<compile_context>
chip_gen: v7x
topology: tpu7x:2x2x1
jax: 0.10.0
libtpu: 0.0.40
codegen_flags: <defaults>
</compile_context>

<pallas_src>
import math

import numpy as np

import jax
import jax.numpy as jnp
from jax import lax
from jax.experimental import pallas as pl
from jax.experimental.pallas import tpu as pltpu

# ----------------------------- configuration -------------------------------
NUM_GRAPHS = 2
NODES_PER_GRAPH = 32
NUM_NODES = NUM_GRAPHS * NODES_PER_GRAPH      # N = 64
NUM_FEATURES = 8                              # F
EMBED_DIM = 4                                 # embedding_dim
HEADS = 4
GATCONV1_DIM = 64                             # per-head out dim of conv1
GATCONV2_DIM = 16                             # per-head out dim of conv2
C1 = HEADS * GATCONV1_DIM                     # 256 (conv1 concat width)
C2 = HEADS * GATCONV2_DIM                     # 64  (conv2 concat width = d_model)
D_MODEL = C2
FF_HID = 32
OUTPUT_DIM = 3
SUBLANE = 8
F32 = jnp.float32

WIDE, QKV, NARROW = "wide", "qkv", "narrow"
BUF_WIDTH = {WIDE: C1, QKV: 3 * D_MODEL, NARROW: D_MODEL}   # 256 / 192 / 64 lanes


# ------------------------- raw (PyTorch-style) params -----------------------
def _raw_param_shapes():
    sh = {}
    sh["Wf"] = (NUM_FEATURES, EMBED_DIM)
    sh["bf"] = (1, EMBED_DIM)
    sh["c1_W"] = (EMBED_DIM, C1)
    sh["c1_asrc"] = (1, C1)
    sh["c1_adst"] = (1, C1)
    sh["c1_b"] = (1, C1)
    sh["c2_W"] = (C1, C2)
    sh["c2_asrc"] = (1, C2)
    sh["c2_adst"] = (1, C2)
    sh["c2_b"] = (1, C2)
    for p in ("enc", "dec_sa", "dec_ca"):
        for nm in ("q", "k", "v", "o"):
            sh[f"{p}_W{nm}"] = (D_MODEL, D_MODEL)
            sh[f"{p}_b{nm}"] = (1, D_MODEL)
    for p, nln in (("enc", 2), ("dec", 3)):
        for i in range(1, nln + 1):
            sh[f"{p}_ln{i}_g"] = (1, D_MODEL)
            sh[f"{p}_ln{i}_b"] = (1, D_MODEL)
        sh[f"{p}_W1"] = (D_MODEL, FF_HID)
        sh[f"{p}_b1"] = (1, FF_HID)
        sh[f"{p}_W2"] = (FF_HID, D_MODEL)
        sh[f"{p}_b2"] = (1, D_MODEL)
    sh["Wfc"] = (D_MODEL, OUTPUT_DIM)
    sh["bfc"] = (1, OUTPUT_DIM)
    return sh


RAW_PARAM_SHAPES = _raw_param_shapes()


# ----------------------- packed (kernel-side) layout -------------------------
def _packed_entries():
    e = [("W1fused", (NUM_FEATURES, C1), WIDE),        # Wf @ c1_W  (feature_fc folded)
         ("c1_asrc_bdT", (HEADS, C1), WIDE),           # block-diag^T attention vectors
         ("c1_adst_bdT", (HEADS, C1), WIDE),
         ("c1_hbias", (1, C1), WIDE),                  # bf @ c1_W
         ("c1_b", (1, C1), WIDE)]
    for p in ("enc", "dec_sa", "dec_ca"):              # fused Q|K|V projections
        e += [(f"{p}_Wqkv", (D_MODEL, 3 * D_MODEL), QKV),
              (f"{p}_bqkv", (1, 3 * D_MODEL), QKV)]
    e += [("c2_W", (C1, C2), NARROW),
          ("c2_asrc_bdT", (HEADS, C2), NARROW),
          ("c2_adst_bdT", (HEADS, C2), NARROW),
          ("c2_b", (1, C2), NARROW)]
    for p in ("enc", "dec_sa", "dec_ca"):
        e += [(f"{p}_Wo", (D_MODEL, D_MODEL), NARROW),
              (f"{p}_bo", (1, D_MODEL), NARROW)]
    for p, nln in (("enc", 2), ("dec", 3)):
        for i in range(1, nln + 1):
            e += [(f"{p}_ln{i}_g", (1, D_MODEL), NARROW),
                  (f"{p}_ln{i}_b", (1, D_MODEL), NARROW)]
        e += [(f"{p}_W1", (D_MODEL, FF_HID), NARROW),
              (f"{p}_b1", (1, FF_HID), NARROW),
              (f"{p}_W2", (FF_HID, D_MODEL), NARROW),
              (f"{p}_b2", (1, D_MODEL), NARROW)]
    e += [("Wfc", (D_MODEL, OUTPUT_DIM), NARROW),
          ("bfc", (1, OUTPUT_DIM), NARROW)]
    return e


PACK_ENTRIES = _packed_entries()


def _build_layout():
    """Row offsets: multi-row matmul operands are sublane(8)-aligned,
    single-row bias/LN vectors are packed densely."""
    layout, nrows = {}, {b: 0 for b in BUF_WIDTH}
    for name, (r, c), buf in PACK_ENTRIES:
        row = nrows[buf]
        if r > 1:
            row = -(-row // SUBLANE) * SUBLANE
        layout[name] = (buf, row, r, c)
        nrows[buf] = row + r
    for b in nrows:
        nrows[b] = max(SUBLANE, -(-nrows[b] // SUBLANE) * SUBLANE)
    return layout, nrows


LAYOUT, BUF_ROWS = _build_layout()


def _block_diag_T(avec, heads, dh):
    """[1, heads*dh] attention vector -> [heads, heads*dh] per-head block-diagonal."""
    m = np.zeros((heads, heads * dh), np.float32)
    a = np.asarray(avec, np.float32).reshape(-1)
    for h in range(heads):
        m[h, h * dh:(h + 1) * dh] = a[h * dh:(h + 1) * dh]
    return m


def pack_params(raw):
    """Host-side packing: fold feature_fc into conv1, fuse Q|K|V, build block-diag
    GAT attention matrices, and lay everything out lane-densely in 3 buffers."""
    p = {k: np.asarray(v, np.float32) for k, v in raw.items()}
    d = {}
    d["W1fused"] = p["Wf"] @ p["c1_W"]                 # exact up to fp reassociation
    d["c1_hbias"] = p["bf"] @ p["c1_W"]
    d["c1_b"] = p["c1_b"]
    d["c1_asrc_bdT"] = _block_diag_T(p["c1_asrc"], HEADS, GATCONV1_DIM)
    d["c1_adst_bdT"] = _block_diag_T(p["c1_adst"], HEADS, GATCONV1_DIM)
    d["c2_W"] = p["c2_W"]
    d["c2_b"] = p["c2_b"]
    d["c2_asrc_bdT"] = _block_diag_T(p["c2_asrc"], HEADS, GATCONV2_DIM)
    d["c2_adst_bdT"] = _block_diag_T(p["c2_adst"], HEADS, GATCONV2_DIM)
    for pref in ("enc", "dec_sa", "dec_ca"):
        d[f"{pref}_Wqkv"] = np.concatenate(
            [p[f"{pref}_Wq"], p[f"{pref}_Wk"], p[f"{pref}_Wv"]], axis=1)
        d[f"{pref}_bqkv"] = np.concatenate(
            [p[f"{pref}_bq"], p[f"{pref}_bk"], p[f"{pref}_bv"]], axis=1)
        d[f"{pref}_Wo"] = p[f"{pref}_Wo"]
        d[f"{pref}_bo"] = p[f"{pref}_bo"]
    for pref, nln in (("enc", 2), ("dec", 3)):
        for i in range(1, nln + 1):
            d[f"{pref}_ln{i}_g"] = p[f"{pref}_ln{i}_g"]
            d[f"{pref}_ln{i}_b"] = p[f"{pref}_ln{i}_b"]
        d[f"{pref}_W1"] = p[f"{pref}_W1"]
        d[f"{pref}_b1"] = p[f"{pref}_b1"]
        d[f"{pref}_W2"] = p[f"{pref}_W2"]
        d[f"{pref}_b2"] = p[f"{pref}_b2"]
    d["Wfc"] = p["Wfc"]
    d["bfc"] = p["bfc"]

    bufs = {b: np.zeros((BUF_ROWS[b], BUF_WIDTH[b]), np.float32) for b in BUF_WIDTH}
    for name, (buf, row, r, c) in LAYOUT.items():
        assert d[name].shape == (r, c), (name, d[name].shape, (r, c))
        bufs[buf][row:row + r, :c] = d[name]
    return tuple(jnp.asarray(bufs[b]) for b in (WIDE, QKV, NARROW))


# ------------------------------ kernel math ----------------------------------
_NT = (((1,), (1,)), ((), ()))   # contract last dims: a @ b.T without a transpose op


def _leaky(v, slope):
    return jnp.maximum(v, slope * v)      # valid for 0 < slope < 1


def _softmax_rows(s, recip):
    s = s - jnp.max(s, axis=-1, keepdims=True)
    p = jnp.exp(s)
    return p * recip(jnp.sum(p, axis=-1, keepdims=True))


def _layernorm(v, g, b, eps=1e-5):
    mu = jnp.mean(v, axis=-1, keepdims=True)
    var = jnp.mean((v - mu) ** 2, axis=-1, keepdims=True)
    return (v - mu) * lax.rsqrt(var + eps) * g + b


def _gat_layer(h, adj_bias, asrc_bdT, adst_bdT, bias, heads, dh, recip, out_scr):
    """Multi-head GATConv (PyG semantics) on a dense additive adjacency bias.
    h is the already-transformed node matrix [N, heads*dh]."""
    s_dst = lax.dot_general(h, adst_bdT, _NT, preferred_element_type=F32)   # [N, H]
    s_src = lax.dot_general(asrc_bdT, h, _NT, preferred_element_type=F32)   # [H, N]
    for hh in range(heads):
        e = _leaky(s_dst[:, hh:hh + 1] + s_src[hh:hh + 1, :], 0.2) + adj_bias
        att = _softmax_rows(e, recip)                                       # [N, N]
        out_scr[:, hh * dh:(hh + 1) * dh] = jnp.dot(
            att, h[:, hh * dh:(hh + 1) * dh], preferred_element_type=F32)
    return out_scr[...] + bias


def _mha(q_in, kv_in, Wqkv, bqkv, Wo, bo, heads, recip, ctx_scr):
    """Multi-head attention with a fused Q|K|V projection and a single Wo matmul
    over the assembled per-head context."""
    d = Wo.shape[0]
    dh = d // heads
    scale = 1.0 / math.sqrt(dh)
    if kv_in is None:                                  # self-attention: one projection
        qkv = jnp.dot(q_in, Wqkv, preferred_element_type=F32) + bqkv
        q, k, v = qkv[:, :d], qkv[:, d:2 * d], qkv[:, 2 * d:]
    else:                                              # cross-attention: q / fused k|v
        q = jnp.dot(q_in, Wqkv[:, :d], preferred_element_type=F32) + bqkv[:, :d]
        kv = jnp.dot(kv_in, Wqkv[:, d:], preferred_element_type=F32) + bqkv[:, d:]
        k, v = kv[:, :d], kv[:, d:]
    for hh in range(heads):
        lo, hi = hh * dh, (hh + 1) * dh
        s = lax.dot_general(q[:, lo:hi], k[:, lo:hi], _NT,
                            preferred_element_type=F32) * scale
        att = _softmax_rows(s, recip)
        ctx_scr[:, lo:hi] = jnp.dot(att, v[:, lo:hi], preferred_element_type=F32)
    return jnp.dot(ctx_scr[...], Wo, preferred_element_type=F32) + bo


def _ffn(x, W1, b1, W2, b2):
    hid = jnp.maximum(jnp.dot(x, W1, preferred_element_type=F32) + b1, 0.0)
    return jnp.dot(hid, W2, preferred_element_type=F32) + b2


# ------------------------------ Pallas kernel --------------------------------
def _kernel(x_ref, adjb_ref, pool_ref, wide_ref, qkv_ref, narrow_ref, out_ref,
            scr256, scr64):
    refs = {WIDE: wide_ref, QKV: qkv_ref, NARROW: narrow_ref}

    def get(name):
        buf, row, r, c = LAYOUT[name]
        return refs[buf][row:row + r, :c]      # static slice of a lane-dense buffer

    recip = lambda v: pl.reciprocal(v, approx=True)   # EUP slot; frees the VALU chain
    x = x_ref[...]
    adj_bias = adjb_ref[...]

    # conv1 (feature_fc folded in) + outer leaky_relu(0.01)
    h1 = jnp.dot(x, get("W1fused"), preferred_element_type=F32) + get("c1_hbias")
    x = _leaky(_gat_layer(h1, adj_bias, get("c1_asrc_bdT"), get("c1_adst_bdT"),
                          get("c1_b"), HEADS, GATCONV1_DIM, recip, scr256), 0.01)
    # conv2 + outer leaky_relu(0.01)
    h2 = jnp.dot(x, get("c2_W"), preferred_element_type=F32)
    x = _leaky(_gat_layer(h2, adj_bias, get("c2_asrc_bdT"), get("c2_adst_bdT"),
                          get("c2_b"), HEADS, GATCONV2_DIM, recip, scr64), 0.01)

    # transformer encoder layer (post-norm, relu FFN, eval-mode dropout = identity)
    attn = _mha(x, None, get("enc_Wqkv"), get("enc_bqkv"), get("enc_Wo"),
                get("enc_bo"), HEADS, recip, scr64)
    mem = _layernorm(x + attn, get("enc_ln1_g"), get("enc_ln1_b"))
    mem = _layernorm(mem + _ffn(mem, get("enc_W1"), get("enc_b1"),
                                get("enc_W2"), get("enc_b2")),
                     get("enc_ln2_g"), get("enc_ln2_b"))

    # transformer decoder layer (self-attn, cross-attn vs encoder memory, FFN)
    t = x
    t = _layernorm(t + _mha(t, None, get("dec_sa_Wqkv"), get("dec_sa_bqkv"),
                            get("dec_sa_Wo"), get("dec_sa_bo"), HEADS, recip, scr64),
                   get("dec_ln1_g"), get("dec_ln1_b"))
    t = _layernorm(t + _mha(t, mem, get("dec_ca_Wqkv"), get("dec_ca_bqkv"),
                            get("dec_ca_Wo"), get("dec_ca_bo"), HEADS, recip, scr64),
                   get("dec_ln2_g"), get("dec_ln2_b"))
    t = _layernorm(t + _ffn(t, get("dec_W1"), get("dec_b1"),
                            get("dec_W2"), get("dec_b2")),
                   get("dec_ln3_g"), get("dec_ln3_b"))

    # global mean pool (1/counts folded into pool_mat host-side) + output fc
    pooled = jnp.dot(pool_ref[...], t, preferred_element_type=F32)
    out_ref[...] = jnp.dot(pooled, get("Wfc"), preferred_element_type=F32) + get("bfc")


def run_pallas(x, adj_bias, pool_mat, wide, qkvbuf, narrow):
    vmem = pltpu.MemorySpace.VMEM
    return pl.pallas_call(
        _kernel,
        out_shape=jax.ShapeDtypeStruct((NUM_GRAPHS, OUTPUT_DIM), jnp.float32),
        in_specs=[pl.BlockSpec(memory_space=vmem)] * 6,
        out_specs=pl.BlockSpec(memory_space=vmem),
        scratch_shapes=[pltpu.VMEM((NUM_NODES, C1), jnp.float32),   # GAT-1 head assembly
                        pltpu.VMEM((NUM_NODES, C2), jnp.float32)],  # GAT-2 / MHA ctx
    )(x, adj_bias, pool_mat, wide, qkvbuf, narrow)


# ----------------------------- pure-JAX reference ----------------------------
def reference_forward(x, adj, pool_mat, p):
    """Straightforward JAX mirror of the PyTorch module (unfused params)."""
    def ln(v, g, b, eps=1e-5):
        mu = jnp.mean(v, -1, keepdims=True)
        var = jnp.mean((v - mu) ** 2, -1, keepdims=True)
        return (v - mu) / jnp.sqrt(var + eps) * g + b

    def gat(x, W, asrc, adst, bias, heads, dh):
        h = x @ W
        outs = []
        for hh in range(heads):
            lo, hi = hh * dh, (hh + 1) * dh
            hs = h[:, lo:hi]
            sd = jnp.sum(hs * adst[:, lo:hi], -1, keepdims=True)    # [N, 1] (target i)
            ss = jnp.sum(hs * asrc[:, lo:hi], -1)[None, :]          # [1, N] (source j)
            e = jax.nn.leaky_relu(sd + ss, 0.2)
            e = jnp.where(adj > 0.0, e, -1e9)
            a = jax.nn.softmax(e, axis=-1)
            outs.append(a @ hs)
        return jnp.concatenate(outs, -1) + bias

    def mha(qin, kvin, pref, heads):
        q = qin @ p[f"{pref}_Wq"] + p[f"{pref}_bq"]
        k = kvin @ p[f"{pref}_Wk"] + p[f"{pref}_bk"]
        v = kvin @ p[f"{pref}_Wv"] + p[f"{pref}_bv"]
        d = q.shape[-1]
        dh = d // heads
        outs = []
        for hh in range(heads):
            lo, hi = hh * dh, (hh + 1) * dh
            s = (q[:, lo:hi] @ k[:, lo:hi].T) / math.sqrt(dh)
            outs.append(jax.nn.softmax(s, axis=-1) @ v[:, lo:hi])
        return jnp.concatenate(outs, -1) @ p[f"{pref}_Wo"] + p[f"{pref}_bo"]

    def ffn(x, pref):
        hid = jnp.maximum(x @ p[f"{pref}_W1"] + p[f"{pref}_b1"], 0.0)
        return hid @ p[f"{pref}_W2"] + p[f"{pref}_b2"]

    x = x @ p["Wf"] + p["bf"]
    x = jax.nn.leaky_relu(gat(x, p["c1_W"], p["c1_asrc"], p["c1_adst"], p["c1_b"],
                              HEADS, GATCONV1_DIM), 0.01)
    x = jax.nn.leaky_relu(gat(x, p["c2_W"], p["c2_asrc"], p["c2_adst"], p["c2_b"],
                              HEADS, GATCONV2_DIM), 0.01)
    mem = ln(x + mha(x, x, "enc", HEADS), p["enc_ln1_g"], p["enc_ln1_b"])
    mem = ln(mem + ffn(mem, "enc"), p["enc_ln2_g"], p["enc_ln2_b"])
    t = x
    t = ln(t + mha(t, t, "dec_sa", HEADS), p["dec_ln1_g"], p["dec_ln1_b"])
    t = ln(t + mha(t, mem, "dec_ca", HEADS), p["dec_ln2_g"], p["dec_ln2_b"])
    t = ln(t + ffn(t, "dec"), p["dec_ln3_g"], p["dec_ln3_b"])
    return pool_mat @ t @ p["Wfc"] + p["bfc"]


# ------------------------------ param init -----------------------------------
def init_params(key):
    params = {}
    keys = jax.random.split(key, len(RAW_PARAM_SHAPES))
    for k, (name, shape) in zip(keys, RAW_PARAM_SHAPES.items()):
        if name.endswith("_g"):   # layernorm gains ~ 1
            params[name] = (jnp.ones(shape, jnp.float32)
                            + 0.01 * jax.random.normal(k, shape, dtype=jnp.float32))
        else:
            params[name] = 0.1 * jax.random.normal(k, shape, dtype=jnp.float32)
    return params


# --------------------------------- main ---------------------------------------
if __name__ == "__main__":
    key = jax.random.PRNGKey(0)
    kx, kp = jax.random.split(key)

    # node features
    x = jax.random.normal(kx, (NUM_NODES, NUM_FEATURES), dtype=jnp.float32)

    # graph batch assignment (block-contiguous graphs)
    batch = jnp.repeat(jnp.arange(NUM_GRAPHS, dtype=jnp.int32), NODES_PER_GRAPH)

    # edge_index: bidirectional ring inside each graph
    edges = []
    for g in range(NUM_GRAPHS):
        off = g * NODES_PER_GRAPH
        for i in range(NODES_PER_GRAPH):
            s, d = off + i, off + (i + 1) % NODES_PER_GRAPH
            edges.append((s, d))
            edges.append((d, s))
    edge_index = jnp.asarray(edges, dtype=jnp.int32).T           # [2, E]

    # dense adjacency mask adj[dst, src] + self loops (PyG GATConv default)
    adj = jnp.zeros((NUM_NODES, NUM_NODES), jnp.float32)
    adj = adj.at[edge_index[1], edge_index[0]].set(1.0)
    adj = jnp.maximum(adj, jnp.eye(NUM_NODES, dtype=jnp.float32))
    # additive edge-mask bias for the kernel (0 on edges, -1e9 elsewhere)
    adj_bias = jnp.where(adj > 0.0, 0.0, -1e9).astype(jnp.float32)

    # mean-pooling matrix with exact 1/counts folded in host-side
    onehot = (batch[None, :] == jnp.arange(NUM_GRAPHS)[:, None]).astype(jnp.float32)
    pool_mat = onehot / jnp.sum(onehot, axis=1, keepdims=True)   # [G, N]

    params = init_params(kp)
    wide_buf, qkv_buf, narrow_buf = pack_params(params)

    out = jax.block_until_ready(
        run_pallas(x, adj_bias, pool_mat, wide_buf, qkv_buf, narrow_buf))
    ref = jax.block_until_ready(jax.jit(reference_forward)(x, adj, pool_mat, params))

    assert out.shape == (NUM_GRAPHS, OUTPUT_DIM)
    # kernel uses approx reciprocal in the softmaxes + fused/folded params
    # -> small drift vs the exact-divide unfused reference
    if not jnp.allclose(out, ref, atol=2e-3, rtol=2e-3):
        raise AssertionError("Pallas kernel output does not match JAX reference")

    print("KERNEL_OK")
</pallas_src>

<mosaic_0001>
module attributes {stable_mosaic.version = 11 : i64} {
  func.func @_kernel(%arg0: memref<64x8xf32, #tpu.memory_space<vmem>>, %arg1: memref<64x64xf32, #tpu.memory_space<vmem>>, %arg2: memref<2x64xf32, #tpu.memory_space<vmem>>, %arg3: memref<24x256xf32, #tpu.memory_space<vmem>>, %arg4: memref<216x192xf32, #tpu.memory_space<vmem>>, %arg5: memref<784x64xf32, #tpu.memory_space<vmem>>, %arg6: memref<2x3xf32, #tpu.memory_space<vmem>>, %arg7: memref<64x256xf32, #tpu.memory_space<vmem>>, %arg8: memref<64x64xf32, #tpu.memory_space<vmem>>) attributes {dimension_semantics = [], scalar_prefetch = 0 : i64, scratch_operands = 2 : i64, tpu.core_type = #tpu.core_type<tc>} {
    %c0 = arith.constant 0 : index
    %c0_0 = arith.constant 0 : index
    %0 = vector.load %arg0[%c0, %c0_0] : memref<64x8xf32, #tpu.memory_space<vmem>>, vector<64x8xf32>
    %c0_1 = arith.constant 0 : index
    %c0_2 = arith.constant 0 : index
    %1 = vector.load %arg1[%c0_1, %c0_2] : memref<64x64xf32, #tpu.memory_space<vmem>>, vector<64x64xf32>
    %c0_3 = arith.constant 0 : index
    %c0_4 = arith.constant 0 : index
    %2 = vector.load %arg3[%c0_3, %c0_4] : memref<24x256xf32, #tpu.memory_space<vmem>>, vector<8x256xf32>
    %cst = arith.constant dense<0.000000e+00> : vector<64x256xf32>
    %3 = tpu.matmul %0, %2, %cst {dimension_numbers = #tpu.dot_dimension_numbers<[1], [0], [0], [1], [0, 0, 1, 1], [], []>} : vector<64x8xf32>, vector<8x256xf32>, vector<64x256xf32> -> vector<64x256xf32>
    %c20 = arith.constant 20 : index
    %c0_5 = arith.constant 0 : index
    %4 = vector.load %arg3[%c20, %c0_5] : memref<24x256xf32, #tpu.memory_space<vmem>>, vector<1x256xf32>
    %5 = vector.broadcast %4 : vector<1x256xf32> to vector<64x256xf32>
    %6 = arith.addf %3, %5 : vector<64x256xf32>
    %c8 = arith.constant 8 : index
    %c0_6 = arith.constant 0 : index
    %7 = vector.load %arg3[%c8, %c0_6] : memref<24x256xf32, #tpu.memory_space<vmem>>, vector<4x256xf32>
    %c16 = arith.constant 16 : index
    %c0_7 = arith.constant 0 : index
    %8 = vector.load %arg3[%c16, %c0_7] : memref<24x256xf32, #tpu.memory_space<vmem>>, vector<4x256xf32>
    %c21 = arith.constant 21 : index
    %c0_8 = arith.constant 0 : index
    %9 = vector.load %arg3[%c21, %c0_8] : memref<24x256xf32, #tpu.memory_space<vmem>>, vector<1x256xf32>
    %cst_9 = arith.constant dense<0.000000e+00> : vector<64x4xf32>
    %10 = tpu.matmul %6, %8, %cst_9 {dimension_numbers = #tpu.dot_dimension_numbers<[1], [1], [0], [0], [0, 0, 1, 0], [], []>} : vector<64x256xf32>, vector<4x256xf32>, vector<64x4xf32> -> vector<64x4xf32>
    %cst_10 = arith.constant dense<0.000000e+00> : vector<4x64xf32>
    %11 = tpu.matmul %7, %6, %cst_10 {dimension_numbers = #tpu.dot_dimension_numbers<[1], [1], [0], [0], [0, 0, 1, 0], [], []>} : vector<4x256xf32>, vector<64x256xf32>, vector<4x64xf32> -> vector<4x64xf32>
    %12 = vector.extract_strided_slice %10 {offsets = [0, 0], sizes = [64, 1], strides = [1, 1]} : vector<64x4xf32> to vector<64x1xf32>
    %13 = vector.extract_strided_slice %11 {offsets = [0, 0], sizes = [1, 64], strides = [1, 1]} : vector<4x64xf32> to vector<1x64xf32>
    %14 = vector.broadcast %12 : vector<64x1xf32> to vector<64x64xf32>
    %15 = vector.broadcast %13 : vector<1x64xf32> to vector<64x64xf32>
    %16 = arith.addf %14, %15 : vector<64x64xf32>
    %cst_11 = arith.constant 2.000000e-01 : f32
    %17 = vector.broadcast %cst_11 : f32 to vector<64x64xf32>
    %18 = arith.mulf %17, %16 : vector<64x64xf32>
    %19 = arith.maximumf %16, %18 : vector<64x64xf32>
    %20 = arith.addf %19, %1 : vector<64x64xf32>
    %cst_12 = arith.constant dense<0xFF800000> : vector<64xf32>
    %21 = vector.multi_reduction <maximumf>, %20, %cst_12 [1] : vector<64x64xf32> to vector<64xf32>
    %22 = vector.shape_cast %21 : vector<64xf32> to vector<64x1xf32>
    %23 = vector.broadcast %22 : vector<64x1xf32> to vector<64x64xf32>
    %24 = arith.subf %20, %23 : vector<64x64xf32>
    %25 = math.exp %24 : vector<64x64xf32>
    %cst_13 = arith.constant dense<0.000000e+00> : vector<64xf32>
    %26 = vector.multi_reduction <add>, %25, %cst_13 [1] : vector<64x64xf32> to vector<64xf32>
    %27 = vector.shape_cast %26 : vector<64xf32> to vector<64x1xf32>
    %28 = tpu.reciprocal %27 {approx = true} : vector<64x1xf32> -> vector<64x1xf32>
    %29 = vector.broadcast %28 : vector<64x1xf32> to vector<64x64xf32>
    %30 = arith.mulf %25, %29 : vector<64x64xf32>
    %31 = vector.extract_strided_slice %6 {offsets = [0, 0], sizes = [64, 64], strides = [1, 1]} : vector<64x256xf32> to vector<64x64xf32>
    %cst_14 = arith.constant dense<0.000000e+00> : vector<64x64xf32>
    %32 = tpu.matmul %30, %31, %cst_14 {dimension_numbers = #tpu.dot_dimension_numbers<[1], [0], [0], [1], [0, 0, 1, 1], [], []>} : vector<64x64xf32>, vector<64x64xf32>, vector<64x64xf32> -> vector<64x64xf32>
    %c0_15 = arith.constant 0 : index
    %c0_16 = arith.constant 0 : index
    %33 = vector.load %arg7[%c0_15, %c0_16] : memref<64x256xf32, #tpu.memory_space<vmem>>, vector<64x64xf32>
    tpu.vector_store %arg7[%c0_15, %c0_16], %32 {strides = array<i32>} : memref<64x256xf32, #tpu.memory_space<vmem>>, vector<64x64xf32>,
    %34 = vector.extract_strided_slice %10 {offsets = [0, 1], sizes = [64, 1], strides = [1, 1]} : vector<64x4xf32> to vector<64x1xf32>
    %35 = vector.extract_strided_slice %11 {offsets = [1, 0], sizes = [1, 64], strides = [1, 1]} : vector<4x64xf32> to vector<1x64xf32>
    %36 = vector.broadcast %34 : vector<64x1xf32> to vector<64x64xf32>
    %37 = vector.broadcast %35 : vector<1x64xf32> to vector<64x64xf32>
    %38 = arith.addf %36, %37 : vector<64x64xf32>
    %cst_17 = arith.constant 2.000000e-01 : f32
    %39 = vector.broadcast %cst_17 : f32 to vector<64x64xf32>
    %40 = arith.mulf %39, %38 : vector<64x64xf32>
    %41 = arith.maximumf %38, %40 : vector<64x64xf32>
    %42 = arith.addf %41, %1 : vector<64x64xf32>
    %cst_18 = arith.constant dense<0xFF800000> : vector<64xf32>
    %43 = vector.multi_reduction <maximumf>, %42, %cst_18 [1] : vector<64x64xf32> to vector<64xf32>
    %44 = vector.shape_cast %43 : vector<64xf32> to vector<64x1xf32>
    %45 = vector.broadcast %44 : vector<64x1xf32> to vector<64x64xf32>
    %46 = arith.subf %42, %45 : vector<64x64xf32>
    %47 = math.exp %46 : vector<64x64xf32>
    %cst_19 = arith.constant dense<0.000000e+00> : vector<64xf32>
    %48 = vector.multi_reduction <add>, %47, %cst_19 [1] : vector<64x64xf32> to vector<64xf32>
    %49 = vector.shape_cast %48 : vector<64xf32> to vector<64x1xf32>
    %50 = tpu.reciprocal %49 {approx = true} : vector<64x1xf32> -> vector<64x1xf32>
    %51 = vector.broadcast %50 : vector<64x1xf32> to vector<64x64xf32>
    %52 = arith.mulf %47, %51 : vector<64x64xf32>
    %53 = vector.extract_strided_slice %6 {offsets = [0, 64], sizes = [64, 64], strides = [1, 1]} : vector<64x256xf32> to vector<64x64xf32>
    %cst_20 = arith.constant dense<0.000000e+00> : vector<64x64xf32>
    %54 = tpu.matmul %52, %53, %cst_20 {dimension_numbers = #tpu.dot_dimension_numbers<[1], [0], [0], [1], [0, 0, 1, 1], [], []>} : vector<64x64xf32>, vector<64x64xf32>, vector<64x64xf32> -> vector<64x64xf32>
    %c0_21 = arith.constant 0 : index
    %c64 = arith.constant 64 : index
    %55 = vector.load %arg7[%c0_21, %c64] : memref<64x256xf32, #tpu.memory_space<vmem>>, vector<64x64xf32>
    tpu.vector_store %arg7[%c0_21, %c64], %54 {strides = array<i32>} : memref<64x256xf32, #tpu.memory_space<vmem>>, vector<64x64xf32>,
    %56 = vector.extract_strided_slice %10 {offsets = [0, 2], sizes = [64, 1], strides = [1, 1]} : vector<64x4xf32> to vector<64x1xf32>
    %57 = vector.extract_strided_slice %11 {offsets = [2, 0], sizes = [1, 64], strides = [1, 1]} : vector<4x64xf32> to vector<1x64xf32>
    %58 = vector.broadcast %56 : vector<64x1xf32> to vector<64x64xf32>
    %59 = vector.broadcast %57 : vector<1x64xf32> to vector<64x64xf32>
    %60 = arith.addf %58, %59 : vector<64x64xf32>
    %cst_22 = arith.constant 2.000000e-01 : f32
    %61 = vector.broadcast %cst_22 : f32 to vector<64x64xf32>
    %62 = arith.mulf %61, %60 : vector<64x64xf32>
    %63 = arith.maximumf %60, %62 : vector<64x64xf32>
    %64 = arith.addf %63, %1 : vector<64x64xf32>
    %cst_23 = arith.constant dense<0xFF800000> : vector<64xf32>
    %65 = vector.multi_reduction <maximumf>, %64, %cst_23 [1] : vector<64x64xf32> to vector<64xf32>
    %66 = vector.shape_cast %65 : vector<64xf32> to vector<64x1xf32>
    %67 = vector.broadcast %66 : vector<64x1xf32> to vector<64x64xf32>
    %68 = arith.subf %64, %67 : vector<64x64xf32>
    %69 = math.exp %68 : vector<64x64xf32>
    %cst_24 = arith.constant dense<0.000000e+00> : vector<64xf32>
    %70 = vector.multi_reduction <add>, %69, %cst_24 [1] : vector<64x64xf32> to vector<64xf32>
    %71 = vector.shape_cast %70 : vector<64xf32> to vector<64x1xf32>
    %72 = tpu.reciprocal %71 {approx = true} : vector<64x1xf32> -> vector<64x1xf32>
    %73 = vector.broadcast %72 : vector<64x1xf32> to vector<64x64xf32>
    %74 = arith.mulf %69, %73 : vector<64x64xf32>
    %75 = vector.extract_strided_slice %6 {offsets = [0, 128], sizes = [64, 64], strides = [1, 1]} : vector<64x256xf32> to vector<64x64xf32>
    %cst_25 = arith.constant dense<0.000000e+00> : vector<64x64xf32>
    %76 = tpu.matmul %74, %75, %cst_25 {dimension_numbers = #tpu.dot_dimension_numbers<[1], [0], [0], [1], [0, 0, 1, 1], [], []>} : vector<64x64xf32>, vector<64x64xf32>, vector<64x64xf32> -> vector<64x64xf32>
    %c0_26 = arith.constant 0 : index
    %c128 = arith.constant 128 : index
    %77 = vector.load %arg7[%c0_26, %c128] : memref<64x256xf32, #tpu.memory_space<vmem>>, vector<64x64xf32>
    tpu.vector_store %arg7[%c0_26, %c128], %76 {strides = array<i32>} : memref<64x256xf32, #tpu.memory_space<vmem>>, vector<64x64xf32>,
    %78 = vector.extract_strided_slice %10 {offsets = [0, 3], sizes = [64, 1], strides = [1, 1]} : vector<64x4xf32> to vector<64x1xf32>
    %79 = vector.extract_strided_slice %11 {offsets = [3, 0], sizes = [1, 64], strides = [1, 1]} : vector<4x64xf32> to vector<1x64xf32>
    %80 = vector.broadcast %78 : vector<64x1xf32> to vector<64x64xf32>
    %81 = vector.broadcast %79 : vector<1x64xf32> to vector<64x64xf32>
    %82 = arith.addf %80, %81 : vector<64x64xf32>
    %cst_27 = arith.constant 2.000000e-01 : f32
    %83 = vector.broadcast %cst_27 : f32 to vector<64x64xf32>
    %84 = arith.mulf %83, %82 : vector<64x64xf32>
    %85 = arith.maximumf %82, %84 : vector<64x64xf32>
    %86 = arith.addf %85, %1 : vector<64x64xf32>
    %cst_28 = arith.constant dense<0xFF800000> : vector<64xf32>
    %87 = vector.multi_reduction <maximumf>, %86, %cst_28 [1] : vector<64x64xf32> to vector<64xf32>
    %88 = vector.shape_cast %87 : vector<64xf32> to vector<64x1xf32>
    %89 = vector.broadcast %88 : vector<64x1xf32> to vector<64x64xf32>
    %90 = arith.subf %86, %89 : vector<64x64xf32>
    %91 = math.exp %90 : vector<64x64xf32>
    %cst_29 = arith.constant dense<0.000000e+00> : vector<64xf32>
    %92 = vector.multi_reduction <add>, %91, %cst_29 [1] : vector<64x64xf32> to vector<64xf32>
    %93 = vector.shape_cast %92 : vector<64xf32> to vector<64x1xf32>
    %94 = tpu.reciprocal %93 {approx = true} : vector<64x1xf32> -> vector<64x1xf32>
    %95 = vector.broadcast %94 : vector<64x1xf32> to vector<64x64xf32>
    %96 = arith.mulf %91, %95 : vector<64x64xf32>
    %97 = vector.extract_strided_slice %6 {offsets = [0, 192], sizes = [64, 64], strides = [1, 1]} : vector<64x256xf32> to vector<64x64xf32>
    %cst_30 = arith.constant dense<0.000000e+00> : vector<64x64xf32>
    %98 = tpu.matmul %96, %97, %cst_30 {dimension_numbers = #tpu.dot_dimension_numbers<[1], [0], [0], [1], [0, 0, 1, 1], [], []>} : vector<64x64xf32>, vector<64x64xf32>, vector<64x64xf32> -> vector<64x64xf32>
    %c0_31 = arith.constant 0 : index
    %c192 = arith.constant 192 : index
    %99 = vector.load %arg7[%c0_31, %c192] : memref<64x256xf32, #tpu.memory_space<vmem>>, vector<64x64xf32>
    tpu.vector_store %arg7[%c0_31, %c192], %98 {strides = array<i32>} : memref<64x256xf32, #tpu.memory_space<vmem>>, vector<64x64xf32>,
    %c0_32 = arith.constant 0 : index
    %c0_33 = arith.constant 0 : index
    %100 = vector.load %arg7[%c0_32, %c0_33] : memref<64x256xf32, #tpu.memory_space<vmem>>, vector<64x256xf32>
    %101 = vector.broadcast %9 : vector<1x256xf32> to vector<64x256xf32>
    %102 = arith.addf %100, %101 : vector<64x256xf32>
    %cst_34 = arith.constant 0.00999999977 : f32
    %103 = vector.broadcast %cst_34 : f32 to vector<64x256xf32>
    %104 = arith.mulf %103, %102 : vector<64x256xf32>
    %105 = arith.maximumf %102, %104 : vector<64x256xf32>
    %c0_35 = arith.constant 0 : index
    %c0_36 = arith.constant 0 : index
    %106 = vector.load %arg5[%c0_35, %c0_36] : memref<784x64xf32, #tpu.memory_space<vmem>>, vector<256x64xf32>
    %cst_37 = arith.constant dense<0.000000e+00> : vector<64x64xf32>
    %107 = tpu.matmul %105, %106, %cst_37 {dimension_numbers = #tpu.dot_dimension_numbers<[1], [0], [0], [1], [0, 0, 1, 1], [], []>} : vector<64x256xf32>, vector<256x64xf32>, vector<64x64xf32> -> vector<64x64xf32>
    %c256 = arith.constant 256 : index
    %c0_38 = arith.constant 0 : index
    %108 = vector.load %arg5[%c256, %c0_38] : memref<784x64xf32, #tpu.memory_space<vmem>>, vector<4x64xf32>
    %c264 = arith.constant 264 : index
    %c0_39 = arith.constant 0 : index
    %109 = vector.load %arg5[%c264, %c0_39] : memref<784x64xf32, #tpu.memory_space<vmem>>, vector<4x64xf32>
    %c268 = arith.constant 268 : index
    %c0_40 = arith.constant 0 : index
    %110 = vector.load %arg5[%c268, %c0_40] : memref<784x64xf32, #tpu.memory_space<vmem>>, vector<1x64xf32>
    %cst_41 = arith.constant dense<0.000000e+00> : vector<64x4xf32>
    %111 = tpu.matmul %107, %109, %cst_41 {dimension_numbers = #tpu.dot_dimension_numbers<[1], [1], [0], [0], [0, 0, 1, 0], [], []>} : vector<64x64xf32>, vector<4x64xf32>, vector<64x4xf32> -> vector<64x4xf32>
    %cst_42 = arith.constant dense<0.000000e+00> : vector<4x64xf32>
    %112 = tpu.matmul %108, %107, %cst_42 {dimension_numbers = #tpu.dot_dimension_numbers<[1], [1], [0], [0], [0, 0, 1, 0], [], []>} : vector<4x64xf32>, vector<64x64xf32>, vector<4x64xf32> -> vector<4x64xf32>
    %113 = vector.extract_strided_slice %111 {offsets = [0, 0], sizes = [64, 1], strides = [1, 1]} : vector<64x4xf32> to vector<64x1xf32>
    %114 = vector.extract_strided_slice %112 {offsets = [0, 0], sizes = [1, 64], strides = [1, 1]} : vector<4x64xf32> to vector<1x64xf32>
    %115 = vector.broadcast %113 : vector<64x1xf32> to vector<64x64xf32>
    %116 = vector.broadcast %114 : vector<1x64xf32> to vector<64x64xf32>
    %117 = arith.addf %115, %116 : vector<64x64xf32>
    %cst_43 = arith.constant 2.000000e-01 : f32
    %118 = vector.broadcast %cst_43 : f32 to vector<64x64xf32>
    %119 = arith.mulf %118, %117 : vector<64x64xf32>
    %120 = arith.maximumf %117, %119 : vector<64x64xf32>
    %121 = arith.addf %120, %1 : vector<64x64xf32>
    %cst_44 = arith.constant dense<0xFF800000> : vector<64xf32>
    %122 = vector.multi_reduction <maximumf>, %121, %cst_44 [1] : vector<64x64xf32> to vector<64xf32>
    %123 = vector.shape_cast %122 : vector<64xf32> to vector<64x1xf32>
    %124 = vector.broadcast %123 : vector<64x1xf32> to vector<64x64xf32>
    %125 = arith.subf %121, %124 : vector<64x64xf32>
    %126 = math.exp %125 : vector<64x64xf32>
    %cst_45 = arith.constant dense<0.000000e+00> : vector<64xf32>
    %127 = vector.multi_reduction <add>, %126, %cst_45 [1] : vector<64x64xf32> to vector<64xf32>
    %128 = vector.shape_cast %127 : vector<64xf32> to vector<64x1xf32>
    %129 = tpu.reciprocal %128 {approx = true} : vector<64x1xf32> -> vector<64x1xf32>
    %130 = vector.broadcast %129 : vector<64x1xf32> to vector<64x64xf32>
    %131 = arith.mulf %126, %130 : vector<64x64xf32>
    %132 = vector.extract_strided_slice %107 {offsets = [0, 0], sizes = [64, 16], strides = [1, 1]} : vector<64x64xf32> to vector<64x16xf32>
    %cst_46 = arith.constant dense<0.000000e+00> : vector<64x16xf32>
    %133 = tpu.matmul %131, %132, %cst_46 {dimension_numbers = #tpu.dot_dimension_numbers<[1], [0], [0], [1], [0, 0, 1, 1], [], []>} : vector<64x64xf32>, vector<64x16xf32>, vector<64x16xf32> -> vector<64x16xf32>
    %c0_47 = arith.constant 0 : index
    %c0_48 = arith.constant 0 : index
    %134 = vector.load %arg8[%c0_47, %c0_48] : memref<64x64xf32, #tpu.memory_space<vmem>>, vector<64x16xf32>
    tpu.vector_store %arg8[%c0_47, %c0_48], %133 {strides = array<i32>} : memref<64x64xf32, #tpu.memory_space<vmem>>, vector<64x16xf32>,
    %135 = vector.extract_strided_slice %111 {offsets = [0, 1], sizes = [64, 1], strides = [1, 1]} : vector<64x4xf32> to vector<64x1xf32>
    %136 = vector.extract_strided_slice %112 {offsets = [1, 0], sizes = [1, 64], strides = [1, 1]} : vector<4x64xf32> to vector<1x64xf32>
    %137 = vector.broadcast %135 : vector<64x1xf32> to vector<64x64xf32>
    %138 = vector.broadcast %136 : vector<1x64xf32> to vector<64x64xf32>
    %139 = arith.addf %137, %138 : vector<64x64xf32>
    %cst_49 = arith.constant 2.000000e-01 : f32
    %140 = vector.broadcast %cst_49 : f32 to vector<64x64xf32>
    %141 = arith.mulf %140, %139 : vector<64x64xf32>
    %142 = arith.maximumf %139, %141 : vector<64x64xf32>
    %143 = arith.addf %142, %1 : vector<64x64xf32>
    %cst_50 = arith.constant dense<0xFF800000> : vector<64xf32>
    %144 = vector.multi_reduction <maximumf>, %143, %cst_50 [1] : vector<64x64xf32> to vector<64xf32>
    %145 = vector.shape_cast %144 : vector<64xf32> to vector<64x1xf32>
    %146 = vector.broadcast %145 : vector<64x1xf32> to vector<64x64xf32>
    %147 = arith.subf %143, %146 : vector<64x64xf32>
    %148 = math.exp %147 : vector<64x64xf32>
    %cst_51 = arith.constant dense<0.000000e+00> : vector<64xf32>
    %149 = vector.multi_reduction <add>, %148, %cst_51 [1] : vector<64x64xf32> to vector<64xf32>
    %150 = vector.shape_cast %149 : vector<64xf32> to vector<64x1xf32>
    %151 = tpu.reciprocal %150 {approx = true} : vector<64x1xf32> -> vector<64x1xf32>
    %152 = vector.broadcast %151 : vector<64x1xf32> to vector<64x64xf32>
    %153 = arith.mulf %148, %152 : vector<64x64xf32>
    %154 = vector.extract_strided_slice %107 {offsets = [0, 16], sizes = [64, 16], strides = [1, 1]} : vector<64x64xf32> to vector<64x16xf32>
    %cst_52 = arith.constant dense<0.000000e+00> : vector<64x16xf32>
    %155 = tpu.matmul %153, %154, %cst_52 {dimension_numbers = #tpu.dot_dimension_numbers<[1], [0], [0], [1], [0, 0, 1, 1], [], []>} : vector<64x64xf32>, vector<64x16xf32>, vector<64x16xf32> -> vector<64x16xf32>
    %c0_53 = arith.constant 0 : index
    %c16_54 = arith.constant 16 : index
    %156 = vector.load %arg8[%c0_53, %c16_54] : memref<64x64xf32, #tpu.memory_space<vmem>>, vector<64x16xf32>
    tpu.vector_store %arg8[%c0_53, %c16_54], %155 {strides = array<i32>} : memref<64x64xf32, #tpu.memory_space<vmem>>, vector<64x16xf32>,
    %157 = vector.extract_strided_slice %111 {offsets = [0, 2], sizes = [64, 1], strides = [1, 1]} : vector<64x4xf32> to vector<64x1xf32>
    %158 = vector.extract_strided_slice %112 {offsets = [2, 0], sizes = [1, 64], strides = [1, 1]} : vector<4x64xf32> to vector<1x64xf32>
    %159 = vector.broadcast %157 : vector<64x1xf32> to vector<64x64xf32>
    %160 = vector.broadcast %158 : vector<1x64xf32> to vector<64x64xf32>
    %161 = arith.addf %159, %160 : vector<64x64xf32>
    %cst_55 = arith.constant 2.000000e-01 : f32
    %162 = vector.broadcast %cst_55 : f32 to vector<64x64xf32>
    %163 = arith.mulf %162, %161 : vector<64x64xf32>
    %164 = arith.maximumf %161, %163 : vector<64x64xf32>
    %165 = arith.addf %164, %1 : vector<64x64xf32>
    %cst_56 = arith.constant dense<0xFF800000> : vector<64xf32>
    %166 = vector.multi_reduction <maximumf>, %165, %cst_56 [1] : vector<64x64xf32> to vector<64xf32>
    %167 = vector.shape_cast %166 : vector<64xf32> to vector<64x1xf32>
    %168 = vector.broadcast %167 : vector<64x1xf32> to vector<64x64xf32>
    %169 = arith.subf %165, %168 : vector<64x64xf32>
    %170 = math.exp %169 : vector<64x64xf32>
    %cst_57 = arith.constant dense<0.000000e+00> : vector<64xf32>
    %171 = vector.multi_reduction <add>, %170, %cst_57 [1] : vector<64x64xf32> to vector<64xf32>
    %172 = vector.shape_cast %171 : vector<64xf32> to vector<64x1xf32>
    %173 = tpu.reciprocal %172 {approx = true} : vector<64x1xf32> -> vector<64x1xf32>
    %174 = vector.broadcast %173 : vector<64x1xf32> to vector<64x64xf32>
    %175 = arith.mulf %170, %174 : vector<64x64xf32>
    %176 = vector.extract_strided_slice %107 {offsets = [0, 32], sizes = [64, 16], strides = [1, 1]} : vector<64x64xf32> to vector<64x16xf32>
    %cst_58 = arith.constant dense<0.000000e+00> : vector<64x16xf32>
    %177 = tpu.matmul %175, %176, %cst_58 {dimension_numbers = #tpu.dot_dimension_numbers<[1], [0], [0], [1], [0, 0, 1, 1], [], []>} : vector<64x64xf32>, vector<64x16xf32>, vector<64x16xf32> -> vector<64x16xf32>
    %c0_59 = arith.constant 0 : index
    %c32 = arith.constant 32 : index
    %178 = vector.load %arg8[%c0_59, %c32] : memref<64x64xf32, #tpu.memory_space<vmem>>, vector<64x16xf32>
    tpu.vector_store %arg8[%c0_59, %c32], %177 {strides = array<i32>} : memref<64x64xf32, #tpu.memory_space<vmem>>, vector<64x16xf32>,
    %179 = vector.extract_strided_slice %111 {offsets = [0, 3], sizes = [64, 1], strides = [1, 1]} : vector<64x4xf32> to vector<64x1xf32>
    %180 = vector.extract_strided_slice %112 {offsets = [3, 0], sizes = [1, 64], strides = [1, 1]} : vector<4x64xf32> to vector<1x64xf32>
    %181 = vector.broadcast %179 : vector<64x1xf32> to vector<64x64xf32>
    %182 = vector.broadcast %180 : vector<1x64xf32> to vector<64x64xf32>
    %183 = arith.addf %181, %182 : vector<64x64xf32>
    %cst_60 = arith.constant 2.000000e-01 : f32
    %184 = vector.broadcast %cst_60 : f32 to vector<64x64xf32>
    %185 = arith.mulf %184, %183 : vector<64x64xf32>
    %186 = arith.maximumf %183, %185 : vector<64x64xf32>
    %187 = arith.addf %186, %1 : vector<64x64xf32>
    %cst_61 = arith.constant dense<0xFF800000> : vector<64xf32>
    %188 = vector.multi_reduction <maximumf>, %187, %cst_61 [1] : vector<64x64xf32> to vector<64xf32>
    %189 = vector.shape_cast %188 : vector<64xf32> to vector<64x1xf32>
    %190 = vector.broadcast %189 : vector<64x1xf32> to vector<64x64xf32>
    %191 = arith.subf %187, %190 : vector<64x64xf32>
    %192 = math.exp %191 : vector<64x64xf32>
    %cst_62 = arith.constant dense<0.000000e+00> : vector<64xf32>
    %193 = vector.multi_reduction <add>, %192, %cst_62 [1] : vector<64x64xf32> to vector<64xf32>
    %194 = vector.shape_cast %193 : vector<64xf32> to vector<64x1xf32>
    %195 = tpu.reciprocal %194 {approx = true} : vector<64x1xf32> -> vector<64x1xf32>
    %196 = vector.broadcast %195 : vector<64x1xf32> to vector<64x64xf32>
    %197 = arith.mulf %192, %196 : vector<64x64xf32>
    %198 = vector.extract_strided_slice %107 {offsets = [0, 48], sizes = [64, 16], strides = [1, 1]} : vector<64x64xf32> to vector<64x16xf32>
    %cst_63 = arith.constant dense<0.000000e+00> : vector<64x16xf32>
    %199 = tpu.matmul %197, %198, %cst_63 {dimension_numbers = #tpu.dot_dimension_numbers<[1], [0], [0], [1], [0, 0, 1, 1], [], []>} : vector<64x64xf32>, vector<64x16xf32>, vector<64x16xf32> -> vector<64x16xf32>
    %c0_64 = arith.constant 0 : index
    %c48 = arith.constant 48 : index
    %200 = vector.load %arg8[%c0_64, %c48] : memref<64x64xf32, #tpu.memory_space<vmem>>, vector<64x16xf32>
    tpu.vector_store %arg8[%c0_64, %c48], %199 {strides = array<i32>} : memref<64x64xf32, #tpu.memory_space<vmem>>, vector<64x16xf32>,
    %c0_65 = arith.constant 0 : index
    %c0_66 = arith.constant 0 : index
    %201 = vector.load %arg8[%c0_65, %c0_66] : memref<64x64xf32, #tpu.memory_space<vmem>>, vector<64x64xf32>
    %202 = vector.broadcast %110 : vector<1x64xf32> to vector<64x64xf32>
    %203 = arith.addf %201, %202 : vector<64x64xf32>
    %cst_67 = arith.constant 0.00999999977 : f32
    %204 = vector.broadcast %cst_67 : f32 to vector<64x64xf32>
    %205 = arith.mulf %204, %203 : vector<64x64xf32>
    %206 = arith.maximumf %203, %205 : vector<64x64xf32>
    %c0_68 = arith.constant 0 : index
    %c0_69 = arith.constant 0 : index
    %207 = vector.load %arg4[%c0_68, %c0_69] : memref<216x192xf32, #tpu.memory_space<vmem>>, vector<64x192xf32>
    %c64_70 = arith.constant 64 : index
    %c0_71 = arith.constant 0 : index
    %208 = vector.load %arg4[%c64_70, %c0_71] : memref<216x192xf32, #tpu.memory_space<vmem>>, vector<1x192xf32>
    %c272 = arith.constant 272 : index
    %c0_72 = arith.constant 0 : index
    %209 = vector.load %arg5[%c272, %c0_72] : memref<784x64xf32, #tpu.memory_space<vmem>>, vector<64x64xf32>
    %c336 = arith.constant 336 : index
    %c0_73 = arith.constant 0 : index
    %210 = vector.load %arg5[%c336, %c0_73] : memref<784x64xf32, #tpu.memory_space<vmem>>, vector<1x64xf32>
    %cst_74 = arith.constant dense<0.000000e+00> : vector<64x192xf32>
    %211 = tpu.matmul %206, %207, %cst_74 {dimension_numbers = #tpu.dot_dimension_numbers<[1], [0], [0], [1], [0, 0, 1, 1], [], []>} : vector<64x64xf32>, vector<64x192xf32>, vector<64x192xf32> -> vector<64x192xf32>
    %212 = vector.broadcast %208 : vector<1x192xf32> to vector<64x192xf32>
    %213 = arith.addf %211, %212 : vector<64x192xf32>
    %214 = vector.extract_strided_slice %213 {offsets = [0, 0], sizes = [64, 64], strides = [1, 1]} : vector<64x192xf32> to vector<64x64xf32>
    %215 = vector.extract_strided_slice %213 {offsets = [0, 64], sizes = [64, 64], strides = [1, 1]} : vector<64x192xf32> to vector<64x64xf32>
    %216 = vector.extract_strided_slice %213 {offsets = [0, 128], sizes = [64, 64], strides = [1, 1]} : vector<64x192xf32> to vector<64x64xf32>
    %217 = vector.extract_strided_slice %214 {offsets = [0, 0], sizes = [64, 16], strides = [1, 1]} : vector<64x64xf32> to vector<64x16xf32>
    %218 = vector.extract_strided_slice %215 {offsets = [0, 0], sizes = [64, 16], strides = [1, 1]} : vector<64x64xf32> to vector<64x16xf32>
    %cst_75 = arith.constant dense<0.000000e+00> : vector<64x64xf32>
    %219 = tpu.matmul %217, %218, %cst_75 {dimension_numbers = #tpu.dot_dimension_numbers<[1], [1], [0], [0], [0, 0, 1, 0], [], []>} : vector<64x16xf32>, vector<64x16xf32>, vector<64x64xf32> -> vector<64x64xf32>
    %cst_76 = arith.constant 2.500000e-01 : f32
    %220 = vector.broadcast %cst_76 : f32 to vector<64x64xf32>
    %221 = arith.mulf %219, %220 : vector<64x64xf32>
    %cst_77 = arith.constant dense<0xFF800000> : vector<64xf32>
    %222 = vector.multi_reduction <maximumf>, %221, %cst_77 [1] : vector<64x64xf32> to vector<64xf32>
    %223 = vector.shape_cast %222 : vector<64xf32> to vector<64x1xf32>
    %224 = vector.broadcast %223 : vector<64x1xf32> to vector<64x64xf32>
    %225 = arith.subf %221, %224 : vector<64x64xf32>
    %226 = math.exp %225 : vector<64x64xf32>
    %cst_78 = arith.constant dense<0.000000e+00> : vector<64xf32>
    %227 = vector.multi_reduction <add>, %226, %cst_78 [1] : vector<64x64xf32> to vector<64xf32>
    %228 = vector.shape_cast %227 : vector<64xf32> to vector<64x1xf32>
    %229 = tpu.reciprocal %228 {approx = true} : vector<64x1xf32> -> vector<64x1xf32>
    %230 = vector.broadcast %229 : vector<64x1xf32> to vector<64x64xf32>
    %231 = arith.mulf %226, %230 : vector<64x64xf32>
    %232 = vector.extract_strided_slice %216 {offsets = [0, 0], sizes = [64, 16], strides = [1, 1]} : vector<64x64xf32> to vector<64x16xf32>
    %cst_79 = arith.constant dense<0.000000e+00> : vector<64x16xf32>
    %233 = tpu.matmul %231, %232, %cst_79 {dimension_numbers = #tpu.dot_dimension_numbers<[1], [0], [0], [1], [0, 0, 1, 1], [], []>} : vector<64x64xf32>, vector<64x16xf32>, vector<64x16xf32> -> vector<64x16xf32>
    %c0_80 = arith.constant 0 : index
    %c0_81 = arith.constant 0 : index
    %234 = vector.load %arg8[%c0_80, %c0_81] : memref<64x64xf32, #tpu.memory_space<vmem>>, vector<64x16xf32>
    tpu.vector_store %arg8[%c0_80, %c0_81], %233 {strides = array<i32>} : memref<64x64xf32, #tpu.memory_space<vmem>>, vector<64x16xf32>,
    %235 = vector.extract_strided_slice %214 {offsets = [0, 16], sizes = [64, 16], strides = [1, 1]} : vector<64x64xf32> to vector<64x16xf32>
    %236 = vector.extract_strided_slice %215 {offsets = [0, 16], sizes = [64, 16], strides = [1, 1]} : vector<64x64xf32> to vector<64x16xf32>
    %cst_82 = arith.constant dense<0.000000e+00> : vector<64x64xf32>
    %237 = tpu.matmul %235, %236, %cst_82 {dimension_numbers = #tpu.dot_dimension_numbers<[1], [1], [0], [0], [0, 0, 1, 0], [], []>} : vector<64x16xf32>, vector<64x16xf32>, vector<64x64xf32> -> vector<64x64xf32>
    %cst_83 = arith.constant 2.500000e-01 : f32
    %238 = vector.broadcast %cst_83 : f32 to vector<64x64xf32>
    %239 = arith.mulf %237, %238 : vector<64x64xf32>
    %cst_84 = arith.constant dense<0xFF800000> : vector<64xf32>
    %240 = vector.multi_reduction <maximumf>, %239, %cst_84 [1] : vector<64x64xf32> to vector<64xf32>
    %241 = vector.shape_cast %240 : vector<64xf32> to vector<64x1xf32>
    %242 = vector.broadcast %241 : vector<64x1xf32> to vector<64x64xf32>
    %243 = arith.subf %239, %242 : vector<64x64xf32>
    %244 = math.exp %243 : vector<64x64xf32>
    %cst_85 = arith.constant dense<0.000000e+00> : vector<64xf32>
    %245 = vector.multi_reduction <add>, %244, %cst_85 [1] : vector<64x64xf32> to vector<64xf32>
    %246 = vector.shape_cast %245 : vector<64xf32> to vector<64x1xf32>
    %247 = tpu.reciprocal %246 {approx = true} : vector<64x1xf32> -> vector<64x1xf32>
    %248 = vector.broadcast %247 : vector<64x1xf32> to vector<64x64xf32>
    %249 = arith.mulf %244, %248 : vector<64x64xf32>
    %250 = vector.extract_strided_slice %216 {offsets = [0, 16], sizes = [64, 16], strides = [1, 1]} : vector<64x64xf32> to vector<64x16xf32>
    %cst_86 = arith.constant dense<0.000000e+00> : vector<64x16xf32>
    %251 = tpu.matmul %249, %250, %cst_86 {dimension_numbers = #tpu.dot_dimension_numbers<[1], [0], [0], [1], [0, 0, 1, 1], [], []>} : vector<64x64xf32>, vector<64x16xf32>, vector<64x16xf32> -> vector<64x16xf32>
    %c0_87 = arith.constant 0 : index
    %c16_88 = arith.constant 16 : index
    %252 = vector.load %arg8[%c0_87, %c16_88] : memref<64x64xf32, #tpu.memory_space<vmem>>, vector<64x16xf32>
    tpu.vector_store %arg8[%c0_87, %c16_88], %251 {strides = array<i32>} : memref<64x64xf32, #tpu.memory_space<vmem>>, vector<64x16xf32>,
    %253 = vector.extract_strided_slice %214 {offsets = [0, 32], sizes = [64, 16], strides = [1, 1]} : vector<64x64xf32> to vector<64x16xf32>
    %254 = vector.extract_strided_slice %215 {offsets = [0, 32], sizes = [64, 16], strides = [1, 1]} : vector<64x64xf32> to vector<64x16xf32>
    %cst_89 = arith.constant dense<0.000000e+00> : vector<64x64xf32>
    %255 = tpu.matmul %253, %254, %cst_89 {dimension_numbers = #tpu.dot_dimension_numbers<[1], [1], [0], [0], [0, 0, 1, 0], [], []>} : vector<64x16xf32>, vector<64x16xf32>, vector<64x64xf32> -> vector<64x64xf32>
    %cst_90 = arith.constant 2.500000e-01 : f32
    %256 = vector.broadcast %cst_90 : f32 to vector<64x64xf32>
    %257 = arith.mulf %255, %256 : vector<64x64xf32>
    %cst_91 = arith.constant dense<0xFF800000> : vector<64xf32>
    %258 = vector.multi_reduction <maximumf>, %257, %cst_91 [1] : vector<64x64xf32> to vector<64xf32>
    %259 = vector.shape_cast %258 : vector<64xf32> to vector<64x1xf32>
    %260 = vector.broadcast %259 : vector<64x1xf32> to vector<64x64xf32>
    %261 = arith.subf %257, %260 : vector<64x64xf32>
    %262 = math.exp %261 : vector<64x64xf32>
    %cst_92 = arith.constant dense<0.000000e+00> : vector<64xf32>
    %263 = vector.multi_reduction <add>, %262, %cst_92 [1] : vector<64x64xf32> to vector<64xf32>
    %264 = vector.shape_cast %263 : vector<64xf32> to vector<64x1xf32>
    %265 = tpu.reciprocal %264 {approx = true} : vector<64x1xf32> -> vector<64x1xf32>
    %266 = vector.broadcast %265 : vector<64x1xf32> to vector<64x64xf32>
    %267 = arith.mulf %262, %266 : vector<64x64xf32>
    %268 = vector.extract_strided_slice %216 {offsets = [0, 32], sizes = [64, 16], strides = [1, 1]} : vector<64x64xf32> to vector<64x16xf32>
    %cst_93 = arith.constant dense<0.000000e+00> : vector<64x16xf32>
    %269 = tpu.matmul %267, %268, %cst_93 {dimension_numbers = #tpu.dot_dimension_numbers<[1], [0], [0], [1], [0, 0, 1, 1], [], []>} : vector<64x64xf32>, vector<64x16xf32>, vector<64x16xf32> -> vector<64x16xf32>
    %c0_94 = arith.constant 0 : index
    %c32_95 = arith.constant 32 : index
    %270 = vector.load %arg8[%c0_94, %c32_95] : memref<64x64xf32, #tpu.memory_space<vmem>>, vector<64x16xf32>
    tpu.vector_store %arg8[%c0_94, %c32_95], %269 {strides = array<i32>} : memref<64x64xf32, #tpu.memory_space<vmem>>, vector<64x16xf32>,
    %271 = vector.extract_strided_slice %214 {offsets = [0, 48], sizes = [64, 16], strides = [1, 1]} : vector<64x64xf32> to vector<64x16xf32>
    %272 = vector.extract_strided_slice %215 {offsets = [0, 48], sizes = [64, 16], strides = [1, 1]} : vector<64x64xf32> to vector<64x16xf32>
    %cst_96 = arith.constant dense<0.000000e+00> : vector<64x64xf32>
    %273 = tpu.matmul %271, %272, %cst_96 {dimension_numbers = #tpu.dot_dimension_numbers<[1], [1], [0], [0], [0, 0, 1, 0], [], []>} : vector<64x16xf32>, vector<64x16xf32>, vector<64x64xf32> -> vector<64x64xf32>
    %cst_97 = arith.constant 2.500000e-01 : f32
    %274 = vector.broadcast %cst_97 : f32 to vector<64x64xf32>
    %275 = arith.mulf %273, %274 : vector<64x64xf32>
    %cst_98 = arith.constant dense<0xFF800000> : vector<64xf32>
    %276 = vector.multi_reduction <maximumf>, %275, %cst_98 [1] : vector<64x64xf32> to vector<64xf32>
    %277 = vector.shape_cast %276 : vector<64xf32> to vector<64x1xf32>
    %278 = vector.broadcast %277 : vector<64x1xf32> to vector<64x64xf32>
    %279 = arith.subf %275, %278 : vector<64x64xf32>
    %280 = math.exp %279 : vector<64x64xf32>
    %cst_99 = arith.constant dense<0.000000e+00> : vector<64xf32>
    %281 = vector.multi_reduction <add>, %280, %cst_99 [1] : vector<64x64xf32> to vector<64xf32>
    %282 = vector.shape_cast %281 : vector<64xf32> to vector<64x1xf32>
    %283 = tpu.reciprocal %282 {approx = true} : vector<64x1xf32> -> vector<64x1xf32>
    %284 = vector.broadcast %283 : vector<64x1xf32> to vector<64x64xf32>
    %285 = arith.mulf %280, %284 : vector<64x64xf32>
    %286 = vector.extract_strided_slice %216 {offsets = [0, 48], sizes = [64, 16], strides = [1, 1]} : vector<64x64xf32> to vector<64x16xf32>
    %cst_100 = arith.constant dense<0.000000e+00> : vector<64x16xf32>
    %287 = tpu.matmul %285, %286, %cst_100 {dimension_numbers = #tpu.dot_dimension_numbers<[1], [0], [0], [1], [0, 0, 1, 1], [], []>} : vector<64x64xf32>, vector<64x16xf32>, vector<64x16xf32> -> vector<64x16xf32>
    %c0_101 = arith.constant 0 : index
    %c48_102 = arith.constant 48 : index
    %288 = vector.load %arg8[%c0_101, %c48_102] : memref<64x64xf32, #tpu.memory_space<vmem>>, vector<64x16xf32>
    tpu.vector_store %arg8[%c0_101, %c48_102], %287 {strides = array<i32>} : memref<64x64xf32, #tpu.memory_space<vmem>>, vector<64x16xf32>,
    %c0_103 = arith.constant 0 : index
    %c0_104 = arith.constant 0 : index
    %289 = vector.load %arg8[%c0_103, %c0_104] : memref<64x64xf32, #tpu.memory_space<vmem>>, vector<64x64xf32>
    %cst_105 = arith.constant dense<0.000000e+00> : vector<64x64xf32>
    %290 = tpu.matmul %289, %209, %cst_105 {dimension_numbers = #tpu.dot_dimension_numbers<[1], [0], [0], [1], [0, 0, 1, 1], [], []>} : vector<64x64xf32>, vector<64x64xf32>, vector<64x64xf32> -> vector<64x64xf32>
    %291 = vector.broadcast %210 : vector<1x64xf32> to vector<64x64xf32>
    %292 = arith.addf %290, %291 : vector<64x64xf32>
    %293 = arith.addf %206, %292 : vector<64x64xf32>
    %c481 = arith.constant 481 : index
    %c0_106 = arith.constant 0 : index
    %294 = vector.load %arg5[%c481, %c0_106] : memref<784x64xf32, #tpu.memory_space<vmem>>, vector<1x64xf32>
    %c482 = arith.constant 482 : index
    %c0_107 = arith.constant 0 : index
    %295 = vector.load %arg5[%c482, %c0_107] : memref<784x64xf32, #tpu.memory_space<vmem>>, vector<1x64xf32>
    %cst_108 = arith.constant dense<0.000000e+00> : vector<64xf32>
    %296 = vector.multi_reduction <add>, %293, %cst_108 [1] : vector<64x64xf32> to vector<64xf32>
    %297 = vector.shape_cast %296 : vector<64xf32> to vector<64x1xf32>
    %cst_109 = arith.constant 6.400000e+01 : f32
    %298 = vector.broadcast %cst_109 : f32 to vector<64x1xf32>
    %299 = arith.divf %297, %298 : vector<64x1xf32>
    %300 = vector.broadcast %299 : vector<64x1xf32> to vector<64x64xf32>
    %301 = arith.subf %293, %300 : vector<64x64xf32>
    %302 = arith.mulf %301, %301 : vector<64x64xf32>
    %cst_110 = arith.constant dense<0.000000e+00> : vector<64xf32>
    %303 = vector.multi_reduction <add>, %302, %cst_110 [1] : vector<64x64xf32> to vector<64xf32>
    %304 = vector.shape_cast %303 : vector<64xf32> to vector<64x1xf32>
    %cst_111 = arith.constant 6.400000e+01 : f32
    %305 = vector.broadcast %cst_111 : f32 to vector<64x1xf32>
    %306 = arith.divf %304, %305 : vector<64x1xf32>
    %307 = vector.broadcast %299 : vector<64x1xf32> to vector<64x64xf32>
    %308 = arith.subf %293, %307 : vector<64x64xf32>
    %cst_112 = arith.constant 9.99999974E-6 : f32
    %309 = vector.broadcast %cst_112 : f32 to vector<64x1xf32>
    %310 = arith.addf %306, %309 : vector<64x1xf32>
    %311 = math.rsqrt %310 : vector<64x1xf32>
    %312 = vector.broadcast %311 : vector<64x1xf32> to vector<64x64xf32>
    %313 = arith.mulf %308, %312 : vector<64x64xf32>
    %314 = vector.broadcast %294 : vector<1x64xf32> to vector<64x64xf32>
    %315 = arith.mulf %313, %314 : vector<64x64xf32>
    %316 = vector.broadcast %295 : vector<1x64xf32> to vector<64x64xf32>
    %317 = arith.addf %315, %316 : vector<64x64xf32>
    %c488 = arith.constant 488 : index
    %c0_113 = arith.constant 0 : index
    %318 = vector.load %arg5[%c488, %c0_113] : memref<784x64xf32, #tpu.memory_space<vmem>>, vector<64x32xf32>
    %c552 = arith.constant 552 : index
    %c0_114 = arith.constant 0 : index
    %319 = vector.load %arg5[%c552, %c0_114] : memref<784x64xf32, #tpu.memory_space<vmem>>, vector<1x32xf32>
    %c560 = arith.constant 560 : index
    %c0_115 = arith.constant 0 : index
    %320 = vector.load %arg5[%c560, %c0_115] : memref<784x64xf32, #tpu.memory_space<vmem>>, vector<32x64xf32>
    %c592 = arith.constant 592 : index
    %c0_116 = arith.constant 0 : index
    %321 = vector.load %arg5[%c592, %c0_116] : memref<784x64xf32, #tpu.memory_space<vmem>>, vector<1x64xf32>
    %cst_117 = arith.constant dense<0.000000e+00> : vector<64x32xf32>
    %322 = tpu.matmul %317, %318, %cst_117 {dimension_numbers = #tpu.dot_dimension_numbers<[1], [0], [0], [1], [0, 0, 1, 1], [], []>} : vector<64x64xf32>, vector<64x32xf32>, vector<64x32xf32> -> vector<64x32xf32>
    %323 = vector.broadcast %319 : vector<1x32xf32> to vector<64x32xf32>
    %324 = arith.addf %322, %323 : vector<64x32xf32>
    %cst_118 = arith.constant 0.000000e+00 : f32
    %325 = vector.broadcast %cst_118 : f32 to vector<64x32xf32>
    %326 = arith.maximumf %324, %325 : vector<64x32xf32>
    %cst_119 = arith.constant dense<0.000000e+00> : vector<64x64xf32>
    %327 = tpu.matmul %326, %320, %cst_119 {dimension_numbers = #tpu.dot_dimension_numbers<[1], [0], [0], [1], [0, 0, 1, 1], [], []>} : vector<64x32xf32>, vector<32x64xf32>, vector<64x64xf32> -> vector<64x64xf32>
    %328 = vector.broadcast %321 : vector<1x64xf32> to vector<64x64xf32>
    %329 = arith.addf %327, %328 : vector<64x64xf32>
    %330 = arith.addf %317, %329 : vector<64x64xf32>
    %c483 = arith.constant 483 : index
    %c0_120 = arith.constant 0 : index
    %331 = vector.load %arg5[%c483, %c0_120] : memref<784x64xf32, #tpu.memory_space<vmem>>, vector<1x64xf32>
    %c484 = arith.constant 484 : index
    %c0_121 = arith.constant 0 : index
    %332 = vector.load %arg5[%c484, %c0_121] : memref<784x64xf32, #tpu.memory_space<vmem>>, vector<1x64xf32>
    %cst_122 = arith.constant dense<0.000000e+00> : vector<64xf32>
    %333 = vector.multi_reduction <add>, %330, %cst_122 [1] : vector<64x64xf32> to vector<64xf32>
    %334 = vector.shape_cast %333 : vector<64xf32> to vector<64x1xf32>
    %cst_123 = arith.constant 6.400000e+01 : f32
    %335 = vector.broadcast %cst_123 : f32 to vector<64x1xf32>
    %336 = arith.divf %334, %335 : vector<64x1xf32>
    %337 = vector.broadcast %336 : vector<64x1xf32> to vector<64x64xf32>
    %338 = arith.subf %330, %337 : vector<64x64xf32>
    %339 = arith.mulf %338, %338 : vector<64x64xf32>
    %cst_124 = arith.constant dense<0.000000e+00> : vector<64xf32>
    %340 = vector.multi_reduction <add>, %339, %cst_124 [1] : vector<64x64xf32> to vector<64xf32>
    %341 = vector.shape_cast %340 : vector<64xf32> to vector<64x1xf32>
    %cst_125 = arith.constant 6.400000e+01 : f32
    %342 = vector.broadcast %cst_125 : f32 to vector<64x1xf32>
    %343 = arith.divf %341, %342 : vector<64x1xf32>
    %344 = vector.broadcast %336 : vector<64x1xf32> to vector<64x64xf32>
    %345 = arith.subf %330, %344 : vector<64x64xf32>
    %cst_126 = arith.constant 9.99999974E-6 : f32
    %346 = vector.broadcast %cst_126 : f32 to vector<64x1xf32>
    %347 = arith.addf %343, %346 : vector<64x1xf32>
    %348 = math.rsqrt %347 : vector<64x1xf32>
    %349 = vector.broadcast %348 : vector<64x1xf32> to vector<64x64xf32>
    %350 = arith.mulf %345, %349 : vector<64x64xf32>
    %351 = vector.broadcast %331 : vector<1x64xf32> to vector<64x64xf32>
    %352 = arith.mulf %350, %351 : vector<64x64xf32>
    %353 = vector.broadcast %332 : vector<1x64xf32> to vector<64x64xf32>
    %354 = arith.addf %352, %353 : vector<64x64xf32>
    %c72 = arith.constant 72 : index
    %c0_127 = arith.constant 0 : index
    %355 = vector.load %arg4[%c72, %c0_127] : memref<216x192xf32, #tpu.memory_space<vmem>>, vector<64x192xf32>
    %c136 = arith.constant 136 : index
    %c0_128 = arith.constant 0 : index
    %356 = vector.load %arg4[%c136, %c0_128] : memref<216x192xf32, #tpu.memory_space<vmem>>, vector<1x192xf32>
    %c344 = arith.constant 344 : index
    %c0_129 = arith.constant 0 : index
    %357 = vector.load %arg5[%c344, %c0_129] : memref<784x64xf32, #tpu.memory_space<vmem>>, vector<64x64xf32>
    %c408 = arith.constant 408 : index
    %c0_130 = arith.constant 0 : index
    %358 = vector.load %arg5[%c408, %c0_130] : memref<784x64xf32, #tpu.memory_space<vmem>>, vector<1x64xf32>
    %cst_131 = arith.constant dense<0.000000e+00> : vector<64x192xf32>
    %359 = tpu.matmul %206, %355, %cst_131 {dimension_numbers = #tpu.dot_dimension_numbers<[1], [0], [0], [1], [0, 0, 1, 1], [], []>} : vector<64x64xf32>, vector<64x192xf32>, vector<64x192xf32> -> vector<64x192xf32>
    %360 = vector.broadcast %356 : vector<1x192xf32> to vector<64x192xf32>
    %361 = arith.addf %359, %360 : vector<64x192xf32>
    %362 = vector.extract_strided_slice %361 {offsets = [0, 0], sizes = [64, 64], strides = [1, 1]} : vector<64x192xf32> to vector<64x64xf32>
    %363 = vector.extract_strided_slice %361 {offsets = [0, 64], sizes = [64, 64], strides = [1, 1]} : vector<64x192xf32> to vector<64x64xf32>
    %364 = vector.extract_strided_slice %361 {offsets = [0, 128], sizes = [64, 64], strides = [1, 1]} : vector<64x192xf32> to vector<64x64xf32>
    %365 = vector.extract_strided_slice %362 {offsets = [0, 0], sizes = [64, 16], strides = [1, 1]} : vector<64x64xf32> to vector<64x16xf32>
    %366 = vector.extract_strided_slice %363 {offsets = [0, 0], sizes = [64, 16], strides = [1, 1]} : vector<64x64xf32> to vector<64x16xf32>
    %cst_132 = arith.constant dense<0.000000e+00> : vector<64x64xf32>
    %367 = tpu.matmul %365, %366, %cst_132 {dimension_numbers = #tpu.dot_dimension_numbers<[1], [1], [0], [0], [0, 0, 1, 0], [], []>} : vector<64x16xf32>, vector<64x16xf32>, vector<64x64xf32> -> vector<64x64xf32>
    %cst_133 = arith.constant 2.500000e-01 : f32
    %368 = vector.broadcast %cst_133 : f32 to vector<64x64xf32>
    %369 = arith.mulf %367, %368 : vector<64x64xf32>
    %cst_134 = arith.constant dense<0xFF800000> : vector<64xf32>
    %370 = vector.multi_reduction <maximumf>, %369, %cst_134 [1] : vector<64x64xf32> to vector<64xf32>
    %371 = vector.shape_cast %370 : vector<64xf32> to vector<64x1xf32>
    %372 = vector.broadcast %371 : vector<64x1xf32> to vector<64x64xf32>
    %373 = arith.subf %369, %372 : vector<64x64xf32>
    %374 = math.exp %373 : vector<64x64xf32>
    %cst_135 = arith.constant dense<0.000000e+00> : vector<64xf32>
    %375 = vector.multi_reduction <add>, %374, %cst_135 [1] : vector<64x64xf32> to vector<64xf32>
    %376 = vector.shape_cast %375 : vector<64xf32> to vector<64x1xf32>
    %377 = tpu.reciprocal %376 {approx = true} : vector<64x1xf32> -> vector<64x1xf32>
    %378 = vector.broadcast %377 : vector<64x1xf32> to vector<64x64xf32>
    %379 = arith.mulf %374, %378 : vector<64x64xf32>
    %380 = vector.extract_strided_slice %364 {offsets = [0, 0], sizes = [64, 16], strides = [1, 1]} : vector<64x64xf32> to vector<64x16xf32>
    %cst_136 = arith.constant dense<0.000000e+00> : vector<64x16xf32>
    %381 = tpu.matmul %379, %380, %cst_136 {dimension_numbers = #tpu.dot_dimension_numbers<[1], [0], [0], [1], [0, 0, 1, 1], [], []>} : vector<64x64xf32>, vector<64x16xf32>, vector<64x16xf32> -> vector<64x16xf32>
    %c0_137 = arith.constant 0 : index
    %c0_138 = arith.constant 0 : index
    %382 = vector.load %arg8[%c0_137, %c0_138] : memref<64x64xf32, #tpu.memory_space<vmem>>, vector<64x16xf32>
    tpu.vector_store %arg8[%c0_137, %c0_138], %381 {strides = array<i32>} : memref<64x64xf32, #tpu.memory_space<vmem>>, vector<64x16xf32>,
    %383 = vector.extract_strided_slice %362 {offsets = [0, 16], sizes = [64, 16], strides = [1, 1]} : vector<64x64xf32> to vector<64x16xf32>
    %384 = vector.extract_strided_slice %363 {offsets = [0, 16], sizes = [64, 16], strides = [1, 1]} : vector<64x64xf32> to vector<64x16xf32>
    %cst_139 = arith.constant dense<0.000000e+00> : vector<64x64xf32>
    %385 = tpu.matmul %383, %384, %cst_139 {dimension_numbers = #tpu.dot_dimension_numbers<[1], [1], [0], [0], [0, 0, 1, 0], [], []>} : vector<64x16xf32>, vector<64x16xf32>, vector<64x64xf32> -> vector<64x64xf32>
    %cst_140 = arith.constant 2.500000e-01 : f32
    %386 = vector.broadcast %cst_140 : f32 to vector<64x64xf32>
    %387 = arith.mulf %385, %386 : vector<64x64xf32>
    %cst_141 = arith.constant dense<0xFF800000> : vector<64xf32>
    %388 = vector.multi_reduction <maximumf>, %387, %cst_141 [1] : vector<64x64xf32> to vector<64xf32>
    %389 = vector.shape_cast %388 : vector<64xf32> to vector<64x1xf32>
    %390 = vector.broadcast %389 : vector<64x1xf32> to vector<64x64xf32>
    %391 = arith.subf %387, %390 : vector<64x64xf32>
    %392 = math.exp %391 : vector<64x64xf32>
    %cst_142 = arith.constant dense<0.000000e+00> : vector<64xf32>
    %393 = vector.multi_reduction <add>, %392, %cst_142 [1] : vector<64x64xf32> to vector<64xf32>
    %394 = vector.shape_cast %393 : vector<64xf32> to vector<64x1xf32>
    %395 = tpu.reciprocal %394 {approx = true} : vector<64x1xf32> -> vector<64x1xf32>
    %396 = vector.broadcast %395 : vector<64x1xf32> to vector<64x64xf32>
    %397 = arith.mulf %392, %396 : vector<64x64xf32>
    %398 = vector.extract_strided_slice %364 {offsets = [0, 16], sizes = [64, 16], strides = [1, 1]} : vector<64x64xf32> to vector<64x16xf32>
    %cst_143 = arith.constant dense<0.000000e+00> : vector<64x16xf32>
    %399 = tpu.matmul %397, %398, %cst_143 {dimension_numbers = #tpu.dot_dimension_numbers<[1], [0], [0], [1], [0, 0, 1, 1], [], []>} : vector<64x64xf32>, vector<64x16xf32>, vector<64x16xf32> -> vector<64x16xf32>
    %c0_144 = arith.constant 0 : index
    %c16_145 = arith.constant 16 : index
    %400 = vector.load %arg8[%c0_144, %c16_145] : memref<64x64xf32, #tpu.memory_space<vmem>>, vector<64x16xf32>
    tpu.vector_store %arg8[%c0_144, %c16_145], %399 {strides = array<i32>} : memref<64x64xf32, #tpu.memory_space<vmem>>, vector<64x16xf32>,
    %401 = vector.extract_strided_slice %362 {offsets = [0, 32], sizes = [64, 16], strides = [1, 1]} : vector<64x64xf32> to vector<64x16xf32>
    %402 = vector.extract_strided_slice %363 {offsets = [0, 32], sizes = [64, 16], strides = [1, 1]} : vector<64x64xf32> to vector<64x16xf32>
    %cst_146 = arith.constant dense<0.000000e+00> : vector<64x64xf32>
    %403 = tpu.matmul %401, %402, %cst_146 {dimension_numbers = #tpu.dot_dimension_numbers<[1], [1], [0], [0], [0, 0, 1, 0], [], []>} : vector<64x16xf32>, vector<64x16xf32>, vector<64x64xf32> -> vector<64x64xf32>
    %cst_147 = arith.constant 2.500000e-01 : f32
    %404 = vector.broadcast %cst_147 : f32 to vector<64x64xf32>
    %405 = arith.mulf %403, %404 : vector<64x64xf32>
    %cst_148 = arith.constant dense<0xFF800000> : vector<64xf32>
    %406 = vector.multi_reduction <maximumf>, %405, %cst_148 [1] : vector<64x64xf32> to vector<64xf32>
    %407 = vector.shape_cast %406 : vector<64xf32> to vector<64x1xf32>
    %408 = vector.broadcast %407 : vector<64x1xf32> to vector<64x64xf32>
    %409 = arith.subf %405, %408 : vector<64x64xf32>
    %410 = math.exp %409 : vector<64x64xf32>
    %cst_149 = arith.constant dense<0.000000e+00> : vector<64xf32>
    %411 = vector.multi_reduction <add>, %410, %cst_149 [1] : vector<64x64xf32> to vector<64xf32>
    %412 = vector.shape_cast %411 : vector<64xf32> to vector<64x1xf32>
    %413 = tpu.reciprocal %412 {approx = true} : vector<64x1xf32> -> vector<64x1xf32>
    %414 = vector.broadcast %413 : vector<64x1xf32> to vector<64x64xf32>
    %415 = arith.mulf %410, %414 : vector<64x64xf32>
    %416 = vector.extract_strided_slice %364 {offsets = [0, 32], sizes = [64, 16], strides = [1, 1]} : vector<64x64xf32> to vector<64x16xf32>
    %cst_150 = arith.constant dense<0.000000e+00> : vector<64x16xf32>
    %417 = tpu.matmul %415, %416, %cst_150 {dimension_numbers = #tpu.dot_dimension_numbers<[1], [0], [0], [1], [0, 0, 1, 1], [], []>} : vector<64x64xf32>, vector<64x16xf32>, vector<64x16xf32> -> vector<64x16xf32>
    %c0_151 = arith.constant 0 : index
    %c32_152 = arith.constant 32 : index
    %418 = vector.load %arg8[%c0_151, %c32_152] : memref<64x64xf32, #tpu.memory_space<vmem>>, vector<64x16xf32>
    tpu.vector_store %arg8[%c0_151, %c32_152], %417 {strides = array<i32>} : memref<64x64xf32, #tpu.memory_space<vmem>>, vector<64x16xf32>,
    %419 = vector.extract_strided_slice %362 {offsets = [0, 48], sizes = [64, 16], strides = [1, 1]} : vector<64x64xf32> to vector<64x16xf32>
    %420 = vector.extract_strided_slice %363 {offsets = [0, 48], sizes = [64, 16], strides = [1, 1]} : vector<64x64xf32> to vector<64x16xf32>
    %cst_153 = arith.constant dense<0.000000e+00> : vector<64x64xf32>
    %421 = tpu.matmul %419, %420, %cst_153 {dimension_numbers = #tpu.dot_dimension_numbers<[1], [1], [0], [0], [0, 0, 1, 0], [], []>} : vector<64x16xf32>, vector<64x16xf32>, vector<64x64xf32> -> vector<64x64xf32>
    %cst_154 = arith.constant 2.500000e-01 : f32
    %422 = vector.broadcast %cst_154 : f32 to vector<64x64xf32>
    %423 = arith.mulf %421, %422 : vector<64x64xf32>
    %cst_155 = arith.constant dense<0xFF800000> : vector<64xf32>
    %424 = vector.multi_reduction <maximumf>, %423, %cst_155 [1] : vector<64x64xf32> to vector<64xf32>
    %425 = vector.shape_cast %424 : vector<64xf32> to vector<64x1xf32>
    %426 = vector.broadcast %425 : vector<64x1xf32> to vector<64x64xf32>
    %427 = arith.subf %423, %426 : vector<64x64xf32>
    %428 = math.exp %427 : vector<64x64xf32>
    %cst_156 = arith.constant dense<0.000000e+00> : vector<64xf32>
    %429 = vector.multi_reduction <add>, %428, %cst_156 [1] : vector<64x64xf32> to vector<64xf32>
    %430 = vector.shape_cast %429 : vector<64xf32> to vector<64x1xf32>
    %431 = tpu.reciprocal %430 {approx = true} : vector<64x1xf32> -> vector<64x1xf32>
    %432 = vector.broadcast %431 : vector<64x1xf32> to vector<64x64xf32>
    %433 = arith.mulf %428, %432 : vector<64x64xf32>
    %434 = vector.extract_strided_slice %364 {offsets = [0, 48], sizes = [64, 16], strides = [1, 1]} : vector<64x64xf32> to vector<64x16xf32>
    %cst_157 = arith.constant dense<0.000000e+00> : vector<64x16xf32>
    %435 = tpu.matmul %433, %434, %cst_157 {dimension_numbers = #tpu.dot_dimension_numbers<[1], [0], [0], [1], [0, 0, 1, 1], [], []>} : vector<64x64xf32>, vector<64x16xf32>, vector<64x16xf32> -> vector<64x16xf32>
    %c0_158 = arith.constant 0 : index
    %c48_159 = arith.constant 48 : index
    %436 = vector.load %arg8[%c0_158, %c48_159] : memref<64x64xf32, #tpu.memory_space<vmem>>, vector<64x16xf32>
    tpu.vector_store %arg8[%c0_158, %c48_159], %435 {strides = array<i32>} : memref<64x64xf32, #tpu.memory_space<vmem>>, vector<64x16xf32>,
    %c0_160 = arith.constant 0 : index
    %c0_161 = arith.constant 0 : index
    %437 = vector.load %arg8[%c0_160, %c0_161] : memref<64x64xf32, #tpu.memory_space<vmem>>, vector<64x64xf32>
    %cst_162 = arith.constant dense<0.000000e+00> : vector<64x64xf32>
    %438 = tpu.matmul %437, %357, %cst_162 {dimension_numbers = #tpu.dot_dimension_numbers<[1], [0], [0], [1], [0, 0, 1, 1], [], []>} : vector<64x64xf32>, vector<64x64xf32>, vector<64x64xf32> -> vector<64x64xf32>
    %439 = vector.broadcast %358 : vector<1x64xf32> to vector<64x64xf32>
    %440 = arith.addf %438, %439 : vector<64x64xf32>
    %441 = arith.addf %206, %440 : vector<64x64xf32>
    %c593 = arith.constant 593 : index
    %c0_163 = arith.constant 0 : index
    %442 = vector.load %arg5[%c593, %c0_163] : memref<784x64xf32, #tpu.memory_space<vmem>>, vector<1x64xf32>
    %c594 = arith.constant 594 : index
    %c0_164 = arith.constant 0 : index
    %443 = vector.load %arg5[%c594, %c0_164] : memref<784x64xf32, #tpu.memory_space<vmem>>, vector<1x64xf32>
    %cst_165 = arith.constant dense<0.000000e+00> : vector<64xf32>
    %444 = vector.multi_reduction <add>, %441, %cst_165 [1] : vector<64x64xf32> to vector<64xf32>
    %445 = vector.shape_cast %444 : vector<64xf32> to vector<64x1xf32>
    %cst_166 = arith.constant 6.400000e+01 : f32
    %446 = vector.broadcast %cst_166 : f32 to vector<64x1xf32>
    %447 = arith.divf %445, %446 : vector<64x1xf32>
    %448 = vector.broadcast %447 : vector<64x1xf32> to vector<64x64xf32>
    %449 = arith.subf %441, %448 : vector<64x64xf32>
    %450 = arith.mulf %449, %449 : vector<64x64xf32>
    %cst_167 = arith.constant dense<0.000000e+00> : vector<64xf32>
    %451 = vector.multi_reduction <add>, %450, %cst_167 [1] : vector<64x64xf32> to vector<64xf32>
    %452 = vector.shape_cast %451 : vector<64xf32> to vector<64x1xf32>
    %cst_168 = arith.constant 6.400000e+01 : f32
    %453 = vector.broadcast %cst_168 : f32 to vector<64x1xf32>
    %454 = arith.divf %452, %453 : vector<64x1xf32>
    %455 = vector.broadcast %447 : vector<64x1xf32> to vector<64x64xf32>
    %456 = arith.subf %441, %455 : vector<64x64xf32>
    %cst_169 = arith.constant 9.99999974E-6 : f32
    %457 = vector.broadcast %cst_169 : f32 to vector<64x1xf32>
    %458 = arith.addf %454, %457 : vector<64x1xf32>
    %459 = math.rsqrt %458 : vector<64x1xf32>
    %460 = vector.broadcast %459 : vector<64x1xf32> to vector<64x64xf32>
    %461 = arith.mulf %456, %460 : vector<64x64xf32>
    %462 = vector.broadcast %442 : vector<1x64xf32> to vector<64x64xf32>
    %463 = arith.mulf %461, %462 : vector<64x64xf32>
    %464 = vector.broadcast %443 : vector<1x64xf32> to vector<64x64xf32>
    %465 = arith.addf %463, %464 : vector<64x64xf32>
    %c144 = arith.constant 144 : index
    %c0_170 = arith.constant 0 : index
    %466 = vector.load %arg4[%c144, %c0_170] : memref<216x192xf32, #tpu.memory_space<vmem>>, vector<64x192xf32>
    %c208 = arith.constant 208 : index
    %c0_171 = arith.constant 0 : index
    %467 = vector.load %arg4[%c208, %c0_171] : memref<216x192xf32, #tpu.memory_space<vmem>>, vector<1x192xf32>
    %c416 = arith.constant 416 : index
    %c0_172 = arith.constant 0 : index
    %468 = vector.load %arg5[%c416, %c0_172] : memref<784x64xf32, #tpu.memory_space<vmem>>, vector<64x64xf32>
    %c480 = arith.constant 480 : index
    %c0_173 = arith.constant 0 : index
    %469 = vector.load %arg5[%c480, %c0_173] : memref<784x64xf32, #tpu.memory_space<vmem>>, vector<1x64xf32>
    %470 = vector.extract_strided_slice %466 {offsets = [0, 0], sizes = [64, 64], strides = [1, 1]} : vector<64x192xf32> to vector<64x64xf32>
    %cst_174 = arith.constant dense<0.000000e+00> : vector<64x64xf32>
    %471 = tpu.matmul %465, %470, %cst_174 {dimension_numbers = #tpu.dot_dimension_numbers<[1], [0], [0], [1], [0, 0, 1, 1], [], []>} : vector<64x64xf32>, vector<64x64xf32>, vector<64x64xf32> -> vector<64x64xf32>
    %472 = vector.extract_strided_slice %467 {offsets = [0, 0], sizes = [1, 64], strides = [1, 1]} : vector<1x192xf32> to vector<1x64xf32>
    %473 = vector.broadcast %472 : vector<1x64xf32> to vector<64x64xf32>
    %474 = arith.addf %471, %473 : vector<64x64xf32>
    %475 = vector.extract_strided_slice %466 {offsets = [0, 64], sizes = [64, 128], strides = [1, 1]} : vector<64x192xf32> to vector<64x128xf32>
    %cst_175 = arith.constant dense<0.000000e+00> : vector<64x128xf32>
    %476 = tpu.matmul %354, %475, %cst_175 {dimension_numbers = #tpu.dot_dimension_numbers<[1], [0], [0], [1], [0, 0, 1, 1], [], []>} : vector<64x64xf32>, vector<64x128xf32>, vector<64x128xf32> -> vector<64x128xf32>
    %477 = vector.extract_strided_slice %467 {offsets = [0, 64], sizes = [1, 128], strides = [1, 1]} : vector<1x192xf32> to vector<1x128xf32>
    %478 = vector.broadcast %477 : vector<1x128xf32> to vector<64x128xf32>
    %479 = arith.addf %476, %478 : vector<64x128xf32>
    %480 = vector.extract_strided_slice %479 {offsets = [0, 0], sizes = [64, 64], strides = [1, 1]} : vector<64x128xf32> to vector<64x64xf32>
    %481 = vector.extract_strided_slice %479 {offsets = [0, 64], sizes = [64, 64], strides = [1, 1]} : vector<64x128xf32> to vector<64x64xf32>
    %482 = vector.extract_strided_slice %474 {offsets = [0, 0], sizes = [64, 16], strides = [1, 1]} : vector<64x64xf32> to vector<64x16xf32>
    %483 = vector.extract_strided_slice %480 {offsets = [0, 0], sizes = [64, 16], strides = [1, 1]} : vector<64x64xf32> to vector<64x16xf32>
    %cst_176 = arith.constant dense<0.000000e+00> : vector<64x64xf32>
    %484 = tpu.matmul %482, %483, %cst_176 {dimension_numbers = #tpu.dot_dimension_numbers<[1], [1], [0], [0], [0, 0, 1, 0], [], []>} : vector<64x16xf32>, vector<64x16xf32>, vector<64x64xf32> -> vector<64x64xf32>
    %cst_177 = arith.constant 2.500000e-01 : f32
    %485 = vector.broadcast %cst_177 : f32 to vector<64x64xf32>
    %486 = arith.mulf %484, %485 : vector<64x64xf32>
    %cst_178 = arith.constant dense<0xFF800000> : vector<64xf32>
    %487 = vector.multi_reduction <maximumf>, %486, %cst_178 [1] : vector<64x64xf32> to vector<64xf32>
    %488 = vector.shape_cast %487 : vector<64xf32> to vector<64x1xf32>
    %489 = vector.broadcast %488 : vector<64x1xf32> to vector<64x64xf32>
    %490 = arith.subf %486, %489 : vector<64x64xf32>
    %491 = math.exp %490 : vector<64x64xf32>
    %cst_179 = arith.constant dense<0.000000e+00> : vector<64xf32>
    %492 = vector.multi_reduction <add>, %491, %cst_179 [1] : vector<64x64xf32> to vector<64xf32>
    %493 = vector.shape_cast %492 : vector<64xf32> to vector<64x1xf32>
    %494 = tpu.reciprocal %493 {approx = true} : vector<64x1xf32> -> vector<64x1xf32>
    %495 = vector.broadcast %494 : vector<64x1xf32> to vector<64x64xf32>
    %496 = arith.mulf %491, %495 : vector<64x64xf32>
    %497 = vector.extract_strided_slice %481 {offsets = [0, 0], sizes = [64, 16], strides = [1, 1]} : vector<64x64xf32> to vector<64x16xf32>
    %cst_180 = arith.constant dense<0.000000e+00> : vector<64x16xf32>
    %498 = tpu.matmul %496, %497, %cst_180 {dimension_numbers = #tpu.dot_dimension_numbers<[1], [0], [0], [1], [0, 0, 1, 1], [], []>} : vector<64x64xf32>, vector<64x16xf32>, vector<64x16xf32> -> vector<64x16xf32>
    %c0_181 = arith.constant 0 : index
    %c0_182 = arith.constant 0 : index
    %499 = vector.load %arg8[%c0_181, %c0_182] : memref<64x64xf32, #tpu.memory_space<vmem>>, vector<64x16xf32>
    tpu.vector_store %arg8[%c0_181, %c0_182], %498 {strides = array<i32>} : memref<64x64xf32, #tpu.memory_space<vmem>>, vector<64x16xf32>,
    %500 = vector.extract_strided_slice %474 {offsets = [0, 16], sizes = [64, 16], strides = [1, 1]} : vector<64x64xf32> to vector<64x16xf32>
    %501 = vector.extract_strided_slice %480 {offsets = [0, 16], sizes = [64, 16], strides = [1, 1]} : vector<64x64xf32> to vector<64x16xf32>
    %cst_183 = arith.constant dense<0.000000e+00> : vector<64x64xf32>
    %502 = tpu.matmul %500, %501, %cst_183 {dimension_numbers = #tpu.dot_dimension_numbers<[1], [1], [0], [0], [0, 0, 1, 0], [], []>} : vector<64x16xf32>, vector<64x16xf32>, vector<64x64xf32> -> vector<64x64xf32>
    %cst_184 = arith.constant 2.500000e-01 : f32
    %503 = vector.broadcast %cst_184 : f32 to vector<64x64xf32>
    %504 = arith.mulf %502, %503 : vector<64x64xf32>
    %cst_185 = arith.constant dense<0xFF800000> : vector<64xf32>
    %505 = vector.multi_reduction <maximumf>, %504, %cst_185 [1] : vector<64x64xf32> to vector<64xf32>
    %506 = vector.shape_cast %505 : vector<64xf32> to vector<64x1xf32>
    %507 = vector.broadcast %506 : vector<64x1xf32> to vector<64x64xf32>
    %508 = arith.subf %504, %507 : vector<64x64xf32>
    %509 = math.exp %508 : vector<64x64xf32>
    %cst_186 = arith.constant dense<0.000000e+00> : vector<64xf32>
    %510 = vector.multi_reduction <add>, %509, %cst_186 [1] : vector<64x64xf32> to vector<64xf32>
    %511 = vector.shape_cast %510 : vector<64xf32> to vector<64x1xf32>
    %512 = tpu.reciprocal %511 {approx = true} : vector<64x1xf32> -> vector<64x1xf32>
    %513 = vector.broadcast %512 : vector<64x1xf32> to vector<64x64xf32>
    %514 = arith.mulf %509, %513 : vector<64x64xf32>
    %515 = vector.extract_strided_slice %481 {offsets = [0, 16], sizes = [64, 16], strides = [1, 1]} : vector<64x64xf32> to vector<64x16xf32>
    %cst_187 = arith.constant dense<0.000000e+00> : vector<64x16xf32>
    %516 = tpu.matmul %514, %515, %cst_187 {dimension_numbers = #tpu.dot_dimension_numbers<[1], [0], [0], [1], [0, 0, 1, 1], [], []>} : vector<64x64xf32>, vector<64x16xf32>, vector<64x16xf32> -> vector<64x16xf32>
    %c0_188 = arith.constant 0 : index
    %c16_189 = arith.constant 16 : index
    %517 = vector.load %arg8[%c0_188, %c16_189] : memref<64x64xf32, #tpu.memory_space<vmem>>, vector<64x16xf32>
    tpu.vector_store %arg8[%c0_188, %c16_189], %516 {strides = array<i32>} : memref<64x64xf32, #tpu.memory_space<vmem>>, vector<64x16xf32>,
    %518 = vector.extract_strided_slice %474 {offsets = [0, 32], sizes = [64, 16], strides = [1, 1]} : vector<64x64xf32> to vector<64x16xf32>
    %519 = vector.extract_strided_slice %480 {offsets = [0, 32], sizes = [64, 16], strides = [1, 1]} : vector<64x64xf32> to vector<64x16xf32>
    %cst_190 = arith.constant dense<0.000000e+00> : vector<64x64xf32>
    %520 = tpu.matmul %518, %519, %cst_190 {dimension_numbers = #tpu.dot_dimension_numbers<[1], [1], [0], [0], [0, 0, 1, 0], [], []>} : vector<64x16xf32>, vector<64x16xf32>, vector<64x64xf32> -> vector<64x64xf32>
    %cst_191 = arith.constant 2.500000e-01 : f32
    %521 = vector.broadcast %cst_191 : f32 to vector<64x64xf32>
    %522 = arith.mulf %520, %521 : vector<64x64xf32>
    %cst_192 = arith.constant dense<0xFF800000> : vector<64xf32>
    %523 = vector.multi_reduction <maximumf>, %522, %cst_192 [1] : vector<64x64xf32> to vector<64xf32>
    %524 = vector.shape_cast %523 : vector<64xf32> to vector<64x1xf32>
    %525 = vector.broadcast %524 : vector<64x1xf32> to vector<64x64xf32>
    %526 = arith.subf %522, %525 : vector<64x64xf32>
    %527 = math.exp %526 : vector<64x64xf32>
    %cst_193 = arith.constant dense<0.000000e+00> : vector<64xf32>
    %528 = vector.multi_reduction <add>, %527, %cst_193 [1] : vector<64x64xf32> to vector<64xf32>
    %529 = vector.shape_cast %528 : vector<64xf32> to vector<64x1xf32>
    %530 = tpu.reciprocal %529 {approx = true} : vector<64x1xf32> -> vector<64x1xf32>
    %531 = vector.broadcast %530 : vector<64x1xf32> to vector<64x64xf32>
    %532 = arith.mulf %527, %531 : vector<64x64xf32>
    %533 = vector.extract_strided_slice %481 {offsets = [0, 32], sizes = [64, 16], strides = [1, 1]} : vector<64x64xf32> to vector<64x16xf32>
    %cst_194 = arith.constant dense<0.000000e+00> : vector<64x16xf32>
    %534 = tpu.matmul %532, %533, %cst_194 {dimension_numbers = #tpu.dot_dimension_numbers<[1], [0], [0], [1], [0, 0, 1, 1], [], []>} : vector<64x64xf32>, vector<64x16xf32>, vector<64x16xf32> -> vector<64x16xf32>
    %c0_195 = arith.constant 0 : index
    %c32_196 = arith.constant 32 : index
    %535 = vector.load %arg8[%c0_195, %c32_196] : memref<64x64xf32, #tpu.memory_space<vmem>>, vector<64x16xf32>
    tpu.vector_store %arg8[%c0_195, %c32_196], %534 {strides = array<i32>} : memref<64x64xf32, #tpu.memory_space<vmem>>, vector<64x16xf32>,
    %536 = vector.extract_strided_slice %474 {offsets = [0, 48], sizes = [64, 16], strides = [1, 1]} : vector<64x64xf32> to vector<64x16xf32>
    %537 = vector.extract_strided_slice %480 {offsets = [0, 48], sizes = [64, 16], strides = [1, 1]} : vector<64x64xf32> to vector<64x16xf32>
    %cst_197 = arith.constant dense<0.000000e+00> : vector<64x64xf32>
    %538 = tpu.matmul %536, %537, %cst_197 {dimension_numbers = #tpu.dot_dimension_numbers<[1], [1], [0], [0], [0, 0, 1, 0], [], []>} : vector<64x16xf32>, vector<64x16xf32>, vector<64x64xf32> -> vector<64x64xf32>
    %cst_198 = arith.constant 2.500000e-01 : f32
    %539 = vector.broadcast %cst_198 : f32 to vector<64x64xf32>
    %540 = arith.mulf %538, %539 : vector<64x64xf32>
    %cst_199 = arith.constant dense<0xFF800000> : vector<64xf32>
    %541 = vector.multi_reduction <maximumf>, %540, %cst_199 [1] : vector<64x64xf32> to vector<64xf32>
    %542 = vector.shape_cast %541 : vector<64xf32> to vector<64x1xf32>
    %543 = vector.broadcast %542 : vector<64x1xf32> to vector<64x64xf32>
    %544 = arith.subf %540, %543 : vector<64x64xf32>
    %545 = math.exp %544 : vector<64x64xf32>
    %cst_200 = arith.constant dense<0.000000e+00> : vector<64xf32>
    %546 = vector.multi_reduction <add>, %545, %cst_200 [1] : vector<64x64xf32> to vector<64xf32>
    %547 = vector.shape_cast %546 : vector<64xf32> to vector<64x1xf32>
    %548 = tpu.reciprocal %547 {approx = true} : vector<64x1xf32> -> vector<64x1xf32>
    %549 = vector.broadcast %548 : vector<64x1xf32> to vector<64x64xf32>
    %550 = arith.mulf %545, %549 : vector<64x64xf32>
    %551 = vector.extract_strided_slice %481 {offsets = [0, 48], sizes = [64, 16], strides = [1, 1]} : vector<64x64xf32> to vector<64x16xf32>
    %cst_201 = arith.constant dense<0.000000e+00> : vector<64x16xf32>
    %552 = tpu.matmul %550, %551, %cst_201 {dimension_numbers = #tpu.dot_dimension_numbers<[1], [0], [0], [1], [0, 0, 1, 1], [], []>} : vector<64x64xf32>, vector<64x16xf32>, vector<64x16xf32> -> vector<64x16xf32>
    %c0_202 = arith.constant 0 : index
    %c48_203 = arith.constant 48 : index
    %553 = vector.load %arg8[%c0_202, %c48_203] : memref<64x64xf32, #tpu.memory_space<vmem>>, vector<64x16xf32>
    tpu.vector_store %arg8[%c0_202, %c48_203], %552 {strides = array<i32>} : memref<64x64xf32, #tpu.memory_space<vmem>>, vector<64x16xf32>,
    %c0_204 = arith.constant 0 : index
    %c0_205 = arith.constant 0 : index
    %554 = vector.load %arg8[%c0_204, %c0_205] : memref<64x64xf32, #tpu.memory_space<vmem>>, vector<64x64xf32>
    %cst_206 = arith.constant dense<0.000000e+00> : vector<64x64xf32>
    %555 = tpu.matmul %554, %468, %cst_206 {dimension_numbers = #tpu.dot_dimension_numbers<[1], [0], [0], [1], [0, 0, 1, 1], [], []>} : vector<64x64xf32>, vector<64x64xf32>, vector<64x64xf32> -> vector<64x64xf32>
    %556 = vector.broadcast %469 : vector<1x64xf32> to vector<64x64xf32>
    %557 = arith.addf %555, %556 : vector<64x64xf32>
    %558 = arith.addf %465, %557 : vector<64x64xf32>
    %c595 = arith.constant 595 : index
    %c0_207 = arith.constant 0 : index
    %559 = vector.load %arg5[%c595, %c0_207] : memref<784x64xf32, #tpu.memory_space<vmem>>, vector<1x64xf32>
    %c596 = arith.constant 596 : index
    %c0_208 = arith.constant 0 : index
    %560 = vector.load %arg5[%c596, %c0_208] : memref<784x64xf32, #tpu.memory_space<vmem>>, vector<1x64xf32>
    %cst_209 = arith.constant dense<0.000000e+00> : vector<64xf32>
    %561 = vector.multi_reduction <add>, %558, %cst_209 [1] : vector<64x64xf32> to vector<64xf32>
    %562 = vector.shape_cast %561 : vector<64xf32> to vector<64x1xf32>
    %cst_210 = arith.constant 6.400000e+01 : f32
    %563 = vector.broadcast %cst_210 : f32 to vector<64x1xf32>
    %564 = arith.divf %562, %563 : vector<64x1xf32>
    %565 = vector.broadcast %564 : vector<64x1xf32> to vector<64x64xf32>
    %566 = arith.subf %558, %565 : vector<64x64xf32>
    %567 = arith.mulf %566, %566 : vector<64x64xf32>
    %cst_211 = arith.constant dense<0.000000e+00> : vector<64xf32>
    %568 = vector.multi_reduction <add>, %567, %cst_211 [1] : vector<64x64xf32> to vector<64xf32>
    %569 = vector.shape_cast %568 : vector<64xf32> to vector<64x1xf32>
    %cst_212 = arith.constant 6.400000e+01 : f32
    %570 = vector.broadcast %cst_212 : f32 to vector<64x1xf32>
    %571 = arith.divf %569, %570 : vector<64x1xf32>
    %572 = vector.broadcast %564 : vector<64x1xf32> to vector<64x64xf32>
    %573 = arith.subf %558, %572 : vector<64x64xf32>
    %cst_213 = arith.constant 9.99999974E-6 : f32
    %574 = vector.broadcast %cst_213 : f32 to vector<64x1xf32>
    %575 = arith.addf %571, %574 : vector<64x1xf32>
    %576 = math.rsqrt %575 : vector<64x1xf32>
    %577 = vector.broadcast %576 : vector<64x1xf32> to vector<64x64xf32>
    %578 = arith.mulf %573, %577 : vector<64x64xf32>
    %579 = vector.broadcast %559 : vector<1x64xf32> to vector<64x64xf32>
    %580 = arith.mulf %578, %579 : vector<64x64xf32>
    %581 = vector.broadcast %560 : vector<1x64xf32> to vector<64x64xf32>
    %582 = arith.addf %580, %581 : vector<64x64xf32>
    %c600 = arith.constant 600 : index
    %c0_214 = arith.constant 0 : index
    %583 = vector.load %arg5[%c600, %c0_214] : memref<784x64xf32, #tpu.memory_space<vmem>>, vector<64x32xf32>
    %c664 = arith.constant 664 : index
    %c0_215 = arith.constant 0 : index
    %584 = vector.load %arg5[%c664, %c0_215] : memref<784x64xf32, #tpu.memory_space<vmem>>, vector<1x32xf32>
    %c672 = arith.constant 672 : index
    %c0_216 = arith.constant 0 : index
    %585 = vector.load %arg5[%c672, %c0_216] : memref<784x64xf32, #tpu.memory_space<vmem>>, vector<32x64xf32>
    %c704 = arith.constant 704 : index
    %c0_217 = arith.constant 0 : index
    %586 = vector.load %arg5[%c704, %c0_217] : memref<784x64xf32, #tpu.memory_space<vmem>>, vector<1x64xf32>
    %cst_218 = arith.constant dense<0.000000e+00> : vector<64x32xf32>
    %587 = tpu.matmul %582, %583, %cst_218 {dimension_numbers = #tpu.dot_dimension_numbers<[1], [0], [0], [1], [0, 0, 1, 1], [], []>} : vector<64x64xf32>, vector<64x32xf32>, vector<64x32xf32> -> vector<64x32xf32>
    %588 = vector.broadcast %584 : vector<1x32xf32> to vector<64x32xf32>
    %589 = arith.addf %587, %588 : vector<64x32xf32>
    %cst_219 = arith.constant 0.000000e+00 : f32
    %590 = vector.broadcast %cst_219 : f32 to vector<64x32xf32>
    %591 = arith.maximumf %589, %590 : vector<64x32xf32>
    %cst_220 = arith.constant dense<0.000000e+00> : vector<64x64xf32>
    %592 = tpu.matmul %591, %585, %cst_220 {dimension_numbers = #tpu.dot_dimension_numbers<[1], [0], [0], [1], [0, 0, 1, 1], [], []>} : vector<64x32xf32>, vector<32x64xf32>, vector<64x64xf32> -> vector<64x64xf32>
    %593 = vector.broadcast %586 : vector<1x64xf32> to vector<64x64xf32>
    %594 = arith.addf %592, %593 : vector<64x64xf32>
    %595 = arith.addf %582, %594 : vector<64x64xf32>
    %c597 = arith.constant 597 : index
    %c0_221 = arith.constant 0 : index
    %596 = vector.load %arg5[%c597, %c0_221] : memref<784x64xf32, #tpu.memory_space<vmem>>, vector<1x64xf32>
    %c598 = arith.constant 598 : index
    %c0_222 = arith.constant 0 : index
    %597 = vector.load %arg5[%c598, %c0_222] : memref<784x64xf32, #tpu.memory_space<vmem>>, vector<1x64xf32>
    %cst_223 = arith.constant dense<0.000000e+00> : vector<64xf32>
    %598 = vector.multi_reduction <add>, %595, %cst_223 [1] : vector<64x64xf32> to vector<64xf32>
    %599 = vector.shape_cast %598 : vector<64xf32> to vector<64x1xf32>
    %cst_224 = arith.constant 6.400000e+01 : f32
    %600 = vector.broadcast %cst_224 : f32 to vector<64x1xf32>
    %601 = arith.divf %599, %600 : vector<64x1xf32>
    %602 = vector.broadcast %601 : vector<64x1xf32> to vector<64x64xf32>
    %603 = arith.subf %595, %602 : vector<64x64xf32>
    %604 = arith.mulf %603, %603 : vector<64x64xf32>
    %cst_225 = arith.constant dense<0.000000e+00> : vector<64xf32>
    %605 = vector.multi_reduction <add>, %604, %cst_225 [1] : vector<64x64xf32> to vector<64xf32>
    %606 = vector.shape_cast %605 : vector<64xf32> to vector<64x1xf32>
    %cst_226 = arith.constant 6.400000e+01 : f32
    %607 = vector.broadcast %cst_226 : f32 to vector<64x1xf32>
    %608 = arith.divf %606, %607 : vector<64x1xf32>
    %609 = vector.broadcast %601 : vector<64x1xf32> to vector<64x64xf32>
    %610 = arith.subf %595, %609 : vector<64x64xf32>
    %cst_227 = arith.constant 9.99999974E-6 : f32
    %611 = vector.broadcast %cst_227 : f32 to vector<64x1xf32>
    %612 = arith.addf %608, %611 : vector<64x1xf32>
    %613 = math.rsqrt %612 : vector<64x1xf32>
    %614 = vector.broadcast %613 : vector<64x1xf32> to vector<64x64xf32>
    %615 = arith.mulf %610, %614 : vector<64x64xf32>
    %616 = vector.broadcast %596 : vector<1x64xf32> to vector<64x64xf32>
    %617 = arith.mulf %615, %616 : vector<64x64xf32>
    %618 = vector.broadcast %597 : vector<1x64xf32> to vector<64x64xf32>
    %619 = arith.addf %617, %618 : vector<64x64xf32>
    %c0_228 = arith.constant 0 : index
    %c0_229 = arith.constant 0 : index
    %620 = vector.load %arg2[%c0_228, %c0_229] : memref<2x64xf32, #tpu.memory_space<vmem>>, vector<2x64xf32>
    %cst_230 = arith.constant dense<0.000000e+00> : vector<2x64xf32>
    %621 = tpu.matmul %620, %619, %cst_230 {dimension_numbers = #tpu.dot_dimension_numbers<[1], [0], [0], [1], [0, 0, 1, 1], [], []>} : vector<2x64xf32>, vector<64x64xf32>, vector<2x64xf32> -> vector<2x64xf32>
    %c712 = arith.constant 712 : index
    %c0_231 = arith.constant 0 : index
    %622 = vector.load %arg5[%c712, %c0_231] : memref<784x64xf32, #tpu.memory_space<vmem>>, vector<64x3xf32>
    %cst_232 = arith.constant dense<0.000000e+00> : vector<2x3xf32>
    %623 = tpu.matmul %621, %622, %cst_232 {dimension_numbers = #tpu.dot_dimension_numbers<[1], [0], [0], [1], [0, 0, 1, 1], [], []>} : vector<2x64xf32>, vector<64x3xf32>, vector<2x3xf32> -> vector<2x3xf32>
    %c776 = arith.constant 776 : index
    %c0_233 = arith.constant 0 : index
    %624 = vector.load %arg5[%c776, %c0_233] : memref<784x64xf32, #tpu.memory_space<vmem>>, vector<1x3xf32>
    %625 = vector.broadcast %624 : vector<1x3xf32> to vector<2x3xf32>
    %626 = arith.addf %623, %625 : vector<2x3xf32>
    %c0_234 = arith.constant 0 : index
    %c0_235 = arith.constant 0 : index
    %627 = vector.load %arg6[%c0_234, %c0_235] : memref<2x3xf32, #tpu.memory_space<vmem>>, vector<2x3xf32>
    tpu.vector_store %arg6[%c0_234, %c0_235], %626 {strides = array<i32>} : memref<2x3xf32, #tpu.memory_space<vmem>>, vector<2x3xf32>,
    return
  }
}

</mosaic_0001>

<llo_original>
// kernel: tpu_custom_call.1
$region0: #{tpu_custom_call.1}
  #allocation0 [shape = 'u32[]', space=smem, size = 0x4, offset = 0x4, fixed_abs, tag = 'smem constant byte address 0x4 - core index']
  #allocation1 [shape = 'u32[144,128]{1,0:T(1,128)}', space=vmem, size = 0x12000, scoped, tag = 'internal scratch']
  #allocation2 [shape = 'f32[64,256]{1,0:T(8,128)}', space=vmem, size = 0x10000, scoped, tag = 'scratch operand']
  #allocation3 [shape = 'f32[64,64]{1,0:T(8,128)}', space=vmem, size = 0x8000, scoped, tag = 'scratch operand']
  %s0 = inlined_call_operand.vmem [shape: f32[64,8], index: 0, kind: input, shape index: {}]
  %s1 = inlined_call_operand.vmem [shape: f32[64,64], index: 1, kind: input, shape index: {}]
  %s2 = inlined_call_operand.vmem [shape: f32[2,64], index: 2, kind: input, shape index: {}]
  %s3 = inlined_call_operand.vmem [shape: f32[24,256], index: 3, kind: input, shape index: {}]
  %s4 = inlined_call_operand.vmem [shape: f32[216,192], index: 4, kind: input, shape index: {}]
  %s5 = inlined_call_operand.vmem [shape: f32[784,64], index: 5, kind: input, shape index: {}]
  %s6 = inlined_call_operand.hbm [shape: f32[2,3], index: 6, kind: output, shape index: {}]
  %s7 = sld [smem:[#allocation0]]
  $region34: #{tpu_custom_call.1} parent=0
    _
  %s9 = ssub.s32 1, %s7
  %s10 = scalar_select 0, %s9, %s7
  $region1: #{tpu_custom_call.1} parent=0
    #allocation4 [shape = 'u8[1024]{0}', space=vmem, size = 0x400, scoped, tag = 'output window, operand 0, single buffered']
    #allocation5 [shape = 's32[1]{0}', space=sflag, size = 0x4, scoped, tag = 'scoped memory for tpu_custom_call.1']
    %11 = vsyncpa [#allocation5], 0
    // Predicated region
    $region2: #{tpu_custom_call.1} parent=1 // pred_check
      _
    $region3: #{tpu_custom_call.1} parent=1 // pred_check_branch
      %13 = sbr.rel (0) target = $region5
    $region4: #{tpu_custom_call.1} parent=1 // pred_region
      _
    $region5: #{tpu_custom_call.1} parent=1 // pred_fallthru
      _
    // Predicated region
    $region6: #{tpu_custom_call.1} parent=1 // pred_check
      _
    $region7: #{tpu_custom_call.1} parent=1 // pred_check_branch
      %15 = sbr.rel (0) target = $region9
    $region8: #{tpu_custom_call.1} parent=1 // pred_region
      _
    $region9: #{tpu_custom_call.1} parent=1 // pred_fallthru
      _
    // Predicated region
    $region10: #{tpu_custom_call.1} parent=1 // pred_check
      _
    $region11: #{tpu_custom_call.1} parent=1 // pred_check_branch
      %17 = sbr.rel (0) target = $region13
    $region12: #{tpu_custom_call.1} parent=1 // pred_region
      _
    $region13: #{tpu_custom_call.1} parent=1 // pred_fallthru
      _
    // Predicated region
    $region14: #{tpu_custom_call.1} parent=1 // pred_check
      _
    $region15: #{tpu_custom_call.1} parent=1 // pred_check_branch
      %19 = sbr.rel (0) target = $region17
    $region16: #{tpu_custom_call.1} parent=1 // pred_region
      _
    $region17: #{tpu_custom_call.1} parent=1 // pred_fallthru
      _
    // Predicated region
    $region18: #{tpu_custom_call.1} parent=1 // pred_check
      _
    $region19: #{tpu_custom_call.1} parent=1 // pred_check_branch
      %21 = sbr.rel (0) target = $region21
    $region20: #{tpu_custom_call.1} parent=1 // pred_region
      _
    $region21: #{tpu_custom_call.1} parent=1 // pred_fallthru
      _
    // Predicated region
    $region22: #{tpu_custom_call.1} parent=1 // pred_check
      _
    $region23: #{tpu_custom_call.1} parent=1 // pred_check_branch
      %23 = sbr.rel (0) target = $region25
    $region24: #{tpu_custom_call.1} parent=1 // pred_region
      _
    $region25: #{tpu_custom_call.1} parent=1 // pred_fallthru
      _
    %v24 = vld [vmem:[%s0] sm:$0xff]
    %v25 = vld [vmem:[%s0 + $0x8] sm:$0xff]
    %v26 = vld [vmem:[%s0 + $0x10] sm:$0xff]
    %v27 = vld [vmem:[%s0 + $0x18] sm:$0xff]
    %v28 = vld [vmem:[%s0 + $0x20] sm:$0xff]
    %v29 = vld [vmem:[%s0 + $0x28] sm:$0xff]
    %v30 = vld [vmem:[%s0 + $0x30] sm:$0xff]
    %v31 = vld [vmem:[%s0 + $0x38] sm:$0xff]
    %v32 = vld [vmem:[%s1] sm:$0xff]
    %v33 = vld [vmem:[%s1 + $0x8] sm:$0xff]
    %v34 = vld [vmem:[%s1 + $0x10] sm:$0xff]
    %v35 = vld [vmem:[%s1 + $0x18] sm:$0xff]
    %v36 = vld [vmem:[%s1 + $0x20] sm:$0xff]
    %v37 = vld [vmem:[%s1 + $0x28] sm:$0xff]
    %v38 = vld [vmem:[%s1 + $0x30] sm:$0xff]
    %v39 = vld [vmem:[%s1 + $0x38] sm:$0xff]
    %v40 = vld [vmem:[%s3] sm:$0xff]
    %v41 = vld [vmem:[%s3 + $0x8] sm:$0xff]
    %s42 = scalar_lea.vmem %s3, 36
    %v43 = vld [vmem:[%s42] ss:$8 sm:$0x3]
    %v45 = vlaneseq
    %v46 = vshrl.u32 %v45, 7
    %v47 = vsub.s32 0, %v46
    %v48 = vrot.slane %v43, %v47
    %v49 = vlaneseq
    %v50 = vshrl.u32 %v49, 7
    %v51 = vsub.s32 1, %v50
    %v52 = vrot.slane %v43, %v51
    %vm55 = vcmask 64512
    %v57 = vsel %vm55, %v24, 0
    %v60 = vsel %vm55, %v25, 0
    %v63 = vsel %vm55, %v26, 0
    %v66 = vsel %vm55, %v27, 0
    %v69 = vsel %vm55, %v28, 0
    %v72 = vsel %vm55, %v29, 0
    %v75 = vsel %vm55, %v30, 0
    %v78 = vsel %vm55, %v31, 0
    %80 = vmatprep.subr.mxu0 %v41
    %81 = vmatpush1.msra.mxu0 %v40
    %82 = vmatprep.subr.mxu0 0.0
    %83 = vmatpush1.msra.mxu0 0.0
    %84 = vmatprep.subr.mxu0 0.0
    %85 = vmatpush1.msra.mxu0 0.0
    %86 = vmatprep.subr.mxu0 0.0
    %87 = vmatpush1.msra.mxu0 0.0
    %88 = vmatprep.subr.mxu0 0.0
    %89 = vmatpush1.msra.mxu0 0.0
    %90 = vmatprep.subr.mxu0 0.0
    %91 = vmatpush1.msra.mxu0 0.0
    %92 = vmatprep.subr.mxu0 0.0
    %93 = vmatpush1.msra.mxu0 0.0
    %94 = vmatprep.subr.mxu0 0.0
    %95 = vmatpush1.msra.mxu0 0.0
    %96 = vmatprep.subr.mxu0 0.0
    %97 = vmatpush1.msra.mxu0 0.0
    %98 = vmatprep.subr.mxu0 0.0
    %99 = vmatpush1.msra.mxu0 0.0
    %100 = vmatprep.subr.mxu0 0.0
    %101 = vmatpush1.msra.mxu0 0.0
    %102 = vmatprep.subr.mxu0 0.0
    %103 = vmatpush1.msra.mxu0 0.0
    %104 = vmatprep.subr.mxu0 0.0
    %105 = vmatpush1.msra.mxu0 0.0
    %106 = vmatprep.subr.mxu0 0.0
    %107 = vmatpush1.msra.mxu0 0.0
    %108 = vmatprep.subr.mxu0 0.0
    %109 = vmatpush1.msra.mxu0 0.0
    %110 = vmatprep.subr.mxu0 0.0
    %111 = vmatpush1.msra.mxu0 0.0
    %112 = vmatprep.subr.mxu0 0.0
    %113 = vmatpush1.msra.mxu0 0.0
    %114 = vmatprep.subr.mxu0 0.0
    %115 = vmatpush1.msra.mxu0 0.0
    %116 = vmatprep.subr.mxu0 0.0
    %117 = vmatpush1.msra.mxu0 0.0
    %118 = vmatprep.subr.mxu0 0.0
    %119 = vmatpush1.msra.mxu0 0.0
    %120 = vmatprep.subr.mxu0 0.0
    %121 = vmatpush1.msra.mxu0 0.0
    %122 = vmatprep.subr.mxu0 0.0
    %123 = vmatpush1.msra.mxu0 0.0
    %124 = vmatprep.subr.mxu0 0.0
    %125 = vmatpush1.msra.mxu0 0.0
    %126 = vmatprep.subr.mxu0 0.0
    %127 = vmatpush1.msra.mxu0 0.0
    %128 = vmatprep.subr.mxu0 0.0
    %129 = vmatpush1.msra.mxu0 0.0
    %130 = vmatprep.subr.mxu0 0.0
    %131 = vmatpush1.msra.mxu0 0.0
    %132 = vmatprep.subr.mxu0 0.0
    %133 = vmatpush1.msra.mxu0 0.0
    %134 = vmatprep.subr.mxu0 0.0
    %135 = vmatpush1.msra.mxu0 0.0
    %136 = vmatprep.subr.mxu0 0.0
    %137 = vmatpush1.msra.mxu0 0.0
    %138 = vmatprep.subr.mxu0 0.0
    %139 = vmatpush1.msra.mxu0 0.0
    %140 = vmatprep.subr.mxu0 0.0
    %141 = vmatpush1.msra.mxu0 0.0
    %142 = vmatprep.subr.mxu0 0.0
    %143 = vmatpush1.msra.mxu0 0.0
    %144 = vmatprep.mubr.f32.mxu0 0.0
    %145 = vmatmul.mubr.f32.gmra.mrb[0].mxu0 %v57
    %v146 = vpop.f32.mrb[0].mxu0
    %v147 = vadd.f32 %v48, %v146
    %v148 = vpop.f32.mrb[0].mxu0
    %v149 = vadd.f32 %v52, %v148
    %150 = vmatprep.mubr.f32.mxu0 0.0
    %151 = vmatmul.mubr.f32.gmra.mrb[0].mxu0 %v60
    %v152 = vpop.f32.mrb[0].mxu0
    %v153 = vadd.f32 %v48, %v152
    %v154 = vpop.f32.mrb[0].mxu0
    %v155 = vadd.f32 %v52, %v154
    %156 = vmatprep.mubr.f32.mxu0 0.0
    %157 = vmatmul.mubr.f32.gmra.mrb[0].mxu0 %v63
    %v158 = vpop.f32.mrb[0].mxu0
    %v159 = vadd.f32 %v48, %v158
    %v160 = vpop.f32.mrb[0].mxu0
    %v161 = vadd.f32 %v52, %v160
    %162 = vmatprep.mubr.f32.mxu0 0.0
    %163 = vmatmul.mubr.f32.gmra.mrb[0].mxu0 %v66
    %v164 = vpop.f32.mrb[0].mxu0
    %v165 = vadd.f32 %v48, %v164
    %v166 = vpop.f32.mrb[0].mxu0
    %v167 = vadd.f32 %v52, %v166
    %168 = vmatprep.mubr.f32.mxu0 0.0
    %169 = vmatmul.mubr.f32.gmra.mrb[0].mxu0 %v69
    %v170 = vpop.f32.mrb[0].mxu0
    %v171 = vadd.f32 %v48, %v170
    %v172 = vpop.f32.mrb[0].mxu0
    %v173 = vadd.f32 %v52, %v172
    %174 = vmatprep.mubr.f32.mxu0 0.0
    %175 = vmatmul.mubr.f32.gmra.mrb[0].mxu0 %v72
    %v176 = vpop.f32.mrb[0].mxu0
    %v177 = vadd.f32 %v48, %v176
    %v178 = vpop.f32.mrb[0].mxu0
    %v179 = vadd.f32 %v52, %v178
    %180 = vmatprep.mubr.f32.mxu0 0.0
    %181 = vmatmul.mubr.f32.gmra.mrb[0].mxu0 %v75
    %v182 = vpop.f32.mrb[0].mxu0
    %v183 = vadd.f32 %v48, %v182
    %v184 = vpop.f32.mrb[0].mxu0
    %v185 = vadd.f32 %v52, %v184
    %186 = vmatprep.mubr.f32.mxu0 0.0
    %187 = vmatmul.mubr.f32.gmra.mrb[0].mxu0 %v78
    %v188 = vpop.f32.mrb[0].mxu0
    %v189 = vadd.f32 %v48, %v188
    %v190 = vpop.f32.mrb[0].mxu0
    %v191 = vadd.f32 %v52, %v190
    %192 = vdwg.mxu0
    %v193 = vld [vmem:[%s3 + $0x10] sm:$0xf]
    %v194 = vld [vmem:[%s3 + $0x18] sm:$0xf]
    %v195 = vld [vmem:[%s3 + $0x20] sm:$0xf]
    %v196 = vld [vmem:[%s3 + $0x28] sm:$0xf]
    %s197 = scalar_lea.vmem %s3, 37
    %v198 = vld [vmem:[%s197] ss:$8 sm:$0x3]
    %199 = vmatprep.subr.mxu0 %v196
    %200 = vmatpush1.xpose.msra.mxu0 %v195
    %201 = vmatprep.subr.mxu0 0.0
    %202 = vmatpush1.xpose.msra.mxu0 0.0
    %203 = vmatprep.subr.mxu0 0.0
    %204 = vmatpush1.xpose.msra.mxu0 0.0
    %205 = vmatprep.subr.mxu0 0.0
    %206 = vmatpush1.xpose.msra.mxu0 0.0
    %207 = vmatprep.subr.mxu0 0.0
    %208 = vmatpush1.xpose.msra.mxu0 0.0
    %209 = vmatprep.subr.mxu0 0.0
    %210 = vmatpush1.xpose.msra.mxu0 0.0
    %211 = vmatprep.subr.mxu0 0.0
    %212 = vmatpush1.xpose.msra.mxu0 0.0
    %213 = vmatprep.subr.mxu0 0.0
    %214 = vmatpush1.xpose.msra.mxu0 0.0
    %215 = vmatprep.subr.mxu0 0.0
    %216 = vmatpush1.xpose.msra.mxu0 0.0
    %217 = vmatprep.subr.mxu0 0.0
    %218 = vmatpush1.xpose.msra.mxu0 0.0
    %219 = vmatprep.subr.mxu0 0.0
    %220 = vmatpush1.xpose.msra.mxu0 0.0
    %221 = vmatprep.subr.mxu0 0.0
    %222 = vmatpush1.xpose.msra.mxu0 0.0
    %223 = vmatprep.subr.mxu0 0.0
    %224 = vmatpush1.xpose.msra.mxu0 0.0
    %225 = vmatprep.subr.mxu0 0.0
    %226 = vmatpush1.xpose.msra.mxu0 0.0
    %227 = vmatprep.subr.mxu0 0.0
    %228 = vmatpush1.xpose.msra.mxu0 0.0
    %229 = vmatprep.subr.mxu0 0.0
    %230 = vmatpush1.xpose.msra.mxu0 0.0
    %231 = vmatprep.subr.mxu0 0.0
    %232 = vmatpush1.xpose.msra.mxu0 0.0
    %233 = vmatprep.subr.mxu0 0.0
    %234 = vmatpush1.xpose.msra.mxu0 0.0
    %235 = vmatprep.subr.mxu0 0.0
    %236 = vmatpush1.xpose.msra.mxu0 0.0
    %237 = vmatprep.subr.mxu0 0.0
    %238 = vmatpush1.xpose.msra.mxu0 0.0
    %239 = vmatprep.subr.mxu0 0.0
    %240 = vmatpush1.xpose.msra.mxu0 0.0
    %241 = vmatprep.subr.mxu0 0.0
    %242 = vmatpush1.xpose.msra.mxu0 0.0
    %243 = vmatprep.subr.mxu0 0.0
    %244 = vmatpush1.xpose.msra.mxu0 0.0
    %245 = vmatprep.subr.mxu0 0.0
    %246 = vmatpush1.xpose.msra.mxu0 0.0
    %247 = vmatprep.subr.mxu0 0.0
    %248 = vmatpush1.xpose.msra.mxu0 0.0
    %249 = vmatprep.subr.mxu0 0.0
    %250 = vmatpush1.xpose.msra.mxu0 0.0
    %251 = vmatprep.subr.mxu0 0.0
    %252 = vmatpush1.xpose.msra.mxu0 0.0
    %253 = vmatprep.subr.mxu0 0.0
    %254 = vmatpush1.xpose.msra.mxu0 0.0
    %255 = vmatprep.subr.mxu0 0.0
    %256 = vmatpush1.xpose.msra.mxu0 0.0
    %257 = vmatprep.subr.mxu0 0.0
    %258 = vmatpush1.xpose.msra.mxu0 0.0
    %259 = vmatprep.subr.mxu0 0.0
    %260 = vmatpush1.xpose.msra.mxu0 0.0
    %261 = vmatprep.subr.mxu0 0.0
    %262 = vmatpush1.xpose.msra.mxu0 0.0
    %263 = vmatprep.mubr.f32.mxu0 %v149
    %264 = vmatmul.mubr.f32.gmra.mrb[0].mxu0 %v147
    %v265 = vpop.f32.mrb[0].mxu0
    %v266 = vadd.f32 0.0, %v265
    %v267 = vpop.f32.mrb[0].mxu0
    %268 = vmatprep.mubr.f32.mxu0 %v155
    %269 = vmatmul.mubr.f32.gmra.mrb[0].mxu0 %v153
    %v270 = vpop.f32.mrb[0].mxu0
    %v271 = vadd.f32 0.0, %v270
    %v272 = vpop.f32.mrb[0].mxu0
    %273 = vmatprep.mubr.f32.mxu0 %v161
    %274 = vmatmul.mubr.f32.gmra.mrb[0].mxu0 %v159
    %v275 = vpop.f32.mrb[0].mxu0
    %v276 = vadd.f32 0.0, %v275
    %v277 = vpop.f32.mrb[0].mxu0
    %278 = vmatprep.mubr.f32.mxu0 %v167
    %279 = vmatmul.mubr.f32.gmra.mrb[0].mxu0 %v165
    %v280 = vpop.f32.mrb[0].mxu0
    %v281 = vadd.f32 0.0, %v280
    %v282 = vpop.f32.mrb[0].mxu0
    %283 = vmatprep.mubr.f32.mxu0 %v173
    %284 = vmatmul.mubr.f32.gmra.mrb[0].mxu0 %v171
    %v285 = vpop.f32.mrb[0].mxu0
    %v286 = vadd.f32 0.0, %v285
    %v287 = vpop.f32.mrb[0].mxu0
    %288 = vmatprep.mubr.f32.mxu0 %v179
    %289 = vmatmul.mubr.f32.gmra.mrb[0].mxu0 %v177
    %v290 = vpop.f32.mrb[0].mxu0
    %v291 = vadd.f32 0.0, %v290
    %v292 = vpop.f32.mrb[0].mxu0
    %293 = vmatprep.mubr.f32.mxu0 %v185
    %294 = vmatmul.mubr.f32.gmra.mrb[0].mxu0 %v183
    %v295 = vpop.f32.mrb[0].mxu0
    %v296 = vadd.f32 0.0, %v295
    %v297 = vpop.f32.mrb[0].mxu0
    %298 = vmatprep.mubr.f32.mxu0 %v191
    %299 = vmatmul.mubr.f32.gmra.mrb[0].mxu0 %v189
    %v300 = vpop.f32.mrb[0].mxu0
    %v301 = vadd.f32 0.0, %v300
    %v302 = vpop.f32.mrb[0].mxu0
    %303 = vdwg.mxu0
    %304 = vmatprep.subr.mxu0 %v149
    %305 = vmatpush1.xpose.msra.mxu0 %v147
    %306 = vmatprep.subr.mxu0 %v155
    %307 = vmatpush1.xpose.msra.mxu0 %v153
    %308 = vmatprep.subr.mxu0 %v161
    %309 = vmatpush1.xpose.msra.mxu0 %v159
    %310 = vmatprep.subr.mxu0 %v167
    %311 = vmatpush1.xpose.msra.mxu0 %v165
    %312 = vmatprep.subr.mxu0 %v173
    %313 = vmatpush1.xpose.msra.mxu0 %v171
    %314 = vmatprep.subr.mxu0 %v179
    %315 = vmatpush1.xpose.msra.mxu0 %v177
    %316 = vmatprep.subr.mxu0 %v185
    %317 = vmatpush1.xpose.msra.mxu0 %v183
    %318 = vmatprep.subr.mxu0 %v191
    %319 = vmatpush1.xpose.msra.mxu0 %v189
    %320 = vmatprep.subr.mxu0 0.0
    %321 = vmatpush1.xpose.msra.mxu0 0.0
    %322 = vmatprep.subr.mxu0 0.0
    %323 = vmatpush1.xpose.msra.mxu0 0.0
    %324 = vmatprep.subr.mxu0 0.0
    %325 = vmatpush1.xpose.msra.mxu0 0.0
    %326 = vmatprep.subr.mxu0 0.0
    %327 = vmatpush1.xpose.msra.mxu0 0.0
    %328 = vmatprep.subr.mxu0 0.0
    %329 = vmatpush1.xpose.msra.mxu0 0.0
    %330 = vmatprep.subr.mxu0 0.0
    %331 = vmatpush1.xpose.msra.mxu0 0.0
    %332 = vmatprep.subr.mxu0 0.0
    %333 = vmatpush1.xpose.msra.mxu0 0.0
    %334 = vmatprep.subr.mxu0 0.0
    %335 = vmatpush1.xpose.msra.mxu0 0.0
    %336 = vmatprep.subr.mxu0 0.0
    %337 = vmatpush1.xpose.msra.mxu0 0.0
    %338 = vmatprep.subr.mxu0 0.0
    %339 = vmatpush1.xpose.msra.mxu0 0.0
    %340 = vmatprep.subr.mxu0 0.0
    %341 = vmatpush1.xpose.msra.mxu0 0.0
    %342 = vmatprep.subr.mxu0 0.0
    %343 = vmatpush1.xpose.msra.mxu0 0.0
    %344 = vmatprep.subr.mxu0 0.0
    %345 = vmatpush1.xpose.msra.mxu0 0.0
    %346 = vmatprep.subr.mxu0 0.0
    %347 = vmatpush1.xpose.msra.mxu0 0.0
    %348 = vmatprep.subr.mxu0 0.0
    %349 = vmatpush1.xpose.msra.mxu0 0.0
    %350 = vmatprep.subr.mxu0 0.0
    %351 = vmatpush1.xpose.msra.mxu0 0.0
    %352 = vmatprep.subr.mxu0 0.0
    %353 = vmatpush1.xpose.msra.mxu0 0.0
    %354 = vmatprep.subr.mxu0 0.0
    %355 = vmatpush1.xpose.msra.mxu0 0.0
    %356 = vmatprep.subr.mxu0 0.0
    %357 = vmatpush1.xpose.msra.mxu0 0.0
    %358 = vmatprep.subr.mxu0 0.0
    %359 = vmatpush1.xpose.msra.mxu0 0.0
    %360 = vmatprep.subr.mxu0 0.0
    %361 = vmatpush1.xpose.msra.mxu0 0.0
    %362 = vmatprep.subr.mxu0 0.0
    %363 = vmatpush1.xpose.msra.mxu0 0.0
    %364 = vmatprep.subr.mxu0 0.0
    %365 = vmatpush1.xpose.msra.mxu0 0.0
    %366 = vmatprep.subr.mxu0 0.0
    %367 = vmatpush1.xpose.msra.mxu0 0.0
    %368 = vmatprep.mubr.f32.mxu0 %v194
    %369 = vmatmul.mubr.f32.gmra.mrb[0].mxu0 %v193
    %v370 = vpop.f32.mrb[0].mxu0
    %v371 = vadd.f32 0.0, %v370
    %v372 = vpop.f32.mrb[0].mxu0
    %373 = vdwg.mxu0
    %375 = vset.pattern.permute.xlu0 0
    %376 = vperm.xlu0 %375, %v266
    %v377 = vpop.permute.xlu0 %376
    %380 = vset.pattern.permute.xlu0 0
    %381 = vperm.xlu0 %380, %v271
    %v382 = vpop.permute.xlu0 %381
    %385 = vset.pattern.permute.xlu0 0
    %386 = vperm.xlu0 %385, %v276
    %v387 = vpop.permute.xlu0 %386
    %390 = vset.pattern.permute.xlu0 0
    %391 = vperm.xlu0 %390, %v281
    %v392 = vpop.permute.xlu0 %391
    %395 = vset.pattern.permute.xlu0 0
    %396 = vperm.xlu0 %395, %v286
    %v397 = vpop.permute.xlu0 %396
    %400 = vset.pattern.permute.xlu0 0
    %401 = vperm.xlu0 %400, %v291
    %v402 = vpop.permute.xlu0 %401
    %405 = vset.pattern.permute.xlu0 0
    %406 = vperm.xlu0 %405, %v296
    %v407 = vpop.permute.xlu0 %406
    %410 = vset.pattern.permute.xlu0 0
    %411 = vperm.xlu0 %410, %v301
    %v412 = vpop.permute.xlu0 %411
    %v414 = vlaneseq
    %v415 = vshrl.u32 %v414, 7
    %v416 = vsub.s32 0, %v415
    %v417 = vrot.slane %v371, %v416
    %v418 = vadd.f32 %v377, %v417
    %v419 = vadd.f32 %v382, %v417
    %v420 = vadd.f32 %v387, %v417
    %v421 = vadd.f32 %v392, %v417
    %v422 = vadd.f32 %v397, %v417
    %v423 = vadd.f32 %v402, %v417
    %v424 = vadd.f32 %v407, %v417
    %v425 = vadd.f32 %v412, %v417
    %v426 = vmul.f32 %v418, 0.2
    %v427 = vmul.f32 %v419, 0.2
    %v428 = vmul.f32 %v420, 0.2
    %v429 = vmul.f32 %v421, 0.2
    %v430 = vmul.f32 %v422, 0.2
    %v431 = vmul.f32 %v423, 0.2
    %v432 = vmul.f32 %v424, 0.2
    %v433 = vmul.f32 %v425, 0.2
    %v434 = vmax.f32 %v418, %v426
    %v435 = vmax.f32 %v419, %v427
    %v436 = vmax.f32 %v420, %v428
    %v437 = vmax.f32 %v421, %v429
    %v438 = vmax.f32 %v422, %v430
    %v439 = vmax.f32 %v423, %v431
    %v440 = vmax.f32 %v424, %v432
    %v441 = vmax.f32 %v425, %v433
    %v442 = vadd.f32 %v434, %v32
    %v443 = vadd.f32 %v435, %v33
    %v444 = vadd.f32 %v436, %v34
    %v445 = vadd.f32 %v437, %v35
    %v446 = vadd.f32 %v438, %v36
    %v447 = vadd.f32 %v439, %v37
    %v448 = vadd.f32 %v440, %v38
    %v449 = vadd.f32 %v441, %v39
    %vm450 = vcmask 523264
    %v451 = vsel %vm450, %v442, -inf
    %452 = vmax.xlane.f32.xlu0 %v451
    %v453 = vpop.xlane.xlu0 %452
    %v454 = vsel %vm450, %v443, -inf
    %455 = vmax.xlane.f32.xlu0 %v454
    %v456 = vpop.xlane.xlu0 %455
    %v457 = vsel %vm450, %v444, -inf
    %458 = vmax.xlane.f32.xlu0 %v457
    %v459 = vpop.xlane.xlu0 %458
    %v460 = vsel %vm450, %v445, -inf
    %461 = vmax.xlane.f32.xlu0 %v460
    %v462 = vpop.xlane.xlu0 %461
    %v463 = vsel %vm450, %v446, -inf
    %464 = vmax.xlane.f32.xlu0 %v463
    %v465 = vpop.xlane.xlu0 %464
    %v466 = vsel %vm450, %v447, -inf
    %467 = vmax.xlane.f32.xlu0 %v466
    %v468 = vpop.xlane.xlu0 %467
    %v469 = vsel %vm450, %v448, -inf
    %470 = vmax.xlane.f32.xlu0 %v469
    %v471 = vpop.xlane.xlu0 %470
    %v472 = vsel %vm450, %v449, -inf
    %473 = vmax.xlane.f32.xlu0 %v472
    %v474 = vpop.xlane.xlu0 %473
    %v475 = vsub.f32 %v442, %v453
    %v476 = vsub.f32 %v443, %v456
    %v477 = vsub.f32 %v444, %v459
    %v478 = vsub.f32 %v445, %v462
    %v479 = vsub.f32 %v446, %v465
    %v480 = vsub.f32 %v447, %v468
    %v481 = vsub.f32 %v448, %v471
    %v482 = vsub.f32 %v449, %v474
    %v483 = vmul.f32 %v475, 1.442695
    %v484 = vpow.pop %v483
    %v485 = vmul.f32 %v476, 1.442695
    %v486 = vpow.pop %v485
    %v487 = vmul.f32 %v477, 1.442695
    %v488 = vpow.pop %v487
    %v489 = vmul.f32 %v478, 1.442695
    %v490 = vpow.pop %v489
    %v491 = vmul.f32 %v479, 1.442695
    %v492 = vpow.pop %v491
    %v493 = vmul.f32 %v480, 1.442695
    %v494 = vpow.pop %v493
    %v495 = vmul.f32 %v481, 1.442695
    %v496 = vpow.pop %v495
    %v497 = vmul.f32 %v482, 1.442695
    %v498 = vpow.pop %v497
    %v499 = vsel %vm450, %v484, 0.0
    %500 = vadd.xlane.f32.xlu0 %v499
    %v501 = vpop.xlane.xlu0 %500
    %v502 = vsel %vm450, %v486, 0.0
    %503 = vadd.xlane.f32.xlu0 %v502
    %v504 = vpop.xlane.xlu0 %503
    %v505 = vsel %vm450, %v488, 0.0
    %506 = vadd.xlane.f32.xlu0 %v505
    %v507 = vpop.xlane.xlu0 %506
    %v508 = vsel %vm450, %v490, 0.0
    %509 = vadd.xlane.f32.xlu0 %v508
    %v510 = vpop.xlane.xlu0 %509
    %v511 = vsel %vm450, %v492, 0.0
    %512 = vadd.xlane.f32.xlu0 %v511
    %v513 = vpop.xlane.xlu0 %512
    %v514 = vsel %vm450, %v494, 0.0
    %515 = vadd.xlane.f32.xlu0 %v514
    %v516 = vpop.xlane.xlu0 %515
    %v517 = vsel %vm450, %v496, 0.0
    %518 = vadd.xlane.f32.xlu0 %v517
    %v519 = vpop.xlane.xlu0 %518
    %v520 = vsel %vm450, %v498, 0.0
    %521 = vadd.xlane.f32.xlu0 %v520
    %v522 = vpop.xlane.xlu0 %521
    %v523 = vrcp.pop %v501
    %v524 = vrcp.pop %v504
    %v525 = vrcp.pop %v507
    %v526 = vrcp.pop %v510
    %v527 = vrcp.pop %v513
    %v528 = vrcp.pop %v516
    %v529 = vrcp.pop %v519
    %v530 = vrcp.pop %v522
    %v531 = vmul.f32 %v484, %v523
    %v532 = vmul.f32 %v486, %v524
    %v533 = vmul.f32 %v488, %v525
    %v534 = vmul.f32 %v490, %v526
    %v535 = vmul.f32 %v492, %v527
    %v536 = vmul.f32 %v494, %v528
    %v537 = vmul.f32 %v496, %v529
    %v538 = vmul.f32 %v498, %v530
    %v540 = vsel %vm450, %v531, 0
    %v543 = vsel %vm450, %v532, 0
    %v546 = vsel %vm450, %v533, 0
    %v549 = vsel %vm450, %v534, 0
    %v552 = vsel %vm450, %v535, 0
    %v555 = vsel %vm450, %v536, 0
    %v558 = vsel %vm450, %v537, 0
    %v561 = vsel %vm450, %v538, 0
    %563 = vmatprep.subr.mxu0 0.0
    %564 = vmatpush1.msra.mxu0 %v147
    %565 = vmatprep.subr.mxu0 0.0
    %566 = vmatpush1.msra.mxu0 %v153
    %567 = vmatprep.subr.mxu0 0.0
    %568 = vmatpush1.msra.mxu0 %v159
    %569 = vmatprep.subr.mxu0 0.0
    %570 = vmatpush1.msra.mxu0 %v165
    %571 = vmatprep.subr.mxu0 0.0
    %572 = vmatpush1.msra.mxu0 %v171
    %573 = vmatprep.subr.mxu0 0.0
    %574 = vmatpush1.msra.mxu0 %v177
    %575 = vmatprep.subr.mxu0 0.0
    %576 = vmatpush1.msra.mxu0 %v183
    %577 = vmatprep.subr.mxu0 0.0
    %578 = vmatpush1.msra.mxu0 %v189
    %579 = vmatprep.subr.mxu0 0.0
    %580 = vmatpush1.msra.mxu0 0.0
    %581 = vmatprep.subr.mxu0 0.0
    %582 = vmatpush1.msra.mxu0 0.0
    %583 = vmatprep.subr.mxu0 0.0
    %584 = vmatpush1.msra.mxu0 0.0
    %585 = vmatprep.subr.mxu0 0.0
    %586 = vmatpush1.msra.mxu0 0.0
    %587 = vmatprep.subr.mxu0 0.0
    %588 = vmatpush1.msra.mxu0 0.0
    %589 = vmatprep.subr.mxu0 0.0
    %590 = vmatpush1.msra.mxu0 0.0
    %591 = vmatprep.subr.mxu0 0.0
    %592 = vmatpush1.msra.mxu0 0.0
    %593 = vmatprep.subr.mxu0 0.0
    %594 = vmatpush1.msra.mxu0 0.0
    %595 = vmatprep.subr.mxu0 0.0
    %596 = vmatpush1.msra.mxu0 0.0
    %597 = vmatprep.subr.mxu0 0.0
    %598 = vmatpush1.msra.mxu0 0.0
    %599 = vmatprep.subr.mxu0 0.0
    %600 = vmatpush1.msra.mxu0 0.0
    %601 = vmatprep.subr.mxu0 0.0
    %602 = vmatpush1.msra.mxu0 0.0
    %603 = vmatprep.subr.mxu0 0.0
    %604 = vmatpush1.msra.mxu0 0.0
    %605 = vmatprep.subr.mxu0 0.0
    %606 = vmatpush1.msra.mxu0 0.0
    %607 = vmatprep.subr.mxu0 0.0
    %608 = vmatpush1.msra.mxu0 0.0
    %609 = vmatprep.subr.mxu0 0.0
    %610 = vmatpush1.msra.mxu0 0.0
    %611 = vmatprep.subr.mxu0 0.0
    %612 = vmatpush1.msra.mxu0 0.0
    %613 = vmatprep.subr.mxu0 0.0
    %614 = vmatpush1.msra.mxu0 0.0
    %615 = vmatprep.subr.mxu0 0.0
    %616 = vmatpush1.msra.mxu0 0.0
    %617 = vmatprep.subr.mxu0 0.0
    %618 = vmatpush1.msra.mxu0 0.0
    %619 = vmatprep.subr.mxu0 0.0
    %620 = vmatpush1.msra.mxu0 0.0
    %621 = vmatprep.subr.mxu0 0.0
    %622 = vmatpush1.msra.mxu0 0.0
    %623 = vmatprep.subr.mxu0 0.0
    %624 = vmatpush1.msra.mxu0 0.0
    %625 = vmatprep.subr.mxu0 0.0
    %626 = vmatpush1.msra.mxu0 0.0
    %627 = vmatprep.mubr.f32.mxu0 0.0
    %628 = vmatmul.mubr.f32.gmra.mrb[0].mxu0 %v540
    %v629 = vpop.f32.mrb[0].mxu0
    %v630 = vadd.f32 0.0, %v629
    %v631 = vpop.f32.mrb[0].mxu0
    %632 = vmatprep.mubr.f32.mxu0 0.0
    %633 = vmatmul.mubr.f32.gmra.mrb[0].mxu0 %v543
    %v634 = vpop.f32.mrb[0].mxu0
    %v635 = vadd.f32 0.0, %v634
    %v636 = vpop.f32.mrb[0].mxu0
    %637 = vmatprep.mubr.f32.mxu0 0.0
    %638 = vmatmul.mubr.f32.gmra.mrb[0].mxu0 %v546
    %v639 = vpop.f32.mrb[0].mxu0
    %v640 = vadd.f32 0.0, %v639
    %v641 = vpop.f32.mrb[0].mxu0
    %642 = vmatprep.mubr.f32.mxu0 0.0
    %643 = vmatmul.mubr.f32.gmra.mrb[0].mxu0 %v549
    %v644 = vpop.f32.mrb[0].mxu0
    %v645 = vadd.f32 0.0, %v644
    %v646 = vpop.f32.mrb[0].mxu0
    %647 = vmatprep.mubr.f32.mxu0 0.0
    %648 = vmatmul.mubr.f32.gmra.mrb[0].mxu0 %v552
    %v649 = vpop.f32.mrb[0].mxu0
    %v650 = vadd.f32 0.0, %v649
    %v651 = vpop.f32.mrb[0].mxu0
    %652 = vmatprep.mubr.f32.mxu0 0.0
    %653 = vmatmul.mubr.f32.gmra.mrb[0].mxu0 %v555
    %v654 = vpop.f32.mrb[0].mxu0
    %v655 = vadd.f32 0.0, %v654
    %v656 = vpop.f32.mrb[0].mxu0
    %657 = vmatprep.mubr.f32.mxu0 0.0
    %658 = vmatmul.mubr.f32.gmra.mrb[0].mxu0 %v558
    %v659 = vpop.f32.mrb[0].mxu0
    %v660 = vadd.f32 0.0, %v659
    %v661 = vpop.f32.mrb[0].mxu0
    %662 = vmatprep.mubr.f32.mxu0 0.0
    %663 = vmatmul.mubr.f32.gmra.mrb[0].mxu0 %v561
    %v664 = vpop.f32.mrb[0].mxu0
    %v665 = vadd.f32 0.0, %v664
    %v666 = vpop.f32.mrb[0].mxu0
    %667 = vdwg.mxu0
    %668 = vst.msk [vmem:[#allocation2] sm:$0xff] %vm450, %v630
    %669 = vst.msk [vmem:[#allocation2 + $0x10] sm:$0xff] %vm450, %v635
    %670 = vst.msk [vmem:[#allocation2 + $0x20] sm:$0xff] %vm450, %v640
    %671 = vst.msk [vmem:[#allocation2 + $0x30] sm:$0xff] %vm450, %v645
    %672 = vst.msk [vmem:[#allocation2 + $0x40] sm:$0xff] %vm450, %v650
    %673 = vst.msk [vmem:[#allocation2 + $0x50] sm:$0xff] %vm450, %v655
    %674 = vst.msk [vmem:[#allocation2 + $0x60] sm:$0xff] %vm450, %v660
    %675 = vst.msk [vmem:[#allocation2 + $0x70] sm:$0xff] %vm450, %v665
    %676 = vset.pattern.permute.xlu0 1
    %677 = vperm.xlu0 %676, %v266
    %v678 = vpop.permute.xlu0 %677
    %680 = vset.pattern.permute.xlu0 1
    %681 = vperm.xlu0 %680, %v271
    %v682 = vpop.permute.xlu0 %681
    %684 = vset.pattern.permute.xlu0 1
    %685 = vperm.xlu0 %684, %v276
    %v686 = vpop.permute.xlu0 %685
    %688 = vset.pattern.permute.xlu0 1
    %689 = vperm.xlu0 %688, %v281
    %v690 = vpop.permute.xlu0 %689
    %692 = vset.pattern.permute.xlu0 1
    %693 = vperm.xlu0 %692, %v286
    %v694 = vpop.permute.xlu0 %693
    %696 = vset.pattern.permute.xlu0 1
    %697 = vperm.xlu0 %696, %v291
    %v698 = vpop.permute.xlu0 %697
    %700 = vset.pattern.permute.xlu0 1
    %701 = vperm.xlu0 %700, %v296
    %v702 = vpop.permute.xlu0 %701
    %704 = vset.pattern.permute.xlu0 1
    %705 = vperm.xlu0 %704, %v301
    %v706 = vpop.permute.xlu0 %705
    %v708 = vlaneseq
    %v709 = vshrl.u32 %v708, 7
    %v710 = vsub.s32 1, %v709
    %v711 = vrot.slane %v371, %v710
    %v712 = vadd.f32 %v678, %v711
    %v713 = vadd.f32 %v682, %v711
    %v714 = vadd.f32 %v686, %v711
    %v715 = vadd.f32 %v690, %v711
    %v716 = vadd.f32 %v694, %v711
    %v717 = vadd.f32 %v698, %v711
    %v718 = vadd.f32 %v702, %v711
    %v719 = vadd.f32 %v706, %v711
    %v720 = vmul.f32 %v712, 0.2
    %v721 = vmul.f32 %v713, 0.2
    %v722 = vmul.f32 %v714, 0.2
    %v723 = vmul.f32 %v715, 0.2
    %v724 = vmul.f32 %v716, 0.2
    %v725 = vmul.f32 %v717, 0.2
    %v726 = vmul.f32 %v718, 0.2
    %v727 = vmul.f32 %v719, 0.2
    %v728 = vmax.f32 %v712, %v720
    %v729 = vmax.f32 %v713, %v721
    %v730 = vmax.f32 %v714, %v722
    %v731 = vmax.f32 %v715, %v723
    %v732 = vmax.f32 %v716, %v724
    %v733 = vmax.f32 %v717, %v725
    %v734 = vmax.f32 %v718, %v726
    %v735 = vmax.f32 %v719, %v727
    %v736 = vadd.f32 %v728, %v32
    %v737 = vadd.f32 %v729, %v33
    %v738 = vadd.f32 %v730, %v34
    %v739 = vadd.f32 %v731, %v35
    %v740 = vadd.f32 %v732, %v36
    %v741 = vadd.f32 %v733, %v37
    %v742 = vadd.f32 %v734, %v38
    %v743 = vadd.f32 %v735, %v39
    %v744 = vsel %vm450, %v736, -inf
    %745 = vmax.xlane.f32.xlu0 %v744
    %v746 = vpop.xlane.xlu0 %745
    %v747 = vsel %vm450, %v737, -inf
    %748 = vmax.xlane.f32.xlu0 %v747
    %v749 = vpop.xlane.xlu0 %748
    %v750 = vsel %vm450, %v738, -inf
    %751 = vmax.xlane.f32.xlu0 %v750
    %v752 = vpop.xlane.xlu0 %751
    %v753 = vsel %vm450, %v739, -inf
    %754 = vmax.xlane.f32.xlu0 %v753
    %v755 = vpop.xlane.xlu0 %754
    %v756 = vsel %vm450, %v740, -inf
    %757 = vmax.xlane.f32.xlu0 %v756
    %v758 = vpop.xlane.xlu0 %757
    %v759 = vsel %vm450, %v741, -inf
    %760 = vmax.xlane.f32.xlu0 %v759
    %v761 = vpop.xlane.xlu0 %760
    %v762 = vsel %vm450, %v742, -inf
    %763 = vmax.xlane.f32.xlu0 %v762
    %v764 = vpop.xlane.xlu0 %763
    %v765 = vsel %vm450, %v743, -inf
    %766 = vmax.xlane.f32.xlu0 %v765
    %v767 = vpop.xlane.xlu0 %766
    %v768 = vsub.f32 %v736, %v746
    %v769 = vsub.f32 %v737, %v749
    %v770 = vsub.f32 %v738, %v752
    %v771 = vsub.f32 %v739, %v755
    %v772 = vsub.f32 %v740, %v758
    %v773 = vsub.f32 %v741, %v761
    %v774 = vsub.f32 %v742, %v764
    %v775 = vsub.f32 %v743, %v767
    %v776 = vmul.f32 %v768, 1.442695
    %v777 = vpow.pop %v776
    %v778 = vmul.f32 %v769, 1.442695
    %v779 = vpow.pop %v778
    %v780 = vmul.f32 %v770, 1.442695
    %v781 = vpow.pop %v780
    %v782 = vmul.f32 %v771, 1.442695
    %v783 = vpow.pop %v782
    %v784 = vmul.f32 %v772, 1.442695
    %v785 = vpow.pop %v784
    %v786 = vmul.f32 %v773, 1.442695
    %v787 = vpow.pop %v786
    %v788 = vmul.f32 %v774, 1.442695
    %v789 = vpow.pop %v788
    %v790 = vmul.f32 %v775, 1.442695
    %v791 = vpow.pop %v790
    %v792 = vsel %vm450, %v777, 0.0
    %793 = vadd.xlane.f32.xlu0 %v792
    %v794 = vpop.xlane.xlu0 %793
    %v795 = vsel %vm450, %v779, 0.0
    %796 = vadd.xlane.f32.xlu0 %v795
    %v797 = vpop.xlane.xlu0 %796
    %v798 = vsel %vm450, %v781, 0.0
    %799 = vadd.xlane.f32.xlu0 %v798
    %v800 = vpop.xlane.xlu0 %799
    %v801 = vsel %vm450, %v783, 0.0
    %802 = vadd.xlane.f32.xlu0 %v801
    %v803 = vpop.xlane.xlu0 %802
    %v804 = vsel %vm450, %v785, 0.0
    %805 = vadd.xlane.f32.xlu0 %v804
    %v806 = vpop.xlane.xlu0 %805
    %v807 = vsel %vm450, %v787, 0.0
    %808 = vadd.xlane.f32.xlu0 %v807
    %v809 = vpop.xlane.xlu0 %808
    %v810 = vsel %vm450, %v789, 0.0
    %811 = vadd.xlane.f32.xlu0 %v810
    %v812 = vpop.xlane.xlu0 %811
    %v813 = vsel %vm450, %v791, 0.0
    %814 = vadd.xlane.f32.xlu0 %v813
    %v815 = vpop.xlane.xlu0 %814
    %v816 = vrcp.pop %v794
    %v817 = vrcp.pop %v797
    %v818 = vrcp.pop %v800
    %v819 = vrcp.pop %v803
    %v820 = vrcp.pop %v806
    %v821 = vrcp.pop %v809
    %v822 = vrcp.pop %v812
    %v823 = vrcp.pop %v815
    %v824 = vmul.f32 %v777, %v816
    %v825 = vmul.f32 %v779, %v817
    %v826 = vmul.f32 %v781, %v818
    %v827 = vmul.f32 %v783, %v819
    %v828 = vmul.f32 %v785, %v820
    %v829 = vmul.f32 %v787, %v821
    %v830 = vmul.f32 %v789, %v822
    %v831 = vmul.f32 %v791, %v823
    %840 = vrot.lane.b32.xlu0 %v147, 64
    %v841 = vpop.permute.xlu0 %840
    %842 = vrot.lane.b32.xlu0 %v153, 64
    %v843 = vpop.permute.xlu0 %842
    %844 = vrot.lane.b32.xlu0 %v159, 64
    %v845 = vpop.permute.xlu0 %844
    %846 = vrot.lane.b32.xlu0 %v165, 64
    %v847 = vpop.permute.xlu0 %846
    %848 = vrot.lane.b32.xlu0 %v171, 64
    %v849 = vpop.permute.xlu0 %848
    %850 = vrot.lane.b32.xlu0 %v177, 64
    %v851 = vpop.permute.xlu0 %850
    %852 = vrot.lane.b32.xlu0 %v183, 64
    %v853 = vpop.permute.xlu0 %852
    %854 = vrot.lane.b32.xlu0 %v189, 64
    %v855 = vpop.permute.xlu0 %854
    %v865 = vsel %vm450, %v824, 0
    %v868 = vsel %vm450, %v825, 0
    %v871 = vsel %vm450, %v826, 0
    %v874 = vsel %vm450, %v827, 0
    %v877 = vsel %vm450, %v828, 0
    %v880 = vsel %vm450, %v829, 0
    %v883 = vsel %vm450, %v830, 0
    %v886 = vsel %vm450, %v831, 0
    %888 = vmatprep.subr.mxu0 0.0
    %889 = vmatpush1.msra.mxu0 %v841
    %890 = vmatprep.subr.mxu0 0.0
    %891 = vmatpush1.msra.mxu0 %v843
    %892 = vmatprep.subr.mxu0 0.0
    %893 = vmatpush1.msra.mxu0 %v845
    %894 = vmatprep.subr.mxu0 0.0
    %895 = vmatpush1.msra.mxu0 %v847
    %896 = vmatprep.subr.mxu0 0.0
    %897 = vmatpush1.msra.mxu0 %v849
    %898 = vmatprep.subr.mxu0 0.0
    %899 = vmatpush1.msra.mxu0 %v851
    %900 = vmatprep.subr.mxu0 0.0
    %901 = vmatpush1.msra.mxu0 %v853
    %902 = vmatprep.subr.mxu0 0.0
    %903 = vmatpush1.msra.mxu0 %v855
    %904 = vmatprep.subr.mxu0 0.0
    %905 = vmatpush1.msra.mxu0 0.0
    %906 = vmatprep.subr.mxu0 0.0
    %907 = vmatpush1.msra.mxu0 0.0
    %908 = vmatprep.subr.mxu0 0.0
    %909 = vmatpush1.msra.mxu0 0.0
    %910 = vmatprep.subr.mxu0 0.0
    %911 = vmatpush1.msra.mxu0 0.0
    %912 = vmatprep.subr.mxu0 0.0
    %913 = vmatpush1.msra.mxu0 0.0
    %914 = vmatprep.subr.mxu0 0.0
    %915 = vmatpush1.msra.mxu0 0.0
    %916 = vmatprep.subr.mxu0 0.0
    %917 = vmatpush1.msra.mxu0 0.0
    %918 = vmatprep.subr.mxu0 0.0
    %919 = vmatpush1.msra.mxu0 0.0
    %920 = vmatprep.subr.mxu0 0.0
    %921 = vmatpush1.msra.mxu0 0.0
    %922 = vmatprep.subr.mxu0 0.0
    %923 = vmatpush1.msra.mxu0 0.0
    %924 = vmatprep.subr.mxu0 0.0
    %925 = vmatpush1.msra.mxu0 0.0
    %926 = vmatprep.subr.mxu0 0.0
    %927 = vmatpush1.msra.mxu0 0.0
    %928 = vmatprep.subr.mxu0 0.0
    %929 = vmatpush1.msra.mxu0 0.0
    %930 = vmatprep.subr.mxu0 0.0
    %931 = vmatpush1.msra.mxu0 0.0
    %932 = vmatprep.subr.mxu0 0.0
    %933 = vmatpush1.msra.mxu0 0.0
    %934 = vmatprep.subr.mxu0 0.0
    %935 = vmatpush1.msra.mxu0 0.0
    %936 = vmatprep.subr.mxu0 0.0
    %937 = vmatpush1.msra.mxu0 0.0
    %938 = vmatprep.subr.mxu0 0.0
    %939 = vmatpush1.msra.mxu0 0.0
    %940 = vmatprep.subr.mxu0 0.0
    %941 = vmatpush1.msra.mxu0 0.0
    %942 = vmatprep.subr.mxu0 0.0
    %943 = vmatpush1.msra.mxu0 0.0
    %944 = vmatprep.subr.mxu0 0.0
    %945 = vmatpush1.msra.mxu0 0.0
    %946 = vmatprep.subr.mxu0 0.0
    %947 = vmatpush1.msra.mxu0 0.0
    %948 = vmatprep.subr.mxu0 0.0
    %949 = vmatpush1.msra.mxu0 0.0
    %950 = vmatprep.subr.mxu0 0.0
    %951 = vmatpush1.msra.mxu0 0.0
    %952 = vmatprep.mubr.f32.mxu0 0.0
    %953 = vmatmul.mubr.f32.gmra.mrb[0].mxu0 %v865
    %v954 = vpop.f32.mrb[0].mxu0
    %v955 = vadd.f32 0.0, %v954
    %v956 = vpop.f32.mrb[0].mxu0
    %957 = vmatprep.mubr.f32.mxu0 0.0
    %958 = vmatmul.mubr.f32.gmra.mrb[0].mxu0 %v868
    %v959 = vpop.f32.mrb[0].mxu0
    %v960 = vadd.f32 0.0, %v959
    %v961 = vpop.f32.mrb[0].mxu0
    %962 = vmatprep.mubr.f32.mxu0 0.0
    %963 = vmatmul.mubr.f32.gmra.mrb[0].mxu0 %v871
    %v964 = vpop.f32.mrb[0].mxu0
    %v965 = vadd.f32 0.0, %v964
    %v966 = vpop.f32.mrb[0].mxu0
    %967 = vmatprep.mubr.f32.mxu0 0.0
    %968 = vmatmul.mubr.f32.gmra.mrb[0].mxu0 %v874
    %v969 = vpop.f32.mrb[0].mxu0
    %v970 = vadd.f32 0.0, %v969
    %v971 = vpop.f32.mrb[0].mxu0
    %972 = vmatprep.mubr.f32.mxu0 0.0
    %973 = vmatmul.mubr.f32.gmra.mrb[0].mxu0 %v877
    %v974 = vpop.f32.mrb[0].mxu0
    %v975 = vadd.f32 0.0, %v974
    %v976 = vpop.f32.mrb[0].mxu0
    %977 = vmatprep.mubr.f32.mxu0 0.0
    %978 = vmatmul.mubr.f32.gmra.mrb[0].mxu0 %v880
    %v979 = vpop.f32.mrb[0].mxu0
    %v980 = vadd.f32 0.0, %v979
    %v981 = vpop.f32.mrb[0].mxu0
    %982 = vmatprep.mubr.f32.mxu0 0.0
    %983 = vmatmul.mubr.f32.gmra.mrb[0].mxu0 %v883
    %v984 = vpop.f32.mrb[0].mxu0
    %v985 = vadd.f32 0.0, %v984
    %v986 = vpop.f32.mrb[0].mxu0
    %987 = vmatprep.mubr.f32.mxu0 0.0
    %988 = vmatmul.mubr.f32.gmra.mrb[0].mxu0 %v886
    %v989 = vpop.f32.mrb[0].mxu0
    %v990 = vadd.f32 0.0, %v989
    %v991 = vpop.f32.mrb[0].mxu0
    %992 = vdwg.mxu0
    %1001 = vrot.lane.b32.xlu0 %v955, 64
    %v1002 = vpop.permute.xlu0 %1001
    %1003 = vrot.lane.b32.xlu0 %v960, 64
    %v1004 = vpop.permute.xlu0 %1003
    %1005 = vrot.lane.b32.xlu0 %v965, 64
    %v1006 = vpop.permute.xlu0 %1005
    %1007 = vrot.lane.b32.xlu0 %v970, 64
    %v1008 = vpop.permute.xlu0 %1007
    %1009 = vrot.lane.b32.xlu0 %v975, 64
    %v1010 = vpop.permute.xlu0 %1009
    %1011 = vrot.lane.b32.xlu0 %v980, 64
    %v1012 = vpop.permute.xlu0 %1011
    %1013 = vrot.lane.b32.xlu0 %v985, 64
    %v1014 = vpop.permute.xlu0 %1013
    %1015 = vrot.lane.b32.xlu0 %v990, 64
    %v1016 = vpop.permute.xlu0 %1015
    %vm1025 = vcmask 1048064
    %1026 = vst.msk [vmem:[#allocation2] sm:$0xff] %vm1025, %v1002
    %1027 = vst.msk [vmem:[#allocation2 + $0x10] sm:$0xff] %vm1025, %v1004
    %1028 = vst.msk [vmem:[#allocation2 + $0x20] sm:$0xff] %vm1025, %v1006
    %1029 = vst.msk [vmem:[#allocation2 + $0x30] sm:$0xff] %vm1025, %v1008
    %1030 = vst.msk [vmem:[#allocation2 + $0x40] sm:$0xff] %vm1025, %v1010
    %1031 = vst.msk [vmem:[#allocation2 + $0x50] sm:$0xff] %vm1025, %v1012
    %1032 = vst.msk [vmem:[#allocation2 + $0x60] sm:$0xff] %vm1025, %v1014
    %1033 = vst.msk [vmem:[#allocation2 + $0x70] sm:$0xff] %vm1025, %v1016
    %1034 = vset.pattern.permute.xlu0 2
    %1035 = vperm.xlu0 %1034, %v266
    %v1036 = vpop.permute.xlu0 %1035
    %1038 = vset.pattern.permute.xlu0 2
    %1039 = vperm.xlu0 %1038, %v271
    %v1040 = vpop.permute.xlu0 %1039
    %1042 = vset.pattern.permute.xlu0 2
    %1043 = vperm.xlu0 %1042, %v276
    %v1044 = vpop.permute.xlu0 %1043
    %1046 = vset.pattern.permute.xlu0 2
    %1047 = vperm.xlu0 %1046, %v281
    %v1048 = vpop.permute.xlu0 %1047
    %1050 = vset.pattern.permute.xlu0 2
    %1051 = vperm.xlu0 %1050, %v286
    %v1052 = vpop.permute.xlu0 %1051
    %1054 = vset.pattern.permute.xlu0 2
    %1055 = vperm.xlu0 %1054, %v291
    %v1056 = vpop.permute.xlu0 %1055
    %1058 = vset.pattern.permute.xlu0 2
    %1059 = vperm.xlu0 %1058, %v296
    %v1060 = vpop.permute.xlu0 %1059
    %1062 = vset.pattern.permute.xlu0 2
    %1063 = vperm.xlu0 %1062, %v301
    %v1064 = vpop.permute.xlu0 %1063
    %v1066 = vlaneseq
    %v1067 = vshrl.u32 %v1066, 7
    %v1068 = vsub.s32 2, %v1067
    %v1069 = vrot.slane %v371, %v1068
    %v1070 = vadd.f32 %v1036, %v1069
    %v1071 = vadd.f32 %v1040, %v1069
    %v1072 = vadd.f32 %v1044, %v1069
    %v1073 = vadd.f32 %v1048, %v1069
    %v1074 = vadd.f32 %v1052, %v1069
    %v1075 = vadd.f32 %v1056, %v1069
    %v1076 = vadd.f32 %v1060, %v1069
    %v1077 = vadd.f32 %v1064, %v1069
    %v1078 = vmul.f32 %v1070, 0.2
    %v1079 = vmul.f32 %v1071, 0.2
    %v1080 = vmul.f32 %v1072, 0.2
    %v1081 = vmul.f32 %v1073, 0.2
    %v1082 = vmul.f32 %v1074, 0.2
    %v1083 = vmul.f32 %v1075, 0.2
    %v1084 = vmul.f32 %v1076, 0.2
    %v1085 = vmul.f32 %v1077, 0.2
    %v1086 = vmax.f32 %v1070, %v1078
    %v1087 = vmax.f32 %v1071, %v1079
    %v1088 = vmax.f32 %v1072, %v1080
    %v1089 = vmax.f32 %v1073, %v1081
    %v1090 = vmax.f32 %v1074, %v1082
    %v1091 = vmax.f32 %v1075, %v1083
    %v1092 = vmax.f32 %v1076, %v1084
    %v1093 = vmax.f32 %v1077, %v1085
    %v1094 = vadd.f32 %v1086, %v32
    %v1095 = vadd.f32 %v1087, %v33
    %v1096 = vadd.f32 %v1088, %v34
    %v1097 = vadd.f32 %v1089, %v35
    %v1098 = vadd.f32 %v1090, %v36
    %v1099 = vadd.f32 %v1091, %v37
    %v1100 = vadd.f32 %v1092, %v38
    %v1101 = vadd.f32 %v1093, %v39
    %v1102 = vsel %vm450, %v1094, -inf
    %1103 = vmax.xlane.f32.xlu0 %v1102
    %v1104 = vpop.xlane.xlu0 %1103
    %v1105 = vsel %vm450, %v1095, -inf
    %1106 = vmax.xlane.f32.xlu0 %v1105
    %v1107 = vpop.xlane.xlu0 %1106
    %v1108 = vsel %vm450, %v1096, -inf
    %1109 = vmax.xlane.f32.xlu0 %v1108
    %v1110 = vpop.xlane.xlu0 %1109
    %v1111 = vsel %vm450, %v1097, -inf
    %1112 = vmax.xlane.f32.xlu0 %v1111
    %v1113 = vpop.xlane.xlu0 %1112
    %v1114 = vsel %vm450, %v1098, -inf
    %1115 = vmax.xlane.f32.xlu0 %v1114
    %v1116 = vpop.xlane.xlu0 %1115
    %v1117 = vsel %vm450, %v1099, -inf
    %1118 = vmax.xlane.f32.xlu0 %v1117
    %v1119 = vpop.xlane.xlu0 %1118
    %v1120 = vsel %vm450, %v1100, -inf
    %1121 = vmax.xlane.f32.xlu0 %v1120
    %v1122 = vpop.xlane.xlu0 %1121
    %v1123 = vsel %vm450, %v1101, -inf
    %1124 = vmax.xlane.f32.xlu0 %v1123
    %v1125 = vpop.xlane.xlu0 %1124
    %v1126 = vsub.f32 %v1094, %v1104
    %v1127 = vsub.f32 %v1095, %v1107
    %v1128 = vsub.f32 %v1096, %v1110
    %v1129 = vsub.f32 %v1097, %v1113
    %v1130 = vsub.f32 %v1098, %v1116
    %v1131 = vsub.f32 %v1099, %v1119
    %v1132 = vsub.f32 %v1100, %v1122
    %v1133 = vsub.f32 %v1101, %v1125
    %v1134 = vmul.f32 %v1126, 1.442695
    %v1135 = vpow.pop %v1134
    %v1136 = vmul.f32 %v1127, 1.442695
    %v1137 = vpow.pop %v1136
    %v1138 = vmul.f32 %v1128, 1.442695
    %v1139 = vpow.pop %v1138
    %v1140 = vmul.f32 %v1129, 1.442695
    %v1141 = vpow.pop %v1140
    %v1142 = vmul.f32 %v1130, 1.442695
    %v1143 = vpow.pop %v1142
    %v1144 = vmul.f32 %v1131, 1.442695
    %v1145 = vpow.pop %v1144
    %v1146 = vmul.f32 %v1132, 1.442695
    %v1147 = vpow.pop %v1146
    %v1148 = vmul.f32 %v1133, 1.442695
    %v1149 = vpow.pop %v1148
    %v1150 = vsel %vm450, %v1135, 0.0
    %1151 = vadd.xlane.f32.xlu0 %v1150
    %v1152 = vpop.xlane.xlu0 %1151
    %v1153 = vsel %vm450, %v1137, 0.0
    %1154 = vadd.xlane.f32.xlu0 %v1153
    %v1155 = vpop.xlane.xlu0 %1154
    %v1156 = vsel %vm450, %v1139, 0.0
    %1157 = vadd.xlane.f32.xlu0 %v1156
    %v1158 = vpop.xlane.xlu0 %1157
    %v1159 = vsel %vm450, %v1141, 0.0
    %1160 = vadd.xlane.f32.xlu0 %v1159
    %v1161 = vpop.xlane.xlu0 %1160
    %v1162 = vsel %vm450, %v1143, 0.0
    %1163 = vadd.xlane.f32.xlu0 %v1162
    %v1164 = vpop.xlane.xlu0 %1163
    %v1165 = vsel %vm450, %v1145, 0.0
    %1166 = vadd.xlane.f32.xlu0 %v1165
    %v1167 = vpop.xlane.xlu0 %1166
    %v1168 = vsel %vm450, %v1147, 0.0
    %1169 = vadd.xlane.f32.xlu0 %v1168
    %v1170 = vpop.xlane.xlu0 %1169
    %v1171 = vsel %vm450, %v1149, 0.0
    %1172 = vadd.xlane.f32.xlu0 %v1171
    %v1173 = vpop.xlane.xlu0 %1172
    %v1174 = vrcp.pop %v1152
    %v1175 = vrcp.pop %v1155
    %v1176 = vrcp.pop %v1158
    %v1177 = vrcp.pop %v1161
    %v1178 = vrcp.pop %v1164
    %v1179 = vrcp.pop %v1167
    %v1180 = vrcp.pop %v1170
    %v1181 = vrcp.pop %v1173
    %v1182 = vmul.f32 %v1135, %v1174
    %v1183 = vmul.f32 %v1137, %v1175
    %v1184 = vmul.f32 %v1139, %v1176
    %v1185 = vmul.f32 %v1141, %v1177
    %v1186 = vmul.f32 %v1143, %v1178
    %v1187 = vmul.f32 %v1145, %v1179
    %v1188 = vmul.f32 %v1147, %v1180
    %v1189 = vmul.f32 %v1149, %v1181
    %v1191 = vsel %vm450, %v1182, 0
    %v1194 = vsel %vm450, %v1183, 0
    %v1197 = vsel %vm450, %v1184, 0
    %v1200 = vsel %vm450, %v1185, 0
    %v1203 = vsel %vm450, %v1186, 0
    %v1206 = vsel %vm450, %v1187, 0
    %v1209 = vsel %vm450, %v1188, 0
    %v1212 = vsel %vm450, %v1189, 0
    %1214 = vmatprep.subr.mxu0 0.0
    %1215 = vmatpush1.msra.mxu0 %v149
    %1216 = vmatprep.subr.mxu0 0.0
    %1217 = vmatpush1.msra.mxu0 %v155
    %1218 = vmatprep.subr.mxu0 0.0
    %1219 = vmatpush1.msra.mxu0 %v161
    %1220 = vmatprep.subr.mxu0 0.0
    %1221 = vmatpush1.msra.mxu0 %v167
    %1222 = vmatprep.subr.mxu0 0.0
    %1223 = vmatpush1.msra.mxu0 %v173
    %1224 = vmatprep.subr.mxu0 0.0
    %1225 = vmatpush1.msra.mxu0 %v179
    %1226 = vmatprep.subr.mxu0 0.0
    %1227 = vmatpush1.msra.mxu0 %v185
    %1228 = vmatprep.subr.mxu0 0.0
    %1229 = vmatpush1.msra.mxu0 %v191
    %1230 = vmatprep.subr.mxu0 0.0
    %1231 = vmatpush1.msra.mxu0 0.0
    %1232 = vmatprep.subr.mxu0 0.0
    %1233 = vmatpush1.msra.mxu0 0.0
    %1234 = vmatprep.subr.mxu0 0.0
    %1235 = vmatpush1.msra.mxu0 0.0
    %1236 = vmatprep.subr.mxu0 0.0
    %1237 = vmatpush1.msra.mxu0 0.0
    %1238 = vmatprep.subr.mxu0 0.0
    %1239 = vmatpush1.msra.mxu0 0.0
    %1240 = vmatprep.subr.mxu0 0.0
    %1241 = vmatpush1.msra.mxu0 0.0
    %1242 = vmatprep.subr.mxu0 0.0
    %1243 = vmatpush1.msra.mxu0 0.0
    %1244 = vmatprep.subr.mxu0 0.0
    %1245 = vmatpush1.msra.mxu0 0.0
    %1246 = vmatprep.subr.mxu0 0.0
    %1247 = vmatpush1.msra.mxu0 0.0
    %1248 = vmatprep.subr.mxu0 0.0
    %1249 = vmatpush1.msra.mxu0 0.0
    %1250 = vmatprep.subr.mxu0 0.0
    %1251 = vmatpush1.msra.mxu0 0.0
    %1252 = vmatprep.subr.mxu0 0.0
    %1253 = vmatpush1.msra.mxu0 0.0
    %1254 = vmatprep.subr.mxu0 0.0
    %1255 = vmatpush1.msra.mxu0 0.0
    %1256 = vmatprep.subr.mxu0 0.0
    %1257 = vmatpush1.msra.mxu0 0.0
    %1258 = vmatprep.subr.mxu0 0.0
    %1259 = vmatpush1.msra.mxu0 0.0
    %1260 = vmatprep.subr.mxu0 0.0
    %1261 = vmatpush1.msra.mxu0 0.0
    %1262 = vmatprep.subr.mxu0 0.0
    %1263 = vmatpush1.msra.mxu0 0.0
    %1264 = vmatprep.subr.mxu0 0.0
    %1265 = vmatpush1.msra.mxu0 0.0
    %1266 = vmatprep.subr.mxu0 0.0
    %1267 = vmatpush1.msra.mxu0 0.0
    %1268 = vmatprep.subr.mxu0 0.0
    %1269 = vmatpush1.msra.mxu0 0.0
    %1270 = vmatprep.subr.mxu0 0.0
    %1271 = vmatpush1.msra.mxu0 0.0
    %1272 = vmatprep.subr.mxu0 0.0
    %1273 = vmatpush1.msra.mxu0 0.0
    %1274 = vmatprep.subr.mxu0 0.0
    %1275 = vmatpush1.msra.mxu0 0.0
    %1276 = vmatprep.subr.mxu0 0.0
    %1277 = vmatpush1.msra.mxu0 0.0
    %1278 = vmatprep.mubr.f32.mxu0 0.0
    %1279 = vmatmul.mubr.f32.gmra.mrb[0].mxu0 %v1191
    %v1280 = vpop.f32.mrb[0].mxu0
    %v1281 = vadd.f32 0.0, %v1280
    %v1282 = vpop.f32.mrb[0].mxu0
    %1283 = vmatprep.mubr.f32.mxu0 0.0
    %1284 = vmatmul.mubr.f32.gmra.mrb[0].mxu0 %v1194
    %v1285 = vpop.f32.mrb[0].mxu0
    %v1286 = vadd.f32 0.0, %v1285
    %v1287 = vpop.f32.mrb[0].mxu0
    %1288 = vmatprep.mubr.f32.mxu0 0.0
    %1289 = vmatmul.mubr.f32.gmra.mrb[0].mxu0 %v1197
    %v1290 = vpop.f32.mrb[0].mxu0
    %v1291 = vadd.f32 0.0, %v1290
    %v1292 = vpop.f32.mrb[0].mxu0
    %1293 = vmatprep.mubr.f32.mxu0 0.0
    %1294 = vmatmul.mubr.f32.gmra.mrb[0].mxu0 %v1200
    %v1295 = vpop.f32.mrb[0].mxu0
    %v1296 = vadd.f32 0.0, %v1295
    %v1297 = vpop.f32.mrb[0].mxu0
    %1298 = vmatprep.mubr.f32.mxu0 0.0
    %1299 = vmatmul.mubr.f32.gmra.mrb[0].mxu0 %v1203
    %v1300 = vpop.f32.mrb[0].mxu0
    %v1301 = vadd.f32 0.0, %v1300
    %v1302 = vpop.f32.mrb[0].mxu0
    %1303 = vmatprep.mubr.f32.mxu0 0.0
    %1304 = vmatmul.mubr.f32.gmra.mrb[0].mxu0 %v1206
    %v1305 = vpop.f32.mrb[0].mxu0
    %v1306 = vadd.f32 0.0, %v1305
    %v1307 = vpop.f32.mrb[0].mxu0
    %1308 = vmatprep.mubr.f32.mxu0 0.0
    %1309 = vmatmul.mubr.f32.gmra.mrb[0].mxu0 %v1209
    %v1310 = vpop.f32.mrb[0].mxu0
    %v1311 = vadd.f32 0.0, %v1310
    %v1312 = vpop.f32.mrb[0].mxu0
    %1313 = vmatprep.mubr.f32.mxu0 0.0
    %1314 = vmatmul.mubr.f32.gmra.mrb[0].mxu0 %v1212
    %v1315 = vpop.f32.mrb[0].mxu0
    %v1316 = vadd.f32 0.0, %v1315
    %v1317 = vpop.f32.mrb[0].mxu0
    %1318 = vdwg.mxu0
    %1319 = vst.msk [vmem:[#allocation2 + $0x8] sm:$0xff] %vm450, %v1281
    %1320 = vst.msk [vmem:[#allocation2 + $0x18] sm:$0xff] %vm450, %v1286
    %1321 = vst.msk [vmem:[#allocation2 + $0x28] sm:$0xff] %vm450, %v1291
    %1322 = vst.msk [vmem:[#allocation2 + $0x38] sm:$0xff] %vm450, %v1296
    %1323 = vst.msk [vmem:[#allocation2 + $0x48] sm:$0xff] %vm450, %v1301
    %1324 = vst.msk [vmem:[#allocation2 + $0x58] sm:$0xff] %vm450, %v1306
    %1325 = vst.msk [vmem:[#allocation2 + $0x68] sm:$0xff] %vm450, %v1311
    %1326 = vst.msk [vmem:[#allocation2 + $0x78] sm:$0xff] %vm450, %v1316
    %1327 = vset.pattern.permute.xlu0 3
    %1328 = vperm.xlu0 %1327, %v266
    %v1329 = vpop.permute.xlu0 %1328
    %1331 = vset.pattern.permute.xlu0 3
    %1332 = vperm.xlu0 %1331, %v271
    %v1333 = vpop.permute.xlu0 %1332
    %1335 = vset.pattern.permute.xlu0 3
    %1336 = vperm.xlu0 %1335, %v276
    %v1337 = vpop.permute.xlu0 %1336
    %1339 = vset.pattern.permute.xlu0 3
    %1340 = vperm.xlu0 %1339, %v281
    %v1341 = vpop.permute.xlu0 %1340
    %1343 = vset.pattern.permute.xlu0 3
    %1344 = vperm.xlu0 %1343, %v286
    %v1345 = vpop.permute.xlu0 %1344
    %1347 = vset.pattern.permute.xlu0 3
    %1348 = vperm.xlu0 %1347, %v291
    %v1349 = vpop.permute.xlu0 %1348
    %1351 = vset.pattern.permute.xlu0 3
    %1352 = vperm.xlu0 %1351, %v296
    %v1353 = vpop.permute.xlu0 %1352
    %1355 = vset.pattern.permute.xlu0 3
    %1356 = vperm.xlu0 %1355, %v301
    %v1357 = vpop.permute.xlu0 %1356
    %v1359 = vlaneseq
    %v1360 = vshrl.u32 %v1359, 7
    %v1361 = vsub.s32 3, %v1360
    %v1362 = vrot.slane %v371, %v1361
    %v1363 = vadd.f32 %v1329, %v1362
    %v1364 = vadd.f32 %v1333, %v1362
    %v1365 = vadd.f32 %v1337, %v1362
    %v1366 = vadd.f32 %v1341, %v1362
    %v1367 = vadd.f32 %v1345, %v1362
    %v1368 = vadd.f32 %v1349, %v1362
    %v1369 = vadd.f32 %v1353, %v1362
    %v1370 = vadd.f32 %v1357, %v1362
    %v1371 = vmul.f32 %v1363, 0.2
    %v1372 = vmul.f32 %v1364, 0.2
    %v1373 = vmul.f32 %v1365, 0.2
    %v1374 = vmul.f32 %v1366, 0.2
    %v1375 = vmul.f32 %v1367, 0.2
    %v1376 = vmul.f32 %v1368, 0.2
    %v1377 = vmul.f32 %v1369, 0.2
    %v1378 = vmul.f32 %v1370, 0.2
    %v1379 = vmax.f32 %v1363, %v1371
    %v1380 = vmax.f32 %v1364, %v1372
    %v1381 = vmax.f32 %v1365, %v1373
    %v1382 = vmax.f32 %v1366, %v1374
    %v1383 = vmax.f32 %v1367, %v1375
    %v1384 = vmax.f32 %v1368, %v1376
    %v1385 = vmax.f32 %v1369, %v1377
    %v1386 = vmax.f32 %v1370, %v1378
    %v1387 = vadd.f32 %v1379, %v32
    %v1388 = vadd.f32 %v1380, %v33
    %v1389 = vadd.f32 %v1381, %v34
    %v1390 = vadd.f32 %v1382, %v35
    %v1391 = vadd.f32 %v1383, %v36
    %v1392 = vadd.f32 %v1384, %v37
    %v1393 = vadd.f32 %v1385, %v38
    %v1394 = vadd.f32 %v1386, %v39
    %v1395 = vsel %vm450, %v1387, -inf
    %1396 = vmax.xlane.f32.xlu0 %v1395
    %v1397 = vpop.xlane.xlu0 %1396
    %v1398 = vsel %vm450, %v1388, -inf
    %1399 = vmax.xlane.f32.xlu0 %v1398
    %v1400 = vpop.xlane.xlu0 %1399
    %v1401 = vsel %vm450, %v1389, -inf
    %1402 = vmax.xlane.f32.xlu0 %v1401
    %v1403 = vpop.xlane.xlu0 %1402
    %v1404 = vsel %vm450, %v1390, -inf
    %1405 = vmax.xlane.f32.xlu0 %v1404
    %v1406 = vpop.xlane.xlu0 %1405
    %v1407 = vsel %vm450, %v1391, -inf
    %1408 = vmax.xlane.f32.xlu0 %v1407
    %v1409 = vpop.xlane.xlu0 %1408
    %v1410 = vsel %vm450, %v1392, -inf
    %1411 = vmax.xlane.f32.xlu0 %v1410
    %v1412 = vpop.xlane.xlu0 %1411
    %v1413 = vsel %vm450, %v1393, -inf
    %1414 = vmax.xlane.f32.xlu0 %v1413
    %v1415 = vpop.xlane.xlu0 %1414
    %v1416 = vsel %vm450, %v1394, -inf
    %1417 = vmax.xlane.f32.xlu0 %v1416
    %v1418 = vpop.xlane.xlu0 %1417
    %v1419 = vsub.f32 %v1387, %v1397
    %v1420 = vsub.f32 %v1388, %v1400
    %v1421 = vsub.f32 %v1389, %v1403
    %v1422 = vsub.f32 %v1390, %v1406
    %v1423 = vsub.f32 %v1391, %v1409
    %v1424 = vsub.f32 %v1392, %v1412
    %v1425 = vsub.f32 %v1393, %v1415
    %v1426 = vsub.f32 %v1394, %v1418
    %v1427 = vmul.f32 %v1419, 1.442695
    %v1428 = vpow.pop %v1427
    %v1429 = vmul.f32 %v1420, 1.442695
    %v1430 = vpow.pop %v1429
    %v1431 = vmul.f32 %v1421, 1.442695
    %v1432 = vpow.pop %v1431
    %v1433 = vmul.f32 %v1422, 1.442695
    %v1434 = vpow.pop %v1433
    %v1435 = vmul.f32 %v1423, 1.442695
    %v1436 = vpow.pop %v1435
    %v1437 = vmul.f32 %v1424, 1.442695
    %v1438 = vpow.pop %v1437
    %v1439 = vmul.f32 %v1425, 1.442695
    %v1440 = vpow.pop %v1439
    %v1441 = vmul.f32 %v1426, 1.442695
    %v1442 = vpow.pop %v1441
    %v1443 = vsel %vm450, %v1428, 0.0
    %1444 = vadd.xlane.f32.xlu0 %v1443
    %v1445 = vpop.xlane.xlu0 %1444
    %v1446 = vsel %vm450, %v1430, 0.0
    %1447 = vadd.xlane.f32.xlu0 %v1446
    %v1448 = vpop.xlane.xlu0 %1447
    %v1449 = vsel %vm450, %v1432, 0.0
    %1450 = vadd.xlane.f32.xlu0 %v1449
    %v1451 = vpop.xlane.xlu0 %1450
    %v1452 = vsel %vm450, %v1434, 0.0
    %1453 = vadd.xlane.f32.xlu0 %v1452
    %v1454 = vpop.xlane.xlu0 %1453
    %v1455 = vsel %vm450, %v1436, 0.0
    %1456 = vadd.xlane.f32.xlu0 %v1455
    %v1457 = vpop.xlane.xlu0 %1456
    %v1458 = vsel %vm450, %v1438, 0.0
    %1459 = vadd.xlane.f32.xlu0 %v1458
    %v1460 = vpop.xlane.xlu0 %1459
    %v1461 = vsel %vm450, %v1440, 0.0
    %1462 = vadd.xlane.f32.xlu0 %v1461
    %v1463 = vpop.xlane.xlu0 %1462
    %v1464 = vsel %vm450, %v1442, 0.0
    %1465 = vadd.xlane.f32.xlu0 %v1464
    %v1466 = vpop.xlane.xlu0 %1465
    %v1467 = vrcp.pop %v1445
    %v1468 = vrcp.pop %v1448
    %v1469 = vrcp.pop %v1451
    %v1470 = vrcp.pop %v1454
    %v1471 = vrcp.pop %v1457
    %v1472 = vrcp.pop %v1460
    %v1473 = vrcp.pop %v1463
    %v1474 = vrcp.pop %v1466
    %v1475 = vmul.f32 %v1428, %v1467
    %v1476 = vmul.f32 %v1430, %v1468
    %v1477 = vmul.f32 %v1432, %v1469
    %v1478 = vmul.f32 %v1434, %v1470
    %v1479 = vmul.f32 %v1436, %v1471
    %v1480 = vmul.f32 %v1438, %v1472
    %v1481 = vmul.f32 %v1440, %v1473
    %v1482 = vmul.f32 %v1442, %v1474
    %1491 = vrot.lane.b32.xlu0 %v149, 64
    %v1492 = vpop.permute.xlu0 %1491
    %1493 = vrot.lane.b32.xlu0 %v155, 64
    %v1494 = vpop.permute.xlu0 %1493
    %1495 = vrot.lane.b32.xlu0 %v161, 64
    %v1496 = vpop.permute.xlu0 %1495
    %1497 = vrot.lane.b32.xlu0 %v167, 64
    %v1498 = vpop.permute.xlu0 %1497
    %1499 = vrot.lane.b32.xlu0 %v173, 64
    %v1500 = vpop.permute.xlu0 %1499
    %1501 = vrot.lane.b32.xlu0 %v179, 64
    %v1502 = vpop.permute.xlu0 %1501
    %1503 = vrot.lane.b32.xlu0 %v185, 64
    %v1504 = vpop.permute.xlu0 %1503
    %1505 = vrot.lane.b32.xlu0 %v191, 64
    %v1506 = vpop.permute.xlu0 %1505
    %v1516 = vsel %vm450, %v1475, 0
    %v1519 = vsel %vm450, %v1476, 0
    %v1522 = vsel %vm450, %v1477, 0
    %v1525 = vsel %vm450, %v1478, 0
    %v1528 = vsel %vm450, %v1479, 0
    %v1531 = vsel %vm450, %v1480, 0
    %v1534 = vsel %vm450, %v1481, 0
    %v1537 = vsel %vm450, %v1482, 0
    %1539 = vmatprep.subr.mxu0 0.0
    %1540 = vmatpush1.msra.mxu0 %v1492
    %1541 = vmatprep.subr.mxu0 0.0
    %1542 = vmatpush1.msra.mxu0 %v1494
    %1543 = vmatprep.subr.mxu0 0.0
    %1544 = vmatpush1.msra.mxu0 %v1496
    %1545 = vmatprep.subr.mxu0 0.0
    %1546 = vmatpush1.msra.mxu0 %v1498
    %1547 = vmatprep.subr.mxu0 0.0
    %1548 = vmatpush1.msra.mxu0 %v1500
    %1549 = vmatprep.subr.mxu0 0.0
    %1550 = vmatpush1.msra.mxu0 %v1502
    %1551 = vmatprep.subr.mxu0 0.0
    %1552 = vmatpush1.msra.mxu0 %v1504
    %1553 = vmatprep.subr.mxu0 0.0
    %1554 = vmatpush1.msra.mxu0 %v1506
    %1555 = vmatprep.subr.mxu0 0.0
    %1556 = vmatpush1.msra.mxu0 0.0
    %1557 = vmatprep.subr.mxu0 0.0
    %1558 = vmatpush1.msra.mxu0 0.0
    %1559 = vmatprep.subr.mxu0 0.0
    %1560 = vmatpush1.msra.mxu0 0.0
    %1561 = vmatprep.subr.mxu0 0.0
    %1562 = vmatpush1.msra.mxu0 0.0
    %1563 = vmatprep.subr.mxu0 0.0
    %1564 = vmatpush1.msra.mxu0 0.0
    %1565 = vmatprep.subr.mxu0 0.0
    %1566 = vmatpush1.msra.mxu0 0.0
    %1567 = vmatprep.subr.mxu0 0.0
    %1568 = vmatpush1.msra.mxu0 0.0
    %1569 = vmatprep.subr.mxu0 0.0
    %1570 = vmatpush1.msra.mxu0 0.0
    %1571 = vmatprep.subr.mxu0 0.0
    %1572 = vmatpush1.msra.mxu0 0.0
    %1573 = vmatprep.subr.mxu0 0.0
    %1574 = vmatpush1.msra.mxu0 0.0
    %1575 = vmatprep.subr.mxu0 0.0
    %1576 = vmatpush1.msra.mxu0 0.0
    %1577 = vmatprep.subr.mxu0 0.0
    %1578 = vmatpush1.msra.mxu0 0.0
    %1579 = vmatprep.subr.mxu0 0.0
    %1580 = vmatpush1.msra.mxu0 0.0
    %1581 = vmatprep.subr.mxu0 0.0
    %1582 = vmatpush1.msra.mxu0 0.0
    %1583 = vmatprep.subr.mxu0 0.0
    %1584 = vmatpush1.msra.mxu0 0.0
    %1585 = vmatprep.subr.mxu0 0.0
    %1586 = vmatpush1.msra.mxu0 0.0
    %1587 = vmatprep.subr.mxu0 0.0
    %1588 = vmatpush1.msra.mxu0 0.0
    %1589 = vmatprep.subr.mxu0 0.0
    %1590 = vmatpush1.msra.mxu0 0.0
    %1591 = vmatprep.subr.mxu0 0.0
    %1592 = vmatpush1.msra.mxu0 0.0
    %1593 = vmatprep.subr.mxu0 0.0
    %1594 = vmatpush1.msra.mxu0 0.0
    %1595 = vmatprep.subr.mxu0 0.0
    %1596 = vmatpush1.msra.mxu0 0.0
    %1597 = vmatprep.subr.mxu0 0.0
    %1598 = vmatpush1.msra.mxu0 0.0
    %1599 = vmatprep.subr.mxu0 0.0
    %1600 = vmatpush1.msra.mxu0 0.0
    %1601 = vmatprep.subr.mxu0 0.0
    %1602 = vmatpush1.msra.mxu0 0.0
    %1603 = vmatprep.mubr.f32.mxu0 0.0
    %1604 = vmatmul.mubr.f32.gmra.mrb[0].mxu0 %v1516
    %v1605 = vpop.f32.mrb[0].mxu0
    %v1606 = vadd.f32 0.0, %v1605
    %v1607 = vpop.f32.mrb[0].mxu0
    %1608 = vmatprep.mubr.f32.mxu0 0.0
    %1609 = vmatmul.mubr.f32.gmra.mrb[0].mxu0 %v1519
    %v1610 = vpop.f32.mrb[0].mxu0
    %v1611 = vadd.f32 0.0, %v1610
    %v1612 = vpop.f32.mrb[0].mxu0
    %1613 = vmatprep.mubr.f32.mxu0 0.0
    %1614 = vmatmul.mubr.f32.gmra.mrb[0].mxu0 %v1522
    %v1615 = vpop.f32.mrb[0].mxu0
    %v1616 = vadd.f32 0.0, %v1615
    %v1617 = vpop.f32.mrb[0].mxu0
    %1618 = vmatprep.mubr.f32.mxu0 0.0
    %1619 = vmatmul.mubr.f32.gmra.mrb[0].mxu0 %v1525
    %v1620 = vpop.f32.mrb[0].mxu0
    %v1621 = vadd.f32 0.0, %v1620
    %v1622 = vpop.f32.mrb[0].mxu0
    %1623 = vmatprep.mubr.f32.mxu0 0.0
    %1624 = vmatmul.mubr.f32.gmra.mrb[0].mxu0 %v1528
    %v1625 = vpop.f32.mrb[0].mxu0
    %v1626 = vadd.f32 0.0, %v1625
    %v1627 = vpop.f32.mrb[0].mxu0
    %1628 = vmatprep.mubr.f32.mxu0 0.0
    %1629 = vmatmul.mubr.f32.gmra.mrb[0].mxu0 %v1531
    %v1630 = vpop.f32.mrb[0].mxu0
    %v1631 = vadd.f32 0.0, %v1630
    %v1632 = vpop.f32.mrb[0].mxu0
    %1633 = vmatprep.mubr.f32.mxu0 0.0
    %1634 = vmatmul.mubr.f32.gmra.mrb[0].mxu0 %v1534
    %v1635 = vpop.f32.mrb[0].mxu0
    %v1636 = vadd.f32 0.0, %v1635
    %v1637 = vpop.f32.mrb[0].mxu0
    %1638 = vmatprep.mubr.f32.mxu0 0.0
    %1639 = vmatmul.mubr.f32.gmra.mrb[0].mxu0 %v1537
    %v1640 = vpop.f32.mrb[0].mxu0
    %v1641 = vadd.f32 0.0, %v1640
    %v1642 = vpop.f32.mrb[0].mxu0
    %1643 = vdwg.mxu0
    %1652 = vrot.lane.b32.xlu0 %v1606, 64
    %v1653 = vpop.permute.xlu0 %1652
    %1654 = vrot.lane.b32.xlu0 %v1611, 64
    %v1655 = vpop.permute.xlu0 %1654
    %1656 = vrot.lane.b32.xlu0 %v1616, 64
    %v1657 = vpop.permute.xlu0 %1656
    %1658 = vrot.lane.b32.xlu0 %v1621, 64
    %v1659 = vpop.permute.xlu0 %1658
    %1660 = vrot.lane.b32.xlu0 %v1626, 64
    %v1661 = vpop.permute.xlu0 %1660
    %1662 = vrot.lane.b32.xlu0 %v1631, 64
    %v1663 = vpop.permute.xlu0 %1662
    %1664 = vrot.lane.b32.xlu0 %v1636, 64
    %v1665 = vpop.permute.xlu0 %1664
    %1666 = vrot.lane.b32.xlu0 %v1641, 64
    %v1667 = vpop.permute.xlu0 %1666
    %1676 = vst.msk [vmem:[#allocation2 + $0x8] sm:$0xff] %vm1025, %v1653
    %1677 = vst.msk [vmem:[#allocation2 + $0x18] sm:$0xff] %vm1025, %v1655
    %1678 = vst.msk [vmem:[#allocation2 + $0x28] sm:$0xff] %vm1025, %v1657
    %1679 = vst.msk [vmem:[#allocation2 + $0x38] sm:$0xff] %vm1025, %v1659
    %1680 = vst.msk [vmem:[#allocation2 + $0x48] sm:$0xff] %vm1025, %v1661
    %1681 = vst.msk [vmem:[#allocation2 + $0x58] sm:$0xff] %vm1025, %v1663
    %1682 = vst.msk [vmem:[#allocation2 + $0x68] sm:$0xff] %vm1025, %v1665
    %1683 = vst.msk [vmem:[#allocation2 + $0x78] sm:$0xff] %vm1025, %v1667
    %v1684 = vld [vmem:[#allocation2] sm:$0xff]
    %v1685 = vld [vmem:[#allocation2 + $0x8] sm:$0xff]
    %v1686 = vld [vmem:[#allocation2 + $0x10] sm:$0xff]
    %v1687 = vld [vmem:[#allocation2 + $0x18] sm:$0xff]
    %v1688 = vld [vmem:[#allocation2 + $0x20] sm:$0xff]
    %v1689 = vld [vmem:[#allocation2 + $0x28] sm:$0xff]
    %v1690 = vld [vmem:[#allocation2 + $0x30] sm:$0xff]
    %v1691 = vld [vmem:[#allocation2 + $0x38] sm:$0xff]
    %v1692 = vld [vmem:[#allocation2 + $0x40] sm:$0xff]
    %v1693 = vld [vmem:[#allocation2 + $0x48] sm:$0xff]
    %v1694 = vld [vmem:[#allocation2 + $0x50] sm:$0xff]
    %v1695 = vld [vmem:[#allocation2 + $0x58] sm:$0xff]
    %v1696 = vld [vmem:[#allocation2 + $0x60] sm:$0xff]
    %v1697 = vld [vmem:[#allocation2 + $0x68] sm:$0xff]
    %v1698 = vld [vmem:[#allocation2 + $0x70] sm:$0xff]
    %v1699 = vld [vmem:[#allocation2 + $0x78] sm:$0xff]
    %v1701 = vlaneseq
    %v1702 = vshrl.u32 %v1701, 7
    %v1703 = vsub.s32 0, %v1702
    %v1704 = vrot.slane %v198, %v1703
    %v1705 = vlaneseq
    %v1706 = vshrl.u32 %v1705, 7
    %v1707 = vsub.s32 1, %v1706
    %v1708 = vrot.slane %v198, %v1707
    %v1711 = vadd.f32 %v1684, %v1704
    %v1712 = vadd.f32 %v1685, %v1708
    %v1713 = vadd.f32 %v1686, %v1704
    %v1714 = vadd.f32 %v1687, %v1708
    %v1715 = vadd.f32 %v1688, %v1704
    %v1716 = vadd.f32 %v1689, %v1708
    %v1717 = vadd.f32 %v1690, %v1704
    %v1718 = vadd.f32 %v1691, %v1708
    %v1719 = vadd.f32 %v1692, %v1704
    %v1720 = vadd.f32 %v1693, %v1708
    %v1721 = vadd.f32 %v1694, %v1704
    %v1722 = vadd.f32 %v1695, %v1708
    %v1723 = vadd.f32 %v1696, %v1704
    %v1724 = vadd.f32 %v1697, %v1708
    %v1725 = vadd.f32 %v1698, %v1704
    %v1726 = vadd.f32 %v1699, %v1708
    %v1727 = vmul.f32 %v1711, 0.01
    %v1728 = vmul.f32 %v1712, 0.01
    %v1729 = vmul.f32 %v1713, 0.01
    %v1730 = vmul.f32 %v1714, 0.01
    %v1731 = vmul.f32 %v1715, 0.01
    %v1732 = vmul.f32 %v1716, 0.01
    %v1733 = vmul.f32 %v1717, 0.01
    %v1734 = vmul.f32 %v1718, 0.01
    %v1735 = vmul.f32 %v1719, 0.01
    %v1736 = vmul.f32 %v1720, 0.01
    %v1737 = vmul.f32 %v1721, 0.01
    %v1738 = vmul.f32 %v1722, 0.01
    %v1739 = vmul.f32 %v1723, 0.01
    %v1740 = vmul.f32 %v1724, 0.01
    %v1741 = vmul.f32 %v1725, 0.01
    %v1742 = vmul.f32 %v1726, 0.01
    %v1743 = vmax.f32 %v1711, %v1727
    %v1744 = vmax.f32 %v1712, %v1728
    %v1745 = vmax.f32 %v1713, %v1729
    %v1746 = vmax.f32 %v1714, %v1730
    %v1747 = vmax.f32 %v1715, %v1731
    %v1748 = vmax.f32 %v1716, %v1732
    %v1749 = vmax.f32 %v1717, %v1733
    %v1750 = vmax.f32 %v1718, %v1734
    %v1751 = vmax.f32 %v1719, %v1735
    %v1752 = vmax.f32 %v1720, %v1736
    %v1753 = vmax.f32 %v1721, %v1737
    %v1754 = vmax.f32 %v1722, %v1738
    %v1755 = vmax.f32 %v1723, %v1739
    %v1756 = vmax.f32 %v1724, %v1740
    %v1757 = vmax.f32 %v1725, %v1741
    %v1758 = vmax.f32 %v1726, %v1742
    %v1759 = vld [vmem:[%s5] sm:$0xff]
    %v1760 = vld [vmem:[%s5 + $0x8] sm:$0xff]
    %v1761 = vld [vmem:[%s5 + $0x10] sm:$0xff]
    %v1762 = vld [vmem:[%s5 + $0x18] sm:$0xff]
    %v1763 = vld [vmem:[%s5 + $0x20] sm:$0xff]
    %v1764 = vld [vmem:[%s5 + $0x28] sm:$0xff]
    %v1765 = vld [vmem:[%s5 + $0x30] sm:$0xff]
    %v1766 = vld [vmem:[%s5 + $0x38] sm:$0xff]
    %v1767 = vld [vmem:[%s5 + $0x40] sm:$0xff]
    %v1768 = vld [vmem:[%s5 + $0x48] sm:$0xff]
    %v1769 = vld [vmem:[%s5 + $0x50] sm:$0xff]
    %v1770 = vld [vmem:[%s5 + $0x58] sm:$0xff]
    %v1771 = vld [vmem:[%s5 + $0x60] sm:$0xff]
    %v1772 = vld [vmem:[%s5 + $0x68] sm:$0xff]
    %v1773 = vld [vmem:[%s5 + $0x70] sm:$0xff]
    %v1774 = vld [vmem:[%s5 + $0x78] sm:$0xff]
    %v1775 = vld [vmem:[%s5 + $0x80] sm:$0xff]
    %v1776 = vld [vmem:[%s5 + $0x88] sm:$0xff]
    %v1777 = vld [vmem:[%s5 + $0x90] sm:$0xff]
    %v1778 = vld [vmem:[%s5 + $0x98] sm:$0xff]
    %v1779 = vld [vmem:[%s5 + $0xa0] sm:$0xff]
    %v1780 = vld [vmem:[%s5 + $0xa8] sm:$0xff]
    %v1781 = vld [vmem:[%s5 + $0xb0] sm:$0xff]
    %v1782 = vld [vmem:[%s5 + $0xb8] sm:$0xff]
    %v1783 = vld [vmem:[%s5 + $0xc0] sm:$0xff]
    %v1784 = vld [vmem:[%s5 + $0xc8] sm:$0xff]
    %v1785 = vld [vmem:[%s5 + $0xd0] sm:$0xff]
    %v1786 = vld [vmem:[%s5 + $0xd8] sm:$0xff]
    %v1787 = vld [vmem:[%s5 + $0xe0] sm:$0xff]
    %v1788 = vld [vmem:[%s5 + $0xe8] sm:$0xff]
    %v1789 = vld [vmem:[%s5 + $0xf0] sm:$0xff]
    %v1790 = vld [vmem:[%s5 + $0xf8] sm:$0xff]
    %1791 = vmatprep.subr.mxu0 0.0
    %1792 = vmatpush1.msra.mxu0 %v1759
    %1793 = vmatprep.subr.mxu0 0.0
    %1794 = vmatpush1.msra.mxu0 %v1760
    %1795 = vmatprep.subr.mxu0 0.0
    %1796 = vmatpush1.msra.mxu0 %v1761
    %1797 = vmatprep.subr.mxu0 0.0
    %1798 = vmatpush1.msra.mxu0 %v1762
    %1799 = vmatprep.subr.mxu0 0.0
    %1800 = vmatpush1.msra.mxu0 %v1763
    %1801 = vmatprep.subr.mxu0 0.0
    %1802 = vmatpush1.msra.mxu0 %v1764
    %1803 = vmatprep.subr.mxu0 0.0
    %1804 = vmatpush1.msra.mxu0 %v1765
    %1805 = vmatprep.subr.mxu0 0.0
    %1806 = vmatpush1.msra.mxu0 %v1766
    %1807 = vmatprep.subr.mxu0 0.0
    %1808 = vmatpush1.msra.mxu0 %v1767
    %1809 = vmatprep.subr.mxu0 0.0
    %1810 = vmatpush1.msra.mxu0 %v1768
    %1811 = vmatprep.subr.mxu0 0.0
    %1812 = vmatpush1.msra.mxu0 %v1769
    %1813 = vmatprep.subr.mxu0 0.0
    %1814 = vmatpush1.msra.mxu0 %v1770
    %1815 = vmatprep.subr.mxu0 0.0
    %1816 = vmatpush1.msra.mxu0 %v1771
    %1817 = vmatprep.subr.mxu0 0.0
    %1818 = vmatpush1.msra.mxu0 %v1772
    %1819 = vmatprep.subr.mxu0 0.0
    %1820 = vmatpush1.msra.mxu0 %v1773
    %1821 = vmatprep.subr.mxu0 0.0
    %1822 = vmatpush1.msra.mxu0 %v1774
    %1823 = vmatprep.subr.mxu0 0.0
    %1824 = vmatpush1.msra.mxu0 %v1775
    %1825 = vmatprep.subr.mxu0 0.0
    %1826 = vmatpush1.msra.mxu0 %v1776
    %1827 = vmatprep.subr.mxu0 0.0
    %1828 = vmatpush1.msra.mxu0 %v1777
    %1829 = vmatprep.subr.mxu0 0.0
    %1830 = vmatpush1.msra.mxu0 %v1778
    %1831 = vmatprep.subr.mxu0 0.0
    %1832 = vmatpush1.msra.mxu0 %v1779
    %1833 = vmatprep.subr.mxu0 0.0
    %1834 = vmatpush1.msra.mxu0 %v1780
    %1835 = vmatprep.subr.mxu0 0.0
    %1836 = vmatpush1.msra.mxu0 %v1781
    %1837 = vmatprep.subr.mxu0 0.0
    %1838 = vmatpush1.msra.mxu0 %v1782
    %1839 = vmatprep.subr.mxu0 0.0
    %1840 = vmatpush1.msra.mxu0 %v1783
    %1841 = vmatprep.subr.mxu0 0.0
    %1842 = vmatpush1.msra.mxu0 %v1784
    %1843 = vmatprep.subr.mxu0 0.0
    %1844 = vmatpush1.msra.mxu0 %v1785
    %1845 = vmatprep.subr.mxu0 0.0
    %1846 = vmatpush1.msra.mxu0 %v1786
    %1847 = vmatprep.subr.mxu0 0.0
    %1848 = vmatpush1.msra.mxu0 %v1787
    %1849 = vmatprep.subr.mxu0 0.0
    %1850 = vmatpush1.msra.mxu0 %v1788
    %1851 = vmatprep.subr.mxu0 0.0
    %1852 = vmatpush1.msra.mxu0 %v1789
    %1853 = vmatprep.subr.mxu0 0.0
    %1854 = vmatpush1.msra.mxu0 %v1790
    %1855 = vmatprep.mubr.f32.mxu0 %v1744
    %1856 = vmatmul.mubr.f32.gmra.mrb[0].mxu0 %v1743
    %v1857 = vpop.f32.mrb[0].mxu0
    %v1858 = vadd.f32 0.0, %v1857
    %v1859 = vpop.f32.mrb[0].mxu0
    %1860 = vmatprep.mubr.f32.mxu0 %v1746
    %1861 = vmatmul.mubr.f32.gmra.mrb[0].mxu0 %v1745
    %v1862 = vpop.f32.mrb[0].mxu0
    %v1863 = vadd.f32 0.0, %v1862
    %v1864 = vpop.f32.mrb[0].mxu0
    %1865 = vmatprep.mubr.f32.mxu0 %v1748
    %1866 = vmatmul.mubr.f32.gmra.mrb[0].mxu0 %v1747
    %v1867 = vpop.f32.mrb[0].mxu0
    %v1868 = vadd.f32 0.0, %v1867
    %v1869 = vpop.f32.mrb[0].mxu0
    %1870 = vmatprep.mubr.f32.mxu0 %v1750
    %1871 = vmatmul.mubr.f32.gmra.mrb[0].mxu0 %v1749
    %v1872 = vpop.f32.mrb[0].mxu0
    %v1873 = vadd.f32 0.0, %v1872
    %v1874 = vpop.f32.mrb[0].mxu0
    %1875 = vmatprep.mubr.f32.mxu0 %v1752
    %1876 = vmatmul.mubr.f32.gmra.mrb[0].mxu0 %v1751
    %v1877 = vpop.f32.mrb[0].mxu0
    %v1878 = vadd.f32 0.0, %v1877
    %v1879 = vpop.f32.mrb[0].mxu0
    %1880 = vmatprep.mubr.f32.mxu0 %v1754
    %1881 = vmatmul.mubr.f32.gmra.mrb[0].mxu0 %v1753
    %v1882 = vpop.f32.mrb[0].mxu0
    %v1883 = vadd.f32 0.0, %v1882
    %v1884 = vpop.f32.mrb[0].mxu0
    %1885 = vmatprep.mubr.f32.mxu0 %v1756
    %1886 = vmatmul.mubr.f32.gmra.mrb[0].mxu0 %v1755
    %v1887 = vpop.f32.mrb[0].mxu0
    %v1888 = vadd.f32 0.0, %v1887
    %v1889 = vpop.f32.mrb[0].mxu0
    %1890 = vmatprep.mubr.f32.mxu0 %v1758
    %1891 = vmatmul.mubr.f32.gmra.mrb[0].mxu0 %v1757
    %v1892 = vpop.f32.mrb[0].mxu0
    %v1893 = vadd.f32 0.0, %v1892
    %v1894 = vpop.f32.mrb[0].mxu0
    %1895 = vdwg.mxu0
    %v1896 = vld [vmem:[%s5 + $0x100] sm:$0xf]
    %v1897 = vld [vmem:[%s5 + $0x108] sm:$0xf]
    %v1898 = vld [vmem:[%s5 + $0x10c] sm:$0x1]
    %v1900 = vsel %vm450, %v1858, 0
    %v1903 = vsel %vm450, %v1863, 0
    %v1906 = vsel %vm450, %v1868, 0
    %v1909 = vsel %vm450, %v1873, 0
    %v1912 = vsel %vm450, %v1878, 0
    %v1915 = vsel %vm450, %v1883, 0
    %v1918 = vsel %vm450, %v1888, 0
    %v1921 = vsel %vm450, %v1893, 0
    %v1924 = vsel %vm450, %v1897, 0
    %1926 = vmatprep.subr.mxu0 0.0
    %1927 = vmatpush1.xpose.msra.mxu0 %v1924
    %1928 = vmatprep.subr.mxu0 0.0
    %1929 = vmatpush1.xpose.msra.mxu0 0.0
    %1930 = vmatprep.subr.mxu0 0.0
    %1931 = vmatpush1.xpose.msra.mxu0 0.0
    %1932 = vmatprep.subr.mxu0 0.0
    %1933 = vmatpush1.xpose.msra.mxu0 0.0
    %1934 = vmatprep.subr.mxu0 0.0
    %1935 = vmatpush1.xpose.msra.mxu0 0.0
    %1936 = vmatprep.subr.mxu0 0.0
    %1937 = vmatpush1.xpose.msra.mxu0 0.0
    %1938 = vmatprep.subr.mxu0 0.0
    %1939 = vmatpush1.xpose.msra.mxu0 0.0
    %1940 = vmatprep.subr.mxu0 0.0
    %1941 = vmatpush1.xpose.msra.mxu0 0.0
    %1942 = vmatprep.subr.mxu0 0.0
    %1943 = vmatpush1.xpose.msra.mxu0 0.0
    %1944 = vmatprep.subr.mxu0 0.0
    %1945 = vmatpush1.xpose.msra.mxu0 0.0
    %1946 = vmatprep.subr.mxu0 0.0
    %1947 = vmatpush1.xpose.msra.mxu0 0.0
    %1948 = vmatprep.subr.mxu0 0.0
    %1949 = vmatpush1.xpose.msra.mxu0 0.0
    %1950 = vmatprep.subr.mxu0 0.0
    %1951 = vmatpush1.xpose.msra.mxu0 0.0
    %1952 = vmatprep.subr.mxu0 0.0
    %1953 = vmatpush1.xpose.msra.mxu0 0.0
    %1954 = vmatprep.subr.mxu0 0.0
    %1955 = vmatpush1.xpose.msra.mxu0 0.0
    %1956 = vmatprep.subr.mxu0 0.0
    %1957 = vmatpush1.xpose.msra.mxu0 0.0
    %1958 = vmatprep.subr.mxu0 0.0
    %1959 = vmatpush1.xpose.msra.mxu0 0.0
    %1960 = vmatprep.subr.mxu0 0.0
    %1961 = vmatpush1.xpose.msra.mxu0 0.0
    %1962 = vmatprep.subr.mxu0 0.0
    %1963 = vmatpush1.xpose.msra.mxu0 0.0
    %1964 = vmatprep.subr.mxu0 0.0
    %1965 = vmatpush1.xpose.msra.mxu0 0.0
    %1966 = vmatprep.subr.mxu0 0.0
    %1967 = vmatpush1.xpose.msra.mxu0 0.0
    %1968 = vmatprep.subr.mxu0 0.0
    %1969 = vmatpush1.xpose.msra.mxu0 0.0
    %1970 = vmatprep.subr.mxu0 0.0
    %1971 = vmatpush1.xpose.msra.mxu0 0.0
    %1972 = vmatprep.subr.mxu0 0.0
    %1973 = vmatpush1.xpose.msra.mxu0 0.0
    %1974 = vmatprep.subr.mxu0 0.0
    %1975 = vmatpush1.xpose.msra.mxu0 0.0
    %1976 = vmatprep.subr.mxu0 0.0
    %1977 = vmatpush1.xpose.msra.mxu0 0.0
    %1978 = vmatprep.subr.mxu0 0.0
    %1979 = vmatpush1.xpose.msra.mxu0 0.0
    %1980 = vmatprep.subr.mxu0 0.0
    %1981 = vmatpush1.xpose.msra.mxu0 0.0
    %1982 = vmatprep.subr.mxu0 0.0
    %1983 = vmatpush1.xpose.msra.mxu0 0.0
    %1984 = vmatprep.subr.mxu0 0.0
    %1985 = vmatpush1.xpose.msra.mxu0 0.0
    %1986 = vmatprep.subr.mxu0 0.0
    %1987 = vmatpush1.xpose.msra.mxu0 0.0
    %1988 = vmatprep.subr.mxu0 0.0
    %1989 = vmatpush1.xpose.msra.mxu0 0.0
    %1990 = vmatprep.mubr.f32.mxu0 0.0
    %1991 = vmatmul.mubr.f32.gmra.mrb[0].mxu0 %v1900
    %v1992 = vpop.f32.mrb[0].mxu0
    %v1993 = vadd.f32 0.0, %v1992
    %v1994 = vpop.f32.mrb[0].mxu0
    %1995 = vmatprep.mubr.f32.mxu0 0.0
    %1996 = vmatmul.mubr.f32.gmra.mrb[0].mxu0 %v1903
    %v1997 = vpop.f32.mrb[0].mxu0
    %v1998 = vadd.f32 0.0, %v1997
    %v1999 = vpop.f32.mrb[0].mxu0
    %2000 = vmatprep.mubr.f32.mxu0 0.0
    %2001 = vmatmul.mubr.f32.gmra.mrb[0].mxu0 %v1906
    %v2002 = vpop.f32.mrb[0].mxu0
    %v2003 = vadd.f32 0.0, %v2002
    %v2004 = vpop.f32.mrb[0].mxu0
    %2005 = vmatprep.mubr.f32.mxu0 0.0
    %2006 = vmatmul.mubr.f32.gmra.mrb[0].mxu0 %v1909
    %v2007 = vpop.f32.mrb[0].mxu0
    %v2008 = vadd.f32 0.0, %v2007
    %v2009 = vpop.f32.mrb[0].mxu0
    %2010 = vmatprep.mubr.f32.mxu0 0.0
    %2011 = vmatmul.mubr.f32.gmra.mrb[0].mxu0 %v1912
    %v2012 = vpop.f32.mrb[0].mxu0
    %v2013 = vadd.f32 0.0, %v2012
    %v2014 = vpop.f32.mrb[0].mxu0
    %2015 = vmatprep.mubr.f32.mxu0 0.0
    %2016 = vmatmul.mubr.f32.gmra.mrb[0].mxu0 %v1915
    %v2017 = vpop.f32.mrb[0].mxu0
    %v2018 = vadd.f32 0.0, %v2017
    %v2019 = vpop.f32.mrb[0].mxu0
    %2020 = vmatprep.mubr.f32.mxu0 0.0
    %2021 = vmatmul.mubr.f32.gmra.mrb[0].mxu0 %v1918
    %v2022 = vpop.f32.mrb[0].mxu0
    %v2023 = vadd.f32 0.0, %v2022
    %v2024 = vpop.f32.mrb[0].mxu0
    %2025 = vmatprep.mubr.f32.mxu0 0.0
    %2026 = vmatmul.mubr.f32.gmra.mrb[0].mxu0 %v1921
    %v2027 = vpop.f32.mrb[0].mxu0
    %v2028 = vadd.f32 0.0, %v2027
    %v2029 = vpop.f32.mrb[0].mxu0
    %2030 = vdwg.mxu0
    %v2032 = vsel %vm450, %v1896, 0
    %2034 = vmatprep.subr.mxu0 0.0
    %2035 = vmatpush1.xpose.msra.mxu0 %v1900
    %2036 = vmatprep.subr.mxu0 0.0
    %2037 = vmatpush1.xpose.msra.mxu0 %v1903
    %2038 = vmatprep.subr.mxu0 0.0
    %2039 = vmatpush1.xpose.msra.mxu0 %v1906
    %2040 = vmatprep.subr.mxu0 0.0
    %2041 = vmatpush1.xpose.msra.mxu0 %v1909
    %2042 = vmatprep.subr.mxu0 0.0
    %2043 = vmatpush1.xpose.msra.mxu0 %v1912
    %2044 = vmatprep.subr.mxu0 0.0
    %2045 = vmatpush1.xpose.msra.mxu0 %v1915
    %2046 = vmatprep.subr.mxu0 0.0
    %2047 = vmatpush1.xpose.msra.mxu0 %v1918
    %2048 = vmatprep.subr.mxu0 0.0
    %2049 = vmatpush1.xpose.msra.mxu0 %v1921
    %2050 = vmatprep.subr.mxu0 0.0
    %2051 = vmatpush1.xpose.msra.mxu0 0.0
    %2052 = vmatprep.subr.mxu0 0.0
    %2053 = vmatpush1.xpose.msra.mxu0 0.0
    %2054 = vmatprep.subr.mxu0 0.0
    %2055 = vmatpush1.xpose.msra.mxu0 0.0
    %2056 = vmatprep.subr.mxu0 0.0
    %2057 = vmatpush1.xpose.msra.mxu0 0.0
    %2058 = vmatprep.subr.mxu0 0.0
    %2059 = vmatpush1.xpose.msra.mxu0 0.0
    %2060 = vmatprep.subr.mxu0 0.0
    %2061 = vmatpush1.xpose.msra.mxu0 0.0
    %2062 = vmatprep.subr.mxu0 0.0
    %2063 = vmatpush1.xpose.msra.mxu0 0.0
    %2064 = vmatprep.subr.mxu0 0.0
    %2065 = vmatpush1.xpose.msra.mxu0 0.0
    %2066 = vmatprep.subr.mxu0 0.0
    %2067 = vmatpush1.xpose.msra.mxu0 0.0
    %2068 = vmatprep.subr.mxu0 0.0
    %2069 = vmatpush1.xpose.msra.mxu0 0.0
    %2070 = vmatprep.subr.mxu0 0.0
    %2071 = vmatpush1.xpose.msra.mxu0 0.0
    %2072 = vmatprep.subr.mxu0 0.0
    %2073 = vmatpush1.xpose.msra.mxu0 0.0
    %2074 = vmatprep.subr.mxu0 0.0
    %2075 = vmatpush1.xpose.msra.mxu0 0.0
    %2076 = vmatprep.subr.mxu0 0.0
    %2077 = vmatpush1.xpose.msra.mxu0 0.0
    %2078 = vmatprep.subr.mxu0 0.0
    %2079 = vmatpush1.xpose.msra.mxu0 0.0
    %2080 = vmatprep.subr.mxu0 0.0
    %2081 = vmatpush1.xpose.msra.mxu0 0.0
    %2082 = vmatprep.subr.mxu0 0.0
    %2083 = vmatpush1.xpose.msra.mxu0 0.0
    %2084 = vmatprep.subr.mxu0 0.0
    %2085 = vmatpush1.xpose.msra.mxu0 0.0
    %2086 = vmatprep.subr.mxu0 0.0
    %2087 = vmatpush1.xpose.msra.mxu0 0.0
    %2088 = vmatprep.subr.mxu0 0.0
    %2089 = vmatpush1.xpose.msra.mxu0 0.0
    %2090 = vmatprep.subr.mxu0 0.0
    %2091 = vmatpush1.xpose.msra.mxu0 0.0
    %2092 = vmatprep.subr.mxu0 0.0
    %2093 = vmatpush1.xpose.msra.mxu0 0.0
    %2094 = vmatprep.subr.mxu0 0.0
    %2095 = vmatpush1.xpose.msra.mxu0 0.0
    %2096 = vmatprep.subr.mxu0 0.0
    %2097 = vmatpush1.xpose.msra.mxu0 0.0
    %2098 = vmatprep.mubr.f32.mxu0 0.0
    %2099 = vmatmul.mubr.f32.gmra.mrb[0].mxu0 %v2032
    %v2100 = vpop.f32.mrb[0].mxu0
    %v2101 = vadd.f32 0.0, %v2100
    %v2102 = vpop.f32.mrb[0].mxu0
    %2103 = vdwg.mxu0
    %2105 = vset.pattern.permute.xlu0 0
    %2106 = vperm.xlu0 %2105, %v1993
    %v2107 = vpop.permute.xlu0 %2106
    %2110 = vset.pattern.permute.xlu0 0
    %2111 = vperm.xlu0 %2110, %v1998
    %v2112 = vpop.permute.xlu0 %2111
    %2115 = vset.pattern.permute.xlu0 0
    %2116 = vperm.xlu0 %2115, %v2003
    %v2117 = vpop.permute.xlu0 %2116
    %2120 = vset.pattern.permute.xlu0 0
    %2121 = vperm.xlu0 %2120, %v2008
    %v2122 = vpop.permute.xlu0 %2121
    %2125 = vset.pattern.permute.xlu0 0
    %2126 = vperm.xlu0 %2125, %v2013
    %v2127 = vpop.permute.xlu0 %2126
    %2130 = vset.pattern.permute.xlu0 0
    %2131 = vperm.xlu0 %2130, %v2018
    %v2132 = vpop.permute.xlu0 %2131
    %2135 = vset.pattern.permute.xlu0 0
    %2136 = vperm.xlu0 %2135, %v2023
    %v2137 = vpop.permute.xlu0 %2136
    %2140 = vset.pattern.permute.xlu0 0
    %2141 = vperm.xlu0 %2140, %v2028
    %v2142 = vpop.permute.xlu0 %2141
    %v2144 = vlaneseq
    %v2145 = vshrl.u32 %v2144, 7
    %v2146 = vsub.s32 0, %v2145
    %v2147 = vrot.slane %v2101, %v2146
    %v2148 = vadd.f32 %v2107, %v2147
    %v2149 = vadd.f32 %v2112, %v2147
    %v2150 = vadd.f32 %v2117, %v2147
    %v2151 = vadd.f32 %v2122, %v2147
    %v2152 = vadd.f32 %v2127, %v2147
    %v2153 = vadd.f32 %v2132, %v2147
    %v2154 = vadd.f32 %v2137, %v2147
    %v2155 = vadd.f32 %v2142, %v2147
    %v2156 = vmul.f32 %v2148, 0.2
    %v2157 = vmul.f32 %v2149, 0.2
    %v2158 = vmul.f32 %v2150, 0.2
    %v2159 = vmul.f32 %v2151, 0.2
    %v2160 = vmul.f32 %v2152, 0.2
    %v2161 = vmul.f32 %v2153, 0.2
    %v2162 = vmul.f32 %v2154, 0.2
    %v2163 = vmul.f32 %v2155, 0.2
    %v2164 = vmax.f32 %v2148, %v2156
    %v2165 = vmax.f32 %v2149, %v2157
    %v2166 = vmax.f32 %v2150, %v2158
    %v2167 = vmax.f32 %v2151, %v2159
    %v2168 = vmax.f32 %v2152, %v2160
    %v2169 = vmax.f32 %v2153, %v2161
    %v2170 = vmax.f32 %v2154, %v2162
    %v2171 = vmax.f32 %v2155, %v2163
    %v2172 = vadd.f32 %v2164, %v32
    %v2173 = vadd.f32 %v2165, %v33
    %v2174 = vadd.f32 %v2166, %v34
    %v2175 = vadd.f32 %v2167, %v35
    %v2176 = vadd.f32 %v2168, %v36
    %v2177 = vadd.f32 %v2169, %v37
    %v2178 = vadd.f32 %v2170, %v38
    %v2179 = vadd.f32 %v2171, %v39
    %v2180 = vsel %vm450, %v2172, -inf
    %2181 = vmax.xlane.f32.xlu0 %v2180
    %v2182 = vpop.xlane.xlu0 %2181
    %v2183 = vsel %vm450, %v2173, -inf
    %2184 = vmax.xlane.f32.xlu0 %v2183
    %v2185 = vpop.xlane.xlu0 %2184
    %v2186 = vsel %vm450, %v2174, -inf
    %2187 = vmax.xlane.f32.xlu0 %v2186
    %v2188 = vpop.xlane.xlu0 %2187
    %v2189 = vsel %vm450, %v2175, -inf
    %2190 = vmax.xlane.f32.xlu0 %v2189
    %v2191 = vpop.xlane.xlu0 %2190
    %v2192 = vsel %vm450, %v2176, -inf
    %2193 = vmax.xlane.f32.xlu0 %v2192
    %v2194 = vpop.xlane.xlu0 %2193
    %v2195 = vsel %vm450, %v2177, -inf
    %2196 = vmax.xlane.f32.xlu0 %v2195
    %v2197 = vpop.xlane.xlu0 %2196
    %v2198 = vsel %vm450, %v2178, -inf
    %2199 = vmax.xlane.f32.xlu0 %v2198
    %v2200 = vpop.xlane.xlu0 %2199
    %v2201 = vsel %vm450, %v2179, -inf
    %2202 = vmax.xlane.f32.xlu0 %v2201
    %v2203 = vpop.xlane.xlu0 %2202
    %v2204 = vsub.f32 %v2172, %v2182
    %v2205 = vsub.f32 %v2173, %v2185
    %v2206 = vsub.f32 %v2174, %v2188
    %v2207 = vsub.f32 %v2175, %v2191
    %v2208 = vsub.f32 %v2176, %v2194
    %v2209 = vsub.f32 %v2177, %v2197
    %v2210 = vsub.f32 %v2178, %v2200
    %v2211 = vsub.f32 %v2179, %v2203
    %v2212 = vmul.f32 %v2204, 1.442695
    %v2213 = vpow.pop %v2212
    %v2214 = vmul.f32 %v2205, 1.442695
    %v2215 = vpow.pop %v2214
    %v2216 = vmul.f32 %v2206, 1.442695
    %v2217 = vpow.pop %v2216
    %v2218 = vmul.f32 %v2207, 1.442695
    %v2219 = vpow.pop %v2218
    %v2220 = vmul.f32 %v2208, 1.442695
    %v2221 = vpow.pop %v2220
    %v2222 = vmul.f32 %v2209, 1.442695
    %v2223 = vpow.pop %v2222
    %v2224 = vmul.f32 %v2210, 1.442695
    %v2225 = vpow.pop %v2224
    %v2226 = vmul.f32 %v2211, 1.442695
    %v2227 = vpow.pop %v2226
    %v2228 = vsel %vm450, %v2213, 0.0
    %2229 = vadd.xlane.f32.xlu0 %v2228
    %v2230 = vpop.xlane.xlu0 %2229
    %v2231 = vsel %vm450, %v2215, 0.0
    %2232 = vadd.xlane.f32.xlu0 %v2231
    %v2233 = vpop.xlane.xlu0 %2232
    %v2234 = vsel %vm450, %v2217, 0.0
    %2235 = vadd.xlane.f32.xlu0 %v2234
    %v2236 = vpop.xlane.xlu0 %2235
    %v2237 = vsel %vm450, %v2219, 0.0
    %2238 = vadd.xlane.f32.xlu0 %v2237
    %v2239 = vpop.xlane.xlu0 %2238
    %v2240 = vsel %vm450, %v2221, 0.0
    %2241 = vadd.xlane.f32.xlu0 %v2240
    %v2242 = vpop.xlane.xlu0 %2241
    %v2243 = vsel %vm450, %v2223, 0.0
    %2244 = vadd.xlane.f32.xlu0 %v2243
    %v2245 = vpop.xlane.xlu0 %2244
    %v2246 = vsel %vm450, %v2225, 0.0
    %2247 = vadd.xlane.f32.xlu0 %v2246
    %v2248 = vpop.xlane.xlu0 %2247
    %v2249 = vsel %vm450, %v2227, 0.0
    %2250 = vadd.xlane.f32.xlu0 %v2249
    %v2251 = vpop.xlane.xlu0 %2250
    %v2252 = vrcp.pop %v2230
    %v2253 = vrcp.pop %v2233
    %v2254 = vrcp.pop %v2236
    %v2255 = vrcp.pop %v2239
    %v2256 = vrcp.pop %v2242
    %v2257 = vrcp.pop %v2245
    %v2258 = vrcp.pop %v2248
    %v2259 = vrcp.pop %v2251
    %v2260 = vmul.f32 %v2213, %v2252
    %v2261 = vmul.f32 %v2215, %v2253
    %v2262 = vmul.f32 %v2217, %v2254
    %v2263 = vmul.f32 %v2219, %v2255
    %v2264 = vmul.f32 %v2221, %v2256
    %v2265 = vmul.f32 %v2223, %v2257
    %v2266 = vmul.f32 %v2225, %v2258
    %v2267 = vmul.f32 %v2227, %v2259
    %v2269 = vsel %vm450, %v2260, 0
    %v2272 = vsel %vm450, %v2261, 0
    %v2275 = vsel %vm450, %v2262, 0
    %v2278 = vsel %vm450, %v2263, 0
    %v2281 = vsel %vm450, %v2264, 0
    %v2284 = vsel %vm450, %v2265, 0
    %v2287 = vsel %vm450, %v2266, 0
    %v2290 = vsel %vm450, %v2267, 0
    %2292 = vmatprep.subr.mxu0 0.0
    %2293 = vmatpush1.msra.mxu0 %v1858
    %2294 = vmatprep.subr.mxu0 0.0
    %2295 = vmatpush1.msra.mxu0 %v1863
    %2296 = vmatprep.subr.mxu0 0.0
    %2297 = vmatpush1.msra.mxu0 %v1868
    %2298 = vmatprep.subr.mxu0 0.0
    %2299 = vmatpush1.msra.mxu0 %v1873
    %2300 = vmatprep.subr.mxu0 0.0
    %2301 = vmatpush1.msra.mxu0 %v1878
    %2302 = vmatprep.subr.mxu0 0.0
    %2303 = vmatpush1.msra.mxu0 %v1883
    %2304 = vmatprep.subr.mxu0 0.0
    %2305 = vmatpush1.msra.mxu0 %v1888
    %2306 = vmatprep.subr.mxu0 0.0
    %2307 = vmatpush1.msra.mxu0 %v1893
    %2308 = vmatprep.subr.mxu0 0.0
    %2309 = vmatpush1.msra.mxu0 0.0
    %2310 = vmatprep.subr.mxu0 0.0
    %2311 = vmatpush1.msra.mxu0 0.0
    %2312 = vmatprep.subr.mxu0 0.0
    %2313 = vmatpush1.msra.mxu0 0.0
    %2314 = vmatprep.subr.mxu0 0.0
    %2315 = vmatpush1.msra.mxu0 0.0
    %2316 = vmatprep.subr.mxu0 0.0
    %2317 = vmatpush1.msra.mxu0 0.0
    %2318 = vmatprep.subr.mxu0 0.0
    %2319 = vmatpush1.msra.mxu0 0.0
    %2320 = vmatprep.subr.mxu0 0.0
    %2321 = vmatpush1.msra.mxu0 0.0
    %2322 = vmatprep.subr.mxu0 0.0
    %2323 = vmatpush1.msra.mxu0 0.0
    %2324 = vmatprep.subr.mxu0 0.0
    %2325 = vmatpush1.msra.mxu0 0.0
    %2326 = vmatprep.subr.mxu0 0.0
    %2327 = vmatpush1.msra.mxu0 0.0
    %2328 = vmatprep.subr.mxu0 0.0
    %2329 = vmatpush1.msra.mxu0 0.0
    %2330 = vmatprep.subr.mxu0 0.0
    %2331 = vmatpush1.msra.mxu0 0.0
    %2332 = vmatprep.subr.mxu0 0.0
    %2333 = vmatpush1.msra.mxu0 0.0
    %2334 = vmatprep.subr.mxu0 0.0
    %2335 = vmatpush1.msra.mxu0 0.0
    %2336 = vmatprep.subr.mxu0 0.0
    %2337 = vmatpush1.msra.mxu0 0.0
    %2338 = vmatprep.subr.mxu0 0.0
    %2339 = vmatpush1.msra.mxu0 0.0
    %2340 = vmatprep.subr.mxu0 0.0
    %2341 = vmatpush1.msra.mxu0 0.0
    %2342 = vmatprep.subr.mxu0 0.0
    %2343 = vmatpush1.msra.mxu0 0.0
    %2344 = vmatprep.subr.mxu0 0.0
    %2345 = vmatpush1.msra.mxu0 0.0
    %2346 = vmatprep.subr.mxu0 0.0
    %2347 = vmatpush1.msra.mxu0 0.0
    %2348 = vmatprep.subr.mxu0 0.0
    %2349 = vmatpush1.msra.mxu0 0.0
    %2350 = vmatprep.subr.mxu0 0.0
    %2351 = vmatpush1.msra.mxu0 0.0
    %2352 = vmatprep.subr.mxu0 0.0
    %2353 = vmatpush1.msra.mxu0 0.0
    %2354 = vmatprep.subr.mxu0 0.0
    %2355 = vmatpush1.msra.mxu0 0.0
    %2356 = vmatprep.mubr.f32.mxu0 0.0
    %2357 = vmatmul.mubr.f32.gmra.mrb[0].mxu0 %v2269
    %v2358 = vpop.f32.mrb[0].mxu0
    %v2359 = vadd.f32 0.0, %v2358
    %v2360 = vpop.f32.mrb[0].mxu0
    %2361 = vmatprep.mubr.f32.mxu0 0.0
    %2362 = vmatmul.mubr.f32.gmra.mrb[0].mxu0 %v2272
    %v2363 = vpop.f32.mrb[0].mxu0
    %v2364 = vadd.f32 0.0, %v2363
    %v2365 = vpop.f32.mrb[0].mxu0
    %2366 = vmatprep.mubr.f32.mxu0 0.0
    %2367 = vmatmul.mubr.f32.gmra.mrb[0].mxu0 %v2275
    %v2368 = vpop.f32.mrb[0].mxu0
    %v2369 = vadd.f32 0.0, %v2368
    %v2370 = vpop.f32.mrb[0].mxu0
    %2371 = vmatprep.mubr.f32.mxu0 0.0
    %2372 = vmatmul.mubr.f32.gmra.mrb[0].mxu0 %v2278
    %v2373 = vpop.f32.mrb[0].mxu0
    %v2374 = vadd.f32 0.0, %v2373
    %v2375 = vpop.f32.mrb[0].mxu0
    %2376 = vmatprep.mubr.f32.mxu0 0.0
    %2377 = vmatmul.mubr.f32.gmra.mrb[0].mxu0 %v2281
    %v2378 = vpop.f32.mrb[0].mxu0
    %v2379 = vadd.f32 0.0, %v2378
    %v2380 = vpop.f32.mrb[0].mxu0
    %2381 = vmatprep.mubr.f32.mxu0 0.0
    %2382 = vmatmul.mubr.f32.gmra.mrb[0].mxu0 %v2284
    %v2383 = vpop.f32.mrb[0].mxu0
    %v2384 = vadd.f32 0.0, %v2383
    %v2385 = vpop.f32.mrb[0].mxu0
    %2386 = vmatprep.mubr.f32.mxu0 0.0
    %2387 = vmatmul.mubr.f32.gmra.mrb[0].mxu0 %v2287
    %v2388 = vpop.f32.mrb[0].mxu0
    %v2389 = vadd.f32 0.0, %v2388
    %v2390 = vpop.f32.mrb[0].mxu0
    %2391 = vmatprep.mubr.f32.mxu0 0.0
    %2392 = vmatmul.mubr.f32.gmra.mrb[0].mxu0 %v2290
    %v2393 = vpop.f32.mrb[0].mxu0
    %v2394 = vadd.f32 0.0, %v2393
    %v2395 = vpop.f32.mrb[0].mxu0
    %2396 = vdwg.mxu0
    %vm2397 = vcmask 130048
    %2398 = vst.msk [vmem:[#allocation3] sm:$0xff] %vm2397, %v2359
    %2399 = vst.msk [vmem:[#allocation3 + $0x8] sm:$0xff] %vm2397, %v2364
    %2400 = vst.msk [vmem:[#allocation3 + $0x10] sm:$0xff] %vm2397, %v2369
    %2401 = vst.msk [vmem:[#allocation3 + $0x18] sm:$0xff] %vm2397, %v2374
    %2402 = vst.msk [vmem:[#allocation3 + $0x20] sm:$0xff] %vm2397, %v2379
    %2403 = vst.msk [vmem:[#allocation3 + $0x28] sm:$0xff] %vm2397, %v2384
    %2404 = vst.msk [vmem:[#allocation3 + $0x30] sm:$0xff] %vm2397, %v2389
    %2405 = vst.msk [vmem:[#allocation3 + $0x38] sm:$0xff] %vm2397, %v2394
    %2406 = vset.pattern.permute.xlu0 1
    %2407 = vperm.xlu0 %2406, %v1993
    %v2408 = vpop.permute.xlu0 %2407
    %2410 = vset.pattern.permute.xlu0 1
    %2411 = vperm.xlu0 %2410, %v1998
    %v2412 = vpop.permute.xlu0 %2411
    %2414 = vset.pattern.permute.xlu0 1
    %2415 = vperm.xlu0 %2414, %v2003
    %v2416 = vpop.permute.xlu0 %2415
    %2418 = vset.pattern.permute.xlu0 1
    %2419 = vperm.xlu0 %2418, %v2008
    %v2420 = vpop.permute.xlu0 %2419
    %2422 = vset.pattern.permute.xlu0 1
    %2423 = vperm.xlu0 %2422, %v2013
    %v2424 = vpop.permute.xlu0 %2423
    %2426 = vset.pattern.permute.xlu0 1
    %2427 = vperm.xlu0 %2426, %v2018
    %v2428 = vpop.permute.xlu0 %2427
    %2430 = vset.pattern.permute.xlu0 1
    %2431 = vperm.xlu0 %2430, %v2023
    %v2432 = vpop.permute.xlu0 %2431
    %2434 = vset.pattern.permute.xlu0 1
    %2435 = vperm.xlu0 %2434, %v2028
    %v2436 = vpop.permute.xlu0 %2435
    %v2438 = vlaneseq
    %v2439 = vshrl.u32 %v2438, 7
    %v2440 = vsub.s32 1, %v2439
    %v2441 = vrot.slane %v2101, %v2440
    %v2442 = vadd.f32 %v2408, %v2441
    %v2443 = vadd.f32 %v2412, %v2441
    %v2444 = vadd.f32 %v2416, %v2441
    %v2445 = vadd.f32 %v2420, %v2441
    %v2446 = vadd.f32 %v2424, %v2441
    %v2447 = vadd.f32 %v2428, %v2441
    %v2448 = vadd.f32 %v2432, %v2441
    %v2449 = vadd.f32 %v2436, %v2441
    %v2450 = vmul.f32 %v2442, 0.2
    %v2451 = vmul.f32 %v2443, 0.2
    %v2452 = vmul.f32 %v2444, 0.2
    %v2453 = vmul.f32 %v2445, 0.2
    %v2454 = vmul.f32 %v2446, 0.2
    %v2455 = vmul.f32 %v2447, 0.2
    %v2456 = vmul.f32 %v2448, 0.2
    %v2457 = vmul.f32 %v2449, 0.2
    %v2458 = vmax.f32 %v2442, %v2450
    %v2459 = vmax.f32 %v2443, %v2451
    %v2460 = vmax.f32 %v2444, %v2452
    %v2461 = vmax.f32 %v2445, %v2453
    %v2462 = vmax.f32 %v2446, %v2454
    %v2463 = vmax.f32 %v2447, %v2455
    %v2464 = vmax.f32 %v2448, %v2456
    %v2465 = vmax.f32 %v2449, %v2457
    %v2466 = vadd.f32 %v2458, %v32
    %v2467 = vadd.f32 %v2459, %v33
    %v2468 = vadd.f32 %v2460, %v34
    %v2469 = vadd.f32 %v2461, %v35
    %v2470 = vadd.f32 %v2462, %v36
    %v2471 = vadd.f32 %v2463, %v37
    %v2472 = vadd.f32 %v2464, %v38
    %v2473 = vadd.f32 %v2465, %v39
    %v2474 = vsel %vm450, %v2466, -inf
    %2475 = vmax.xlane.f32.xlu0 %v2474
    %v2476 = vpop.xlane.xlu0 %2475
    %v2477 = vsel %vm450, %v2467, -inf
    %2478 = vmax.xlane.f32.xlu0 %v2477
    %v2479 = vpop.xlane.xlu0 %2478
    %v2480 = vsel %vm450, %v2468, -inf
    %2481 = vmax.xlane.f32.xlu0 %v2480
    %v2482 = vpop.xlane.xlu0 %2481
    %v2483 = vsel %vm450, %v2469, -inf
    %2484 = vmax.xlane.f32.xlu0 %v2483
    %v2485 = vpop.xlane.xlu0 %2484
    %v2486 = vsel %vm450, %v2470, -inf
    %2487 = vmax.xlane.f32.xlu0 %v2486
    %v2488 = vpop.xlane.xlu0 %2487
    %v2489 = vsel %vm450, %v2471, -inf
    %2490 = vmax.xlane.f32.xlu0 %v2489
    %v2491 = vpop.xlane.xlu0 %2490
    %v2492 = vsel %vm450, %v2472, -inf
    %2493 = vmax.xlane.f32.xlu0 %v2492
    %v2494 = vpop.xlane.xlu0 %2493
    %v2495 = vsel %vm450, %v2473, -inf
    %2496 = vmax.xlane.f32.xlu0 %v2495
    %v2497 = vpop.xlane.xlu0 %2496
    %v2498 = vsub.f32 %v2466, %v2476
    %v2499 = vsub.f32 %v2467, %v2479
    %v2500 = vsub.f32 %v2468, %v2482
    %v2501 = vsub.f32 %v2469, %v2485
    %v2502 = vsub.f32 %v2470, %v2488
    %v2503 = vsub.f32 %v2471, %v2491
    %v2504 = vsub.f32 %v2472, %v2494
    %v2505 = vsub.f32 %v2473, %v2497
    %v2506 = vmul.f32 %v2498, 1.442695
    %v2507 = vpow.pop %v2506
    %v2508 = vmul.f32 %v2499, 1.442695
    %v2509 = vpow.pop %v2508
    %v2510 = vmul.f32 %v2500, 1.442695
    %v2511 = vpow.pop %v2510
    %v2512 = vmul.f32 %v2501, 1.442695
    %v2513 = vpow.pop %v2512
    %v2514 = vmul.f32 %v2502, 1.442695
    %v2515 = vpow.pop %v2514
    %v2516 = vmul.f32 %v2503, 1.442695
    %v2517 = vpow.pop %v2516
    %v2518 = vmul.f32 %v2504, 1.442695
    %v2519 = vpow.pop %v2518
    %v2520 = vmul.f32 %v2505, 1.442695
    %v2521 = vpow.pop %v2520
    %v2522 = vsel %vm450, %v2507, 0.0
    %2523 = vadd.xlane.f32.xlu0 %v2522
    %v2524 = vpop.xlane.xlu0 %2523
    %v2525 = vsel %vm450, %v2509, 0.0
    %2526 = vadd.xlane.f32.xlu0 %v2525
    %v2527 = vpop.xlane.xlu0 %2526
    %v2528 = vsel %vm450, %v2511, 0.0
    %2529 = vadd.xlane.f32.xlu0 %v2528
    %v2530 = vpop.xlane.xlu0 %2529
    %v2531 = vsel %vm450, %v2513, 0.0
    %2532 = vadd.xlane.f32.xlu0 %v2531
    %v2533 = vpop.xlane.xlu0 %2532
    %v2534 = vsel %vm450, %v2515, 0.0
    %2535 = vadd.xlane.f32.xlu0 %v2534
    %v2536 = vpop.xlane.xlu0 %2535
    %v2537 = vsel %vm450, %v2517, 0.0
    %2538 = vadd.xlane.f32.xlu0 %v2537
    %v2539 = vpop.xlane.xlu0 %2538
    %v2540 = vsel %vm450, %v2519, 0.0
    %2541 = vadd.xlane.f32.xlu0 %v2540
    %v2542 = vpop.xlane.xlu0 %2541
    %v2543 = vsel %vm450, %v2521, 0.0
    %2544 = vadd.xlane.f32.xlu0 %v2543
    %v2545 = vpop.xlane.xlu0 %2544
    %v2546 = vrcp.pop %v2524
    %v2547 = vrcp.pop %v2527
    %v2548 = vrcp.pop %v2530
    %v2549 = vrcp.pop %v2533
    %v2550 = vrcp.pop %v2536
    %v2551 = vrcp.pop %v2539
    %v2552 = vrcp.pop %v2542
    %v2553 = vrcp.pop %v2545
    %v2554 = vmul.f32 %v2507, %v2546
    %v2555 = vmul.f32 %v2509, %v2547
    %v2556 = vmul.f32 %v2511, %v2548
    %v2557 = vmul.f32 %v2513, %v2549
    %v2558 = vmul.f32 %v2515, %v2550
    %v2559 = vmul.f32 %v2517, %v2551
    %v2560 = vmul.f32 %v2519, %v2552
    %v2561 = vmul.f32 %v2521, %v2553
    %2562 = vrot.lane.b32.xlu0 %v1858, 112
    %v2563 = vpop.permute.xlu0 %2562
    %2564 = vrot.lane.b32.xlu0 %v1863, 112
    %v2565 = vpop.permute.xlu0 %2564
    %2566 = vrot.lane.b32.xlu0 %v1868, 112
    %v2567 = vpop.permute.xlu0 %2566
    %2568 = vrot.lane.b32.xlu0 %v1873, 112
    %v2569 = vpop.permute.xlu0 %2568
    %2570 = vrot.lane.b32.xlu0 %v1878, 112
    %v2571 = vpop.permute.xlu0 %2570
    %2572 = vrot.lane.b32.xlu0 %v1883, 112
    %v2573 = vpop.permute.xlu0 %2572
    %2574 = vrot.lane.b32.xlu0 %v1888, 112
    %v2575 = vpop.permute.xlu0 %2574
    %2576 = vrot.lane.b32.xlu0 %v1893, 112
    %v2577 = vpop.permute.xlu0 %2576
    %v2587 = vsel %vm450, %v2554, 0
    %v2590 = vsel %vm450, %v2555, 0
    %v2593 = vsel %vm450, %v2556, 0
    %v2596 = vsel %vm450, %v2557, 0
    %v2599 = vsel %vm450, %v2558, 0
    %v2602 = vsel %vm450, %v2559, 0
    %v2605 = vsel %vm450, %v2560, 0
    %v2608 = vsel %vm450, %v2561, 0
    %2610 = vmatprep.subr.mxu0 0.0
    %2611 = vmatpush1.msra.mxu0 %v2563
    %2612 = vmatprep.subr.mxu0 0.0
    %2613 = vmatpush1.msra.mxu0 %v2565
    %2614 = vmatprep.subr.mxu0 0.0
    %2615 = vmatpush1.msra.mxu0 %v2567
    %2616 = vmatprep.subr.mxu0 0.0
    %2617 = vmatpush1.msra.mxu0 %v2569
    %2618 = vmatprep.subr.mxu0 0.0
    %2619 = vmatpush1.msra.mxu0 %v2571
    %2620 = vmatprep.subr.mxu0 0.0
    %2621 = vmatpush1.msra.mxu0 %v2573
    %2622 = vmatprep.subr.mxu0 0.0
    %2623 = vmatpush1.msra.mxu0 %v2575
    %2624 = vmatprep.subr.mxu0 0.0
    %2625 = vmatpush1.msra.mxu0 %v2577
    %2626 = vmatprep.subr.mxu0 0.0
    %2627 = vmatpush1.msra.mxu0 0.0
    %2628 = vmatprep.subr.mxu0 0.0
    %2629 = vmatpush1.msra.mxu0 0.0
    %2630 = vmatprep.subr.mxu0 0.0
    %2631 = vmatpush1.msra.mxu0 0.0
    %2632 = vmatprep.subr.mxu0 0.0
    %2633 = vmatpush1.msra.mxu0 0.0
    %2634 = vmatprep.subr.mxu0 0.0
    %2635 = vmatpush1.msra.mxu0 0.0
    %2636 = vmatprep.subr.mxu0 0.0
    %2637 = vmatpush1.msra.mxu0 0.0
    %2638 = vmatprep.subr.mxu0 0.0
    %2639 = vmatpush1.msra.mxu0 0.0
    %2640 = vmatprep.subr.mxu0 0.0
    %2641 = vmatpush1.msra.mxu0 0.0
    %2642 = vmatprep.subr.mxu0 0.0
    %2643 = vmatpush1.msra.mxu0 0.0
    %2644 = vmatprep.subr.mxu0 0.0
    %2645 = vmatpush1.msra.mxu0 0.0
    %2646 = vmatprep.subr.mxu0 0.0
    %2647 = vmatpush1.msra.mxu0 0.0
    %2648 = vmatprep.subr.mxu0 0.0
    %2649 = vmatpush1.msra.mxu0 0.0
    %2650 = vmatprep.subr.mxu0 0.0
    %2651 = vmatpush1.msra.mxu0 0.0
    %2652 = vmatprep.subr.mxu0 0.0
    %2653 = vmatpush1.msra.mxu0 0.0
    %2654 = vmatprep.subr.mxu0 0.0
    %2655 = vmatpush1.msra.mxu0 0.0
    %2656 = vmatprep.subr.mxu0 0.0
    %2657 = vmatpush1.msra.mxu0 0.0
    %2658 = vmatprep.subr.mxu0 0.0
    %2659 = vmatpush1.msra.mxu0 0.0
    %2660 = vmatprep.subr.mxu0 0.0
    %2661 = vmatpush1.msra.mxu0 0.0
    %2662 = vmatprep.subr.mxu0 0.0
    %2663 = vmatpush1.msra.mxu0 0.0
    %2664 = vmatprep.subr.mxu0 0.0
    %2665 = vmatpush1.msra.mxu0 0.0
    %2666 = vmatprep.subr.mxu0 0.0
    %2667 = vmatpush1.msra.mxu0 0.0
    %2668 = vmatprep.subr.mxu0 0.0
    %2669 = vmatpush1.msra.mxu0 0.0
    %2670 = vmatprep.subr.mxu0 0.0
    %2671 = vmatpush1.msra.mxu0 0.0
    %2672 = vmatprep.subr.mxu0 0.0
    %2673 = vmatpush1.msra.mxu0 0.0
    %2674 = vmatprep.mubr.f32.mxu0 0.0
    %2675 = vmatmul.mubr.f32.gmra.mrb[0].mxu0 %v2587
    %v2676 = vpop.f32.mrb[0].mxu0
    %v2677 = vadd.f32 0.0, %v2676
    %v2678 = vpop.f32.mrb[0].mxu0
    %2679 = vmatprep.mubr.f32.mxu0 0.0
    %2680 = vmatmul.mubr.f32.gmra.mrb[0].mxu0 %v2590
    %v2681 = vpop.f32.mrb[0].mxu0
    %v2682 = vadd.f32 0.0, %v2681
    %v2683 = vpop.f32.mrb[0].mxu0
    %2684 = vmatprep.mubr.f32.mxu0 0.0
    %2685 = vmatmul.mubr.f32.gmra.mrb[0].mxu0 %v2593
    %v2686 = vpop.f32.mrb[0].mxu0
    %v2687 = vadd.f32 0.0, %v2686
    %v2688 = vpop.f32.mrb[0].mxu0
    %2689 = vmatprep.mubr.f32.mxu0 0.0
    %2690 = vmatmul.mubr.f32.gmra.mrb[0].mxu0 %v2596
    %v2691 = vpop.f32.mrb[0].mxu0
    %v2692 = vadd.f32 0.0, %v2691
    %v2693 = vpop.f32.mrb[0].mxu0
    %2694 = vmatprep.mubr.f32.mxu0 0.0
    %2695 = vmatmul.mubr.f32.gmra.mrb[0].mxu0 %v2599
    %v2696 = vpop.f32.mrb[0].mxu0
    %v2697 = vadd.f32 0.0, %v2696
    %v2698 = vpop.f32.mrb[0].mxu0
    %2699 = vmatprep.mubr.f32.mxu0 0.0
    %2700 = vmatmul.mubr.f32.gmra.mrb[0].mxu0 %v2602
    %v2701 = vpop.f32.mrb[0].mxu0
    %v2702 = vadd.f32 0.0, %v2701
    %v2703 = vpop.f32.mrb[0].mxu0
    %2704 = vmatprep.mubr.f32.mxu0 0.0
    %2705 = vmatmul.mubr.f32.gmra.mrb[0].mxu0 %v2605
    %v2706 = vpop.f32.mrb[0].mxu0
    %v2707 = vadd.f32 0.0, %v2706
    %v2708 = vpop.f32.mrb[0].mxu0
    %2709 = vmatprep.mubr.f32.mxu0 0.0
    %2710 = vmatmul.mubr.f32.gmra.mrb[0].mxu0 %v2608
    %v2711 = vpop.f32.mrb[0].mxu0
    %v2712 = vadd.f32 0.0, %v2711
    %v2713 = vpop.f32.mrb[0].mxu0
    %2714 = vdwg.mxu0
    %2723 = vrot.lane.b32.xlu0 %v2677, 16
    %v2724 = vpop.permute.xlu0 %2723
    %2725 = vrot.lane.b32.xlu0 %v2682, 16
    %v2726 = vpop.permute.xlu0 %2725
    %2727 = vrot.lane.b32.xlu0 %v2687, 16
    %v2728 = vpop.permute.xlu0 %2727
    %2729 = vrot.lane.b32.xlu0 %v2692, 16
    %v2730 = vpop.permute.xlu0 %2729
    %2731 = vrot.lane.b32.xlu0 %v2697, 16
    %v2732 = vpop.permute.xlu0 %2731
    %2733 = vrot.lane.b32.xlu0 %v2702, 16
    %v2734 = vpop.permute.xlu0 %2733
    %2735 = vrot.lane.b32.xlu0 %v2707, 16
    %v2736 = vpop.permute.xlu0 %2735
    %2737 = vrot.lane.b32.xlu0 %v2712, 16
    %v2738 = vpop.permute.xlu0 %2737
    %vm2747 = vcmask 261248
    %2748 = vst.msk [vmem:[#allocation3] sm:$0xff] %vm2747, %v2724
    %2749 = vst.msk [vmem:[#allocation3 + $0x8] sm:$0xff] %vm2747, %v2726
    %2750 = vst.msk [vmem:[#allocation3 + $0x10] sm:$0xff] %vm2747, %v2728
    %2751 = vst.msk [vmem:[#allocation3 + $0x18] sm:$0xff] %vm2747, %v2730
    %2752 = vst.msk [vmem:[#allocation3 + $0x20] sm:$0xff] %vm2747, %v2732
    %2753 = vst.msk [vmem:[#allocation3 + $0x28] sm:$0xff] %vm2747, %v2734
    %2754 = vst.msk [vmem:[#allocation3 + $0x30] sm:$0xff] %vm2747, %v2736
    %2755 = vst.msk [vmem:[#allocation3 + $0x38] sm:$0xff] %vm2747, %v2738
    %2756 = vset.pattern.permute.xlu0 2
    %2757 = vperm.xlu0 %2756, %v1993
    %v2758 = vpop.permute.xlu0 %2757
    %2760 = vset.pattern.permute.xlu0 2
    %2761 = vperm.xlu0 %2760, %v1998
    %v2762 = vpop.permute.xlu0 %2761
    %2764 = vset.pattern.permute.xlu0 2
    %2765 = vperm.xlu0 %2764, %v2003
    %v2766 = vpop.permute.xlu0 %2765
    %2768 = vset.pattern.permute.xlu0 2
    %2769 = vperm.xlu0 %2768, %v2008
    %v2770 = vpop.permute.xlu0 %2769
    %2772 = vset.pattern.permute.xlu0 2
    %2773 = vperm.xlu0 %2772, %v2013
    %v2774 = vpop.permute.xlu0 %2773
    %2776 = vset.pattern.permute.xlu0 2
    %2777 = vperm.xlu0 %2776, %v2018
    %v2778 = vpop.permute.xlu0 %2777
    %2780 = vset.pattern.permute.xlu0 2
    %2781 = vperm.xlu0 %2780, %v2023
    %v2782 = vpop.permute.xlu0 %2781
    %2784 = vset.pattern.permute.xlu0 2
    %2785 = vperm.xlu0 %2784, %v2028
    %v2786 = vpop.permute.xlu0 %2785
    %v2788 = vlaneseq
    %v2789 = vshrl.u32 %v2788, 7
    %v2790 = vsub.s32 2, %v2789
    %v2791 = vrot.slane %v2101, %v2790
    %v2792 = vadd.f32 %v2758, %v2791
    %v2793 = vadd.f32 %v2762, %v2791
    %v2794 = vadd.f32 %v2766, %v2791
    %v2795 = vadd.f32 %v2770, %v2791
    %v2796 = vadd.f32 %v2774, %v2791
    %v2797 = vadd.f32 %v2778, %v2791
    %v2798 = vadd.f32 %v2782, %v2791
    %v2799 = vadd.f32 %v2786, %v2791
    %v2800 = vmul.f32 %v2792, 0.2
    %v2801 = vmul.f32 %v2793, 0.2
    %v2802 = vmul.f32 %v2794, 0.2
    %v2803 = vmul.f32 %v2795, 0.2
    %v2804 = vmul.f32 %v2796, 0.2
    %v2805 = vmul.f32 %v2797, 0.2
    %v2806 = vmul.f32 %v2798, 0.2
    %v2807 = vmul.f32 %v2799, 0.2
    %v2808 = vmax.f32 %v2792, %v2800
    %v2809 = vmax.f32 %v2793, %v2801
    %v2810 = vmax.f32 %v2794, %v2802
    %v2811 = vmax.f32 %v2795, %v2803
    %v2812 = vmax.f32 %v2796, %v2804
    %v2813 = vmax.f32 %v2797, %v2805
    %v2814 = vmax.f32 %v2798, %v2806
    %v2815 = vmax.f32 %v2799, %v2807
    %v2816 = vadd.f32 %v2808, %v32
    %v2817 = vadd.f32 %v2809, %v33
    %v2818 = vadd.f32 %v2810, %v34
    %v2819 = vadd.f32 %v2811, %v35
    %v2820 = vadd.f32 %v2812, %v36
    %v2821 = vadd.f32 %v2813, %v37
    %v2822 = vadd.f32 %v2814, %v38
    %v2823 = vadd.f32 %v2815, %v39
    %v2824 = vsel %vm450, %v2816, -inf
    %2825 = vmax.xlane.f32.xlu0 %v2824
    %v2826 = vpop.xlane.xlu0 %2825
    %v2827 = vsel %vm450, %v2817, -inf
    %2828 = vmax.xlane.f32.xlu0 %v2827
    %v2829 = vpop.xlane.xlu0 %2828
    %v2830 = vsel %vm450, %v2818, -inf
    %2831 = vmax.xlane.f32.xlu0 %v2830
    %v2832 = vpop.xlane.xlu0 %2831
    %v2833 = vsel %vm450, %v2819, -inf
    %2834 = vmax.xlane.f32.xlu0 %v2833
    %v2835 = vpop.xlane.xlu0 %2834
    %v2836 = vsel %vm450, %v2820, -inf
    %2837 = vmax.xlane.f32.xlu0 %v2836
    %v2838 = vpop.xlane.xlu0 %2837
    %v2839 = vsel %vm450, %v2821, -inf
    %2840 = vmax.xlane.f32.xlu0 %v2839
    %v2841 = vpop.xlane.xlu0 %2840
    %v2842 = vsel %vm450, %v2822, -inf
    %2843 = vmax.xlane.f32.xlu0 %v2842
    %v2844 = vpop.xlane.xlu0 %2843
    %v2845 = vsel %vm450, %v2823, -inf
    %2846 = vmax.xlane.f32.xlu0 %v2845
    %v2847 = vpop.xlane.xlu0 %2846
    %v2848 = vsub.f32 %v2816, %v2826
    %v2849 = vsub.f32 %v2817, %v2829
    %v2850 = vsub.f32 %v2818, %v2832
    %v2851 = vsub.f32 %v2819, %v2835
    %v2852 = vsub.f32 %v2820, %v2838
    %v2853 = vsub.f32 %v2821, %v2841
    %v2854 = vsub.f32 %v2822, %v2844
    %v2855 = vsub.f32 %v2823, %v2847
    %v2856 = vmul.f32 %v2848, 1.442695
    %v2857 = vpow.pop %v2856
    %v2858 = vmul.f32 %v2849, 1.442695
    %v2859 = vpow.pop %v2858
    %v2860 = vmul.f32 %v2850, 1.442695
    %v2861 = vpow.pop %v2860
    %v2862 = vmul.f32 %v2851, 1.442695
    %v2863 = vpow.pop %v2862
    %v2864 = vmul.f32 %v2852, 1.442695
    %v2865 = vpow.pop %v2864
    %v2866 = vmul.f32 %v2853, 1.442695
    %v2867 = vpow.pop %v2866
    %v2868 = vmul.f32 %v2854, 1.442695
    %v2869 = vpow.pop %v2868
    %v2870 = vmul.f32 %v2855, 1.442695
    %v2871 = vpow.pop %v2870
    %v2872 = vsel %vm450, %v2857, 0.0
    %2873 = vadd.xlane.f32.xlu0 %v2872
    %v2874 = vpop.xlane.xlu0 %2873
    %v2875 = vsel %vm450, %v2859, 0.0
    %2876 = vadd.xlane.f32.xlu0 %v2875
    %v2877 = vpop.xlane.xlu0 %2876
    %v2878 = vsel %vm450, %v2861, 0.0
    %2879 = vadd.xlane.f32.xlu0 %v2878
    %v2880 = vpop.xlane.xlu0 %2879
    %v2881 = vsel %vm450, %v2863, 0.0
    %2882 = vadd.xlane.f32.xlu0 %v2881
    %v2883 = vpop.xlane.xlu0 %2882
    %v2884 = vsel %vm450, %v2865, 0.0
    %2885 = vadd.xlane.f32.xlu0 %v2884
    %v2886 = vpop.xlane.xlu0 %2885
    %v2887 = vsel %vm450, %v2867, 0.0
    %2888 = vadd.xlane.f32.xlu0 %v2887
    %v2889 = vpop.xlane.xlu0 %2888
    %v2890 = vsel %vm450, %v2869, 0.0
    %2891 = vadd.xlane.f32.xlu0 %v2890
    %v2892 = vpop.xlane.xlu0 %2891
    %v2893 = vsel %vm450, %v2871, 0.0
    %2894 = vadd.xlane.f32.xlu0 %v2893
    %v2895 = vpop.xlane.xlu0 %2894
    %v2896 = vrcp.pop %v2874
    %v2897 = vrcp.pop %v2877
    %v2898 = vrcp.pop %v2880
    %v2899 = vrcp.pop %v2883
    %v2900 = vrcp.pop %v2886
    %v2901 = vrcp.pop %v2889
    %v2902 = vrcp.pop %v2892
    %v2903 = vrcp.pop %v2895
    %v2904 = vmul.f32 %v2857, %v2896
    %v2905 = vmul.f32 %v2859, %v2897
    %v2906 = vmul.f32 %v2861, %v2898
    %v2907 = vmul.f32 %v2863, %v2899
    %v2908 = vmul.f32 %v2865, %v2900
    %v2909 = vmul.f32 %v2867, %v2901
    %v2910 = vmul.f32 %v2869, %v2902
    %v2911 = vmul.f32 %v2871, %v2903
    %2912 = vrot.lane.b32.xlu0 %v1858, 96
    %v2913 = vpop.permute.xlu0 %2912
    %2914 = vrot.lane.b32.xlu0 %v1863, 96
    %v2915 = vpop.permute.xlu0 %2914
    %2916 = vrot.lane.b32.xlu0 %v1868, 96
    %v2917 = vpop.permute.xlu0 %2916
    %2918 = vrot.lane.b32.xlu0 %v1873, 96
    %v2919 = vpop.permute.xlu0 %2918
    %2920 = vrot.lane.b32.xlu0 %v1878, 96
    %v2921 = vpop.permute.xlu0 %2920
    %2922 = vrot.lane.b32.xlu0 %v1883, 96
    %v2923 = vpop.permute.xlu0 %2922
    %2924 = vrot.lane.b32.xlu0 %v1888, 96
    %v2925 = vpop.permute.xlu0 %2924
    %2926 = vrot.lane.b32.xlu0 %v1893, 96
    %v2927 = vpop.permute.xlu0 %2926
    %v2937 = vsel %vm450, %v2904, 0
    %v2940 = vsel %vm450, %v2905, 0
    %v2943 = vsel %vm450, %v2906, 0
    %v2946 = vsel %vm450, %v2907, 0
    %v2949 = vsel %vm450, %v2908, 0
    %v2952 = vsel %vm450, %v2909, 0
    %v2955 = vsel %vm450, %v2910, 0
    %v2958 = vsel %vm450, %v2911, 0
    %2960 = vmatprep.subr.mxu0 0.0
    %2961 = vmatpush1.msra.mxu0 %v2913
    %2962 = vmatprep.subr.mxu0 0.0
    %2963 = vmatpush1.msra.mxu0 %v2915
    %2964 = vmatprep.subr.mxu0 0.0
    %2965 = vmatpush1.msra.mxu0 %v2917
    %2966 = vmatprep.subr.mxu0 0.0
    %2967 = vmatpush1.msra.mxu0 %v2919
    %2968 = vmatprep.subr.mxu0 0.0
    %2969 = vmatpush1.msra.mxu0 %v2921
    %2970 = vmatprep.subr.mxu0 0.0
    %2971 = vmatpush1.msra.mxu0 %v2923
    %2972 = vmatprep.subr.mxu0 0.0
    %2973 = vmatpush1.msra.mxu0 %v2925
    %2974 = vmatprep.subr.mxu0 0.0
    %2975 = vmatpush1.msra.mxu0 %v2927
    %2976 = vmatprep.subr.mxu0 0.0
    %2977 = vmatpush1.msra.mxu0 0.0
    %2978 = vmatprep.subr.mxu0 0.0
    %2979 = vmatpush1.msra.mxu0 0.0
    %2980 = vmatprep.subr.mxu0 0.0
    %2981 = vmatpush1.msra.mxu0 0.0
    %2982 = vmatprep.subr.mxu0 0.0
    %2983 = vmatpush1.msra.mxu0 0.0
    %2984 = vmatprep.subr.mxu0 0.0
    %2985 = vmatpush1.msra.mxu0 0.0
    %2986 = vmatprep.subr.mxu0 0.0
    %2987 = vmatpush1.msra.mxu0 0.0
    %2988 = vmatprep.subr.mxu0 0.0
    %2989 = vmatpush1.msra.mxu0 0.0
    %2990 = vmatprep.subr.mxu0 0.0
    %2991 = vmatpush1.msra.mxu0 0.0
    %2992 = vmatprep.subr.mxu0 0.0
    %2993 = vmatpush1.msra.mxu0 0.0
    %2994 = vmatprep.subr.mxu0 0.0
    %2995 = vmatpush1.msra.mxu0 0.0
    %2996 = vmatprep.subr.mxu0 0.0
    %2997 = vmatpush1.msra.mxu0 0.0
    %2998 = vmatprep.subr.mxu0 0.0
    %2999 = vmatpush1.msra.mxu0 0.0
    %3000 = vmatprep.subr.mxu0 0.0
    %3001 = vmatpush1.msra.mxu0 0.0
    %3002 = vmatprep.subr.mxu0 0.0
    %3003 = vmatpush1.msra.mxu0 0.0
    %3004 = vmatprep.subr.mxu0 0.0
    %3005 = vmatpush1.msra.mxu0 0.0
    %3006 = vmatprep.subr.mxu0 0.0
    %3007 = vmatpush1.msra.mxu0 0.0
    %3008 = vmatprep.subr.mxu0 0.0
    %3009 = vmatpush1.msra.mxu0 0.0
    %3010 = vmatprep.subr.mxu0 0.0
    %3011 = vmatpush1.msra.mxu0 0.0
    %3012 = vmatprep.subr.mxu0 0.0
    %3013 = vmatpush1.msra.mxu0 0.0
    %3014 = vmatprep.subr.mxu0 0.0
    %3015 = vmatpush1.msra.mxu0 0.0
    %3016 = vmatprep.subr.mxu0 0.0
    %3017 = vmatpush1.msra.mxu0 0.0
    %3018 = vmatprep.subr.mxu0 0.0
    %3019 = vmatpush1.msra.mxu0 0.0
    %3020 = vmatprep.subr.mxu0 0.0
    %3021 = vmatpush1.msra.mxu0 0.0
    %3022 = vmatprep.subr.mxu0 0.0
    %3023 = vmatpush1.msra.mxu0 0.0
    %3024 = vmatprep.mubr.f32.mxu0 0.0
    %3025 = vmatmul.mubr.f32.gmra.mrb[0].mxu0 %v2937
    %v3026 = vpop.f32.mrb[0].mxu0
    %v3027 = vadd.f32 0.0, %v3026
    %v3028 = vpop.f32.mrb[0].mxu0
    %3029 = vmatprep.mubr.f32.mxu0 0.0
    %3030 = vmatmul.mubr.f32.gmra.mrb[0].mxu0 %v2940
    %v3031 = vpop.f32.mrb[0].mxu0
    %v3032 = vadd.f32 0.0, %v3031
    %v3033 = vpop.f32.mrb[0].mxu0
    %3034 = vmatprep.mubr.f32.mxu0 0.0
    %3035 = vmatmul.mubr.f32.gmra.mrb[0].mxu0 %v2943
    %v3036 = vpop.f32.mrb[0].mxu0
    %v3037 = vadd.f32 0.0, %v3036
    %v3038 = vpop.f32.mrb[0].mxu0
    %3039 = vmatprep.mubr.f32.mxu0 0.0
    %3040 = vmatmul.mubr.f32.gmra.mrb[0].mxu0 %v2946
    %v3041 = vpop.f32.mrb[0].mxu0
    %v3042 = vadd.f32 0.0, %v3041
    %v3043 = vpop.f32.mrb[0].mxu0
    %3044 = vmatprep.mubr.f32.mxu0 0.0
    %3045 = vmatmul.mubr.f32.gmra.mrb[0].mxu0 %v2949
    %v3046 = vpop.f32.mrb[0].mxu0
    %v3047 = vadd.f32 0.0, %v3046
    %v3048 = vpop.f32.mrb[0].mxu0
    %3049 = vmatprep.mubr.f32.mxu0 0.0
    %3050 = vmatmul.mubr.f32.gmra.mrb[0].mxu0 %v2952
    %v3051 = vpop.f32.mrb[0].mxu0
    %v3052 = vadd.f32 0.0, %v3051
    %v3053 = vpop.f32.mrb[0].mxu0
    %3054 = vmatprep.mubr.f32.mxu0 0.0
    %3055 = vmatmul.mubr.f32.gmra.mrb[0].mxu0 %v2955
    %v3056 = vpop.f32.mrb[0].mxu0
    %v3057 = vadd.f32 0.0, %v3056
    %v3058 = vpop.f32.mrb[0].mxu0
    %3059 = vmatprep.mubr.f32.mxu0 0.0
    %3060 = vmatmul.mubr.f32.gmra.mrb[0].mxu0 %v2958
    %v3061 = vpop.f32.mrb[0].mxu0
    %v3062 = vadd.f32 0.0, %v3061
    %v3063 = vpop.f32.mrb[0].mxu0
    %3064 = vdwg.mxu0
    %3073 = vrot.lane.b32.xlu0 %v3027, 32
    %v3074 = vpop.permute.xlu0 %3073
    %3075 = vrot.lane.b32.xlu0 %v3032, 32
    %v3076 = vpop.permute.xlu0 %3075
    %3077 = vrot.lane.b32.xlu0 %v3037, 32
    %v3078 = vpop.permute.xlu0 %3077
    %3079 = vrot.lane.b32.xlu0 %v3042, 32
    %v3080 = vpop.permute.xlu0 %3079
    %3081 = vrot.lane.b32.xlu0 %v3047, 32
    %v3082 = vpop.permute.xlu0 %3081
    %3083 = vrot.lane.b32.xlu0 %v3052, 32
    %v3084 = vpop.permute.xlu0 %3083
    %3085 = vrot.lane.b32.xlu0 %v3057, 32
    %v3086 = vpop.permute.xlu0 %3085
    %3087 = vrot.lane.b32.xlu0 %v3062, 32
    %v3088 = vpop.permute.xlu0 %3087
    %vm3097 = vcmask 392448
    %3098 = vst.msk [vmem:[#allocation3] sm:$0xff] %vm3097, %v3074
    %3099 = vst.msk [vmem:[#allocation3 + $0x8] sm:$0xff] %vm3097, %v3076
    %3100 = vst.msk [vmem:[#allocation3 + $0x10] sm:$0xff] %vm3097, %v3078
    %3101 = vst.msk [vmem:[#allocation3 + $0x18] sm:$0xff] %vm3097, %v3080
    %3102 = vst.msk [vmem:[#allocation3 + $0x20] sm:$0xff] %vm3097, %v3082
    %3103 = vst.msk [vmem:[#allocation3 + $0x28] sm:$0xff] %vm3097, %v3084
    %3104 = vst.msk [vmem:[#allocation3 + $0x30] sm:$0xff] %vm3097, %v3086
    %3105 = vst.msk [vmem:[#allocation3 + $0x38] sm:$0xff] %vm3097, %v3088
    %3106 = vset.pattern.permute.xlu0 3
    %3107 = vperm.xlu0 %3106, %v1993
    %v3108 = vpop.permute.xlu0 %3107
    %3110 = vset.pattern.permute.xlu0 3
    %3111 = vperm.xlu0 %3110, %v1998
    %v3112 = vpop.permute.xlu0 %3111
    %3114 = vset.pattern.permute.xlu0 3
    %3115 = vperm.xlu0 %3114, %v2003
    %v3116 = vpop.permute.xlu0 %3115
    %3118 = vset.pattern.permute.xlu0 3
    %3119 = vperm.xlu0 %3118, %v2008
    %v3120 = vpop.permute.xlu0 %3119
    %3122 = vset.pattern.permute.xlu0 3
    %3123 = vperm.xlu0 %3122, %v2013
    %v3124 = vpop.permute.xlu0 %3123
    %3126 = vset.pattern.permute.xlu0 3
    %3127 = vperm.xlu0 %3126, %v2018
    %v3128 = vpop.permute.xlu0 %3127
    %3130 = vset.pattern.permute.xlu0 3
    %3131 = vperm.xlu0 %3130, %v2023
    %v3132 = vpop.permute.xlu0 %3131
    %3134 = vset.pattern.permute.xlu0 3
    %3135 = vperm.xlu0 %3134, %v2028
    %v3136 = vpop.permute.xlu0 %3135
    %v3138 = vlaneseq
    %v3139 = vshrl.u32 %v3138, 7
    %v3140 = vsub.s32 3, %v3139
    %v3141 = vrot.slane %v2101, %v3140
    %v3142 = vadd.f32 %v3108, %v3141
    %v3143 = vadd.f32 %v3112, %v3141
    %v3144 = vadd.f32 %v3116, %v3141
    %v3145 = vadd.f32 %v3120, %v3141
    %v3146 = vadd.f32 %v3124, %v3141
    %v3147 = vadd.f32 %v3128, %v3141
    %v3148 = vadd.f32 %v3132, %v3141
    %v3149 = vadd.f32 %v3136, %v3141
    %v3150 = vmul.f32 %v3142, 0.2
    %v3151 = vmul.f32 %v3143, 0.2
    %v3152 = vmul.f32 %v3144, 0.2
    %v3153 = vmul.f32 %v3145, 0.2
    %v3154 = vmul.f32 %v3146, 0.2
    %v3155 = vmul.f32 %v3147, 0.2
    %v3156 = vmul.f32 %v3148, 0.2
    %v3157 = vmul.f32 %v3149, 0.2
    %v3158 = vmax.f32 %v3142, %v3150
    %v3159 = vmax.f32 %v3143, %v3151
    %v3160 = vmax.f32 %v3144, %v3152
    %v3161 = vmax.f32 %v3145, %v3153
    %v3162 = vmax.f32 %v3146, %v3154
    %v3163 = vmax.f32 %v3147, %v3155
    %v3164 = vmax.f32 %v3148, %v3156
    %v3165 = vmax.f32 %v3149, %v3157
    %v3166 = vadd.f32 %v3158, %v32
    %v3167 = vadd.f32 %v3159, %v33
    %v3168 = vadd.f32 %v3160, %v34
    %v3169 = vadd.f32 %v3161, %v35
    %v3170 = vadd.f32 %v3162, %v36
    %v3171 = vadd.f32 %v3163, %v37
    %v3172 = vadd.f32 %v3164, %v38
    %v3173 = vadd.f32 %v3165, %v39
    %v3174 = vsel %vm450, %v3166, -inf
    %3175 = vmax.xlane.f32.xlu0 %v3174
    %v3176 = vpop.xlane.xlu0 %3175
    %v3177 = vsel %vm450, %v3167, -inf
    %3178 = vmax.xlane.f32.xlu0 %v3177
    %v3179 = vpop.xlane.xlu0 %3178
    %v3180 = vsel %vm450, %v3168, -inf
    %3181 = vmax.xlane.f32.xlu0 %v3180
    %v3182 = vpop.xlane.xlu0 %3181
    %v3183 = vsel %vm450, %v3169, -inf
    %3184 = vmax.xlane.f32.xlu0 %v3183
    %v3185 = vpop.xlane.xlu0 %3184
    %v3186 = vsel %vm450, %v3170, -inf
    %3187 = vmax.xlane.f32.xlu0 %v3186
    %v3188 = vpop.xlane.xlu0 %3187
    %v3189 = vsel %vm450, %v3171, -inf
    %3190 = vmax.xlane.f32.xlu0 %v3189
    %v3191 = vpop.xlane.xlu0 %3190
    %v3192 = vsel %vm450, %v3172, -inf
    %3193 = vmax.xlane.f32.xlu0 %v3192
    %v3194 = vpop.xlane.xlu0 %3193
    %v3195 = vsel %vm450, %v3173, -inf
    %3196 = vmax.xlane.f32.xlu0 %v3195
    %v3197 = vpop.xlane.xlu0 %3196
    %v3198 = vsub.f32 %v3166, %v3176
    %v3199 = vsub.f32 %v3167, %v3179
    %v3200 = vsub.f32 %v3168, %v3182
    %v3201 = vsub.f32 %v3169, %v3185
    %v3202 = vsub.f32 %v3170, %v3188
    %v3203 = vsub.f32 %v3171, %v3191
    %v3204 = vsub.f32 %v3172, %v3194
    %v3205 = vsub.f32 %v3173, %v3197
    %v3206 = vmul.f32 %v3198, 1.442695
    %v3207 = vpow.pop %v3206
    %v3208 = vmul.f32 %v3199, 1.442695
    %v3209 = vpow.pop %v3208
    %v3210 = vmul.f32 %v3200, 1.442695
    %v3211 = vpow.pop %v3210
    %v3212 = vmul.f32 %v3201, 1.442695
    %v3213 = vpow.pop %v3212
    %v3214 = vmul.f32 %v3202, 1.442695
    %v3215 = vpow.pop %v3214
    %v3216 = vmul.f32 %v3203, 1.442695
    %v3217 = vpow.pop %v3216
    %v3218 = vmul.f32 %v3204, 1.442695
    %v3219 = vpow.pop %v3218
    %v3220 = vmul.f32 %v3205, 1.442695
    %v3221 = vpow.pop %v3220
    %v3222 = vsel %vm450, %v3207, 0.0
    %3223 = vadd.xlane.f32.xlu0 %v3222
    %v3224 = vpop.xlane.xlu0 %3223
    %v3225 = vsel %vm450, %v3209, 0.0
    %3226 = vadd.xlane.f32.xlu0 %v3225
    %v3227 = vpop.xlane.xlu0 %3226
    %v3228 = vsel %vm450, %v3211, 0.0
    %3229 = vadd.xlane.f32.xlu0 %v3228
    %v3230 = vpop.xlane.xlu0 %3229
    %v3231 = vsel %vm450, %v3213, 0.0
    %3232 = vadd.xlane.f32.xlu0 %v3231
    %v3233 = vpop.xlane.xlu0 %3232
    %v3234 = vsel %vm450, %v3215, 0.0
    %3235 = vadd.xlane.f32.xlu0 %v3234
    %v3236 = vpop.xlane.xlu0 %3235
    %v3237 = vsel %vm450, %v3217, 0.0
    %3238 = vadd.xlane.f32.xlu0 %v3237
    %v3239 = vpop.xlane.xlu0 %3238
    %v3240 = vsel %vm450, %v3219, 0.0
    %3241 = vadd.xlane.f32.xlu0 %v3240
    %v3242 = vpop.xlane.xlu0 %3241
    %v3243 = vsel %vm450, %v3221, 0.0
    %3244 = vadd.xlane.f32.xlu0 %v3243
    %v3245 = vpop.xlane.xlu0 %3244
    %v3246 = vrcp.pop %v3224
    %v3247 = vrcp.pop %v3227
    %v3248 = vrcp.pop %v3230
    %v3249 = vrcp.pop %v3233
    %v3250 = vrcp.pop %v3236
    %v3251 = vrcp.pop %v3239
    %v3252 = vrcp.pop %v3242
    %v3253 = vrcp.pop %v3245
    %v3254 = vmul.f32 %v3207, %v3246
    %v3255 = vmul.f32 %v3209, %v3247
    %v3256 = vmul.f32 %v3211, %v3248
    %v3257 = vmul.f32 %v3213, %v3249
    %v3258 = vmul.f32 %v3215, %v3250
    %v3259 = vmul.f32 %v3217, %v3251
    %v3260 = vmul.f32 %v3219, %v3252
    %v3261 = vmul.f32 %v3221, %v3253
    %3262 = vrot.lane.b32.xlu0 %v1858, 80
    %v3263 = vpop.permute.xlu0 %3262
    %3264 = vrot.lane.b32.xlu0 %v1863, 80
    %v3265 = vpop.permute.xlu0 %3264
    %3266 = vrot.lane.b32.xlu0 %v1868, 80
    %v3267 = vpop.permute.xlu0 %3266
    %3268 = vrot.lane.b32.xlu0 %v1873, 80
    %v3269 = vpop.permute.xlu0 %3268
    %3270 = vrot.lane.b32.xlu0 %v1878, 80
    %v3271 = vpop.permute.xlu0 %3270
    %3272 = vrot.lane.b32.xlu0 %v1883, 80
    %v3273 = vpop.permute.xlu0 %3272
    %3274 = vrot.lane.b32.xlu0 %v1888, 80
    %v3275 = vpop.permute.xlu0 %3274
    %3276 = vrot.lane.b32.xlu0 %v1893, 80
    %v3277 = vpop.permute.xlu0 %3276
    %v3287 = vsel %vm450, %v3254, 0
    %v3290 = vsel %vm450, %v3255, 0
    %v3293 = vsel %vm450, %v3256, 0
    %v3296 = vsel %vm450, %v3257, 0
    %v3299 = vsel %vm450, %v3258, 0
    %v3302 = vsel %vm450, %v3259, 0
    %v3305 = vsel %vm450, %v3260, 0
    %v3308 = vsel %vm450, %v3261, 0
    %3310 = vmatprep.subr.mxu0 0.0
    %3311 = vmatpush1.msra.mxu0 %v3263
    %3312 = vmatprep.subr.mxu0 0.0
    %3313 = vmatpush1.msra.mxu0 %v3265
    %3314 = vmatprep.subr.mxu0 0.0
    %3315 = vmatpush1.msra.mxu0 %v3267
    %3316 = vmatprep.subr.mxu0 0.0
    %3317 = vmatpush1.msra.mxu0 %v3269
    %3318 = vmatprep.subr.mxu0 0.0
    %3319 = vmatpush1.msra.mxu0 %v3271
    %3320 = vmatprep.subr.mxu0 0.0
    %3321 = vmatpush1.msra.mxu0 %v3273
    %3322 = vmatprep.subr.mxu0 0.0
    %3323 = vmatpush1.msra.mxu0 %v3275
    %3324 = vmatprep.subr.mxu0 0.0
    %3325 = vmatpush1.msra.mxu0 %v3277
    %3326 = vmatprep.subr.mxu0 0.0
    %3327 = vmatpush1.msra.mxu0 0.0
    %3328 = vmatprep.subr.mxu0 0.0
    %3329 = vmatpush1.msra.mxu0 0.0
    %3330 = vmatprep.subr.mxu0 0.0
    %3331 = vmatpush1.msra.mxu0 0.0
    %3332 = vmatprep.subr.mxu0 0.0
    %3333 = vmatpush1.msra.mxu0 0.0
    %3334 = vmatprep.subr.mxu0 0.0
    %3335 = vmatpush1.msra.mxu0 0.0
    %3336 = vmatprep.subr.mxu0 0.0
    %3337 = vmatpush1.msra.mxu0 0.0
    %3338 = vmatprep.subr.mxu0 0.0
    %3339 = vmatpush1.msra.mxu0 0.0
    %3340 = vmatprep.subr.mxu0 0.0
    %3341 = vmatpush1.msra.mxu0 0.0
    %3342 = vmatprep.subr.mxu0 0.0
    %3343 = vmatpush1.msra.mxu0 0.0
    %3344 = vmatprep.subr.mxu0 0.0
    %3345 = vmatpush1.msra.mxu0 0.0
    %3346 = vmatprep.subr.mxu0 0.0
    %3347 = vmatpush1.msra.mxu0 0.0
    %3348 = vmatprep.subr.mxu0 0.0
    %3349 = vmatpush1.msra.mxu0 0.0
    %3350 = vmatprep.subr.mxu0 0.0
    %3351 = vmatpush1.msra.mxu0 0.0
    %3352 = vmatprep.subr.mxu0 0.0
    %3353 = vmatpush1.msra.mxu0 0.0
    %3354 = vmatprep.subr.mxu0 0.0
    %3355 = vmatpush1.msra.mxu0 0.0
    %3356 = vmatprep.subr.mxu0 0.0
    %3357 = vmatpush1.msra.mxu0 0.0
    %3358 = vmatprep.subr.mxu0 0.0
    %3359 = vmatpush1.msra.mxu0 0.0
    %3360 = vmatprep.subr.mxu0 0.0
    %3361 = vmatpush1.msra.mxu0 0.0
    %3362 = vmatprep.subr.mxu0 0.0
    %3363 = vmatpush1.msra.mxu0 0.0
    %3364 = vmatprep.subr.mxu0 0.0
    %3365 = vmatpush1.msra.mxu0 0.0
    %3366 = vmatprep.subr.mxu0 0.0
    %3367 = vmatpush1.msra.mxu0 0.0
    %3368 = vmatprep.subr.mxu0 0.0
    %3369 = vmatpush1.msra.mxu0 0.0
    %3370 = vmatprep.subr.mxu0 0.0
    %3371 = vmatpush1.msra.mxu0 0.0
    %3372 = vmatprep.subr.mxu0 0.0
    %3373 = vmatpush1.msra.mxu0 0.0
    %3374 = vmatprep.mubr.f32.mxu0 0.0
    %3375 = vmatmul.mubr.f32.gmra.mrb[0].mxu0 %v3287
    %v3376 = vpop.f32.mrb[0].mxu0
    %v3377 = vadd.f32 0.0, %v3376
    %v3378 = vpop.f32.mrb[0].mxu0
    %3379 = vmatprep.mubr.f32.mxu0 0.0
    %3380 = vmatmul.mubr.f32.gmra.mrb[0].mxu0 %v3290
    %v3381 = vpop.f32.mrb[0].mxu0
    %v3382 = vadd.f32 0.0, %v3381
    %v3383 = vpop.f32.mrb[0].mxu0
    %3384 = vmatprep.mubr.f32.mxu0 0.0
    %3385 = vmatmul.mubr.f32.gmra.mrb[0].mxu0 %v3293
    %v3386 = vpop.f32.mrb[0].mxu0
    %v3387 = vadd.f32 0.0, %v3386
    %v3388 = vpop.f32.mrb[0].mxu0
    %3389 = vmatprep.mubr.f32.mxu0 0.0
    %3390 = vmatmul.mubr.f32.gmra.mrb[0].mxu0 %v3296
    %v3391 = vpop.f32.mrb[0].mxu0
    %v3392 = vadd.f32 0.0, %v3391
    %v3393 = vpop.f32.mrb[0].mxu0
    %3394 = vmatprep.mubr.f32.mxu0 0.0
    %3395 = vmatmul.mubr.f32.gmra.mrb[0].mxu0 %v3299
    %v3396 = vpop.f32.mrb[0].mxu0
    %v3397 = vadd.f32 0.0, %v3396
    %v3398 = vpop.f32.mrb[0].mxu0
    %3399 = vmatprep.mubr.f32.mxu0 0.0
    %3400 = vmatmul.mubr.f32.gmra.mrb[0].mxu0 %v3302
    %v3401 = vpop.f32.mrb[0].mxu0
    %v3402 = vadd.f32 0.0, %v3401
    %v3403 = vpop.f32.mrb[0].mxu0
    %3404 = vmatprep.mubr.f32.mxu0 0.0
    %3405 = vmatmul.mubr.f32.gmra.mrb[0].mxu0 %v3305
    %v3406 = vpop.f32.mrb[0].mxu0
    %v3407 = vadd.f32 0.0, %v3406
    %v3408 = vpop.f32.mrb[0].mxu0
    %3409 = vmatprep.mubr.f32.mxu0 0.0
    %3410 = vmatmul.mubr.f32.gmra.mrb[0].mxu0 %v3308
    %v3411 = vpop.f32.mrb[0].mxu0
    %v3412 = vadd.f32 0.0, %v3411
    %v3413 = vpop.f32.mrb[0].mxu0
    %3414 = vdwg.mxu0
    %3423 = vrot.lane.b32.xlu0 %v3377, 48
    %v3424 = vpop.permute.xlu0 %3423
    %3425 = vrot.lane.b32.xlu0 %v3382, 48
    %v3426 = vpop.permute.xlu0 %3425
    %3427 = vrot.lane.b32.xlu0 %v3387, 48
    %v3428 = vpop.permute.xlu0 %3427
    %3429 = vrot.lane.b32.xlu0 %v3392, 48
    %v3430 = vpop.permute.xlu0 %3429
    %3431 = vrot.lane.b32.xlu0 %v3397, 48
    %v3432 = vpop.permute.xlu0 %3431
    %3433 = vrot.lane.b32.xlu0 %v3402, 48
    %v3434 = vpop.permute.xlu0 %3433
    %3435 = vrot.lane.b32.xlu0 %v3407, 48
    %v3436 = vpop.permute.xlu0 %3435
    %3437 = vrot.lane.b32.xlu0 %v3412, 48
    %v3438 = vpop.permute.xlu0 %3437
    %vm3447 = vcmask 523648
    %3448 = vst.msk [vmem:[#allocation3] sm:$0xff] %vm3447, %v3424
    %3449 = vst.msk [vmem:[#allocation3 + $0x8] sm:$0xff] %vm3447, %v3426
    %3450 = vst.msk [vmem:[#allocation3 + $0x10] sm:$0xff] %vm3447, %v3428
    %3451 = vst.msk [vmem:[#allocation3 + $0x18] sm:$0xff] %vm3447, %v3430
    %3452 = vst.msk [vmem:[#allocation3 + $0x20] sm:$0xff] %vm3447, %v3432
    %3453 = vst.msk [vmem:[#allocation3 + $0x28] sm:$0xff] %vm3447, %v3434
    %3454 = vst.msk [vmem:[#allocation3 + $0x30] sm:$0xff] %vm3447, %v3436
    %3455 = vst.msk [vmem:[#allocation3 + $0x38] sm:$0xff] %vm3447, %v3438
    %v3456 = vld [vmem:[#allocation3] sm:$0xff]
    %v3457 = vld [vmem:[#allocation3 + $0x8] sm:$0xff]
    %v3458 = vld [vmem:[#allocation3 + $0x10] sm:$0xff]
    %v3459 = vld [vmem:[#allocation3 + $0x18] sm:$0xff]
    %v3460 = vld [vmem:[#allocation3 + $0x20] sm:$0xff]
    %v3461 = vld [vmem:[#allocation3 + $0x28] sm:$0xff]
    %v3462 = vld [vmem:[#allocation3 + $0x30] sm:$0xff]
    %v3463 = vld [vmem:[#allocation3 + $0x38] sm:$0xff]
    %v3464 = vlaneseq
    %v3465 = vshrl.u32 %v3464, 7
    %v3466 = vsub.s32 0, %v3465
    %v3467 = vrot.slane %v1898, %v3466
    %v3468 = vadd.f32 %v3456, %v3467
    %v3469 = vadd.f32 %v3457, %v3467
    %v3470 = vadd.f32 %v3458, %v3467
    %v3471 = vadd.f32 %v3459, %v3467
    %v3472 = vadd.f32 %v3460, %v3467
    %v3473 = vadd.f32 %v3461, %v3467
    %v3474 = vadd.f32 %v3462, %v3467
    %v3475 = vadd.f32 %v3463, %v3467
    %v3476 = vmul.f32 %v3468, 0.01
    %v3477 = vmul.f32 %v3469, 0.01
    %v3478 = vmul.f32 %v3470, 0.01
    %v3479 = vmul.f32 %v3471, 0.01
    %v3480 = vmul.f32 %v3472, 0.01
    %v3481 = vmul.f32 %v3473, 0.01
    %v3482 = vmul.f32 %v3474, 0.01
    %v3483 = vmul.f32 %v3475, 0.01
    %v3484 = vmax.f32 %v3468, %v3476
    %v3485 = vmax.f32 %v3469, %v3477
    %v3486 = vmax.f32 %v3470, %v3478
    %v3487 = vmax.f32 %v3471, %v3479
    %v3488 = vmax.f32 %v3472, %v3480
    %v3489 = vmax.f32 %v3473, %v3481
    %v3490 = vmax.f32 %v3474, %v3482
    %v3491 = vmax.f32 %v3475, %v3483
    %v3492 = vld [vmem:[%s4] sm:$0xff]
    %v3493 = vld [vmem:[%s4 + $0x8] sm:$0xff]
    %v3494 = vld [vmem:[%s4 + $0x10] sm:$0xff]
    %v3495 = vld [vmem:[%s4 + $0x18] sm:$0xff]
    %v3496 = vld [vmem:[%s4 + $0x20] sm:$0xff]
    %v3497 = vld [vmem:[%s4 + $0x28] sm:$0xff]
    %v3498 = vld [vmem:[%s4 + $0x30] sm:$0xff]
    %v3499 = vld [vmem:[%s4 + $0x38] sm:$0xff]
    %v3500 = vld [vmem:[%s4 + $0x40] sm:$0xff]
    %v3501 = vld [vmem:[%s4 + $0x48] sm:$0xff]
    %v3502 = vld [vmem:[%s4 + $0x50] sm:$0xff]
    %v3503 = vld [vmem:[%s4 + $0x58] sm:$0xff]
    %v3504 = vld [vmem:[%s4 + $0x60] sm:$0xff]
    %v3505 = vld [vmem:[%s4 + $0x68] sm:$0xff]
    %v3506 = vld [vmem:[%s4 + $0x70] sm:$0xff]
    %v3507 = vld [vmem:[%s4 + $0x78] sm:$0xff]
    %s3508 = scalar_lea.vmem %s4, 128
    %v3509 = vld [vmem:[%s3508] ss:$8 sm:$0x3]
    %v3510 = vld [vmem:[%s5 + $0x110] sm:$0xff]
    %v3511 = vld [vmem:[%s5 + $0x118] sm:$0xff]
    %v3512 = vld [vmem:[%s5 + $0x120] sm:$0xff]
    %v3513 = vld [vmem:[%s5 + $0x128] sm:$0xff]
    %v3514 = vld [vmem:[%s5 + $0x130] sm:$0xff]
    %v3515 = vld [vmem:[%s5 + $0x138] sm:$0xff]
    %v3516 = vld [vmem:[%s5 + $0x140] sm:$0xff]
    %v3517 = vld [vmem:[%s5 + $0x148] sm:$0xff]
    %v3518 = vld [vmem:[%s5 + $0x150] sm:$0x1]
    %v3520 = vlaneseq
    %v3521 = vshrl.u32 %v3520, 7
    %v3522 = vsub.s32 0, %v3521
    %v3523 = vrot.slane %v3509, %v3522
    %v3524 = vlaneseq
    %v3525 = vshrl.u32 %v3524, 7
    %v3526 = vsub.s32 1, %v3525
    %v3527 = vrot.slane %v3509, %v3526
    %v3531 = vsel %vm450, %v3484, 0
    %v3534 = vsel %vm450, %v3485, 0
    %v3537 = vsel %vm450, %v3486, 0
    %v3540 = vsel %vm450, %v3487, 0
    %v3543 = vsel %vm450, %v3488, 0
    %v3546 = vsel %vm450, %v3489, 0
    %v3549 = vsel %vm450, %v3490, 0
    %v3552 = vsel %vm450, %v3491, 0
    %3554 = vmatprep.subr.mxu0 %v3493
    %3555 = vmatpush1.msra.mxu0 %v3492
    %3556 = vmatprep.subr.mxu0 %v3495
    %3557 = vmatpush1.msra.mxu0 %v3494
    %3558 = vmatprep.subr.mxu0 %v3497
    %3559 = vmatpush1.msra.mxu0 %v3496
    %3560 = vmatprep.subr.mxu0 %v3499
    %3561 = vmatpush1.msra.mxu0 %v3498
    %3562 = vmatprep.subr.mxu0 %v3501
    %3563 = vmatpush1.msra.mxu0 %v3500
    %3564 = vmatprep.subr.mxu0 %v3503
    %3565 = vmatpush1.msra.mxu0 %v3502
    %3566 = vmatprep.subr.mxu0 %v3505
    %3567 = vmatpush1.msra.mxu0 %v3504
    %3568 = vmatprep.subr.mxu0 %v3507
    %3569 = vmatpush1.msra.mxu0 %v3506
    %3570 = vmatprep.subr.mxu0 0.0
    %3571 = vmatpush1.msra.mxu0 0.0
    %3572 = vmatprep.subr.mxu0 0.0
    %3573 = vmatpush1.msra.mxu0 0.0
    %3574 = vmatprep.subr.mxu0 0.0
    %3575 = vmatpush1.msra.mxu0 0.0
    %3576 = vmatprep.subr.mxu0 0.0
    %3577 = vmatpush1.msra.mxu0 0.0
    %3578 = vmatprep.subr.mxu0 0.0
    %3579 = vmatpush1.msra.mxu0 0.0
    %3580 = vmatprep.subr.mxu0 0.0
    %3581 = vmatpush1.msra.mxu0 0.0
    %3582 = vmatprep.subr.mxu0 0.0
    %3583 = vmatpush1.msra.mxu0 0.0
    %3584 = vmatprep.subr.mxu0 0.0
    %3585 = vmatpush1.msra.mxu0 0.0
    %3586 = vmatprep.subr.mxu0 0.0
    %3587 = vmatpush1.msra.mxu0 0.0
    %3588 = vmatprep.subr.mxu0 0.0
    %3589 = vmatpush1.msra.mxu0 0.0
    %3590 = vmatprep.subr.mxu0 0.0
    %3591 = vmatpush1.msra.mxu0 0.0
    %3592 = vmatprep.subr.mxu0 0.0
    %3593 = vmatpush1.msra.mxu0 0.0
    %3594 = vmatprep.subr.mxu0 0.0
    %3595 = vmatpush1.msra.mxu0 0.0
    %3596 = vmatprep.subr.mxu0 0.0
    %3597 = vmatpush1.msra.mxu0 0.0
    %3598 = vmatprep.subr.mxu0 0.0
    %3599 = vmatpush1.msra.mxu0 0.0
    %3600 = vmatprep.subr.mxu0 0.0
    %3601 = vmatpush1.msra.mxu0 0.0
    %3602 = vmatprep.subr.mxu0 0.0
    %3603 = vmatpush1.msra.mxu0 0.0
    %3604 = vmatprep.subr.mxu0 0.0
    %3605 = vmatpush1.msra.mxu0 0.0
    %3606 = vmatprep.subr.mxu0 0.0
    %3607 = vmatpush1.msra.mxu0 0.0
    %3608 = vmatprep.subr.mxu0 0.0
    %3609 = vmatpush1.msra.mxu0 0.0
    %3610 = vmatprep.subr.mxu0 0.0
    %3611 = vmatpush1.msra.mxu0 0.0
    %3612 = vmatprep.subr.mxu0 0.0
    %3613 = vmatpush1.msra.mxu0 0.0
    %3614 = vmatprep.subr.mxu0 0.0
    %3615 = vmatpush1.msra.mxu0 0.0
    %3616 = vmatprep.subr.mxu0 0.0
    %3617 = vmatpush1.msra.mxu0 0.0
    %3618 = vmatprep.mubr.f32.mxu0 0.0
    %3619 = vmatmul.mubr.f32.gmra.mrb[0].mxu0 %v3531
    %v3620 = vpop.f32.mrb[0].mxu0
    %v3621 = vadd.f32 %v3523, %v3620
    %v3622 = vpop.f32.mrb[0].mxu0
    %v3623 = vadd.f32 %v3527, %v3622
    %3624 = vmatprep.mubr.f32.mxu0 0.0
    %3625 = vmatmul.mubr.f32.gmra.mrb[0].mxu0 %v3534
    %v3626 = vpop.f32.mrb[0].mxu0
    %v3627 = vadd.f32 %v3523, %v3626
    %v3628 = vpop.f32.mrb[0].mxu0
    %v3629 = vadd.f32 %v3527, %v3628
    %3630 = vmatprep.mubr.f32.mxu0 0.0
    %3631 = vmatmul.mubr.f32.gmra.mrb[0].mxu0 %v3537
    %v3632 = vpop.f32.mrb[0].mxu0
    %v3633 = vadd.f32 %v3523, %v3632
    %v3634 = vpop.f32.mrb[0].mxu0
    %v3635 = vadd.f32 %v3527, %v3634
    %3636 = vmatprep.mubr.f32.mxu0 0.0
    %3637 = vmatmul.mubr.f32.gmra.mrb[0].mxu0 %v3540
    %v3638 = vpop.f32.mrb[0].mxu0
    %v3639 = vadd.f32 %v3523, %v3638
    %v3640 = vpop.f32.mrb[0].mxu0
    %v3641 = vadd.f32 %v3527, %v3640
    %3642 = vmatprep.mubr.f32.mxu0 0.0
    %3643 = vmatmul.mubr.f32.gmra.mrb[0].mxu0 %v3543
    %v3644 = vpop.f32.mrb[0].mxu0
    %v3645 = vadd.f32 %v3523, %v3644
    %v3646 = vpop.f32.mrb[0].mxu0
    %v3647 = vadd.f32 %v3527, %v3646
    %3648 = vmatprep.mubr.f32.mxu0 0.0
    %3649 = vmatmul.mubr.f32.gmra.mrb[0].mxu0 %v3546
    %v3650 = vpop.f32.mrb[0].mxu0
    %v3651 = vadd.f32 %v3523, %v3650
    %v3652 = vpop.f32.mrb[0].mxu0
    %v3653 = vadd.f32 %v3527, %v3652
    %3654 = vmatprep.mubr.f32.mxu0 0.0
    %3655 = vmatmul.mubr.f32.gmra.mrb[0].mxu0 %v3549
    %v3656 = vpop.f32.mrb[0].mxu0
    %v3657 = vadd.f32 %v3523, %v3656
    %v3658 = vpop.f32.mrb[0].mxu0
    %v3659 = vadd.f32 %v3527, %v3658
    %3660 = vmatprep.mubr.f32.mxu0 0.0
    %3661 = vmatmul.mubr.f32.gmra.mrb[0].mxu0 %v3552
    %v3662 = vpop.f32.mrb[0].mxu0
    %v3663 = vadd.f32 %v3523, %v3662
    %v3664 = vpop.f32.mrb[0].mxu0
    %v3665 = vadd.f32 %v3527, %v3664
    %3666 = vdwg.mxu0
    %3675 = vrot.lane.b32.xlu0 %v3621, 64
    %v3676 = vpop.permute.xlu0 %3675
    %3677 = vrot.lane.b32.xlu0 %v3627, 64
    %v3678 = vpop.permute.xlu0 %3677
    %3679 = vrot.lane.b32.xlu0 %v3633, 64
    %v3680 = vpop.permute.xlu0 %3679
    %3681 = vrot.lane.b32.xlu0 %v3639, 64
    %v3682 = vpop.permute.xlu0 %3681
    %3683 = vrot.lane.b32.xlu0 %v3645, 64
    %v3684 = vpop.permute.xlu0 %3683
    %3685 = vrot.lane.b32.xlu0 %v3651, 64
    %v3686 = vpop.permute.xlu0 %3685
    %3687 = vrot.lane.b32.xlu0 %v3657, 64
    %v3688 = vpop.permute.xlu0 %3687
    %3689 = vrot.lane.b32.xlu0 %v3663, 64
    %v3690 = vpop.permute.xlu0 %3689
    %v3691 = vsel %vm2397, %v3621, 0
    %v3693 = vsel %vm2397, %v3627, 0
    %v3695 = vsel %vm2397, %v3633, 0
    %v3697 = vsel %vm2397, %v3639, 0
    %v3699 = vsel %vm2397, %v3645, 0
    %v3701 = vsel %vm2397, %v3651, 0
    %v3703 = vsel %vm2397, %v3657, 0
    %v3705 = vsel %vm2397, %v3663, 0
    %v3707 = vsel %vm2397, %v3676, 0
    %v3709 = vsel %vm2397, %v3678, 0
    %v3711 = vsel %vm2397, %v3680, 0
    %v3713 = vsel %vm2397, %v3682, 0
    %v3715 = vsel %vm2397, %v3684, 0
    %v3717 = vsel %vm2397, %v3686, 0
    %v3719 = vsel %vm2397, %v3688, 0
    %v3721 = vsel %vm2397, %v3690, 0
    %3723 = vmatprep.subr.mxu0 0.0
    %3724 = vmatpush1.xpose.msra.mxu0 %v3707
    %3725 = vmatprep.subr.mxu0 0.0
    %3726 = vmatpush1.xpose.msra.mxu0 %v3709
    %3727 = vmatprep.subr.mxu0 0.0
    %3728 = vmatpush1.xpose.msra.mxu0 %v3711
    %3729 = vmatprep.subr.mxu0 0.0
    %3730 = vmatpush1.xpose.msra.mxu0 %v3713
    %3731 = vmatprep.subr.mxu0 0.0
    %3732 = vmatpush1.xpose.msra.mxu0 %v3715
    %3733 = vmatprep.subr.mxu0 0.0
    %3734 = vmatpush1.xpose.msra.mxu0 %v3717
    %3735 = vmatprep.subr.mxu0 0.0
    %3736 = vmatpush1.xpose.msra.mxu0 %v3719
    %3737 = vmatprep.subr.mxu0 0.0
    %3738 = vmatpush1.xpose.msra.mxu0 %v3721
    %3739 = vmatprep.subr.mxu0 0.0
    %3740 = vmatpush1.xpose.msra.mxu0 0.0
    %3741 = vmatprep.subr.mxu0 0.0
    %3742 = vmatpush1.xpose.msra.mxu0 0.0
    %3743 = vmatprep.subr.mxu0 0.0
    %3744 = vmatpush1.xpose.msra.mxu0 0.0
    %3745 = vmatprep.subr.mxu0 0.0
    %3746 = vmatpush1.xpose.msra.mxu0 0.0
    %3747 = vmatprep.subr.mxu0 0.0
    %3748 = vmatpush1.xpose.msra.mxu0 0.0
    %3749 = vmatprep.subr.mxu0 0.0
    %3750 = vmatpush1.xpose.msra.mxu0 0.0
    %3751 = vmatprep.subr.mxu0 0.0
    %3752 = vmatpush1.xpose.msra.mxu0 0.0
    %3753 = vmatprep.subr.mxu0 0.0
    %3754 = vmatpush1.xpose.msra.mxu0 0.0
    %3755 = vmatprep.subr.mxu0 0.0
    %3756 = vmatpush1.xpose.msra.mxu0 0.0
    %3757 = vmatprep.subr.mxu0 0.0
    %3758 = vmatpush1.xpose.msra.mxu0 0.0
    %3759 = vmatprep.subr.mxu0 0.0
    %3760 = vmatpush1.xpose.msra.mxu0 0.0
    %3761 = vmatprep.subr.mxu0 0.0
    %3762 = vmatpush1.xpose.msra.mxu0 0.0
    %3763 = vmatprep.subr.mxu0 0.0
    %3764 = vmatpush1.xpose.msra.mxu0 0.0
    %3765 = vmatprep.subr.mxu0 0.0
    %3766 = vmatpush1.xpose.msra.mxu0 0.0
    %3767 = vmatprep.subr.mxu0 0.0
    %3768 = vmatpush1.xpose.msra.mxu0 0.0
    %3769 = vmatprep.subr.mxu0 0.0
    %3770 = vmatpush1.xpose.msra.mxu0 0.0
    %3771 = vmatprep.subr.mxu0 0.0
    %3772 = vmatpush1.xpose.msra.mxu0 0.0
    %3773 = vmatprep.subr.mxu0 0.0
    %3774 = vmatpush1.xpose.msra.mxu0 0.0
    %3775 = vmatprep.subr.mxu0 0.0
    %3776 = vmatpush1.xpose.msra.mxu0 0.0
    %3777 = vmatprep.subr.mxu0 0.0
    %3778 = vmatpush1.xpose.msra.mxu0 0.0
    %3779 = vmatprep.subr.mxu0 0.0
    %3780 = vmatpush1.xpose.msra.mxu0 0.0
    %3781 = vmatprep.subr.mxu0 0.0
    %3782 = vmatpush1.xpose.msra.mxu0 0.0
    %3783 = vmatprep.subr.mxu0 0.0
    %3784 = vmatpush1.xpose.msra.mxu0 0.0
    %3785 = vmatprep.subr.mxu0 0.0
    %3786 = vmatpush1.xpose.msra.mxu0 0.0
    %3787 = vmatprep.mubr.f32.mxu0 0.0
    %3788 = vmatmul.mubr.f32.gmra.mrb[0].mxu0 %v3691
    %v3789 = vpop.f32.mrb[0].mxu0
    %v3790 = vadd.f32 0.0, %v3789
    %v3791 = vpop.f32.mrb[0].mxu0
    %3792 = vmatprep.mubr.f32.mxu0 0.0
    %3793 = vmatmul.mubr.f32.gmra.mrb[0].mxu0 %v3693
    %v3794 = vpop.f32.mrb[0].mxu0
    %v3795 = vadd.f32 0.0, %v3794
    %v3796 = vpop.f32.mrb[0].mxu0
    %3797 = vmatprep.mubr.f32.mxu0 0.0
    %3798 = vmatmul.mubr.f32.gmra.mrb[0].mxu0 %v3695
    %v3799 = vpop.f32.mrb[0].mxu0
    %v3800 = vadd.f32 0.0, %v3799
    %v3801 = vpop.f32.mrb[0].mxu0
    %3802 = vmatprep.mubr.f32.mxu0 0.0
    %3803 = vmatmul.mubr.f32.gmra.mrb[0].mxu0 %v3697
    %v3804 = vpop.f32.mrb[0].mxu0
    %v3805 = vadd.f32 0.0, %v3804
    %v3806 = vpop.f32.mrb[0].mxu0
    %3807 = vmatprep.mubr.f32.mxu0 0.0
    %3808 = vmatmul.mubr.f32.gmra.mrb[0].mxu0 %v3699
    %v3809 = vpop.f32.mrb[0].mxu0
    %v3810 = vadd.f32 0.0, %v3809
    %v3811 = vpop.f32.mrb[0].mxu0
    %3812 = vmatprep.mubr.f32.mxu0 0.0
    %3813 = vmatmul.mubr.f32.gmra.mrb[0].mxu0 %v3701
    %v3814 = vpop.f32.mrb[0].mxu0
    %v3815 = vadd.f32 0.0, %v3814
    %v3816 = vpop.f32.mrb[0].mxu0
    %3817 = vmatprep.mubr.f32.mxu0 0.0
    %3818 = vmatmul.mubr.f32.gmra.mrb[0].mxu0 %v3703
    %v3819 = vpop.f32.mrb[0].mxu0
    %v3820 = vadd.f32 0.0, %v3819
    %v3821 = vpop.f32.mrb[0].mxu0
    %3822 = vmatprep.mubr.f32.mxu0 0.0
    %3823 = vmatmul.mubr.f32.gmra.mrb[0].mxu0 %v3705
    %v3824 = vpop.f32.mrb[0].mxu0
    %v3825 = vadd.f32 0.0, %v3824
    %v3826 = vpop.f32.mrb[0].mxu0
    %3827 = vdwg.mxu0
    %v3828 = vmul.f32 %v3790, 0.25
    %v3829 = vmul.f32 %v3795, 0.25
    %v3830 = vmul.f32 %v3800, 0.25
    %v3831 = vmul.f32 %v3805, 0.25
    %v3832 = vmul.f32 %v3810, 0.25
    %v3833 = vmul.f32 %v3815, 0.25
    %v3834 = vmul.f32 %v3820, 0.25
    %v3835 = vmul.f32 %v3825, 0.25
    %v3836 = vsel %vm450, %v3828, -inf
    %3837 = vmax.xlane.f32.xlu0 %v3836
    %v3838 = vpop.xlane.xlu0 %3837
    %v3839 = vsel %vm450, %v3829, -inf
    %3840 = vmax.xlane.f32.xlu0 %v3839
    %v3841 = vpop.xlane.xlu0 %3840
    %v3842 = vsel %vm450, %v3830, -inf
    %3843 = vmax.xlane.f32.xlu0 %v3842
    %v3844 = vpop.xlane.xlu0 %3843
    %v3845 = vsel %vm450, %v3831, -inf
    %3846 = vmax.xlane.f32.xlu0 %v3845
    %v3847 = vpop.xlane.xlu0 %3846
    %v3848 = vsel %vm450, %v3832, -inf
    %3849 = vmax.xlane.f32.xlu0 %v3848
    %v3850 = vpop.xlane.xlu0 %3849
    %v3851 = vsel %vm450, %v3833, -inf
    %3852 = vmax.xlane.f32.xlu0 %v3851
    %v3853 = vpop.xlane.xlu0 %3852
    %v3854 = vsel %vm450, %v3834, -inf
    %3855 = vmax.xlane.f32.xlu0 %v3854
    %v3856 = vpop.xlane.xlu0 %3855
    %v3857 = vsel %vm450, %v3835, -inf
    %3858 = vmax.xlane.f32.xlu0 %v3857
    %v3859 = vpop.xlane.xlu0 %3858
    %v3860 = vsub.f32 %v3828, %v3838
    %v3861 = vsub.f32 %v3829, %v3841
    %v3862 = vsub.f32 %v3830, %v3844
    %v3863 = vsub.f32 %v3831, %v3847
    %v3864 = vsub.f32 %v3832, %v3850
    %v3865 = vsub.f32 %v3833, %v3853
    %v3866 = vsub.f32 %v3834, %v3856
    %v3867 = vsub.f32 %v3835, %v3859
    %v3868 = vmul.f32 %v3860, 1.442695
    %v3869 = vpow.pop %v3868
    %v3870 = vmul.f32 %v3861, 1.442695
    %v3871 = vpow.pop %v3870
    %v3872 = vmul.f32 %v3862, 1.442695
    %v3873 = vpow.pop %v3872
    %v3874 = vmul.f32 %v3863, 1.442695
    %v3875 = vpow.pop %v3874
    %v3876 = vmul.f32 %v3864, 1.442695
    %v3877 = vpow.pop %v3876
    %v3878 = vmul.f32 %v3865, 1.442695
    %v3879 = vpow.pop %v3878
    %v3880 = vmul.f32 %v3866, 1.442695
    %v3881 = vpow.pop %v3880
    %v3882 = vmul.f32 %v3867, 1.442695
    %v3883 = vpow.pop %v3882
    %v3884 = vsel %vm450, %v3869, 0.0
    %3885 = vadd.xlane.f32.xlu0 %v3884
    %v3886 = vpop.xlane.xlu0 %3885
    %v3887 = vsel %vm450, %v3871, 0.0
    %3888 = vadd.xlane.f32.xlu0 %v3887
    %v3889 = vpop.xlane.xlu0 %3888
    %v3890 = vsel %vm450, %v3873, 0.0
    %3891 = vadd.xlane.f32.xlu0 %v3890
    %v3892 = vpop.xlane.xlu0 %3891
    %v3893 = vsel %vm450, %v3875, 0.0
    %3894 = vadd.xlane.f32.xlu0 %v3893
    %v3895 = vpop.xlane.xlu0 %3894
    %v3896 = vsel %vm450, %v3877, 0.0
    %3897 = vadd.xlane.f32.xlu0 %v3896
    %v3898 = vpop.xlane.xlu0 %3897
    %v3899 = vsel %vm450, %v3879, 0.0
    %3900 = vadd.xlane.f32.xlu0 %v3899
    %v3901 = vpop.xlane.xlu0 %3900
    %v3902 = vsel %vm450, %v3881, 0.0
    %3903 = vadd.xlane.f32.xlu0 %v3902
    %v3904 = vpop.xlane.xlu0 %3903
    %v3905 = vsel %vm450, %v3883, 0.0
    %3906 = vadd.xlane.f32.xlu0 %v3905
    %v3907 = vpop.xlane.xlu0 %3906
    %v3908 = vrcp.pop %v3886
    %v3909 = vrcp.pop %v3889
    %v3910 = vrcp.pop %v3892
    %v3911 = vrcp.pop %v3895
    %v3912 = vrcp.pop %v3898
    %v3913 = vrcp.pop %v3901
    %v3914 = vrcp.pop %v3904
    %v3915 = vrcp.pop %v3907
    %v3916 = vmul.f32 %v3869, %v3908
    %v3917 = vmul.f32 %v3871, %v3909
    %v3918 = vmul.f32 %v3873, %v3910
    %v3919 = vmul.f32 %v3875, %v3911
    %v3920 = vmul.f32 %v3877, %v3912
    %v3921 = vmul.f32 %v3879, %v3913
    %v3922 = vmul.f32 %v3881, %v3914
    %v3923 = vmul.f32 %v3883, %v3915
    %v3925 = vsel %vm450, %v3916, 0
    %v3928 = vsel %vm450, %v3917, 0
    %v3931 = vsel %vm450, %v3918, 0
    %v3934 = vsel %vm450, %v3919, 0
    %v3937 = vsel %vm450, %v3920, 0
    %v3940 = vsel %vm450, %v3921, 0
    %v3943 = vsel %vm450, %v3922, 0
    %v3946 = vsel %vm450, %v3923, 0
    %3948 = vmatprep.subr.mxu0 0.0
    %3949 = vmatpush1.msra.mxu0 %v3623
    %3950 = vmatprep.subr.mxu0 0.0
    %3951 = vmatpush1.msra.mxu0 %v3629
    %3952 = vmatprep.subr.mxu0 0.0
    %3953 = vmatpush1.msra.mxu0 %v3635
    %3954 = vmatprep.subr.mxu0 0.0
    %3955 = vmatpush1.msra.mxu0 %v3641
    %3956 = vmatprep.subr.mxu0 0.0
    %3957 = vmatpush1.msra.mxu0 %v3647
    %3958 = vmatprep.subr.mxu0 0.0
    %3959 = vmatpush1.msra.mxu0 %v3653
    %3960 = vmatprep.subr.mxu0 0.0
    %3961 = vmatpush1.msra.mxu0 %v3659
    %3962 = vmatprep.subr.mxu0 0.0
    %3963 = vmatpush1.msra.mxu0 %v3665
    %3964 = vmatprep.subr.mxu0 0.0
    %3965 = vmatpush1.msra.mxu0 0.0
    %3966 = vmatprep.subr.mxu0 0.0
    %3967 = vmatpush1.msra.mxu0 0.0
    %3968 = vmatprep.subr.mxu0 0.0
    %3969 = vmatpush1.msra.mxu0 0.0
    %3970 = vmatprep.subr.mxu0 0.0
    %3971 = vmatpush1.msra.mxu0 0.0
    %3972 = vmatprep.subr.mxu0 0.0
    %3973 = vmatpush1.msra.mxu0 0.0
    %3974 = vmatprep.subr.mxu0 0.0
    %3975 = vmatpush1.msra.mxu0 0.0
    %3976 = vmatprep.subr.mxu0 0.0
    %3977 = vmatpush1.msra.mxu0 0.0
    %3978 = vmatprep.subr.mxu0 0.0
    %3979 = vmatpush1.msra.mxu0 0.0
    %3980 = vmatprep.subr.mxu0 0.0
    %3981 = vmatpush1.msra.mxu0 0.0
    %3982 = vmatprep.subr.mxu0 0.0
    %3983 = vmatpush1.msra.mxu0 0.0
    %3984 = vmatprep.subr.mxu0 0.0
    %3985 = vmatpush1.msra.mxu0 0.0
    %3986 = vmatprep.subr.mxu0 0.0
    %3987 = vmatpush1.msra.mxu0 0.0
    %3988 = vmatprep.subr.mxu0 0.0
    %3989 = vmatpush1.msra.mxu0 0.0
    %3990 = vmatprep.subr.mxu0 0.0
    %3991 = vmatpush1.msra.mxu0 0.0
    %3992 = vmatprep.subr.mxu0 0.0
    %3993 = vmatpush1.msra.mxu0 0.0
    %3994 = vmatprep.subr.mxu0 0.0
    %3995 = vmatpush1.msra.mxu0 0.0
    %3996 = vmatprep.subr.mxu0 0.0
    %3997 = vmatpush1.msra.mxu0 0.0
    %3998 = vmatprep.subr.mxu0 0.0
    %3999 = vmatpush1.msra.mxu0 0.0
    %4000 = vmatprep.subr.mxu0 0.0
    %4001 = vmatpush1.msra.mxu0 0.0
    %4002 = vmatprep.subr.mxu0 0.0
    %4003 = vmatpush1.msra.mxu0 0.0
    %4004 = vmatprep.subr.mxu0 0.0
    %4005 = vmatpush1.msra.mxu0 0.0
    %4006 = vmatprep.subr.mxu0 0.0
    %4007 = vmatpush1.msra.mxu0 0.0
    %4008 = vmatprep.subr.mxu0 0.0
    %4009 = vmatpush1.msra.mxu0 0.0
    %4010 = vmatprep.subr.mxu0 0.0
    %4011 = vmatpush1.msra.mxu0 0.0
    %4012 = vmatprep.mubr.f32.mxu0 0.0
    %4013 = vmatmul.mubr.f32.gmra.mrb[0].mxu0 %v3925
    %v4014 = vpop.f32.mrb[0].mxu0
    %v4015 = vadd.f32 0.0, %v4014
    %v4016 = vpop.f32.mrb[0].mxu0
    %4017 = vmatprep.mubr.f32.mxu0 0.0
    %4018 = vmatmul.mubr.f32.gmra.mrb[0].mxu0 %v3928
    %v4019 = vpop.f32.mrb[0].mxu0
    %v4020 = vadd.f32 0.0, %v4019
    %v4021 = vpop.f32.mrb[0].mxu0
    %4022 = vmatprep.mubr.f32.mxu0 0.0
    %4023 = vmatmul.mubr.f32.gmra.mrb[0].mxu0 %v3931
    %v4024 = vpop.f32.mrb[0].mxu0
    %v4025 = vadd.f32 0.0, %v4024
    %v4026 = vpop.f32.mrb[0].mxu0
    %4027 = vmatprep.mubr.f32.mxu0 0.0
    %4028 = vmatmul.mubr.f32.gmra.mrb[0].mxu0 %v3934
    %v4029 = vpop.f32.mrb[0].mxu0
    %v4030 = vadd.f32 0.0, %v4029
    %v4031 = vpop.f32.mrb[0].mxu0
    %4032 = vmatprep.mubr.f32.mxu0 0.0
    %4033 = vmatmul.mubr.f32.gmra.mrb[0].mxu0 %v3937
    %v4034 = vpop.f32.mrb[0].mxu0
    %v4035 = vadd.f32 0.0, %v4034
    %v4036 = vpop.f32.mrb[0].mxu0
    %4037 = vmatprep.mubr.f32.mxu0 0.0
    %4038 = vmatmul.mubr.f32.gmra.mrb[0].mxu0 %v3940
    %v4039 = vpop.f32.mrb[0].mxu0
    %v4040 = vadd.f32 0.0, %v4039
    %v4041 = vpop.f32.mrb[0].mxu0
    %4042 = vmatprep.mubr.f32.mxu0 0.0
    %4043 = vmatmul.mubr.f32.gmra.mrb[0].mxu0 %v3943
    %v4044 = vpop.f32.mrb[0].mxu0
    %v4045 = vadd.f32 0.0, %v4044
    %v4046 = vpop.f32.mrb[0].mxu0
    %4047 = vmatprep.mubr.f32.mxu0 0.0
    %4048 = vmatmul.mubr.f32.gmra.mrb[0].mxu0 %v3946
    %v4049 = vpop.f32.mrb[0].mxu0
    %v4050 = vadd.f32 0.0, %v4049
    %v4051 = vpop.f32.mrb[0].mxu0
    %4052 = vdwg.mxu0
    %4053 = vst.msk [vmem:[#allocation3] sm:$0xff] %vm2397, %v4015
    %4054 = vst.msk [vmem:[#allocation3 + $0x8] sm:$0xff] %vm2397, %v4020
    %4055 = vst.msk [vmem:[#allocation3 + $0x10] sm:$0xff] %vm2397, %v4025
    %4056 = vst.msk [vmem:[#allocation3 + $0x18] sm:$0xff] %vm2397, %v4030
    %4057 = vst.msk [vmem:[#allocation3 + $0x20] sm:$0xff] %vm2397, %v4035
    %4058 = vst.msk [vmem:[#allocation3 + $0x28] sm:$0xff] %vm2397, %v4040
    %4059 = vst.msk [vmem:[#allocation3 + $0x30] sm:$0xff] %vm2397, %v4045
    %4060 = vst.msk [vmem:[#allocation3 + $0x38] sm:$0xff] %vm2397, %v4050
    %4061 = vrot.lane.b32.xlu0 %v3621, 112
    %v4062 = vpop.permute.xlu0 %4061
    %4063 = vrot.lane.b32.xlu0 %v3627, 112
    %v4064 = vpop.permute.xlu0 %4063
    %4065 = vrot.lane.b32.xlu0 %v3633, 112
    %v4066 = vpop.permute.xlu0 %4065
    %4067 = vrot.lane.b32.xlu0 %v3639, 112
    %v4068 = vpop.permute.xlu0 %4067
    %4069 = vrot.lane.b32.xlu0 %v3645, 112
    %v4070 = vpop.permute.xlu0 %4069
    %4071 = vrot.lane.b32.xlu0 %v3651, 112
    %v4072 = vpop.permute.xlu0 %4071
    %4073 = vrot.lane.b32.xlu0 %v3657, 112
    %v4074 = vpop.permute.xlu0 %4073
    %4075 = vrot.lane.b32.xlu0 %v3663, 112
    %v4076 = vpop.permute.xlu0 %4075
    %4077 = vrot.lane.b32.xlu0 %v3621, 48
    %v4078 = vpop.permute.xlu0 %4077
    %4079 = vrot.lane.b32.xlu0 %v3627, 48
    %v4080 = vpop.permute.xlu0 %4079
    %4081 = vrot.lane.b32.xlu0 %v3633, 48
    %v4082 = vpop.permute.xlu0 %4081
    %4083 = vrot.lane.b32.xlu0 %v3639, 48
    %v4084 = vpop.permute.xlu0 %4083
    %4085 = vrot.lane.b32.xlu0 %v3645, 48
    %v4086 = vpop.permute.xlu0 %4085
    %4087 = vrot.lane.b32.xlu0 %v3651, 48
    %v4088 = vpop.permute.xlu0 %4087
    %4089 = vrot.lane.b32.xlu0 %v3657, 48
    %v4090 = vpop.permute.xlu0 %4089
    %4091 = vrot.lane.b32.xlu0 %v3663, 48
    %v4092 = vpop.permute.xlu0 %4091
    %v4093 = vsel %vm2397, %v4062, 0
    %v4095 = vsel %vm2397, %v4064, 0
    %v4097 = vsel %vm2397, %v4066, 0
    %v4099 = vsel %vm2397, %v4068, 0
    %v4101 = vsel %vm2397, %v4070, 0
    %v4103 = vsel %vm2397, %v4072, 0
    %v4105 = vsel %vm2397, %v4074, 0
    %v4107 = vsel %vm2397, %v4076, 0
    %v4109 = vsel %vm2397, %v4078, 0
    %v4111 = vsel %vm2397, %v4080, 0
    %v4113 = vsel %vm2397, %v4082, 0
    %v4115 = vsel %vm2397, %v4084, 0
    %v4117 = vsel %vm2397, %v4086, 0
    %v4119 = vsel %vm2397, %v4088, 0
    %v4121 = vsel %vm2397, %v4090, 0
    %v4123 = vsel %vm2397, %v4092, 0
    %4125 = vmatprep.subr.mxu0 0.0
    %4126 = vmatpush1.xpose.msra.mxu0 %v4109
    %4127 = vmatprep.subr.mxu0 0.0
    %4128 = vmatpush1.xpose.msra.mxu0 %v4111
    %4129 = vmatprep.subr.mxu0 0.0
    %4130 = vmatpush1.xpose.msra.mxu0 %v4113
    %4131 = vmatprep.subr.mxu0 0.0
    %4132 = vmatpush1.xpose.msra.mxu0 %v4115
    %4133 = vmatprep.subr.mxu0 0.0
    %4134 = vmatpush1.xpose.msra.mxu0 %v4117
    %4135 = vmatprep.subr.mxu0 0.0
    %4136 = vmatpush1.xpose.msra.mxu0 %v4119
    %4137 = vmatprep.subr.mxu0 0.0
    %4138 = vmatpush1.xpose.msra.mxu0 %v4121
    %4139 = vmatprep.subr.mxu0 0.0
    %4140 = vmatpush1.xpose.msra.mxu0 %v4123
    %4141 = vmatprep.subr.mxu0 0.0
    %4142 = vmatpush1.xpose.msra.mxu0 0.0
    %4143 = vmatprep.subr.mxu0 0.0
    %4144 = vmatpush1.xpose.msra.mxu0 0.0
    %4145 = vmatprep.subr.mxu0 0.0
    %4146 = vmatpush1.xpose.msra.mxu0 0.0
    %4147 = vmatprep.subr.mxu0 0.0
    %4148 = vmatpush1.xpose.msra.mxu0 0.0
    %4149 = vmatprep.subr.mxu0 0.0
    %4150 = vmatpush1.xpose.msra.mxu0 0.0
    %4151 = vmatprep.subr.mxu0 0.0
    %4152 = vmatpush1.xpose.msra.mxu0 0.0
    %4153 = vmatprep.subr.mxu0 0.0
    %4154 = vmatpush1.xpose.msra.mxu0 0.0
    %4155 = vmatprep.subr.mxu0 0.0
    %4156 = vmatpush1.xpose.msra.mxu0 0.0
    %4157 = vmatprep.subr.mxu0 0.0
    %4158 = vmatpush1.xpose.msra.mxu0 0.0
    %4159 = vmatprep.subr.mxu0 0.0
    %4160 = vmatpush1.xpose.msra.mxu0 0.0
    %4161 = vmatprep.subr.mxu0 0.0
    %4162 = vmatpush1.xpose.msra.mxu0 0.0
    %4163 = vmatprep.subr.mxu0 0.0
    %4164 = vmatpush1.xpose.msra.mxu0 0.0
    %4165 = vmatprep.subr.mxu0 0.0
    %4166 = vmatpush1.xpose.msra.mxu0 0.0
    %4167 = vmatprep.subr.mxu0 0.0
    %4168 = vmatpush1.xpose.msra.mxu0 0.0
    %4169 = vmatprep.subr.mxu0 0.0
    %4170 = vmatpush1.xpose.msra.mxu0 0.0
    %4171 = vmatprep.subr.mxu0 0.0
    %4172 = vmatpush1.xpose.msra.mxu0 0.0
    %4173 = vmatprep.subr.mxu0 0.0
    %4174 = vmatpush1.xpose.msra.mxu0 0.0
    %4175 = vmatprep.subr.mxu0 0.0
    %4176 = vmatpush1.xpose.msra.mxu0 0.0
    %4177 = vmatprep.subr.mxu0 0.0
    %4178 = vmatpush1.xpose.msra.mxu0 0.0
    %4179 = vmatprep.subr.mxu0 0.0
    %4180 = vmatpush1.xpose.msra.mxu0 0.0
    %4181 = vmatprep.subr.mxu0 0.0
    %4182 = vmatpush1.xpose.msra.mxu0 0.0
    %4183 = vmatprep.subr.mxu0 0.0
    %4184 = vmatpush1.xpose.msra.mxu0 0.0
    %4185 = vmatprep.subr.mxu0 0.0
    %4186 = vmatpush1.xpose.msra.mxu0 0.0
    %4187 = vmatprep.subr.mxu0 0.0
    %4188 = vmatpush1.xpose.msra.mxu0 0.0
    %4189 = vmatprep.mubr.f32.mxu0 0.0
    %4190 = vmatmul.mubr.f32.gmra.mrb[0].mxu0 %v4093
    %v4191 = vpop.f32.mrb[0].mxu0
    %v4192 = vadd.f32 0.0, %v4191
    %v4193 = vpop.f32.mrb[0].mxu0
    %4194 = vmatprep.mubr.f32.mxu0 0.0
    %4195 = vmatmul.mubr.f32.gmra.mrb[0].mxu0 %v4095
    %v4196 = vpop.f32.mrb[0].mxu0
    %v4197 = vadd.f32 0.0, %v4196
    %v4198 = vpop.f32.mrb[0].mxu0
    %4199 = vmatprep.mubr.f32.mxu0 0.0
    %4200 = vmatmul.mubr.f32.gmra.mrb[0].mxu0 %v4097
    %v4201 = vpop.f32.mrb[0].mxu0
    %v4202 = vadd.f32 0.0, %v4201
    %v4203 = vpop.f32.mrb[0].mxu0
    %4204 = vmatprep.mubr.f32.mxu0 0.0
    %4205 = vmatmul.mubr.f32.gmra.mrb[0].mxu0 %v4099
    %v4206 = vpop.f32.mrb[0].mxu0
    %v4207 = vadd.f32 0.0, %v4206
    %v4208 = vpop.f32.mrb[0].mxu0
    %4209 = vmatprep.mubr.f32.mxu0 0.0
    %4210 = vmatmul.mubr.f32.gmra.mrb[0].mxu0 %v4101
    %v4211 = vpop.f32.mrb[0].mxu0
    %v4212 = vadd.f32 0.0, %v4211
    %v4213 = vpop.f32.mrb[0].mxu0
    %4214 = vmatprep.mubr.f32.mxu0 0.0
    %4215 = vmatmul.mubr.f32.gmra.mrb[0].mxu0 %v4103
    %v4216 = vpop.f32.mrb[0].mxu0
    %v4217 = vadd.f32 0.0, %v4216
    %v4218 = vpop.f32.mrb[0].mxu0
    %4219 = vmatprep.mubr.f32.mxu0 0.0
    %4220 = vmatmul.mubr.f32.gmra.mrb[0].mxu0 %v4105
    %v4221 = vpop.f32.mrb[0].mxu0
    %v4222 = vadd.f32 0.0, %v4221
    %v4223 = vpop.f32.mrb[0].mxu0
    %4224 = vmatprep.mubr.f32.mxu0 0.0
    %4225 = vmatmul.mubr.f32.gmra.mrb[0].mxu0 %v4107
    %v4226 = vpop.f32.mrb[0].mxu0
    %v4227 = vadd.f32 0.0, %v4226
    %v4228 = vpop.f32.mrb[0].mxu0
    %4229 = vdwg.mxu0
    %v4230 = vmul.f32 %v4192, 0.25
    %v4231 = vmul.f32 %v4197, 0.25
    %v4232 = vmul.f32 %v4202, 0.25
    %v4233 = vmul.f32 %v4207, 0.25
    %v4234 = vmul.f32 %v4212, 0.25
    %v4235 = vmul.f32 %v4217, 0.25
    %v4236 = vmul.f32 %v4222, 0.25
    %v4237 = vmul.f32 %v4227, 0.25
    %v4238 = vsel %vm450, %v4230, -inf
    %4239 = vmax.xlane.f32.xlu0 %v4238
    %v4240 = vpop.xlane.xlu0 %4239
    %v4241 = vsel %vm450, %v4231, -inf
    %4242 = vmax.xlane.f32.xlu0 %v4241
    %v4243 = vpop.xlane.xlu0 %4242
    %v4244 = vsel %vm450, %v4232, -inf
    %4245 = vmax.xlane.f32.xlu0 %v4244
    %v4246 = vpop.xlane.xlu0 %4245
    %v4247 = vsel %vm450, %v4233, -inf
    %4248 = vmax.xlane.f32.xlu0 %v4247
    %v4249 = vpop.xlane.xlu0 %4248
    %v4250 = vsel %vm450, %v4234, -inf
    %4251 = vmax.xlane.f32.xlu0 %v4250
    %v4252 = vpop.xlane.xlu0 %4251
    %v4253 = vsel %vm450, %v4235, -inf
    %4254 = vmax.xlane.f32.xlu0 %v4253
    %v4255 = vpop.xlane.xlu0 %4254
    %v4256 = vsel %vm450, %v4236, -inf
    %4257 = vmax.xlane.f32.xlu0 %v4256
    %v4258 = vpop.xlane.xlu0 %4257
    %v4259 = vsel %vm450, %v4237, -inf
    %4260 = vmax.xlane.f32.xlu0 %v4259
    %v4261 = vpop.xlane.xlu0 %4260
    %v4262 = vsub.f32 %v4230, %v4240
    %v4263 = vsub.f32 %v4231, %v4243
    %v4264 = vsub.f32 %v4232, %v4246
    %v4265 = vsub.f32 %v4233, %v4249
    %v4266 = vsub.f32 %v4234, %v4252
    %v4267 = vsub.f32 %v4235, %v4255
    %v4268 = vsub.f32 %v4236, %v4258
    %v4269 = vsub.f32 %v4237, %v4261
    %v4270 = vmul.f32 %v4262, 1.442695
    %v4271 = vpow.pop %v4270
    %v4272 = vmul.f32 %v4263, 1.442695
    %v4273 = vpow.pop %v4272
    %v4274 = vmul.f32 %v4264, 1.442695
    %v4275 = vpow.pop %v4274
    %v4276 = vmul.f32 %v4265, 1.442695
    %v4277 = vpow.pop %v4276
    %v4278 = vmul.f32 %v4266, 1.442695
    %v4279 = vpow.pop %v4278
    %v4280 = vmul.f32 %v4267, 1.442695
    %v4281 = vpow.pop %v4280
    %v4282 = vmul.f32 %v4268, 1.442695
    %v4283 = vpow.pop %v4282
    %v4284 = vmul.f32 %v4269, 1.442695
    %v4285 = vpow.pop %v4284
    %v4286 = vsel %vm450, %v4271, 0.0
    %4287 = vadd.xlane.f32.xlu0 %v4286
    %v4288 = vpop.xlane.xlu0 %4287
    %v4289 = vsel %vm450, %v4273, 0.0
    %4290 = vadd.xlane.f32.xlu0 %v4289
    %v4291 = vpop.xlane.xlu0 %4290
    %v4292 = vsel %vm450, %v4275, 0.0
    %4293 = vadd.xlane.f32.xlu0 %v4292
    %v4294 = vpop.xlane.xlu0 %4293
    %v4295 = vsel %vm450, %v4277, 0.0
    %4296 = vadd.xlane.f32.xlu0 %v4295
    %v4297 = vpop.xlane.xlu0 %4296
    %v4298 = vsel %vm450, %v4279, 0.0
    %4299 = vadd.xlane.f32.xlu0 %v4298
    %v4300 = vpop.xlane.xlu0 %4299
    %v4301 = vsel %vm450, %v4281, 0.0
    %4302 = vadd.xlane.f32.xlu0 %v4301
    %v4303 = vpop.xlane.xlu0 %4302
    %v4304 = vsel %vm450, %v4283, 0.0
    %4305 = vadd.xlane.f32.xlu0 %v4304
    %v4306 = vpop.xlane.xlu0 %4305
    %v4307 = vsel %vm450, %v4285, 0.0
    %4308 = vadd.xlane.f32.xlu0 %v4307
    %v4309 = vpop.xlane.xlu0 %4308
    %v4310 = vrcp.pop %v4288
    %v4311 = vrcp.pop %v4291
    %v4312 = vrcp.pop %v4294
    %v4313 = vrcp.pop %v4297
    %v4314 = vrcp.pop %v4300
    %v4315 = vrcp.pop %v4303
    %v4316 = vrcp.pop %v4306
    %v4317 = vrcp.pop %v4309
    %v4318 = vmul.f32 %v4271, %v4310
    %v4319 = vmul.f32 %v4273, %v4311
    %v4320 = vmul.f32 %v4275, %v4312
    %v4321 = vmul.f32 %v4277, %v4313
    %v4322 = vmul.f32 %v4279, %v4314
    %v4323 = vmul.f32 %v4281, %v4315
    %v4324 = vmul.f32 %v4283, %v4316
    %v4325 = vmul.f32 %v4285, %v4317
    %4334 = vrot.lane.b32.xlu0 %v3623, 112
    %v4335 = vpop.permute.xlu0 %4334
    %4336 = vrot.lane.b32.xlu0 %v3629, 112
    %v4337 = vpop.permute.xlu0 %4336
    %4338 = vrot.lane.b32.xlu0 %v3635, 112
    %v4339 = vpop.permute.xlu0 %4338
    %4340 = vrot.lane.b32.xlu0 %v3641, 112
    %v4341 = vpop.permute.xlu0 %4340
    %4342 = vrot.lane.b32.xlu0 %v3647, 112
    %v4343 = vpop.permute.xlu0 %4342
    %4344 = vrot.lane.b32.xlu0 %v3653, 112
    %v4345 = vpop.permute.xlu0 %4344
    %4346 = vrot.lane.b32.xlu0 %v3659, 112
    %v4347 = vpop.permute.xlu0 %4346
    %4348 = vrot.lane.b32.xlu0 %v3665, 112
    %v4349 = vpop.permute.xlu0 %4348
    %v4359 = vsel %vm450, %v4318, 0
    %v4362 = vsel %vm450, %v4319, 0
    %v4365 = vsel %vm450, %v4320, 0
    %v4368 = vsel %vm450, %v4321, 0
    %v4371 = vsel %vm450, %v4322, 0
    %v4374 = vsel %vm450, %v4323, 0
    %v4377 = vsel %vm450, %v4324, 0
    %v4380 = vsel %vm450, %v4325, 0
    %4382 = vmatprep.subr.mxu0 0.0
    %4383 = vmatpush1.msra.mxu0 %v4335
    %4384 = vmatprep.subr.mxu0 0.0
    %4385 = vmatpush1.msra.mxu0 %v4337
    %4386 = vmatprep.subr.mxu0 0.0
    %4387 = vmatpush1.msra.mxu0 %v4339
    %4388 = vmatprep.subr.mxu0 0.0
    %4389 = vmatpush1.msra.mxu0 %v4341
    %4390 = vmatprep.subr.mxu0 0.0
    %4391 = vmatpush1.msra.mxu0 %v4343
    %4392 = vmatprep.subr.mxu0 0.0
    %4393 = vmatpush1.msra.mxu0 %v4345
    %4394 = vmatprep.subr.mxu0 0.0
    %4395 = vmatpush1.msra.mxu0 %v4347
    %4396 = vmatprep.subr.mxu0 0.0
    %4397 = vmatpush1.msra.mxu0 %v4349
    %4398 = vmatprep.subr.mxu0 0.0
    %4399 = vmatpush1.msra.mxu0 0.0
    %4400 = vmatprep.subr.mxu0 0.0
    %4401 = vmatpush1.msra.mxu0 0.0
    %4402 = vmatprep.subr.mxu0 0.0
    %4403 = vmatpush1.msra.mxu0 0.0
    %4404 = vmatprep.subr.mxu0 0.0
    %4405 = vmatpush1.msra.mxu0 0.0
    %4406 = vmatprep.subr.mxu0 0.0
    %4407 = vmatpush1.msra.mxu0 0.0
    %4408 = vmatprep.subr.mxu0 0.0
    %4409 = vmatpush1.msra.mxu0 0.0
    %4410 = vmatprep.subr.mxu0 0.0
    %4411 = vmatpush1.msra.mxu0 0.0
    %4412 = vmatprep.subr.mxu0 0.0
    %4413 = vmatpush1.msra.mxu0 0.0
    %4414 = vmatprep.subr.mxu0 0.0
    %4415 = vmatpush1.msra.mxu0 0.0
    %4416 = vmatprep.subr.mxu0 0.0
    %4417 = vmatpush1.msra.mxu0 0.0
    %4418 = vmatprep.subr.mxu0 0.0
    %4419 = vmatpush1.msra.mxu0 0.0
    %4420 = vmatprep.subr.mxu0 0.0
    %4421 = vmatpush1.msra.mxu0 0.0
    %4422 = vmatprep.subr.mxu0 0.0
    %4423 = vmatpush1.msra.mxu0 0.0
    %4424 = vmatprep.subr.mxu0 0.0
    %4425 = vmatpush1.msra.mxu0 0.0
    %4426 = vmatprep.subr.mxu0 0.0
    %4427 = vmatpush1.msra.mxu0 0.0
    %4428 = vmatprep.subr.mxu0 0.0
    %4429 = vmatpush1.msra.mxu0 0.0
    %4430 = vmatprep.subr.mxu0 0.0
    %4431 = vmatpush1.msra.mxu0 0.0
    %4432 = vmatprep.subr.mxu0 0.0
    %4433 = vmatpush1.msra.mxu0 0.0
    %4434 = vmatprep.subr.mxu0 0.0
    %4435 = vmatpush1.msra.mxu0 0.0
    %4436 = vmatprep.subr.mxu0 0.0
    %4437 = vmatpush1.msra.mxu0 0.0
    %4438 = vmatprep.subr.mxu0 0.0
    %4439 = vmatpush1.msra.mxu0 0.0
    %4440 = vmatprep.subr.mxu0 0.0
    %4441 = vmatpush1.msra.mxu0 0.0
    %4442 = vmatprep.subr.mxu0 0.0
    %4443 = vmatpush1.msra.mxu0 0.0
    %4444 = vmatprep.subr.mxu0 0.0
    %4445 = vmatpush1.msra.mxu0 0.0
    %4446 = vmatprep.mubr.f32.mxu0 0.0
    %4447 = vmatmul.mubr.f32.gmra.mrb[0].mxu0 %v4359
    %v4448 = vpop.f32.mrb[0].mxu0
    %v4449 = vadd.f32 0.0, %v4448
    %v4450 = vpop.f32.mrb[0].mxu0
    %4451 = vmatprep.mubr.f32.mxu0 0.0
    %4452 = vmatmul.mubr.f32.gmra.mrb[0].mxu0 %v4362
    %v4453 = vpop.f32.mrb[0].mxu0
    %v4454 = vadd.f32 0.0, %v4453
    %v4455 = vpop.f32.mrb[0].mxu0
    %4456 = vmatprep.mubr.f32.mxu0 0.0
    %4457 = vmatmul.mubr.f32.gmra.mrb[0].mxu0 %v4365
    %v4458 = vpop.f32.mrb[0].mxu0
    %v4459 = vadd.f32 0.0, %v4458
    %v4460 = vpop.f32.mrb[0].mxu0
    %4461 = vmatprep.mubr.f32.mxu0 0.0
    %4462 = vmatmul.mubr.f32.gmra.mrb[0].mxu0 %v4368
    %v4463 = vpop.f32.mrb[0].mxu0
    %v4464 = vadd.f32 0.0, %v4463
    %v4465 = vpop.f32.mrb[0].mxu0
    %4466 = vmatprep.mubr.f32.mxu0 0.0
    %4467 = vmatmul.mubr.f32.gmra.mrb[0].mxu0 %v4371
    %v4468 = vpop.f32.mrb[0].mxu0
    %v4469 = vadd.f32 0.0, %v4468
    %v4470 = vpop.f32.mrb[0].mxu0
    %4471 = vmatprep.mubr.f32.mxu0 0.0
    %4472 = vmatmul.mubr.f32.gmra.mrb[0].mxu0 %v4374
    %v4473 = vpop.f32.mrb[0].mxu0
    %v4474 = vadd.f32 0.0, %v4473
    %v4475 = vpop.f32.mrb[0].mxu0
    %4476 = vmatprep.mubr.f32.mxu0 0.0
    %4477 = vmatmul.mubr.f32.gmra.mrb[0].mxu0 %v4377
    %v4478 = vpop.f32.mrb[0].mxu0
    %v4479 = vadd.f32 0.0, %v4478
    %v4480 = vpop.f32.mrb[0].mxu0
    %4481 = vmatprep.mubr.f32.mxu0 0.0
    %4482 = vmatmul.mubr.f32.gmra.mrb[0].mxu0 %v4380
    %v4483 = vpop.f32.mrb[0].mxu0
    %v4484 = vadd.f32 0.0, %v4483
    %v4485 = vpop.f32.mrb[0].mxu0
    %4486 = vdwg.mxu0
    %4495 = vrot.lane.b32.xlu0 %v4449, 16
    %v4496 = vpop.permute.xlu0 %4495
    %4497 = vrot.lane.b32.xlu0 %v4454, 16
    %v4498 = vpop.permute.xlu0 %4497
    %4499 = vrot.lane.b32.xlu0 %v4459, 16
    %v4500 = vpop.permute.xlu0 %4499
    %4501 = vrot.lane.b32.xlu0 %v4464, 16
    %v4502 = vpop.permute.xlu0 %4501
    %4503 = vrot.lane.b32.xlu0 %v4469, 16
    %v4504 = vpop.permute.xlu0 %4503
    %4505 = vrot.lane.b32.xlu0 %v4474, 16
    %v4506 = vpop.permute.xlu0 %4505
    %4507 = vrot.lane.b32.xlu0 %v4479, 16
    %v4508 = vpop.permute.xlu0 %4507
    %4509 = vrot.lane.b32.xlu0 %v4484, 16
    %v4510 = vpop.permute.xlu0 %4509
    %4519 = vst.msk [vmem:[#allocation3] sm:$0xff] %vm2747, %v4496
    %4520 = vst.msk [vmem:[#allocation3 + $0x8] sm:$0xff] %vm2747, %v4498
    %4521 = vst.msk [vmem:[#allocation3 + $0x10] sm:$0xff] %vm2747, %v4500
    %4522 = vst.msk [vmem:[#allocation3 + $0x18] sm:$0xff] %vm2747, %v4502
    %4523 = vst.msk [vmem:[#allocation3 + $0x20] sm:$0xff] %vm2747, %v4504
    %4524 = vst.msk [vmem:[#allocation3 + $0x28] sm:$0xff] %vm2747, %v4506
    %4525 = vst.msk [vmem:[#allocation3 + $0x30] sm:$0xff] %vm2747, %v4508
    %4526 = vst.msk [vmem:[#allocation3 + $0x38] sm:$0xff] %vm2747, %v4510
    %4527 = vrot.lane.b32.xlu0 %v3621, 96
    %v4528 = vpop.permute.xlu0 %4527
    %4529 = vrot.lane.b32.xlu0 %v3627, 96
    %v4530 = vpop.permute.xlu0 %4529
    %4531 = vrot.lane.b32.xlu0 %v3633, 96
    %v4532 = vpop.permute.xlu0 %4531
    %4533 = vrot.lane.b32.xlu0 %v3639, 96
    %v4534 = vpop.permute.xlu0 %4533
    %4535 = vrot.lane.b32.xlu0 %v3645, 96
    %v4536 = vpop.permute.xlu0 %4535
    %4537 = vrot.lane.b32.xlu0 %v3651, 96
    %v4538 = vpop.permute.xlu0 %4537
    %4539 = vrot.lane.b32.xlu0 %v3657, 96
    %v4540 = vpop.permute.xlu0 %4539
    %4541 = vrot.lane.b32.xlu0 %v3663, 96
    %v4542 = vpop.permute.xlu0 %4541
    %4543 = vrot.lane.b32.xlu0 %v3621, 32
    %v4544 = vpop.permute.xlu0 %4543
    %4545 = vrot.lane.b32.xlu0 %v3627, 32
    %v4546 = vpop.permute.xlu0 %4545
    %4547 = vrot.lane.b32.xlu0 %v3633, 32
    %v4548 = vpop.permute.xlu0 %4547
    %4549 = vrot.lane.b32.xlu0 %v3639, 32
    %v4550 = vpop.permute.xlu0 %4549
    %4551 = vrot.lane.b32.xlu0 %v3645, 32
    %v4552 = vpop.permute.xlu0 %4551
    %4553 = vrot.lane.b32.xlu0 %v3651, 32
    %v4554 = vpop.permute.xlu0 %4553
    %4555 = vrot.lane.b32.xlu0 %v3657, 32
    %v4556 = vpop.permute.xlu0 %4555
    %4557 = vrot.lane.b32.xlu0 %v3663, 32
    %v4558 = vpop.permute.xlu0 %4557
    %v4559 = vsel %vm2397, %v4528, 0
    %v4561 = vsel %vm2397, %v4530, 0
    %v4563 = vsel %vm2397, %v4532, 0
    %v4565 = vsel %vm2397, %v4534, 0
    %v4567 = vsel %vm2397, %v4536, 0
    %v4569 = vsel %vm2397, %v4538, 0
    %v4571 = vsel %vm2397, %v4540, 0
    %v4573 = vsel %vm2397, %v4542, 0
    %v4575 = vsel %vm2397, %v4544, 0
    %v4577 = vsel %vm2397, %v4546, 0
    %v4579 = vsel %vm2397, %v4548, 0
    %v4581 = vsel %vm2397, %v4550, 0
    %v4583 = vsel %vm2397, %v4552, 0
    %v4585 = vsel %vm2397, %v4554, 0
    %v4587 = vsel %vm2397, %v4556, 0
    %v4589 = vsel %vm2397, %v4558, 0
    %4591 = vmatprep.subr.mxu0 0.0
    %4592 = vmatpush1.xpose.msra.mxu0 %v4575
    %4593 = vmatprep.subr.mxu0 0.0
    %4594 = vmatpush1.xpose.msra.mxu0 %v4577
    %4595 = vmatprep.subr.mxu0 0.0
    %4596 = vmatpush1.xpose.msra.mxu0 %v4579
    %4597 = vmatprep.subr.mxu0 0.0
    %4598 = vmatpush1.xpose.msra.mxu0 %v4581
    %4599 = vmatprep.subr.mxu0 0.0
    %4600 = vmatpush1.xpose.msra.mxu0 %v4583
    %4601 = vmatprep.subr.mxu0 0.0
    %4602 = vmatpush1.xpose.msra.mxu0 %v4585
    %4603 = vmatprep.subr.mxu0 0.0
    %4604 = vmatpush1.xpose.msra.mxu0 %v4587
    %4605 = vmatprep.subr.mxu0 0.0
    %4606 = vmatpush1.xpose.msra.mxu0 %v4589
    %4607 = vmatprep.subr.mxu0 0.0
    %4608 = vmatpush1.xpose.msra.mxu0 0.0
    %4609 = vmatprep.subr.mxu0 0.0
    %4610 = vmatpush1.xpose.msra.mxu0 0.0
    %4611 = vmatprep.subr.mxu0 0.0
    %4612 = vmatpush1.xpose.msra.mxu0 0.0
    %4613 = vmatprep.subr.mxu0 0.0
    %4614 = vmatpush1.xpose.msra.mxu0 0.0
    %4615 = vmatprep.subr.mxu0 0.0
    %4616 = vmatpush1.xpose.msra.mxu0 0.0
    %4617 = vmatprep.subr.mxu0 0.0
    %4618 = vmatpush1.xpose.msra.mxu0 0.0
    %4619 = vmatprep.subr.mxu0 0.0
    %4620 = vmatpush1.xpose.msra.mxu0 0.0
    %4621 = vmatprep.subr.mxu0 0.0
    %4622 = vmatpush1.xpose.msra.mxu0 0.0
    %4623 = vmatprep.subr.mxu0 0.0
    %4624 = vmatpush1.xpose.msra.mxu0 0.0
    %4625 = vmatprep.subr.mxu0 0.0
    %4626 = vmatpush1.xpose.msra.mxu0 0.0
    %4627 = vmatprep.subr.mxu0 0.0
    %4628 = vmatpush1.xpose.msra.mxu0 0.0
    %4629 = vmatprep.subr.mxu0 0.0
    %4630 = vmatpush1.xpose.msra.mxu0 0.0
    %4631 = vmatprep.subr.mxu0 0.0
    %4632 = vmatpush1.xpose.msra.mxu0 0.0
    %4633 = vmatprep.subr.mxu0 0.0
    %4634 = vmatpush1.xpose.msra.mxu0 0.0
    %4635 = vmatprep.subr.mxu0 0.0
    %4636 = vmatpush1.xpose.msra.mxu0 0.0
    %4637 = vmatprep.subr.mxu0 0.0
    %4638 = vmatpush1.xpose.msra.mxu0 0.0
    %4639 = vmatprep.subr.mxu0 0.0
    %4640 = vmatpush1.xpose.msra.mxu0 0.0
    %4641 = vmatprep.subr.mxu0 0.0
    %4642 = vmatpush1.xpose.msra.mxu0 0.0
    %4643 = vmatprep.subr.mxu0 0.0
    %4644 = vmatpush1.xpose.msra.mxu0 0.0
    %4645 = vmatprep.subr.mxu0 0.0
    %4646 = vmatpush1.xpose.msra.mxu0 0.0
    %4647 = vmatprep.subr.mxu0 0.0
    %4648 = vmatpush1.xpose.msra.mxu0 0.0
    %4649 = vmatprep.subr.mxu0 0.0
    %4650 = vmatpush1.xpose.msra.mxu0 0.0
    %4651 = vmatprep.subr.mxu0 0.0
    %4652 = vmatpush1.xpose.msra.mxu0 0.0
    %4653 = vmatprep.subr.mxu0 0.0
    %4654 = vmatpush1.xpose.msra.mxu0 0.0
    %4655 = vmatprep.mubr.f32.mxu0 0.0
    %4656 = vmatmul.mubr.f32.gmra.mrb[0].mxu0 %v4559
    %v4657 = vpop.f32.mrb[0].mxu0
    %v4658 = vadd.f32 0.0, %v4657
    %v4659 = vpop.f32.mrb[0].mxu0
    %4660 = vmatprep.mubr.f32.mxu0 0.0
    %4661 = vmatmul.mubr.f32.gmra.mrb[0].mxu0 %v4561
    %v4662 = vpop.f32.mrb[0].mxu0
    %v4663 = vadd.f32 0.0, %v4662
    %v4664 = vpop.f32.mrb[0].mxu0
    %4665 = vmatprep.mubr.f32.mxu0 0.0
    %4666 = vmatmul.mubr.f32.gmra.mrb[0].mxu0 %v4563
    %v4667 = vpop.f32.mrb[0].mxu0
    %v4668 = vadd.f32 0.0, %v4667
    %v4669 = vpop.f32.mrb[0].mxu0
    %4670 = vmatprep.mubr.f32.mxu0 0.0
    %4671 = vmatmul.mubr.f32.gmra.mrb[0].mxu0 %v4565
    %v4672 = vpop.f32.mrb[0].mxu0
    %v4673 = vadd.f32 0.0, %v4672
    %v4674 = vpop.f32.mrb[0].mxu0
    %4675 = vmatprep.mubr.f32.mxu0 0.0
    %4676 = vmatmul.mubr.f32.gmra.mrb[0].mxu0 %v4567
    %v4677 = vpop.f32.mrb[0].mxu0
    %v4678 = vadd.f32 0.0, %v4677
    %v4679 = vpop.f32.mrb[0].mxu0
    %4680 = vmatprep.mubr.f32.mxu0 0.0
    %4681 = vmatmul.mubr.f32.gmra.mrb[0].mxu0 %v4569
    %v4682 = vpop.f32.mrb[0].mxu0
    %v4683 = vadd.f32 0.0, %v4682
    %v4684 = vpop.f32.mrb[0].mxu0
    %4685 = vmatprep.mubr.f32.mxu0 0.0
    %4686 = vmatmul.mubr.f32.gmra.mrb[0].mxu0 %v4571
    %v4687 = vpop.f32.mrb[0].mxu0
    %v4688 = vadd.f32 0.0, %v4687
    %v4689 = vpop.f32.mrb[0].mxu0
    %4690 = vmatprep.mubr.f32.mxu0 0.0
    %4691 = vmatmul.mubr.f32.gmra.mrb[0].mxu0 %v4573
    %v4692 = vpop.f32.mrb[0].mxu0
    %v4693 = vadd.f32 0.0, %v4692
    %v4694 = vpop.f32.mrb[0].mxu0
    %4695 = vdwg.mxu0
    %v4696 = vmul.f32 %v4658, 0.25
    %v4697 = vmul.f32 %v4663, 0.25
    %v4698 = vmul.f32 %v4668, 0.25
    %v4699 = vmul.f32 %v4673, 0.25
    %v4700 = vmul.f32 %v4678, 0.25
    %v4701 = vmul.f32 %v4683, 0.25
    %v4702 = vmul.f32 %v4688, 0.25
    %v4703 = vmul.f32 %v4693, 0.25
    %v4704 = vsel %vm450, %v4696, -inf
    %4705 = vmax.xlane.f32.xlu0 %v4704
    %v4706 = vpop.xlane.xlu0 %4705
    %v4707 = vsel %vm450, %v4697, -inf
    %4708 = vmax.xlane.f32.xlu0 %v4707
    %v4709 = vpop.xlane.xlu0 %4708
    %v4710 = vsel %vm450, %v4698, -inf
    %4711 = vmax.xlane.f32.xlu0 %v4710
    %v4712 = vpop.xlane.xlu0 %4711
    %v4713 = vsel %vm450, %v4699, -inf
    %4714 = vmax.xlane.f32.xlu0 %v4713
    %v4715 = vpop.xlane.xlu0 %4714
    %v4716 = vsel %vm450, %v4700, -inf
    %4717 = vmax.xlane.f32.xlu0 %v4716
    %v4718 = vpop.xlane.xlu0 %4717
    %v4719 = vsel %vm450, %v4701, -inf
    %4720 = vmax.xlane.f32.xlu0 %v4719
    %v4721 = vpop.xlane.xlu0 %4720
    %v4722 = vsel %vm450, %v4702, -inf
    %4723 = vmax.xlane.f32.xlu0 %v4722
    %v4724 = vpop.xlane.xlu0 %4723
    %v4725 = vsel %vm450, %v4703, -inf
    %4726 = vmax.xlane.f32.xlu0 %v4725
    %v4727 = vpop.xlane.xlu0 %4726
    %v4728 = vsub.f32 %v4696, %v4706
    %v4729 = vsub.f32 %v4697, %v4709
    %v4730 = vsub.f32 %v4698, %v4712
    %v4731 = vsub.f32 %v4699, %v4715
    %v4732 = vsub.f32 %v4700, %v4718
    %v4733 = vsub.f32 %v4701, %v4721
    %v4734 = vsub.f32 %v4702, %v4724
    %v4735 = vsub.f32 %v4703, %v4727
    %v4736 = vmul.f32 %v4728, 1.442695
    %v4737 = vpow.pop %v4736
    %v4738 = vmul.f32 %v4729, 1.442695
    %v4739 = vpow.pop %v4738
    %v4740 = vmul.f32 %v4730, 1.442695
    %v4741 = vpow.pop %v4740
    %v4742 = vmul.f32 %v4731, 1.442695
    %v4743 = vpow.pop %v4742
    %v4744 = vmul.f32 %v4732, 1.442695
    %v4745 = vpow.pop %v4744
    %v4746 = vmul.f32 %v4733, 1.442695
    %v4747 = vpow.pop %v4746
    %v4748 = vmul.f32 %v4734, 1.442695
    %v4749 = vpow.pop %v4748
    %v4750 = vmul.f32 %v4735, 1.442695
    %v4751 = vpow.pop %v4750
    %v4752 = vsel %vm450, %v4737, 0.0
    %4753 = vadd.xlane.f32.xlu0 %v4752
    %v4754 = vpop.xlane.xlu0 %4753
    %v4755 = vsel %vm450, %v4739, 0.0
    %4756 = vadd.xlane.f32.xlu0 %v4755
    %v4757 = vpop.xlane.xlu0 %4756
    %v4758 = vsel %vm450, %v4741, 0.0
    %4759 = vadd.xlane.f32.xlu0 %v4758
    %v4760 = vpop.xlane.xlu0 %4759
    %v4761 = vsel %vm450, %v4743, 0.0
    %4762 = vadd.xlane.f32.xlu0 %v4761
    %v4763 = vpop.xlane.xlu0 %4762
    %v4764 = vsel %vm450, %v4745, 0.0
    %4765 = vadd.xlane.f32.xlu0 %v4764
    %v4766 = vpop.xlane.xlu0 %4765
    %v4767 = vsel %vm450, %v4747, 0.0
    %4768 = vadd.xlane.f32.xlu0 %v4767
    %v4769 = vpop.xlane.xlu0 %4768
    %v4770 = vsel %vm450, %v4749, 0.0
    %4771 = vadd.xlane.f32.xlu0 %v4770
    %v4772 = vpop.xlane.xlu0 %4771
    %v4773 = vsel %vm450, %v4751, 0.0
    %4774 = vadd.xlane.f32.xlu0 %v4773
    %v4775 = vpop.xlane.xlu0 %4774
    %v4776 = vrcp.pop %v4754
    %v4777 = vrcp.pop %v4757
    %v4778 = vrcp.pop %v4760
    %v4779 = vrcp.pop %v4763
    %v4780 = vrcp.pop %v4766
    %v4781 = vrcp.pop %v4769
    %v4782 = vrcp.pop %v4772
    %v4783 = vrcp.pop %v4775
    %v4784 = vmul.f32 %v4737, %v4776
    %v4785 = vmul.f32 %v4739, %v4777
    %v4786 = vmul.f32 %v4741, %v4778
    %v4787 = vmul.f32 %v4743, %v4779
    %v4788 = vmul.f32 %v4745, %v4780
    %v4789 = vmul.f32 %v4747, %v4781
    %v4790 = vmul.f32 %v4749, %v4782
    %v4791 = vmul.f32 %v4751, %v4783
    %4792 = vrot.lane.b32.xlu0 %v3623, 96
    %v4793 = vpop.permute.xlu0 %4792
    %4794 = vrot.lane.b32.xlu0 %v3629, 96
    %v4795 = vpop.permute.xlu0 %4794
    %4796 = vrot.lane.b32.xlu0 %v3635, 96
    %v4797 = vpop.permute.xlu0 %4796
    %4798 = vrot.lane.b32.xlu0 %v3641, 96
    %v4799 = vpop.permute.xlu0 %4798
    %4800 = vrot.lane.b32.xlu0 %v3647, 96
    %v4801 = vpop.permute.xlu0 %4800
    %4802 = vrot.lane.b32.xlu0 %v3653, 96
    %v4803 = vpop.permute.xlu0 %4802
    %4804 = vrot.lane.b32.xlu0 %v3659, 96
    %v4805 = vpop.permute.xlu0 %4804
    %4806 = vrot.lane.b32.xlu0 %v3665, 96
    %v4807 = vpop.permute.xlu0 %4806
    %v4817 = vsel %vm450, %v4784, 0
    %v4820 = vsel %vm450, %v4785, 0
    %v4823 = vsel %vm450, %v4786, 0
    %v4826 = vsel %vm450, %v4787, 0
    %v4829 = vsel %vm450, %v4788, 0
    %v4832 = vsel %vm450, %v4789, 0
    %v4835 = vsel %vm450, %v4790, 0
    %v4838 = vsel %vm450, %v4791, 0
    %4840 = vmatprep.subr.mxu0 0.0
    %4841 = vmatpush1.msra.mxu0 %v4793
    %4842 = vmatprep.subr.mxu0 0.0
    %4843 = vmatpush1.msra.mxu0 %v4795
    %4844 = vmatprep.subr.mxu0 0.0
    %4845 = vmatpush1.msra.mxu0 %v4797
    %4846 = vmatprep.subr.mxu0 0.0
    %4847 = vmatpush1.msra.mxu0 %v4799
    %4848 = vmatprep.subr.mxu0 0.0
    %4849 = vmatpush1.msra.mxu0 %v4801
    %4850 = vmatprep.subr.mxu0 0.0
    %4851 = vmatpush1.msra.mxu0 %v4803
    %4852 = vmatprep.subr.mxu0 0.0
    %4853 = vmatpush1.msra.mxu0 %v4805
    %4854 = vmatprep.subr.mxu0 0.0
    %4855 = vmatpush1.msra.mxu0 %v4807
    %4856 = vmatprep.subr.mxu0 0.0
    %4857 = vmatpush1.msra.mxu0 0.0
    %4858 = vmatprep.subr.mxu0 0.0
    %4859 = vmatpush1.msra.mxu0 0.0
    %4860 = vmatprep.subr.mxu0 0.0
    %4861 = vmatpush1.msra.mxu0 0.0
    %4862 = vmatprep.subr.mxu0 0.0
    %4863 = vmatpush1.msra.mxu0 0.0
    %4864 = vmatprep.subr.mxu0 0.0
    %4865 = vmatpush1.msra.mxu0 0.0
    %4866 = vmatprep.subr.mxu0 0.0
    %4867 = vmatpush1.msra.mxu0 0.0
    %4868 = vmatprep.subr.mxu0 0.0
    %4869 = vmatpush1.msra.mxu0 0.0
    %4870 = vmatprep.subr.mxu0 0.0
    %4871 = vmatpush1.msra.mxu0 0.0
    %4872 = vmatprep.subr.mxu0 0.0
    %4873 = vmatpush1.msra.mxu0 0.0
    %4874 = vmatprep.subr.mxu0 0.0
    %4875 = vmatpush1.msra.mxu0 0.0
    %4876 = vmatprep.subr.mxu0 0.0
    %4877 = vmatpush1.msra.mxu0 0.0
    %4878 = vmatprep.subr.mxu0 0.0
    %4879 = vmatpush1.msra.mxu0 0.0
    %4880 = vmatprep.subr.mxu0 0.0
    %4881 = vmatpush1.msra.mxu0 0.0
    %4882 = vmatprep.subr.mxu0 0.0
    %4883 = vmatpush1.msra.mxu0 0.0
    %4884 = vmatprep.subr.mxu0 0.0
    %4885 = vmatpush1.msra.mxu0 0.0
    %4886 = vmatprep.subr.mxu0 0.0
    %4887 = vmatpush1.msra.mxu0 0.0
    %4888 = vmatprep.subr.mxu0 0.0
    %4889 = vmatpush1.msra.mxu0 0.0
    %4890 = vmatprep.subr.mxu0 0.0
    %4891 = vmatpush1.msra.mxu0 0.0
    %4892 = vmatprep.subr.mxu0 0.0
    %4893 = vmatpush1.msra.mxu0 0.0
    %4894 = vmatprep.subr.mxu0 0.0
    %4895 = vmatpush1.msra.mxu0 0.0
    %4896 = vmatprep.subr.mxu0 0.0
    %4897 = vmatpush1.msra.mxu0 0.0
    %4898 = vmatprep.subr.mxu0 0.0
    %4899 = vmatpush1.msra.mxu0 0.0
    %4900 = vmatprep.subr.mxu0 0.0
    %4901 = vmatpush1.msra.mxu0 0.0
    %4902 = vmatprep.subr.mxu0 0.0
    %4903 = vmatpush1.msra.mxu0 0.0
    %4904 = vmatprep.mubr.f32.mxu0 0.0
    %4905 = vmatmul.mubr.f32.gmra.mrb[0].mxu0 %v4817
    %v4906 = vpop.f32.mrb[0].mxu0
    %v4907 = vadd.f32 0.0, %v4906
    %v4908 = vpop.f32.mrb[0].mxu0
    %4909 = vmatprep.mubr.f32.mxu0 0.0
    %4910 = vmatmul.mubr.f32.gmra.mrb[0].mxu0 %v4820
    %v4911 = vpop.f32.mrb[0].mxu0
    %v4912 = vadd.f32 0.0, %v4911
    %v4913 = vpop.f32.mrb[0].mxu0
    %4914 = vmatprep.mubr.f32.mxu0 0.0
    %4915 = vmatmul.mubr.f32.gmra.mrb[0].mxu0 %v4823
    %v4916 = vpop.f32.mrb[0].mxu0
    %v4917 = vadd.f32 0.0, %v4916
    %v4918 = vpop.f32.mrb[0].mxu0
    %4919 = vmatprep.mubr.f32.mxu0 0.0
    %4920 = vmatmul.mubr.f32.gmra.mrb[0].mxu0 %v4826
    %v4921 = vpop.f32.mrb[0].mxu0
    %v4922 = vadd.f32 0.0, %v4921
    %v4923 = vpop.f32.mrb[0].mxu0
    %4924 = vmatprep.mubr.f32.mxu0 0.0
    %4925 = vmatmul.mubr.f32.gmra.mrb[0].mxu0 %v4829
    %v4926 = vpop.f32.mrb[0].mxu0
    %v4927 = vadd.f32 0.0, %v4926
    %v4928 = vpop.f32.mrb[0].mxu0
    %4929 = vmatprep.mubr.f32.mxu0 0.0
    %4930 = vmatmul.mubr.f32.gmra.mrb[0].mxu0 %v4832
    %v4931 = vpop.f32.mrb[0].mxu0
    %v4932 = vadd.f32 0.0, %v4931
    %v4933 = vpop.f32.mrb[0].mxu0
    %4934 = vmatprep.mubr.f32.mxu0 0.0
    %4935 = vmatmul.mubr.f32.gmra.mrb[0].mxu0 %v4835
    %v4936 = vpop.f32.mrb[0].mxu0
    %v4937 = vadd.f32 0.0, %v4936
    %v4938 = vpop.f32.mrb[0].mxu0
    %4939 = vmatprep.mubr.f32.mxu0 0.0
    %4940 = vmatmul.mubr.f32.gmra.mrb[0].mxu0 %v4838
    %v4941 = vpop.f32.mrb[0].mxu0
    %v4942 = vadd.f32 0.0, %v4941
    %v4943 = vpop.f32.mrb[0].mxu0
    %4944 = vdwg.mxu0
    %4953 = vrot.lane.b32.xlu0 %v4907, 32
    %v4954 = vpop.permute.xlu0 %4953
    %4955 = vrot.lane.b32.xlu0 %v4912, 32
    %v4956 = vpop.permute.xlu0 %4955
    %4957 = vrot.lane.b32.xlu0 %v4917, 32
    %v4958 = vpop.permute.xlu0 %4957
    %4959 = vrot.lane.b32.xlu0 %v4922, 32
    %v4960 = vpop.permute.xlu0 %4959
    %4961 = vrot.lane.b32.xlu0 %v4927, 32
    %v4962 = vpop.permute.xlu0 %4961
    %4963 = vrot.lane.b32.xlu0 %v4932, 32
    %v4964 = vpop.permute.xlu0 %4963
    %4965 = vrot.lane.b32.xlu0 %v4937, 32
    %v4966 = vpop.permute.xlu0 %4965
    %4967 = vrot.lane.b32.xlu0 %v4942, 32
    %v4968 = vpop.permute.xlu0 %4967
    %4977 = vst.msk [vmem:[#allocation3] sm:$0xff] %vm3097, %v4954
    %4978 = vst.msk [vmem:[#allocation3 + $0x8] sm:$0xff] %vm3097, %v4956
    %4979 = vst.msk [vmem:[#allocation3 + $0x10] sm:$0xff] %vm3097, %v4958
    %4980 = vst.msk [vmem:[#allocation3 + $0x18] sm:$0xff] %vm3097, %v4960
    %4981 = vst.msk [vmem:[#allocation3 + $0x20] sm:$0xff] %vm3097, %v4962
    %4982 = vst.msk [vmem:[#allocation3 + $0x28] sm:$0xff] %vm3097, %v4964
    %4983 = vst.msk [vmem:[#allocation3 + $0x30] sm:$0xff] %vm3097, %v4966
    %4984 = vst.msk [vmem:[#allocation3 + $0x38] sm:$0xff] %vm3097, %v4968
    %4985 = vrot.lane.b32.xlu0 %v3621, 80
    %v4986 = vpop.permute.xlu0 %4985
    %4987 = vrot.lane.b32.xlu0 %v3627, 80
    %v4988 = vpop.permute.xlu0 %4987
    %4989 = vrot.lane.b32.xlu0 %v3633, 80
    %v4990 = vpop.permute.xlu0 %4989
    %4991 = vrot.lane.b32.xlu0 %v3639, 80
    %v4992 = vpop.permute.xlu0 %4991
    %4993 = vrot.lane.b32.xlu0 %v3645, 80
    %v4994 = vpop.permute.xlu0 %4993
    %4995 = vrot.lane.b32.xlu0 %v3651, 80
    %v4996 = vpop.permute.xlu0 %4995
    %4997 = vrot.lane.b32.xlu0 %v3657, 80
    %v4998 = vpop.permute.xlu0 %4997
    %4999 = vrot.lane.b32.xlu0 %v3663, 80
    %v5000 = vpop.permute.xlu0 %4999
    %5001 = vrot.lane.b32.xlu0 %v3621, 16
    %v5002 = vpop.permute.xlu0 %5001
    %5003 = vrot.lane.b32.xlu0 %v3627, 16
    %v5004 = vpop.permute.xlu0 %5003
    %5005 = vrot.lane.b32.xlu0 %v3633, 16
    %v5006 = vpop.permute.xlu0 %5005
    %5007 = vrot.lane.b32.xlu0 %v3639, 16
    %v5008 = vpop.permute.xlu0 %5007
    %5009 = vrot.lane.b32.xlu0 %v3645, 16
    %v5010 = vpop.permute.xlu0 %5009
    %5011 = vrot.lane.b32.xlu0 %v3651, 16
    %v5012 = vpop.permute.xlu0 %5011
    %5013 = vrot.lane.b32.xlu0 %v3657, 16
    %v5014 = vpop.permute.xlu0 %5013
    %5015 = vrot.lane.b32.xlu0 %v3663, 16
    %v5016 = vpop.permute.xlu0 %5015
    %v5017 = vsel %vm2397, %v4986, 0
    %v5019 = vsel %vm2397, %v4988, 0
    %v5021 = vsel %vm2397, %v4990, 0
    %v5023 = vsel %vm2397, %v4992, 0
    %v5025 = vsel %vm2397, %v4994, 0
    %v5027 = vsel %vm2397, %v4996, 0
    %v5029 = vsel %vm2397, %v4998, 0
    %v5031 = vsel %vm2397, %v5000, 0
    %v5033 = vsel %vm2397, %v5002, 0
    %v5035 = vsel %vm2397, %v5004, 0
    %v5037 = vsel %vm2397, %v5006, 0
    %v5039 = vsel %vm2397, %v5008, 0
    %v5041 = vsel %vm2397, %v5010, 0
    %v5043 = vsel %vm2397, %v5012, 0
    %v5045 = vsel %vm2397, %v5014, 0
    %v5047 = vsel %vm2397, %v5016, 0
    %5049 = vmatprep.subr.mxu0 0.0
    %5050 = vmatpush1.xpose.msra.mxu0 %v5033
    %5051 = vmatprep.subr.mxu0 0.0
    %5052 = vmatpush1.xpose.msra.mxu0 %v5035
    %5053 = vmatprep.subr.mxu0 0.0
    %5054 = vmatpush1.xpose.msra.mxu0 %v5037
    %5055 = vmatprep.subr.mxu0 0.0
    %5056 = vmatpush1.xpose.msra.mxu0 %v5039
    %5057 = vmatprep.subr.mxu0 0.0
    %5058 = vmatpush1.xpose.msra.mxu0 %v5041
    %5059 = vmatprep.subr.mxu0 0.0
    %5060 = vmatpush1.xpose.msra.mxu0 %v5043
    %5061 = vmatprep.subr.mxu0 0.0
    %5062 = vmatpush1.xpose.msra.mxu0 %v5045
    %5063 = vmatprep.subr.mxu0 0.0
    %5064 = vmatpush1.xpose.msra.mxu0 %v5047
    %5065 = vmatprep.subr.mxu0 0.0
    %5066 = vmatpush1.xpose.msra.mxu0 0.0
    %5067 = vmatprep.subr.mxu0 0.0
    %5068 = vmatpush1.xpose.msra.mxu0 0.0
    %5069 = vmatprep.subr.mxu0 0.0
    %5070 = vmatpush1.xpose.msra.mxu0 0.0
    %5071 = vmatprep.subr.mxu0 0.0
    %5072 = vmatpush1.xpose.msra.mxu0 0.0
    %5073 = vmatprep.subr.mxu0 0.0
    %5074 = vmatpush1.xpose.msra.mxu0 0.0
    %5075 = vmatprep.subr.mxu0 0.0
    %5076 = vmatpush1.xpose.msra.mxu0 0.0
    %5077 = vmatprep.subr.mxu0 0.0
    %5078 = vmatpush1.xpose.msra.mxu0 0.0
    %5079 = vmatprep.subr.mxu0 0.0
    %5080 = vmatpush1.xpose.msra.mxu0 0.0
    %5081 = vmatprep.subr.mxu0 0.0
    %5082 = vmatpush1.xpose.msra.mxu0 0.0
    %5083 = vmatprep.subr.mxu0 0.0
    %5084 = vmatpush1.xpose.msra.mxu0 0.0
    %5085 = vmatprep.subr.mxu0 0.0
    %5086 = vmatpush1.xpose.msra.mxu0 0.0
    %5087 = vmatprep.subr.mxu0 0.0
    %5088 = vmatpush1.xpose.msra.mxu0 0.0
    %5089 = vmatprep.subr.mxu0 0.0
    %5090 = vmatpush1.xpose.msra.mxu0 0.0
    %5091 = vmatprep.subr.mxu0 0.0
    %5092 = vmatpush1.xpose.msra.mxu0 0.0
    %5093 = vmatprep.subr.mxu0 0.0
    %5094 = vmatpush1.xpose.msra.mxu0 0.0
    %5095 = vmatprep.subr.mxu0 0.0
    %5096 = vmatpush1.xpose.msra.mxu0 0.0
    %5097 = vmatprep.subr.mxu0 0.0
    %5098 = vmatpush1.xpose.msra.mxu0 0.0
    %5099 = vmatprep.subr.mxu0 0.0
    %5100 = vmatpush1.xpose.msra.mxu0 0.0
    %5101 = vmatprep.subr.mxu0 0.0
    %5102 = vmatpush1.xpose.msra.mxu0 0.0
    %5103 = vmatprep.subr.mxu0 0.0
    %5104 = vmatpush1.xpose.msra.mxu0 0.0
    %5105 = vmatprep.subr.mxu0 0.0
    %5106 = vmatpush1.xpose.msra.mxu0 0.0
    %5107 = vmatprep.subr.mxu0 0.0
    %5108 = vmatpush1.xpose.msra.mxu0 0.0
    %5109 = vmatprep.subr.mxu0 0.0
    %5110 = vmatpush1.xpose.msra.mxu0 0.0
    %5111 = vmatprep.subr.mxu0 0.0
    %5112 = vmatpush1.xpose.msra.mxu0 0.0
    %5113 = vmatprep.mubr.f32.mxu0 0.0
    %5114 = vmatmul.mubr.f32.gmra.mrb[0].mxu0 %v5017
    %v5115 = vpop.f32.mrb[0].mxu0
    %v5116 = vadd.f32 0.0, %v5115
    %v5117 = vpop.f32.mrb[0].mxu0
    %5118 = vmatprep.mubr.f32.mxu0 0.0
    %5119 = vmatmul.mubr.f32.gmra.mrb[0].mxu0 %v5019
    %v5120 = vpop.f32.mrb[0].mxu0
    %v5121 = vadd.f32 0.0, %v5120
    %v5122 = vpop.f32.mrb[0].mxu0
    %5123 = vmatprep.mubr.f32.mxu0 0.0
    %5124 = vmatmul.mubr.f32.gmra.mrb[0].mxu0 %v5021
    %v5125 = vpop.f32.mrb[0].mxu0
    %v5126 = vadd.f32 0.0, %v5125
    %v5127 = vpop.f32.mrb[0].mxu0
    %5128 = vmatprep.mubr.f32.mxu0 0.0
    %5129 = vmatmul.mubr.f32.gmra.mrb[0].mxu0 %v5023
    %v5130 = vpop.f32.mrb[0].mxu0
    %v5131 = vadd.f32 0.0, %v5130
    %v5132 = vpop.f32.mrb[0].mxu0
    %5133 = vmatprep.mubr.f32.mxu0 0.0
    %5134 = vmatmul.mubr.f32.gmra.mrb[0].mxu0 %v5025
    %v5135 = vpop.f32.mrb[0].mxu0
    %v5136 = vadd.f32 0.0, %v5135
    %v5137 = vpop.f32.mrb[0].mxu0
    %5138 = vmatprep.mubr.f32.mxu0 0.0
    %5139 = vmatmul.mubr.f32.gmra.mrb[0].mxu0 %v5027
    %v5140 = vpop.f32.mrb[0].mxu0
    %v5141 = vadd.f32 0.0, %v5140
    %v5142 = vpop.f32.mrb[0].mxu0
    %5143 = vmatprep.mubr.f32.mxu0 0.0
    %5144 = vmatmul.mubr.f32.gmra.mrb[0].mxu0 %v5029
    %v5145 = vpop.f32.mrb[0].mxu0
    %v5146 = vadd.f32 0.0, %v5145
    %v5147 = vpop.f32.mrb[0].mxu0
    %5148 = vmatprep.mubr.f32.mxu0 0.0
    %5149 = vmatmul.mubr.f32.gmra.mrb[0].mxu0 %v5031
    %v5150 = vpop.f32.mrb[0].mxu0
    %v5151 = vadd.f32 0.0, %v5150
    %v5152 = vpop.f32.mrb[0].mxu0
    %5153 = vdwg.mxu0
    %v5154 = vmul.f32 %v5116, 0.25
    %v5155 = vmul.f32 %v5121, 0.25
    %v5156 = vmul.f32 %v5126, 0.25
    %v5157 = vmul.f32 %v5131, 0.25
    %v5158 = vmul.f32 %v5136, 0.25
    %v5159 = vmul.f32 %v5141, 0.25
    %v5160 = vmul.f32 %v5146, 0.25
    %v5161 = vmul.f32 %v5151, 0.25
    %v5162 = vsel %vm450, %v5154, -inf
    %5163 = vmax.xlane.f32.xlu0 %v5162
    %v5164 = vpop.xlane.xlu0 %5163
    %v5165 = vsel %vm450, %v5155, -inf
    %5166 = vmax.xlane.f32.xlu0 %v5165
    %v5167 = vpop.xlane.xlu0 %5166
    %v5168 = vsel %vm450, %v5156, -inf
    %5169 = vmax.xlane.f32.xlu0 %v5168
    %v5170 = vpop.xlane.xlu0 %5169
    %v5171 = vsel %vm450, %v5157, -inf
    %5172 = vmax.xlane.f32.xlu0 %v5171
    %v5173 = vpop.xlane.xlu0 %5172
    %v5174 = vsel %vm450, %v5158, -inf
    %5175 = vmax.xlane.f32.xlu0 %v5174
    %v5176 = vpop.xlane.xlu0 %5175
    %v5177 = vsel %vm450, %v5159, -inf
    %5178 = vmax.xlane.f32.xlu0 %v5177
    %v5179 = vpop.xlane.xlu0 %5178
    %v5180 = vsel %vm450, %v5160, -inf
    %5181 = vmax.xlane.f32.xlu0 %v5180
    %v5182 = vpop.xlane.xlu0 %5181
    %v5183 = vsel %vm450, %v5161, -inf
    %5184 = vmax.xlane.f32.xlu0 %v5183
    %v5185 = vpop.xlane.xlu0 %5184
    %v5186 = vsub.f32 %v5154, %v5164
    %v5187 = vsub.f32 %v5155, %v5167
    %v5188 = vsub.f32 %v5156, %v5170
    %v5189 = vsub.f32 %v5157, %v5173
    %v5190 = vsub.f32 %v5158, %v5176
    %v5191 = vsub.f32 %v5159, %v5179
    %v5192 = vsub.f32 %v5160, %v5182
    %v5193 = vsub.f32 %v5161, %v5185
    %v5194 = vmul.f32 %v5186, 1.442695
    %v5195 = vpow.pop %v5194
    %v5196 = vmul.f32 %v5187, 1.442695
    %v5197 = vpow.pop %v5196
    %v5198 = vmul.f32 %v5188, 1.442695
    %v5199 = vpow.pop %v5198
    %v5200 = vmul.f32 %v5189, 1.442695
    %v5201 = vpow.pop %v5200
    %v5202 = vmul.f32 %v5190, 1.442695
    %v5203 = vpow.pop %v5202
    %v5204 = vmul.f32 %v5191, 1.442695
    %v5205 = vpow.pop %v5204
    %v5206 = vmul.f32 %v5192, 1.442695
    %v5207 = vpow.pop %v5206
    %v5208 = vmul.f32 %v5193, 1.442695
    %v5209 = vpow.pop %v5208
    %v5210 = vsel %vm450, %v5195, 0.0
    %5211 = vadd.xlane.f32.xlu0 %v5210
    %v5212 = vpop.xlane.xlu0 %5211
    %v5213 = vsel %vm450, %v5197, 0.0
    %5214 = vadd.xlane.f32.xlu0 %v5213
    %v5215 = vpop.xlane.xlu0 %5214
    %v5216 = vsel %vm450, %v5199, 0.0
    %5217 = vadd.xlane.f32.xlu0 %v5216
    %v5218 = vpop.xlane.xlu0 %5217
    %v5219 = vsel %vm450, %v5201, 0.0
    %5220 = vadd.xlane.f32.xlu0 %v5219
    %v5221 = vpop.xlane.xlu0 %5220
    %v5222 = vsel %vm450, %v5203, 0.0
    %5223 = vadd.xlane.f32.xlu0 %v5222
    %v5224 = vpop.xlane.xlu0 %5223
    %v5225 = vsel %vm450, %v5205, 0.0
    %5226 = vadd.xlane.f32.xlu0 %v5225
    %v5227 = vpop.xlane.xlu0 %5226
    %v5228 = vsel %vm450, %v5207, 0.0
    %5229 = vadd.xlane.f32.xlu0 %v5228
    %v5230 = vpop.xlane.xlu0 %5229
    %v5231 = vsel %vm450, %v5209, 0.0
    %5232 = vadd.xlane.f32.xlu0 %v5231
    %v5233 = vpop.xlane.xlu0 %5232
    %v5234 = vrcp.pop %v5212
    %v5235 = vrcp.pop %v5215
    %v5236 = vrcp.pop %v5218
    %v5237 = vrcp.pop %v5221
    %v5238 = vrcp.pop %v5224
    %v5239 = vrcp.pop %v5227
    %v5240 = vrcp.pop %v5230
    %v5241 = vrcp.pop %v5233
    %v5242 = vmul.f32 %v5195, %v5234
    %v5243 = vmul.f32 %v5197, %v5235
    %v5244 = vmul.f32 %v5199, %v5236
    %v5245 = vmul.f32 %v5201, %v5237
    %v5246 = vmul.f32 %v5203, %v5238
    %v5247 = vmul.f32 %v5205, %v5239
    %v5248 = vmul.f32 %v5207, %v5240
    %v5249 = vmul.f32 %v5209, %v5241
    %5250 = vrot.lane.b32.xlu0 %v3623, 80
    %v5251 = vpop.permute.xlu0 %5250
    %5252 = vrot.lane.b32.xlu0 %v3629, 80
    %v5253 = vpop.permute.xlu0 %5252
    %5254 = vrot.lane.b32.xlu0 %v3635, 80
    %v5255 = vpop.permute.xlu0 %5254
    %5256 = vrot.lane.b32.xlu0 %v3641, 80
    %v5257 = vpop.permute.xlu0 %5256
    %5258 = vrot.lane.b32.xlu0 %v3647, 80
    %v5259 = vpop.permute.xlu0 %5258
    %5260 = vrot.lane.b32.xlu0 %v3653, 80
    %v5261 = vpop.permute.xlu0 %5260
    %5262 = vrot.lane.b32.xlu0 %v3659, 80
    %v5263 = vpop.permute.xlu0 %5262
    %5264 = vrot.lane.b32.xlu0 %v3665, 80
    %v5265 = vpop.permute.xlu0 %5264
    %v5275 = vsel %vm450, %v5242, 0
    %v5278 = vsel %vm450, %v5243, 0
    %v5281 = vsel %vm450, %v5244, 0
    %v5284 = vsel %vm450, %v5245, 0
    %v5287 = vsel %vm450, %v5246, 0
    %v5290 = vsel %vm450, %v5247, 0
    %v5293 = vsel %vm450, %v5248, 0
    %v5296 = vsel %vm450, %v5249, 0
    %5298 = vmatprep.subr.mxu0 0.0
    %5299 = vmatpush1.msra.mxu0 %v5251
    %5300 = vmatprep.subr.mxu0 0.0
    %5301 = vmatpush1.msra.mxu0 %v5253
    %5302 = vmatprep.subr.mxu0 0.0
    %5303 = vmatpush1.msra.mxu0 %v5255
    %5304 = vmatprep.subr.mxu0 0.0
    %5305 = vmatpush1.msra.mxu0 %v5257
    %5306 = vmatprep.subr.mxu0 0.0
    %5307 = vmatpush1.msra.mxu0 %v5259
    %5308 = vmatprep.subr.mxu0 0.0
    %5309 = vmatpush1.msra.mxu0 %v5261
    %5310 = vmatprep.subr.mxu0 0.0
    %5311 = vmatpush1.msra.mxu0 %v5263
    %5312 = vmatprep.subr.mxu0 0.0
    %5313 = vmatpush1.msra.mxu0 %v5265
    %5314 = vmatprep.subr.mxu0 0.0
    %5315 = vmatpush1.msra.mxu0 0.0
    %5316 = vmatprep.subr.mxu0 0.0
    %5317 = vmatpush1.msra.mxu0 0.0
    %5318 = vmatprep.subr.mxu0 0.0
    %5319 = vmatpush1.msra.mxu0 0.0
    %5320 = vmatprep.subr.mxu0 0.0
    %5321 = vmatpush1.msra.mxu0 0.0
    %5322 = vmatprep.subr.mxu0 0.0
    %5323 = vmatpush1.msra.mxu0 0.0
    %5324 = vmatprep.subr.mxu0 0.0
    %5325 = vmatpush1.msra.mxu0 0.0
    %5326 = vmatprep.subr.mxu0 0.0
    %5327 = vmatpush1.msra.mxu0 0.0
    %5328 = vmatprep.subr.mxu0 0.0
    %5329 = vmatpush1.msra.mxu0 0.0
    %5330 = vmatprep.subr.mxu0 0.0
    %5331 = vmatpush1.msra.mxu0 0.0
    %5332 = vmatprep.subr.mxu0 0.0
    %5333 = vmatpush1.msra.mxu0 0.0
    %5334 = vmatprep.subr.mxu0 0.0
    %5335 = vmatpush1.msra.mxu0 0.0
    %5336 = vmatprep.subr.mxu0 0.0
    %5337 = vmatpush1.msra.mxu0 0.0
    %5338 = vmatprep.subr.mxu0 0.0
    %5339 = vmatpush1.msra.mxu0 0.0
    %5340 = vmatprep.subr.mxu0 0.0
    %5341 = vmatpush1.msra.mxu0 0.0
    %5342 = vmatprep.subr.mxu0 0.0
    %5343 = vmatpush1.msra.mxu0 0.0
    %5344 = vmatprep.subr.mxu0 0.0
    %5345 = vmatpush1.msra.mxu0 0.0
    %5346 = vmatprep.subr.mxu0 0.0
    %5347 = vmatpush1.msra.mxu0 0.0
    %5348 = vmatprep.subr.mxu0 0.0
    %5349 = vmatpush1.msra.mxu0 0.0
    %5350 = vmatprep.subr.mxu0 0.0
    %5351 = vmatpush1.msra.mxu0 0.0
    %5352 = vmatprep.subr.mxu0 0.0
    %5353 = vmatpush1.msra.mxu0 0.0
    %5354 = vmatprep.subr.mxu0 0.0
    %5355 = vmatpush1.msra.mxu0 0.0
    %5356 = vmatprep.subr.mxu0 0.0
    %5357 = vmatpush1.msra.mxu0 0.0
    %5358 = vmatprep.subr.mxu0 0.0
    %5359 = vmatpush1.msra.mxu0 0.0
    %5360 = vmatprep.subr.mxu0 0.0
    %5361 = vmatpush1.msra.mxu0 0.0
    %5362 = vmatprep.mubr.f32.mxu0 0.0
    %5363 = vmatmul.mubr.f32.gmra.mrb[0].mxu0 %v5275
    %v5364 = vpop.f32.mrb[0].mxu0
    %v5365 = vadd.f32 0.0, %v5364
    %v5366 = vpop.f32.mrb[0].mxu0
    %5367 = vmatprep.mubr.f32.mxu0 0.0
    %5368 = vmatmul.mubr.f32.gmra.mrb[0].mxu0 %v5278
    %v5369 = vpop.f32.mrb[0].mxu0
    %v5370 = vadd.f32 0.0, %v5369
    %v5371 = vpop.f32.mrb[0].mxu0
    %5372 = vmatprep.mubr.f32.mxu0 0.0
    %5373 = vmatmul.mubr.f32.gmra.mrb[0].mxu0 %v5281
    %v5374 = vpop.f32.mrb[0].mxu0
    %v5375 = vadd.f32 0.0, %v5374
    %v5376 = vpop.f32.mrb[0].mxu0
    %5377 = vmatprep.mubr.f32.mxu0 0.0
    %5378 = vmatmul.mubr.f32.gmra.mrb[0].mxu0 %v5284
    %v5379 = vpop.f32.mrb[0].mxu0
    %v5380 = vadd.f32 0.0, %v5379
    %v5381 = vpop.f32.mrb[0].mxu0
    %5382 = vmatprep.mubr.f32.mxu0 0.0
    %5383 = vmatmul.mubr.f32.gmra.mrb[0].mxu0 %v5287
    %v5384 = vpop.f32.mrb[0].mxu0
    %v5385 = vadd.f32 0.0, %v5384
    %v5386 = vpop.f32.mrb[0].mxu0
    %5387 = vmatprep.mubr.f32.mxu0 0.0
    %5388 = vmatmul.mubr.f32.gmra.mrb[0].mxu0 %v5290
    %v5389 = vpop.f32.mrb[0].mxu0
    %v5390 = vadd.f32 0.0, %v5389
    %v5391 = vpop.f32.mrb[0].mxu0
    %5392 = vmatprep.mubr.f32.mxu0 0.0
    %5393 = vmatmul.mubr.f32.gmra.mrb[0].mxu0 %v5293
    %v5394 = vpop.f32.mrb[0].mxu0
    %v5395 = vadd.f32 0.0, %v5394
    %v5396 = vpop.f32.mrb[0].mxu0
    %5397 = vmatprep.mubr.f32.mxu0 0.0
    %5398 = vmatmul.mubr.f32.gmra.mrb[0].mxu0 %v5296
    %v5399 = vpop.f32.mrb[0].mxu0
    %v5400 = vadd.f32 0.0, %v5399
    %v5401 = vpop.f32.mrb[0].mxu0
    %5402 = vdwg.mxu0
    %5411 = vrot.lane.b32.xlu0 %v5365, 48
    %v5412 = vpop.permute.xlu0 %5411
    %5413 = vrot.lane.b32.xlu0 %v5370, 48
    %v5414 = vpop.permute.xlu0 %5413
    %5415 = vrot.lane.b32.xlu0 %v5375, 48
    %v5416 = vpop.permute.xlu0 %5415
    %5417 = vrot.lane.b32.xlu0 %v5380, 48
    %v5418 = vpop.permute.xlu0 %5417
    %5419 = vrot.lane.b32.xlu0 %v5385, 48
    %v5420 = vpop.permute.xlu0 %5419
    %5421 = vrot.lane.b32.xlu0 %v5390, 48
    %v5422 = vpop.permute.xlu0 %5421
    %5423 = vrot.lane.b32.xlu0 %v5395, 48
    %v5424 = vpop.permute.xlu0 %5423
    %5425 = vrot.lane.b32.xlu0 %v5400, 48
    %v5426 = vpop.permute.xlu0 %5425
    %5435 = vst.msk [vmem:[#allocation3] sm:$0xff] %vm3447, %v5412
    %5436 = vst.msk [vmem:[#allocation3 + $0x8] sm:$0xff] %vm3447, %v5414
    %5437 = vst.msk [vmem:[#allocation3 + $0x10] sm:$0xff] %vm3447, %v5416
    %5438 = vst.msk [vmem:[#allocation3 + $0x18] sm:$0xff] %vm3447, %v5418
    %5439 = vst.msk [vmem:[#allocation3 + $0x20] sm:$0xff] %vm3447, %v5420
    %5440 = vst.msk [vmem:[#allocation3 + $0x28] sm:$0xff] %vm3447, %v5422
    %5441 = vst.msk [vmem:[#allocation3 + $0x30] sm:$0xff] %vm3447, %v5424
    %5442 = vst.msk [vmem:[#allocation3 + $0x38] sm:$0xff] %vm3447, %v5426
    %v5443 = vld [vmem:[#allocation3] sm:$0xff]
    %v5444 = vld [vmem:[#allocation3 + $0x8] sm:$0xff]
    %v5445 = vld [vmem:[#allocation3 + $0x10] sm:$0xff]
    %v5446 = vld [vmem:[#allocation3 + $0x18] sm:$0xff]
    %v5447 = vld [vmem:[#allocation3 + $0x20] sm:$0xff]
    %v5448 = vld [vmem:[#allocation3 + $0x28] sm:$0xff]
    %v5449 = vld [vmem:[#allocation3 + $0x30] sm:$0xff]
    %v5450 = vld [vmem:[#allocation3 + $0x38] sm:$0xff]
    %v5451 = vlaneseq
    %v5452 = vshrl.u32 %v5451, 7
    %v5453 = vsub.s32 0, %v5452
    %v5454 = vrot.slane %v3518, %v5453
    %v5456 = vsel %vm450, %v5443, 0
    %v5459 = vsel %vm450, %v5444, 0
    %v5462 = vsel %vm450, %v5445, 0
    %v5465 = vsel %vm450, %v5446, 0
    %v5468 = vsel %vm450, %v5447, 0
    %v5471 = vsel %vm450, %v5448, 0
    %v5474 = vsel %vm450, %v5449, 0
    %v5477 = vsel %vm450, %v5450, 0
    %5479 = vmatprep.subr.mxu0 0.0
    %5480 = vmatpush1.msra.mxu0 %v3510
    %5481 = vmatprep.subr.mxu0 0.0
    %5482 = vmatpush1.msra.mxu0 %v3511
    %5483 = vmatprep.subr.mxu0 0.0
    %5484 = vmatpush1.msra.mxu0 %v3512
    %5485 = vmatprep.subr.mxu0 0.0
    %5486 = vmatpush1.msra.mxu0 %v3513
    %5487 = vmatprep.subr.mxu0 0.0
    %5488 = vmatpush1.msra.mxu0 %v3514
    %5489 = vmatprep.subr.mxu0 0.0
    %5490 = vmatpush1.msra.mxu0 %v3515
    %5491 = vmatprep.subr.mxu0 0.0
    %5492 = vmatpush1.msra.mxu0 %v3516
    %5493 = vmatprep.subr.mxu0 0.0
    %5494 = vmatpush1.msra.mxu0 %v3517
    %5495 = vmatprep.subr.mxu0 0.0
    %5496 = vmatpush1.msra.mxu0 0.0
    %5497 = vmatprep.subr.mxu0 0.0
    %5498 = vmatpush1.msra.mxu0 0.0
    %5499 = vmatprep.subr.mxu0 0.0
    %5500 = vmatpush1.msra.mxu0 0.0
    %5501 = vmatprep.subr.mxu0 0.0
    %5502 = vmatpush1.msra.mxu0 0.0
    %5503 = vmatprep.subr.mxu0 0.0
    %5504 = vmatpush1.msra.mxu0 0.0
    %5505 = vmatprep.subr.mxu0 0.0
    %5506 = vmatpush1.msra.mxu0 0.0
    %5507 = vmatprep.subr.mxu0 0.0
    %5508 = vmatpush1.msra.mxu0 0.0
    %5509 = vmatprep.subr.mxu0 0.0
    %5510 = vmatpush1.msra.mxu0 0.0
    %5511 = vmatprep.subr.mxu0 0.0
    %5512 = vmatpush1.msra.mxu0 0.0
    %5513 = vmatprep.subr.mxu0 0.0
    %5514 = vmatpush1.msra.mxu0 0.0
    %5515 = vmatprep.subr.mxu0 0.0
    %5516 = vmatpush1.msra.mxu0 0.0
    %5517 = vmatprep.subr.mxu0 0.0
    %5518 = vmatpush1.msra.mxu0 0.0
    %5519 = vmatprep.subr.mxu0 0.0
    %5520 = vmatpush1.msra.mxu0 0.0
    %5521 = vmatprep.subr.mxu0 0.0
    %5522 = vmatpush1.msra.mxu0 0.0
    %5523 = vmatprep.subr.mxu0 0.0
    %5524 = vmatpush1.msra.mxu0 0.0
    %5525 = vmatprep.subr.mxu0 0.0
    %5526 = vmatpush1.msra.mxu0 0.0
    %5527 = vmatprep.subr.mxu0 0.0
    %5528 = vmatpush1.msra.mxu0 0.0
    %5529 = vmatprep.subr.mxu0 0.0
    %5530 = vmatpush1.msra.mxu0 0.0
    %5531 = vmatprep.subr.mxu0 0.0
    %5532 = vmatpush1.msra.mxu0 0.0
    %5533 = vmatprep.subr.mxu0 0.0
    %5534 = vmatpush1.msra.mxu0 0.0
    %5535 = vmatprep.subr.mxu0 0.0
    %5536 = vmatpush1.msra.mxu0 0.0
    %5537 = vmatprep.subr.mxu0 0.0
    %5538 = vmatpush1.msra.mxu0 0.0
    %5539 = vmatprep.subr.mxu0 0.0
    %5540 = vmatpush1.msra.mxu0 0.0
    %5541 = vmatprep.subr.mxu0 0.0
    %5542 = vmatpush1.msra.mxu0 0.0
    %5543 = vmatprep.mubr.f32.mxu0 0.0
    %5544 = vmatmul.mubr.f32.gmra.mrb[0].mxu0 %v5456
    %v5545 = vpop.f32.mrb[0].mxu0
    %v5546 = vadd.f32 %v5454, %v5545
    %v5547 = vpop.f32.mrb[0].mxu0
    %5548 = vmatprep.mubr.f32.mxu0 0.0
    %5549 = vmatmul.mubr.f32.gmra.mrb[0].mxu0 %v5459
    %v5550 = vpop.f32.mrb[0].mxu0
    %v5551 = vadd.f32 %v5454, %v5550
    %v5552 = vpop.f32.mrb[0].mxu0
    %5553 = vmatprep.mubr.f32.mxu0 0.0
    %5554 = vmatmul.mubr.f32.gmra.mrb[0].mxu0 %v5462
    %v5555 = vpop.f32.mrb[0].mxu0
    %v5556 = vadd.f32 %v5454, %v5555
    %v5557 = vpop.f32.mrb[0].mxu0
    %5558 = vmatprep.mubr.f32.mxu0 0.0
    %5559 = vmatmul.mubr.f32.gmra.mrb[0].mxu0 %v5465
    %v5560 = vpop.f32.mrb[0].mxu0
    %v5561 = vadd.f32 %v5454, %v5560
    %v5562 = vpop.f32.mrb[0].mxu0
    %5563 = vmatprep.mubr.f32.mxu0 0.0
    %5564 = vmatmul.mubr.f32.gmra.mrb[0].mxu0 %v5468
    %v5565 = vpop.f32.mrb[0].mxu0
    %v5566 = vadd.f32 %v5454, %v5565
    %v5567 = vpop.f32.mrb[0].mxu0
    %5568 = vmatprep.mubr.f32.mxu0 0.0
    %5569 = vmatmul.mubr.f32.gmra.mrb[0].mxu0 %v5471
    %v5570 = vpop.f32.mrb[0].mxu0
    %v5571 = vadd.f32 %v5454, %v5570
    %v5572 = vpop.f32.mrb[0].mxu0
    %5573 = vmatprep.mubr.f32.mxu0 0.0
    %5574 = vmatmul.mubr.f32.gmra.mrb[0].mxu0 %v5474
    %v5575 = vpop.f32.mrb[0].mxu0
    %v5576 = vadd.f32 %v5454, %v5575
    %v5577 = vpop.f32.mrb[0].mxu0
    %5578 = vmatprep.mubr.f32.mxu0 0.0
    %5579 = vmatmul.mubr.f32.gmra.mrb[0].mxu0 %v5477
    %v5580 = vpop.f32.mrb[0].mxu0
    %v5581 = vadd.f32 %v5454, %v5580
    %v5582 = vpop.f32.mrb[0].mxu0
    %5583 = vdwg.mxu0
    %v5584 = vadd.f32 %v3484, %v5546
    %v5585 = vadd.f32 %v3485, %v5551
    %v5586 = vadd.f32 %v3486, %v5556
    %v5587 = vadd.f32 %v3487, %v5561
    %v5588 = vadd.f32 %v3488, %v5566
    %v5589 = vadd.f32 %v3489, %v5571
    %v5590 = vadd.f32 %v3490, %v5576
    %v5591 = vadd.f32 %v3491, %v5581
    %v5592 = vld [vmem:[%s5 + $0x1e1] sm:$0x1]
    %v5593 = vld [vmem:[%s5 + $0x1e2] sm:$0x1]
    %v5594 = vsel %vm450, %v5584, 0.0
    %5595 = vadd.xlane.f32.xlu0 %v5594
    %v5596 = vpop.xlane.xlu0 %5595
    %v5597 = vsel %vm450, %v5585, 0.0
    %5598 = vadd.xlane.f32.xlu0 %v5597
    %v5599 = vpop.xlane.xlu0 %5598
    %v5600 = vsel %vm450, %v5586, 0.0
    %5601 = vadd.xlane.f32.xlu0 %v5600
    %v5602 = vpop.xlane.xlu0 %5601
    %v5603 = vsel %vm450, %v5587, 0.0
    %5604 = vadd.xlane.f32.xlu0 %v5603
    %v5605 = vpop.xlane.xlu0 %5604
    %v5606 = vsel %vm450, %v5588, 0.0
    %5607 = vadd.xlane.f32.xlu0 %v5606
    %v5608 = vpop.xlane.xlu0 %5607
    %v5609 = vsel %vm450, %v5589, 0.0
    %5610 = vadd.xlane.f32.xlu0 %v5609
    %v5611 = vpop.xlane.xlu0 %5610
    %v5612 = vsel %vm450, %v5590, 0.0
    %5613 = vadd.xlane.f32.xlu0 %v5612
    %v5614 = vpop.xlane.xlu0 %5613
    %v5615 = vsel %vm450, %v5591, 0.0
    %5616 = vadd.xlane.f32.xlu0 %v5615
    %v5617 = vpop.xlane.xlu0 %5616
    %v5618 = vrcp.pop 64.0
    %v5619 = vmul.f32 %v5596, %v5618
    %v5620 = vmul.f32 %v5599, %v5618
    %v5621 = vmul.f32 %v5602, %v5618
    %v5622 = vmul.f32 %v5605, %v5618
    %v5623 = vmul.f32 %v5608, %v5618
    %v5624 = vmul.f32 %v5611, %v5618
    %v5625 = vmul.f32 %v5614, %v5618
    %v5626 = vmul.f32 %v5617, %v5618
    %v5627 = vsub.f32 %v5584, %v5619
    %v5628 = vsub.f32 %v5585, %v5620
    %v5629 = vsub.f32 %v5586, %v5621
    %v5630 = vsub.f32 %v5587, %v5622
    %v5631 = vsub.f32 %v5588, %v5623
    %v5632 = vsub.f32 %v5589, %v5624
    %v5633 = vsub.f32 %v5590, %v5625
    %v5634 = vsub.f32 %v5591, %v5626
    %v5635 = vmul.f32 %v5627, %v5627
    %v5636 = vmul.f32 %v5628, %v5628
    %v5637 = vmul.f32 %v5629, %v5629
    %v5638 = vmul.f32 %v5630, %v5630
    %v5639 = vmul.f32 %v5631, %v5631
    %v5640 = vmul.f32 %v5632, %v5632
    %v5641 = vmul.f32 %v5633, %v5633
    %v5642 = vmul.f32 %v5634, %v5634
    %v5643 = vsel %vm450, %v5635, 0.0
    %5644 = vadd.xlane.f32.xlu0 %v5643
    %v5645 = vpop.xlane.xlu0 %5644
    %v5646 = vsel %vm450, %v5636, 0.0
    %5647 = vadd.xlane.f32.xlu0 %v5646
    %v5648 = vpop.xlane.xlu0 %5647
    %v5649 = vsel %vm450, %v5637, 0.0
    %5650 = vadd.xlane.f32.xlu0 %v5649
    %v5651 = vpop.xlane.xlu0 %5650
    %v5652 = vsel %vm450, %v5638, 0.0
    %5653 = vadd.xlane.f32.xlu0 %v5652
    %v5654 = vpop.xlane.xlu0 %5653
    %v5655 = vsel %vm450, %v5639, 0.0
    %5656 = vadd.xlane.f32.xlu0 %v5655
    %v5657 = vpop.xlane.xlu0 %5656
    %v5658 = vsel %vm450, %v5640, 0.0
    %5659 = vadd.xlane.f32.xlu0 %v5658
    %v5660 = vpop.xlane.xlu0 %5659
    %v5661 = vsel %vm450, %v5641, 0.0
    %5662 = vadd.xlane.f32.xlu0 %v5661
    %v5663 = vpop.xlane.xlu0 %5662
    %v5664 = vsel %vm450, %v5642, 0.0
    %5665 = vadd.xlane.f32.xlu0 %v5664
    %v5666 = vpop.xlane.xlu0 %5665
    %v5667 = vmul.f32 %v5645, %v5618
    %v5668 = vmul.f32 %v5648, %v5618
    %v5669 = vmul.f32 %v5651, %v5618
    %v5670 = vmul.f32 %v5654, %v5618
    %v5671 = vmul.f32 %v5657, %v5618
    %v5672 = vmul.f32 %v5660, %v5618
    %v5673 = vmul.f32 %v5663, %v5618
    %v5674 = vmul.f32 %v5666, %v5618
    %v5675 = vadd.f32 %v5667, 1e-05
    %v5676 = vadd.f32 %v5668, 1e-05
    %v5677 = vadd.f32 %v5669, 1e-05
    %v5678 = vadd.f32 %v5670, 1e-05
    %v5679 = vadd.f32 %v5671, 1e-05
    %v5680 = vadd.f32 %v5672, 1e-05
    %v5681 = vadd.f32 %v5673, 1e-05
    %v5682 = vadd.f32 %v5674, 1e-05
    %v5683 = vrsqrt.pop %v5675
    %v5684 = vrsqrt.pop %v5676
    %v5685 = vrsqrt.pop %v5677
    %v5686 = vrsqrt.pop %v5678
    %v5687 = vrsqrt.pop %v5679
    %v5688 = vrsqrt.pop %v5680
    %v5689 = vrsqrt.pop %v5681
    %v5690 = vrsqrt.pop %v5682
    %v5691 = vmul.f32 %v5627, %v5683
    %v5692 = vmul.f32 %v5628, %v5684
    %v5693 = vmul.f32 %v5629, %v5685
    %v5694 = vmul.f32 %v5630, %v5686
    %v5695 = vmul.f32 %v5631, %v5687
    %v5696 = vmul.f32 %v5632, %v5688
    %v5697 = vmul.f32 %v5633, %v5689
    %v5698 = vmul.f32 %v5634, %v5690
    %v5699 = vlaneseq
    %v5700 = vshrl.u32 %v5699, 7
    %v5701 = vsub.s32 0, %v5700
    %v5702 = vrot.slane %v5592, %v5701
    %v5703 = vmul.f32 %v5691, %v5702
    %v5704 = vmul.f32 %v5692, %v5702
    %v5705 = vmul.f32 %v5693, %v5702
    %v5706 = vmul.f32 %v5694, %v5702
    %v5707 = vmul.f32 %v5695, %v5702
    %v5708 = vmul.f32 %v5696, %v5702
    %v5709 = vmul.f32 %v5697, %v5702
    %v5710 = vmul.f32 %v5698, %v5702
    %v5711 = vlaneseq
    %v5712 = vshrl.u32 %v5711, 7
    %v5713 = vsub.s32 0, %v5712
    %v5714 = vrot.slane %v5593, %v5713
    %v5715 = vadd.f32 %v5703, %v5714
    %v5716 = vadd.f32 %v5704, %v5714
    %v5717 = vadd.f32 %v5705, %v5714
    %v5718 = vadd.f32 %v5706, %v5714
    %v5719 = vadd.f32 %v5707, %v5714
    %v5720 = vadd.f32 %v5708, %v5714
    %v5721 = vadd.f32 %v5709, %v5714
    %v5722 = vadd.f32 %v5710, %v5714
    %v5723 = vld [vmem:[%s5 + $0x1e8] sm:$0xff]
    %v5724 = vld [vmem:[%s5 + $0x1f0] sm:$0xff]
    %v5725 = vld [vmem:[%s5 + $0x1f8] sm:$0xff]
    %v5726 = vld [vmem:[%s5 + $0x200] sm:$0xff]
    %v5727 = vld [vmem:[%s5 + $0x208] sm:$0xff]
    %v5728 = vld [vmem:[%s5 + $0x210] sm:$0xff]
    %v5729 = vld [vmem:[%s5 + $0x218] sm:$0xff]
    %v5730 = vld [vmem:[%s5 + $0x220] sm:$0xff]
    %v5731 = vld [vmem:[%s5 + $0x228] sm:$0x1]
    %v5732 = vld [vmem:[%s5 + $0x230] sm:$0xff]
    %v5733 = vld [vmem:[%s5 + $0x238] sm:$0xff]
    %v5734 = vld [vmem:[%s5 + $0x240] sm:$0xff]
    %v5735 = vld [vmem:[%s5 + $0x248] sm:$0xff]
    %v5736 = vld [vmem:[%s5 + $0x250] sm:$0x1]
    %v5737 = vlaneseq
    %v5738 = vshrl.u32 %v5737, 7
    %v5739 = vsub.s32 0, %v5738
    %v5740 = vrot.slane %v5731, %v5739
    %v5742 = vsel %vm450, %v5715, 0
    %v5745 = vsel %vm450, %v5716, 0
    %v5748 = vsel %vm450, %v5717, 0
    %v5751 = vsel %vm450, %v5718, 0
    %v5754 = vsel %vm450, %v5719, 0
    %v5757 = vsel %vm450, %v5720, 0
    %v5760 = vsel %vm450, %v5721, 0
    %v5763 = vsel %vm450, %v5722, 0
    %5765 = vmatprep.subr.mxu0 0.0
    %5766 = vmatpush1.msra.mxu0 %v5723
    %5767 = vmatprep.subr.mxu0 0.0
    %5768 = vmatpush1.msra.mxu0 %v5724
    %5769 = vmatprep.subr.mxu0 0.0
    %5770 = vmatpush1.msra.mxu0 %v5725
    %5771 = vmatprep.subr.mxu0 0.0
    %5772 = vmatpush1.msra.mxu0 %v5726
    %5773 = vmatprep.subr.mxu0 0.0
    %5774 = vmatpush1.msra.mxu0 %v5727
    %5775 = vmatprep.subr.mxu0 0.0
    %5776 = vmatpush1.msra.mxu0 %v5728
    %5777 = vmatprep.subr.mxu0 0.0
    %5778 = vmatpush1.msra.mxu0 %v5729
    %5779 = vmatprep.subr.mxu0 0.0
    %5780 = vmatpush1.msra.mxu0 %v5730
    %5781 = vmatprep.subr.mxu0 0.0
    %5782 = vmatpush1.msra.mxu0 0.0
    %5783 = vmatprep.subr.mxu0 0.0
    %5784 = vmatpush1.msra.mxu0 0.0
    %5785 = vmatprep.subr.mxu0 0.0
    %5786 = vmatpush1.msra.mxu0 0.0
    %5787 = vmatprep.subr.mxu0 0.0
    %5788 = vmatpush1.msra.mxu0 0.0
    %5789 = vmatprep.subr.mxu0 0.0
    %5790 = vmatpush1.msra.mxu0 0.0
    %5791 = vmatprep.subr.mxu0 0.0
    %5792 = vmatpush1.msra.mxu0 0.0
    %5793 = vmatprep.subr.mxu0 0.0
    %5794 = vmatpush1.msra.mxu0 0.0
    %5795 = vmatprep.subr.mxu0 0.0
    %5796 = vmatpush1.msra.mxu0 0.0
    %5797 = vmatprep.subr.mxu0 0.0
    %5798 = vmatpush1.msra.mxu0 0.0
    %5799 = vmatprep.subr.mxu0 0.0
    %5800 = vmatpush1.msra.mxu0 0.0
    %5801 = vmatprep.subr.mxu0 0.0
    %5802 = vmatpush1.msra.mxu0 0.0
    %5803 = vmatprep.subr.mxu0 0.0
    %5804 = vmatpush1.msra.mxu0 0.0
    %5805 = vmatprep.subr.mxu0 0.0
    %5806 = vmatpush1.msra.mxu0 0.0
    %5807 = vmatprep.subr.mxu0 0.0
    %5808 = vmatpush1.msra.mxu0 0.0
    %5809 = vmatprep.subr.mxu0 0.0
    %5810 = vmatpush1.msra.mxu0 0.0
    %5811 = vmatprep.subr.mxu0 0.0
    %5812 = vmatpush1.msra.mxu0 0.0
    %5813 = vmatprep.subr.mxu0 0.0
    %5814 = vmatpush1.msra.mxu0 0.0
    %5815 = vmatprep.subr.mxu0 0.0
    %5816 = vmatpush1.msra.mxu0 0.0
    %5817 = vmatprep.subr.mxu0 0.0
    %5818 = vmatpush1.msra.mxu0 0.0
    %5819 = vmatprep.subr.mxu0 0.0
    %5820 = vmatpush1.msra.mxu0 0.0
    %5821 = vmatprep.subr.mxu0 0.0
    %5822 = vmatpush1.msra.mxu0 0.0
    %5823 = vmatprep.subr.mxu0 0.0
    %5824 = vmatpush1.msra.mxu0 0.0
    %5825 = vmatprep.subr.mxu0 0.0
    %5826 = vmatpush1.msra.mxu0 0.0
    %5827 = vmatprep.subr.mxu0 0.0
    %5828 = vmatpush1.msra.mxu0 0.0
    %5829 = vmatprep.mubr.f32.mxu0 0.0
    %5830 = vmatmul.mubr.f32.gmra.mrb[0].mxu0 %v5742
    %v5831 = vpop.f32.mrb[0].mxu0
    %v5832 = vadd.f32 %v5740, %v5831
    %v5833 = vpop.f32.mrb[0].mxu0
    %5834 = vmatprep.mubr.f32.mxu0 0.0
    %5835 = vmatmul.mubr.f32.gmra.mrb[0].mxu0 %v5745
    %v5836 = vpop.f32.mrb[0].mxu0
    %v5837 = vadd.f32 %v5740, %v5836
    %v5838 = vpop.f32.mrb[0].mxu0
    %5839 = vmatprep.mubr.f32.mxu0 0.0
    %5840 = vmatmul.mubr.f32.gmra.mrb[0].mxu0 %v5748
    %v5841 = vpop.f32.mrb[0].mxu0
    %v5842 = vadd.f32 %v5740, %v5841
    %v5843 = vpop.f32.mrb[0].mxu0
    %5844 = vmatprep.mubr.f32.mxu0 0.0
    %5845 = vmatmul.mubr.f32.gmra.mrb[0].mxu0 %v5751
    %v5846 = vpop.f32.mrb[0].mxu0
    %v5847 = vadd.f32 %v5740, %v5846
    %v5848 = vpop.f32.mrb[0].mxu0
    %5849 = vmatprep.mubr.f32.mxu0 0.0
    %5850 = vmatmul.mubr.f32.gmra.mrb[0].mxu0 %v5754
    %v5851 = vpop.f32.mrb[0].mxu0
    %v5852 = vadd.f32 %v5740, %v5851
    %v5853 = vpop.f32.mrb[0].mxu0
    %5854 = vmatprep.mubr.f32.mxu0 0.0
    %5855 = vmatmul.mubr.f32.gmra.mrb[0].mxu0 %v5757
    %v5856 = vpop.f32.mrb[0].mxu0
    %v5857 = vadd.f32 %v5740, %v5856
    %v5858 = vpop.f32.mrb[0].mxu0
    %5859 = vmatprep.mubr.f32.mxu0 0.0
    %5860 = vmatmul.mubr.f32.gmra.mrb[0].mxu0 %v5760
    %v5861 = vpop.f32.mrb[0].mxu0
    %v5862 = vadd.f32 %v5740, %v5861
    %v5863 = vpop.f32.mrb[0].mxu0
    %5864 = vmatprep.mubr.f32.mxu0 0.0
    %5865 = vmatmul.mubr.f32.gmra.mrb[0].mxu0 %v5763
    %v5866 = vpop.f32.mrb[0].mxu0
    %v5867 = vadd.f32 %v5740, %v5866
    %v5868 = vpop.f32.mrb[0].mxu0
    %5869 = vdwg.mxu0
    %v5870 = vmax.f32 %v5832, 0.0
    %v5871 = vmax.f32 %v5837, 0.0
    %v5872 = vmax.f32 %v5842, 0.0
    %v5873 = vmax.f32 %v5847, 0.0
    %v5874 = vmax.f32 %v5852, 0.0
    %v5875 = vmax.f32 %v5857, 0.0
    %v5876 = vmax.f32 %v5862, 0.0
    %v5877 = vmax.f32 %v5867, 0.0
    %v5878 = vlaneseq
    %v5879 = vshrl.u32 %v5878, 7
    %v5880 = vsub.s32 0, %v5879
    %v5881 = vrot.slane %v5736, %v5880
    %vm5882 = vcmask 261120
    %v5884 = vsel %vm5882, %v5870, 0
    %v5887 = vsel %vm5882, %v5871, 0
    %v5890 = vsel %vm5882, %v5872, 0
    %v5893 = vsel %vm5882, %v5873, 0
    %v5896 = vsel %vm5882, %v5874, 0
    %v5899 = vsel %vm5882, %v5875, 0
    %v5902 = vsel %vm5882, %v5876, 0
    %v5905 = vsel %vm5882, %v5877, 0
    %5907 = vmatprep.subr.mxu0 0.0
    %5908 = vmatpush1.msra.mxu0 %v5732
    %5909 = vmatprep.subr.mxu0 0.0
    %5910 = vmatpush1.msra.mxu0 %v5733
    %5911 = vmatprep.subr.mxu0 0.0
    %5912 = vmatpush1.msra.mxu0 %v5734
    %5913 = vmatprep.subr.mxu0 0.0
    %5914 = vmatpush1.msra.mxu0 %v5735
    %5915 = vmatprep.subr.mxu0 0.0
    %5916 = vmatpush1.msra.mxu0 0.0
    %5917 = vmatprep.subr.mxu0 0.0
    %5918 = vmatpush1.msra.mxu0 0.0
    %5919 = vmatprep.subr.mxu0 0.0
    %5920 = vmatpush1.msra.mxu0 0.0
    %5921 = vmatprep.subr.mxu0 0.0
    %5922 = vmatpush1.msra.mxu0 0.0
    %5923 = vmatprep.subr.mxu0 0.0
    %5924 = vmatpush1.msra.mxu0 0.0
    %5925 = vmatprep.subr.mxu0 0.0
    %5926 = vmatpush1.msra.mxu0 0.0
    %5927 = vmatprep.subr.mxu0 0.0
    %5928 = vmatpush1.msra.mxu0 0.0
    %5929 = vmatprep.subr.mxu0 0.0
    %5930 = vmatpush1.msra.mxu0 0.0
    %5931 = vmatprep.subr.mxu0 0.0
    %5932 = vmatpush1.msra.mxu0 0.0
    %5933 = vmatprep.subr.mxu0 0.0
    %5934 = vmatpush1.msra.mxu0 0.0
    %5935 = vmatprep.subr.mxu0 0.0
    %5936 = vmatpush1.msra.mxu0 0.0
    %5937 = vmatprep.subr.mxu0 0.0
    %5938 = vmatpush1.msra.mxu0 0.0
    %5939 = vmatprep.subr.mxu0 0.0
    %5940 = vmatpush1.msra.mxu0 0.0
    %5941 = vmatprep.subr.mxu0 0.0
    %5942 = vmatpush1.msra.mxu0 0.0
    %5943 = vmatprep.subr.mxu0 0.0
    %5944 = vmatpush1.msra.mxu0 0.0
    %5945 = vmatprep.subr.mxu0 0.0
    %5946 = vmatpush1.msra.mxu0 0.0
    %5947 = vmatprep.subr.mxu0 0.0
    %5948 = vmatpush1.msra.mxu0 0.0
    %5949 = vmatprep.subr.mxu0 0.0
    %5950 = vmatpush1.msra.mxu0 0.0
    %5951 = vmatprep.subr.mxu0 0.0
    %5952 = vmatpush1.msra.mxu0 0.0
    %5953 = vmatprep.subr.mxu0 0.0
    %5954 = vmatpush1.msra.mxu0 0.0
    %5955 = vmatprep.subr.mxu0 0.0
    %5956 = vmatpush1.msra.mxu0 0.0
    %5957 = vmatprep.subr.mxu0 0.0
    %5958 = vmatpush1.msra.mxu0 0.0
    %5959 = vmatprep.subr.mxu0 0.0
    %5960 = vmatpush1.msra.mxu0 0.0
    %5961 = vmatprep.subr.mxu0 0.0
    %5962 = vmatpush1.msra.mxu0 0.0
    %5963 = vmatprep.subr.mxu0 0.0
    %5964 = vmatpush1.msra.mxu0 0.0
    %5965 = vmatprep.subr.mxu0 0.0
    %5966 = vmatpush1.msra.mxu0 0.0
    %5967 = vmatprep.subr.mxu0 0.0
    %5968 = vmatpush1.msra.mxu0 0.0
    %5969 = vmatprep.subr.mxu0 0.0
    %5970 = vmatpush1.msra.mxu0 0.0
    %5971 = vmatprep.mubr.f32.mxu0 0.0
    %5972 = vmatmul.mubr.f32.gmra.mrb[0].mxu0 %v5884
    %v5973 = vpop.f32.mrb[0].mxu0
    %v5974 = vadd.f32 %v5881, %v5973
    %v5975 = vpop.f32.mrb[0].mxu0
    %5976 = vmatprep.mubr.f32.mxu0 0.0
    %5977 = vmatmul.mubr.f32.gmra.mrb[0].mxu0 %v5887
    %v5978 = vpop.f32.mrb[0].mxu0
    %v5979 = vadd.f32 %v5881, %v5978
    %v5980 = vpop.f32.mrb[0].mxu0
    %5981 = vmatprep.mubr.f32.mxu0 0.0
    %5982 = vmatmul.mubr.f32.gmra.mrb[0].mxu0 %v5890
    %v5983 = vpop.f32.mrb[0].mxu0
    %v5984 = vadd.f32 %v5881, %v5983
    %v5985 = vpop.f32.mrb[0].mxu0
    %5986 = vmatprep.mubr.f32.mxu0 0.0
    %5987 = vmatmul.mubr.f32.gmra.mrb[0].mxu0 %v5893
    %v5988 = vpop.f32.mrb[0].mxu0
    %v5989 = vadd.f32 %v5881, %v5988
    %v5990 = vpop.f32.mrb[0].mxu0
    %5991 = vmatprep.mubr.f32.mxu0 0.0
    %5992 = vmatmul.mubr.f32.gmra.mrb[0].mxu0 %v5896
    %v5993 = vpop.f32.mrb[0].mxu0
    %v5994 = vadd.f32 %v5881, %v5993
    %v5995 = vpop.f32.mrb[0].mxu0
    %5996 = vmatprep.mubr.f32.mxu0 0.0
    %5997 = vmatmul.mubr.f32.gmra.mrb[0].mxu0 %v5899
    %v5998 = vpop.f32.mrb[0].mxu0
    %v5999 = vadd.f32 %v5881, %v5998
    %v6000 = vpop.f32.mrb[0].mxu0
    %6001 = vmatprep.mubr.f32.mxu0 0.0
    %6002 = vmatmul.mubr.f32.gmra.mrb[0].mxu0 %v5902
    %v6003 = vpop.f32.mrb[0].mxu0
    %v6004 = vadd.f32 %v5881, %v6003
    %v6005 = vpop.f32.mrb[0].mxu0
    %6006 = vmatprep.mubr.f32.mxu0 0.0
    %6007 = vmatmul.mubr.f32.gmra.mrb[0].mxu0 %v5905
    %v6008 = vpop.f32.mrb[0].mxu0
    %v6009 = vadd.f32 %v5881, %v6008
    %v6010 = vpop.f32.mrb[0].mxu0
    %6011 = vdwg.mxu0
    %v6012 = vadd.f32 %v5715, %v5974
    %v6013 = vadd.f32 %v5716, %v5979
    %v6014 = vadd.f32 %v5717, %v5984
    %v6015 = vadd.f32 %v5718, %v5989
    %v6016 = vadd.f32 %v5719, %v5994
    %v6017 = vadd.f32 %v5720, %v5999
    %v6018 = vadd.f32 %v5721, %v6004
    %v6019 = vadd.f32 %v5722, %v6009
    %v6020 = vld [vmem:[%s5 + $0x1e3] sm:$0x1]
    %v6021 = vld [vmem:[%s5 + $0x1e4] sm:$0x1]
    %v6022 = vsel %vm450, %v6012, 0.0
    %6023 = vadd.xlane.f32.xlu0 %v6022
    %v6024 = vpop.xlane.xlu0 %6023
    %v6025 = vsel %vm450, %v6013, 0.0
    %6026 = vadd.xlane.f32.xlu0 %v6025
    %v6027 = vpop.xlane.xlu0 %6026
    %v6028 = vsel %vm450, %v6014, 0.0
    %6029 = vadd.xlane.f32.xlu0 %v6028
    %v6030 = vpop.xlane.xlu0 %6029
    %v6031 = vsel %vm450, %v6015, 0.0
    %6032 = vadd.xlane.f32.xlu0 %v6031
    %v6033 = vpop.xlane.xlu0 %6032
    %v6034 = vsel %vm450, %v6016, 0.0
    %6035 = vadd.xlane.f32.xlu0 %v6034
    %v6036 = vpop.xlane.xlu0 %6035
    %v6037 = vsel %vm450, %v6017, 0.0
    %6038 = vadd.xlane.f32.xlu0 %v6037
    %v6039 = vpop.xlane.xlu0 %6038
    %v6040 = vsel %vm450, %v6018, 0.0
    %6041 = vadd.xlane.f32.xlu0 %v6040
    %v6042 = vpop.xlane.xlu0 %6041
    %v6043 = vsel %vm450, %v6019, 0.0
    %6044 = vadd.xlane.f32.xlu0 %v6043
    %v6045 = vpop.xlane.xlu0 %6044
    %v6046 = vmul.f32 %v6024, %v5618
    %v6047 = vmul.f32 %v6027, %v5618
    %v6048 = vmul.f32 %v6030, %v5618
    %v6049 = vmul.f32 %v6033, %v5618
    %v6050 = vmul.f32 %v6036, %v5618
    %v6051 = vmul.f32 %v6039, %v5618
    %v6052 = vmul.f32 %v6042, %v5618
    %v6053 = vmul.f32 %v6045, %v5618
    %v6054 = vsub.f32 %v6012, %v6046
    %v6055 = vsub.f32 %v6013, %v6047
    %v6056 = vsub.f32 %v6014, %v6048
    %v6057 = vsub.f32 %v6015, %v6049
    %v6058 = vsub.f32 %v6016, %v6050
    %v6059 = vsub.f32 %v6017, %v6051
    %v6060 = vsub.f32 %v6018, %v6052
    %v6061 = vsub.f32 %v6019, %v6053
    %v6062 = vmul.f32 %v6054, %v6054
    %v6063 = vmul.f32 %v6055, %v6055
    %v6064 = vmul.f32 %v6056, %v6056
    %v6065 = vmul.f32 %v6057, %v6057
    %v6066 = vmul.f32 %v6058, %v6058
    %v6067 = vmul.f32 %v6059, %v6059
    %v6068 = vmul.f32 %v6060, %v6060
    %v6069 = vmul.f32 %v6061, %v6061
    %v6070 = vsel %vm450, %v6062, 0.0
    %6071 = vadd.xlane.f32.xlu0 %v6070
    %v6072 = vpop.xlane.xlu0 %6071
    %v6073 = vsel %vm450, %v6063, 0.0
    %6074 = vadd.xlane.f32.xlu0 %v6073
    %v6075 = vpop.xlane.xlu0 %6074
    %v6076 = vsel %vm450, %v6064, 0.0
    %6077 = vadd.xlane.f32.xlu0 %v6076
    %v6078 = vpop.xlane.xlu0 %6077
    %v6079 = vsel %vm450, %v6065, 0.0
    %6080 = vadd.xlane.f32.xlu0 %v6079
    %v6081 = vpop.xlane.xlu0 %6080
    %v6082 = vsel %vm450, %v6066, 0.0
    %6083 = vadd.xlane.f32.xlu0 %v6082
    %v6084 = vpop.xlane.xlu0 %6083
    %v6085 = vsel %vm450, %v6067, 0.0
    %6086 = vadd.xlane.f32.xlu0 %v6085
    %v6087 = vpop.xlane.xlu0 %6086
    %v6088 = vsel %vm450, %v6068, 0.0
    %6089 = vadd.xlane.f32.xlu0 %v6088
    %v6090 = vpop.xlane.xlu0 %6089
    %v6091 = vsel %vm450, %v6069, 0.0
    %6092 = vadd.xlane.f32.xlu0 %v6091
    %v6093 = vpop.xlane.xlu0 %6092
    %v6094 = vmul.f32 %v6072, %v5618
    %v6095 = vmul.f32 %v6075, %v5618
    %v6096 = vmul.f32 %v6078, %v5618
    %v6097 = vmul.f32 %v6081, %v5618
    %v6098 = vmul.f32 %v6084, %v5618
    %v6099 = vmul.f32 %v6087, %v5618
    %v6100 = vmul.f32 %v6090, %v5618
    %v6101 = vmul.f32 %v6093, %v5618
    %v6102 = vadd.f32 %v6094, 1e-05
    %v6103 = vadd.f32 %v6095, 1e-05
    %v6104 = vadd.f32 %v6096, 1e-05
    %v6105 = vadd.f32 %v6097, 1e-05
    %v6106 = vadd.f32 %v6098, 1e-05
    %v6107 = vadd.f32 %v6099, 1e-05
    %v6108 = vadd.f32 %v6100, 1e-05
    %v6109 = vadd.f32 %v6101, 1e-05
    %v6110 = vrsqrt.pop %v6102
    %v6111 = vrsqrt.pop %v6103
    %v6112 = vrsqrt.pop %v6104
    %v6113 = vrsqrt.pop %v6105
    %v6114 = vrsqrt.pop %v6106
    %v6115 = vrsqrt.pop %v6107
    %v6116 = vrsqrt.pop %v6108
    %v6117 = vrsqrt.pop %v6109
    %v6118 = vmul.f32 %v6054, %v6110
    %v6119 = vmul.f32 %v6055, %v6111
    %v6120 = vmul.f32 %v6056, %v6112
    %v6121 = vmul.f32 %v6057, %v6113
    %v6122 = vmul.f32 %v6058, %v6114
    %v6123 = vmul.f32 %v6059, %v6115
    %v6124 = vmul.f32 %v6060, %v6116
    %v6125 = vmul.f32 %v6061, %v6117
    %v6126 = vlaneseq
    %v6127 = vshrl.u32 %v6126, 7
    %v6128 = vsub.s32 0, %v6127
    %v6129 = vrot.slane %v6020, %v6128
    %v6130 = vmul.f32 %v6118, %v6129
    %v6131 = vmul.f32 %v6119, %v6129
    %v6132 = vmul.f32 %v6120, %v6129
    %v6133 = vmul.f32 %v6121, %v6129
    %v6134 = vmul.f32 %v6122, %v6129
    %v6135 = vmul.f32 %v6123, %v6129
    %v6136 = vmul.f32 %v6124, %v6129
    %v6137 = vmul.f32 %v6125, %v6129
    %v6138 = vlaneseq
    %v6139 = vshrl.u32 %v6138, 7
    %v6140 = vsub.s32 0, %v6139
    %v6141 = vrot.slane %v6021, %v6140
    %v6142 = vadd.f32 %v6130, %v6141
    %v6143 = vadd.f32 %v6131, %v6141
    %v6144 = vadd.f32 %v6132, %v6141
    %v6145 = vadd.f32 %v6133, %v6141
    %v6146 = vadd.f32 %v6134, %v6141
    %v6147 = vadd.f32 %v6135, %v6141
    %v6148 = vadd.f32 %v6136, %v6141
    %v6149 = vadd.f32 %v6137, %v6141
    %v6150 = vld [vmem:[%s4 + $0x90] sm:$0xff]
    %v6151 = vld [vmem:[%s4 + $0x98] sm:$0xff]
    %v6152 = vld [vmem:[%s4 + $0xa0] sm:$0xff]
    %v6153 = vld [vmem:[%s4 + $0xa8] sm:$0xff]
    %v6154 = vld [vmem:[%s4 + $0xb0] sm:$0xff]
    %v6155 = vld [vmem:[%s4 + $0xb8] sm:$0xff]
    %v6156 = vld [vmem:[%s4 + $0xc0] sm:$0xff]
    %v6157 = vld [vmem:[%s4 + $0xc8] sm:$0xff]
    %v6158 = vld [vmem:[%s4 + $0xd0] sm:$0xff]
    %v6159 = vld [vmem:[%s4 + $0xd8] sm:$0xff]
    %v6160 = vld [vmem:[%s4 + $0xe0] sm:$0xff]
    %v6161 = vld [vmem:[%s4 + $0xe8] sm:$0xff]
    %v6162 = vld [vmem:[%s4 + $0xf0] sm:$0xff]
    %v6163 = vld [vmem:[%s4 + $0xf8] sm:$0xff]
    %v6164 = vld [vmem:[%s4 + $0x100] sm:$0xff]
    %v6165 = vld [vmem:[%s4 + $0x108] sm:$0xff]
    %s6166 = scalar_lea.vmem %s4, 272
    %v6167 = vld [vmem:[%s6166] ss:$8 sm:$0x3]
    %v6168 = vld [vmem:[%s5 + $0x158] sm:$0xff]
    %v6169 = vld [vmem:[%s5 + $0x160] sm:$0xff]
    %v6170 = vld [vmem:[%s5 + $0x168] sm:$0xff]
    %v6171 = vld [vmem:[%s5 + $0x170] sm:$0xff]
    %v6172 = vld [vmem:[%s5 + $0x178] sm:$0xff]
    %v6173 = vld [vmem:[%s5 + $0x180] sm:$0xff]
    %v6174 = vld [vmem:[%s5 + $0x188] sm:$0xff]
    %v6175 = vld [vmem:[%s5 + $0x190] sm:$0xff]
    %v6176 = vld [vmem:[%s5 + $0x198] sm:$0x1]
    %v6178 = vlaneseq
    %v6179 = vshrl.u32 %v6178, 7
    %v6180 = vsub.s32 0, %v6179
    %v6181 = vrot.slane %v6167, %v6180
    %v6182 = vlaneseq
    %v6183 = vshrl.u32 %v6182, 7
    %v6184 = vsub.s32 1, %v6183
    %v6185 = vrot.slane %v6167, %v6184
    %6188 = vmatprep.subr.mxu0 %v6151
    %6189 = vmatpush1.msra.mxu0 %v6150
    %6190 = vmatprep.subr.mxu0 %v6153
    %6191 = vmatpush1.msra.mxu0 %v6152
    %6192 = vmatprep.subr.mxu0 %v6155
    %6193 = vmatpush1.msra.mxu0 %v6154
    %6194 = vmatprep.subr.mxu0 %v6157
    %6195 = vmatpush1.msra.mxu0 %v6156
    %6196 = vmatprep.subr.mxu0 %v6159
    %6197 = vmatpush1.msra.mxu0 %v6158
    %6198 = vmatprep.subr.mxu0 %v6161
    %6199 = vmatpush1.msra.mxu0 %v6160
    %6200 = vmatprep.subr.mxu0 %v6163
    %6201 = vmatpush1.msra.mxu0 %v6162
    %6202 = vmatprep.subr.mxu0 %v6165
    %6203 = vmatpush1.msra.mxu0 %v6164
    %6204 = vmatprep.subr.mxu0 0.0
    %6205 = vmatpush1.msra.mxu0 0.0
    %6206 = vmatprep.subr.mxu0 0.0
    %6207 = vmatpush1.msra.mxu0 0.0
    %6208 = vmatprep.subr.mxu0 0.0
    %6209 = vmatpush1.msra.mxu0 0.0
    %6210 = vmatprep.subr.mxu0 0.0
    %6211 = vmatpush1.msra.mxu0 0.0
    %6212 = vmatprep.subr.mxu0 0.0
    %6213 = vmatpush1.msra.mxu0 0.0
    %6214 = vmatprep.subr.mxu0 0.0
    %6215 = vmatpush1.msra.mxu0 0.0
    %6216 = vmatprep.subr.mxu0 0.0
    %6217 = vmatpush1.msra.mxu0 0.0
    %6218 = vmatprep.subr.mxu0 0.0
    %6219 = vmatpush1.msra.mxu0 0.0
    %6220 = vmatprep.subr.mxu0 0.0
    %6221 = vmatpush1.msra.mxu0 0.0
    %6222 = vmatprep.subr.mxu0 0.0
    %6223 = vmatpush1.msra.mxu0 0.0
    %6224 = vmatprep.subr.mxu0 0.0
    %6225 = vmatpush1.msra.mxu0 0.0
    %6226 = vmatprep.subr.mxu0 0.0
    %6227 = vmatpush1.msra.mxu0 0.0
    %6228 = vmatprep.subr.mxu0 0.0
    %6229 = vmatpush1.msra.mxu0 0.0
    %6230 = vmatprep.subr.mxu0 0.0
    %6231 = vmatpush1.msra.mxu0 0.0
    %6232 = vmatprep.subr.mxu0 0.0
    %6233 = vmatpush1.msra.mxu0 0.0
    %6234 = vmatprep.subr.mxu0 0.0
    %6235 = vmatpush1.msra.mxu0 0.0
    %6236 = vmatprep.subr.mxu0 0.0
    %6237 = vmatpush1.msra.mxu0 0.0
    %6238 = vmatprep.subr.mxu0 0.0
    %6239 = vmatpush1.msra.mxu0 0.0
    %6240 = vmatprep.subr.mxu0 0.0
    %6241 = vmatpush1.msra.mxu0 0.0
    %6242 = vmatprep.subr.mxu0 0.0
    %6243 = vmatpush1.msra.mxu0 0.0
    %6244 = vmatprep.subr.mxu0 0.0
    %6245 = vmatpush1.msra.mxu0 0.0
    %6246 = vmatprep.subr.mxu0 0.0
    %6247 = vmatpush1.msra.mxu0 0.0
    %6248 = vmatprep.subr.mxu0 0.0
    %6249 = vmatpush1.msra.mxu0 0.0
    %6250 = vmatprep.subr.mxu0 0.0
    %6251 = vmatpush1.msra.mxu0 0.0
    %6252 = vmatprep.mubr.f32.mxu0 0.0
    %6253 = vmatmul.mubr.f32.gmra.mrb[0].mxu0 %v3531
    %v6254 = vpop.f32.mrb[0].mxu0
    %v6255 = vadd.f32 %v6181, %v6254
    %v6256 = vpop.f32.mrb[0].mxu0
    %v6257 = vadd.f32 %v6185, %v6256
    %6258 = vmatprep.mubr.f32.mxu0 0.0
    %6259 = vmatmul.mubr.f32.gmra.mrb[0].mxu0 %v3534
    %v6260 = vpop.f32.mrb[0].mxu0
    %v6261 = vadd.f32 %v6181, %v6260
    %v6262 = vpop.f32.mrb[0].mxu0
    %v6263 = vadd.f32 %v6185, %v6262
    %6264 = vmatprep.mubr.f32.mxu0 0.0
    %6265 = vmatmul.mubr.f32.gmra.mrb[0].mxu0 %v3537
    %v6266 = vpop.f32.mrb[0].mxu0
    %v6267 = vadd.f32 %v6181, %v6266
    %v6268 = vpop.f32.mrb[0].mxu0
    %v6269 = vadd.f32 %v6185, %v6268
    %6270 = vmatprep.mubr.f32.mxu0 0.0
    %6271 = vmatmul.mubr.f32.gmra.mrb[0].mxu0 %v3540
    %v6272 = vpop.f32.mrb[0].mxu0
    %v6273 = vadd.f32 %v6181, %v6272
    %v6274 = vpop.f32.mrb[0].mxu0
    %v6275 = vadd.f32 %v6185, %v6274
    %6276 = vmatprep.mubr.f32.mxu0 0.0
    %6277 = vmatmul.mubr.f32.gmra.mrb[0].mxu0 %v3543
    %v6278 = vpop.f32.mrb[0].mxu0
    %v6279 = vadd.f32 %v6181, %v6278
    %v6280 = vpop.f32.mrb[0].mxu0
    %v6281 = vadd.f32 %v6185, %v6280
    %6282 = vmatprep.mubr.f32.mxu0 0.0
    %6283 = vmatmul.mubr.f32.gmra.mrb[0].mxu0 %v3546
    %v6284 = vpop.f32.mrb[0].mxu0
    %v6285 = vadd.f32 %v6181, %v6284
    %v6286 = vpop.f32.mrb[0].mxu0
    %v6287 = vadd.f32 %v6185, %v6286
    %6288 = vmatprep.mubr.f32.mxu0 0.0
    %6289 = vmatmul.mubr.f32.gmra.mrb[0].mxu0 %v3549
    %v6290 = vpop.f32.mrb[0].mxu0
    %v6291 = vadd.f32 %v6181, %v6290
    %v6292 = vpop.f32.mrb[0].mxu0
    %v6293 = vadd.f32 %v6185, %v6292
    %6294 = vmatprep.mubr.f32.mxu0 0.0
    %6295 = vmatmul.mubr.f32.gmra.mrb[0].mxu0 %v3552
    %v6296 = vpop.f32.mrb[0].mxu0
    %v6297 = vadd.f32 %v6181, %v6296
    %v6298 = vpop.f32.mrb[0].mxu0
    %v6299 = vadd.f32 %v6185, %v6298
    %6300 = vdwg.mxu0
    %6309 = vrot.lane.b32.xlu0 %v6255, 64
    %v6310 = vpop.permute.xlu0 %6309
    %6311 = vrot.lane.b32.xlu0 %v6261, 64
    %v6312 = vpop.permute.xlu0 %6311
    %6313 = vrot.lane.b32.xlu0 %v6267, 64
    %v6314 = vpop.permute.xlu0 %6313
    %6315 = vrot.lane.b32.xlu0 %v6273, 64
    %v6316 = vpop.permute.xlu0 %6315
    %6317 = vrot.lane.b32.xlu0 %v6279, 64
    %v6318 = vpop.permute.xlu0 %6317
    %6319 = vrot.lane.b32.xlu0 %v6285, 64
    %v6320 = vpop.permute.xlu0 %6319
    %6321 = vrot.lane.b32.xlu0 %v6291, 64
    %v6322 = vpop.permute.xlu0 %6321
    %6323 = vrot.lane.b32.xlu0 %v6297, 64
    %v6324 = vpop.permute.xlu0 %6323
    %v6325 = vsel %vm2397, %v6255, 0
    %v6327 = vsel %vm2397, %v6261, 0
    %v6329 = vsel %vm2397, %v6267, 0
    %v6331 = vsel %vm2397, %v6273, 0
    %v6333 = vsel %vm2397, %v6279, 0
    %v6335 = vsel %vm2397, %v6285, 0
    %v6337 = vsel %vm2397, %v6291, 0
    %v6339 = vsel %vm2397, %v6297, 0
    %v6341 = vsel %vm2397, %v6310, 0
    %v6343 = vsel %vm2397, %v6312, 0
    %v6345 = vsel %vm2397, %v6314, 0
    %v6347 = vsel %vm2397, %v6316, 0
    %v6349 = vsel %vm2397, %v6318, 0
    %v6351 = vsel %vm2397, %v6320, 0
    %v6353 = vsel %vm2397, %v6322, 0
    %v6355 = vsel %vm2397, %v6324, 0
    %6357 = vmatprep.subr.mxu0 0.0
    %6358 = vmatpush1.xpose.msra.mxu0 %v6341
    %6359 = vmatprep.subr.mxu0 0.0
    %6360 = vmatpush1.xpose.msra.mxu0 %v6343
    %6361 = vmatprep.subr.mxu0 0.0
    %6362 = vmatpush1.xpose.msra.mxu0 %v6345
    %6363 = vmatprep.subr.mxu0 0.0
    %6364 = vmatpush1.xpose.msra.mxu0 %v6347
    %6365 = vmatprep.subr.mxu0 0.0
    %6366 = vmatpush1.xpose.msra.mxu0 %v6349
    %6367 = vmatprep.subr.mxu0 0.0
    %6368 = vmatpush1.xpose.msra.mxu0 %v6351
    %6369 = vmatprep.subr.mxu0 0.0
    %6370 = vmatpush1.xpose.msra.mxu0 %v6353
    %6371 = vmatprep.subr.mxu0 0.0
    %6372 = vmatpush1.xpose.msra.mxu0 %v6355
    %6373 = vmatprep.subr.mxu0 0.0
    %6374 = vmatpush1.xpose.msra.mxu0 0.0
    %6375 = vmatprep.subr.mxu0 0.0
    %6376 = vmatpush1.xpose.msra.mxu0 0.0
    %6377 = vmatprep.subr.mxu0 0.0
    %6378 = vmatpush1.xpose.msra.mxu0 0.0
    %6379 = vmatprep.subr.mxu0 0.0
    %6380 = vmatpush1.xpose.msra.mxu0 0.0
    %6381 = vmatprep.subr.mxu0 0.0
    %6382 = vmatpush1.xpose.msra.mxu0 0.0
    %6383 = vmatprep.subr.mxu0 0.0
    %6384 = vmatpush1.xpose.msra.mxu0 0.0
    %6385 = vmatprep.subr.mxu0 0.0
    %6386 = vmatpush1.xpose.msra.mxu0 0.0
    %6387 = vmatprep.subr.mxu0 0.0
    %6388 = vmatpush1.xpose.msra.mxu0 0.0
    %6389 = vmatprep.subr.mxu0 0.0
    %6390 = vmatpush1.xpose.msra.mxu0 0.0
    %6391 = vmatprep.subr.mxu0 0.0
    %6392 = vmatpush1.xpose.msra.mxu0 0.0
    %6393 = vmatprep.subr.mxu0 0.0
    %6394 = vmatpush1.xpose.msra.mxu0 0.0
    %6395 = vmatprep.subr.mxu0 0.0
    %6396 = vmatpush1.xpose.msra.mxu0 0.0
    %6397 = vmatprep.subr.mxu0 0.0
    %6398 = vmatpush1.xpose.msra.mxu0 0.0
    %6399 = vmatprep.subr.mxu0 0.0
    %6400 = vmatpush1.xpose.msra.mxu0 0.0
    %6401 = vmatprep.subr.mxu0 0.0
    %6402 = vmatpush1.xpose.msra.mxu0 0.0
    %6403 = vmatprep.subr.mxu0 0.0
    %6404 = vmatpush1.xpose.msra.mxu0 0.0
    %6405 = vmatprep.subr.mxu0 0.0
    %6406 = vmatpush1.xpose.msra.mxu0 0.0
    %6407 = vmatprep.subr.mxu0 0.0
    %6408 = vmatpush1.xpose.msra.mxu0 0.0
    %6409 = vmatprep.subr.mxu0 0.0
    %6410 = vmatpush1.xpose.msra.mxu0 0.0
    %6411 = vmatprep.subr.mxu0 0.0
    %6412 = vmatpush1.xpose.msra.mxu0 0.0
    %6413 = vmatprep.subr.mxu0 0.0
    %6414 = vmatpush1.xpose.msra.mxu0 0.0
    %6415 = vmatprep.subr.mxu0 0.0
    %6416 = vmatpush1.xpose.msra.mxu0 0.0
    %6417 = vmatprep.subr.mxu0 0.0
    %6418 = vmatpush1.xpose.msra.mxu0 0.0
    %6419 = vmatprep.subr.mxu0 0.0
    %6420 = vmatpush1.xpose.msra.mxu0 0.0
    %6421 = vmatprep.mubr.f32.mxu0 0.0
    %6422 = vmatmul.mubr.f32.gmra.mrb[0].mxu0 %v6325
    %v6423 = vpop.f32.mrb[0].mxu0
    %v6424 = vadd.f32 0.0, %v6423
    %v6425 = vpop.f32.mrb[0].mxu0
    %6426 = vmatprep.mubr.f32.mxu0 0.0
    %6427 = vmatmul.mubr.f32.gmra.mrb[0].mxu0 %v6327
    %v6428 = vpop.f32.mrb[0].mxu0
    %v6429 = vadd.f32 0.0, %v6428
    %v6430 = vpop.f32.mrb[0].mxu0
    %6431 = vmatprep.mubr.f32.mxu0 0.0
    %6432 = vmatmul.mubr.f32.gmra.mrb[0].mxu0 %v6329
    %v6433 = vpop.f32.mrb[0].mxu0
    %v6434 = vadd.f32 0.0, %v6433
    %v6435 = vpop.f32.mrb[0].mxu0
    %6436 = vmatprep.mubr.f32.mxu0 0.0
    %6437 = vmatmul.mubr.f32.gmra.mrb[0].mxu0 %v6331
    %v6438 = vpop.f32.mrb[0].mxu0
    %v6439 = vadd.f32 0.0, %v6438
    %v6440 = vpop.f32.mrb[0].mxu0
    %6441 = vmatprep.mubr.f32.mxu0 0.0
    %6442 = vmatmul.mubr.f32.gmra.mrb[0].mxu0 %v6333
    %v6443 = vpop.f32.mrb[0].mxu0
    %v6444 = vadd.f32 0.0, %v6443
    %v6445 = vpop.f32.mrb[0].mxu0
    %6446 = vmatprep.mubr.f32.mxu0 0.0
    %6447 = vmatmul.mubr.f32.gmra.mrb[0].mxu0 %v6335
    %v6448 = vpop.f32.mrb[0].mxu0
    %v6449 = vadd.f32 0.0, %v6448
    %v6450 = vpop.f32.mrb[0].mxu0
    %6451 = vmatprep.mubr.f32.mxu0 0.0
    %6452 = vmatmul.mubr.f32.gmra.mrb[0].mxu0 %v6337
    %v6453 = vpop.f32.mrb[0].mxu0
    %v6454 = vadd.f32 0.0, %v6453
    %v6455 = vpop.f32.mrb[0].mxu0
    %6456 = vmatprep.mubr.f32.mxu0 0.0
    %6457 = vmatmul.mubr.f32.gmra.mrb[0].mxu0 %v6339
    %v6458 = vpop.f32.mrb[0].mxu0
    %v6459 = vadd.f32 0.0, %v6458
    %v6460 = vpop.f32.mrb[0].mxu0
    %6461 = vdwg.mxu0
    %v6462 = vmul.f32 %v6424, 0.25
    %v6463 = vmul.f32 %v6429, 0.25
    %v6464 = vmul.f32 %v6434, 0.25
    %v6465 = vmul.f32 %v6439, 0.25
    %v6466 = vmul.f32 %v6444, 0.25
    %v6467 = vmul.f32 %v6449, 0.25
    %v6468 = vmul.f32 %v6454, 0.25
    %v6469 = vmul.f32 %v6459, 0.25
    %v6470 = vsel %vm450, %v6462, -inf
    %6471 = vmax.xlane.f32.xlu0 %v6470
    %v6472 = vpop.xlane.xlu0 %6471
    %v6473 = vsel %vm450, %v6463, -inf
    %6474 = vmax.xlane.f32.xlu0 %v6473
    %v6475 = vpop.xlane.xlu0 %6474
    %v6476 = vsel %vm450, %v6464, -inf
    %6477 = vmax.xlane.f32.xlu0 %v6476
    %v6478 = vpop.xlane.xlu0 %6477
    %v6479 = vsel %vm450, %v6465, -inf
    %6480 = vmax.xlane.f32.xlu0 %v6479
    %v6481 = vpop.xlane.xlu0 %6480
    %v6482 = vsel %vm450, %v6466, -inf
    %6483 = vmax.xlane.f32.xlu0 %v6482
    %v6484 = vpop.xlane.xlu0 %6483
    %v6485 = vsel %vm450, %v6467, -inf
    %6486 = vmax.xlane.f32.xlu0 %v6485
    %v6487 = vpop.xlane.xlu0 %6486
    %v6488 = vsel %vm450, %v6468, -inf
    %6489 = vmax.xlane.f32.xlu0 %v6488
    %v6490 = vpop.xlane.xlu0 %6489
    %v6491 = vsel %vm450, %v6469, -inf
    %6492 = vmax.xlane.f32.xlu0 %v6491
    %v6493 = vpop.xlane.xlu0 %6492
    %v6494 = vsub.f32 %v6462, %v6472
    %v6495 = vsub.f32 %v6463, %v6475
    %v6496 = vsub.f32 %v6464, %v6478
    %v6497 = vsub.f32 %v6465, %v6481
    %v6498 = vsub.f32 %v6466, %v6484
    %v6499 = vsub.f32 %v6467, %v6487
    %v6500 = vsub.f32 %v6468, %v6490
    %v6501 = vsub.f32 %v6469, %v6493
    %v6502 = vmul.f32 %v6494, 1.442695
    %v6503 = vpow.pop %v6502
    %v6504 = vmul.f32 %v6495, 1.442695
    %v6505 = vpow.pop %v6504
    %v6506 = vmul.f32 %v6496, 1.442695
    %v6507 = vpow.pop %v6506
    %v6508 = vmul.f32 %v6497, 1.442695
    %v6509 = vpow.pop %v6508
    %v6510 = vmul.f32 %v6498, 1.442695
    %v6511 = vpow.pop %v6510
    %v6512 = vmul.f32 %v6499, 1.442695
    %v6513 = vpow.pop %v6512
    %v6514 = vmul.f32 %v6500, 1.442695
    %v6515 = vpow.pop %v6514
    %v6516 = vmul.f32 %v6501, 1.442695
    %v6517 = vpow.pop %v6516
    %v6518 = vsel %vm450, %v6503, 0.0
    %6519 = vadd.xlane.f32.xlu0 %v6518
    %v6520 = vpop.xlane.xlu0 %6519
    %v6521 = vsel %vm450, %v6505, 0.0
    %6522 = vadd.xlane.f32.xlu0 %v6521
    %v6523 = vpop.xlane.xlu0 %6522
    %v6524 = vsel %vm450, %v6507, 0.0
    %6525 = vadd.xlane.f32.xlu0 %v6524
    %v6526 = vpop.xlane.xlu0 %6525
    %v6527 = vsel %vm450, %v6509, 0.0
    %6528 = vadd.xlane.f32.xlu0 %v6527
    %v6529 = vpop.xlane.xlu0 %6528
    %v6530 = vsel %vm450, %v6511, 0.0
    %6531 = vadd.xlane.f32.xlu0 %v6530
    %v6532 = vpop.xlane.xlu0 %6531
    %v6533 = vsel %vm450, %v6513, 0.0
    %6534 = vadd.xlane.f32.xlu0 %v6533
    %v6535 = vpop.xlane.xlu0 %6534
    %v6536 = vsel %vm450, %v6515, 0.0
    %6537 = vadd.xlane.f32.xlu0 %v6536
    %v6538 = vpop.xlane.xlu0 %6537
    %v6539 = vsel %vm450, %v6517, 0.0
    %6540 = vadd.xlane.f32.xlu0 %v6539
    %v6541 = vpop.xlane.xlu0 %6540
    %v6542 = vrcp.pop %v6520
    %v6543 = vrcp.pop %v6523
    %v6544 = vrcp.pop %v6526
    %v6545 = vrcp.pop %v6529
    %v6546 = vrcp.pop %v6532
    %v6547 = vrcp.pop %v6535
    %v6548 = vrcp.pop %v6538
    %v6549 = vrcp.pop %v6541
    %v6550 = vmul.f32 %v6503, %v6542
    %v6551 = vmul.f32 %v6505, %v6543
    %v6552 = vmul.f32 %v6507, %v6544
    %v6553 = vmul.f32 %v6509, %v6545
    %v6554 = vmul.f32 %v6511, %v6546
    %v6555 = vmul.f32 %v6513, %v6547
    %v6556 = vmul.f32 %v6515, %v6548
    %v6557 = vmul.f32 %v6517, %v6549
    %v6559 = vsel %vm450, %v6550, 0
    %v6562 = vsel %vm450, %v6551, 0
    %v6565 = vsel %vm450, %v6552, 0
    %v6568 = vsel %vm450, %v6553, 0
    %v6571 = vsel %vm450, %v6554, 0
    %v6574 = vsel %vm450, %v6555, 0
    %v6577 = vsel %vm450, %v6556, 0
    %v6580 = vsel %vm450, %v6557, 0
    %6582 = vmatprep.subr.mxu0 0.0
    %6583 = vmatpush1.msra.mxu0 %v6257
    %6584 = vmatprep.subr.mxu0 0.0
    %6585 = vmatpush1.msra.mxu0 %v6263
    %6586 = vmatprep.subr.mxu0 0.0
    %6587 = vmatpush1.msra.mxu0 %v6269
    %6588 = vmatprep.subr.mxu0 0.0
    %6589 = vmatpush1.msra.mxu0 %v6275
    %6590 = vmatprep.subr.mxu0 0.0
    %6591 = vmatpush1.msra.mxu0 %v6281
    %6592 = vmatprep.subr.mxu0 0.0
    %6593 = vmatpush1.msra.mxu0 %v6287
    %6594 = vmatprep.subr.mxu0 0.0
    %6595 = vmatpush1.msra.mxu0 %v6293
    %6596 = vmatprep.subr.mxu0 0.0
    %6597 = vmatpush1.msra.mxu0 %v6299
    %6598 = vmatprep.subr.mxu0 0.0
    %6599 = vmatpush1.msra.mxu0 0.0
    %6600 = vmatprep.subr.mxu0 0.0
    %6601 = vmatpush1.msra.mxu0 0.0
    %6602 = vmatprep.subr.mxu0 0.0
    %6603 = vmatpush1.msra.mxu0 0.0
    %6604 = vmatprep.subr.mxu0 0.0
    %6605 = vmatpush1.msra.mxu0 0.0
    %6606 = vmatprep.subr.mxu0 0.0
    %6607 = vmatpush1.msra.mxu0 0.0
    %6608 = vmatprep.subr.mxu0 0.0
    %6609 = vmatpush1.msra.mxu0 0.0
    %6610 = vmatprep.subr.mxu0 0.0
    %6611 = vmatpush1.msra.mxu0 0.0
    %6612 = vmatprep.subr.mxu0 0.0
    %6613 = vmatpush1.msra.mxu0 0.0
    %6614 = vmatprep.subr.mxu0 0.0
    %6615 = vmatpush1.msra.mxu0 0.0
    %6616 = vmatprep.subr.mxu0 0.0
    %6617 = vmatpush1.msra.mxu0 0.0
    %6618 = vmatprep.subr.mxu0 0.0
    %6619 = vmatpush1.msra.mxu0 0.0
    %6620 = vmatprep.subr.mxu0 0.0
    %6621 = vmatpush1.msra.mxu0 0.0
    %6622 = vmatprep.subr.mxu0 0.0
    %6623 = vmatpush1.msra.mxu0 0.0
    %6624 = vmatprep.subr.mxu0 0.0
    %6625 = vmatpush1.msra.mxu0 0.0
    %6626 = vmatprep.subr.mxu0 0.0
    %6627 = vmatpush1.msra.mxu0 0.0
    %6628 = vmatprep.subr.mxu0 0.0
    %6629 = vmatpush1.msra.mxu0 0.0
    %6630 = vmatprep.subr.mxu0 0.0
    %6631 = vmatpush1.msra.mxu0 0.0
    %6632 = vmatprep.subr.mxu0 0.0
    %6633 = vmatpush1.msra.mxu0 0.0
    %6634 = vmatprep.subr.mxu0 0.0
    %6635 = vmatpush1.msra.mxu0 0.0
    %6636 = vmatprep.subr.mxu0 0.0
    %6637 = vmatpush1.msra.mxu0 0.0
    %6638 = vmatprep.subr.mxu0 0.0
    %6639 = vmatpush1.msra.mxu0 0.0
    %6640 = vmatprep.subr.mxu0 0.0
    %6641 = vmatpush1.msra.mxu0 0.0
    %6642 = vmatprep.subr.mxu0 0.0
    %6643 = vmatpush1.msra.mxu0 0.0
    %6644 = vmatprep.subr.mxu0 0.0
    %6645 = vmatpush1.msra.mxu0 0.0
    %6646 = vmatprep.mubr.f32.mxu0 0.0
    %6647 = vmatmul.mubr.f32.gmra.mrb[0].mxu0 %v6559
    %v6648 = vpop.f32.mrb[0].mxu0
    %v6649 = vadd.f32 0.0, %v6648
    %v6650 = vpop.f32.mrb[0].mxu0
    %6651 = vmatprep.mubr.f32.mxu0 0.0
    %6652 = vmatmul.mubr.f32.gmra.mrb[0].mxu0 %v6562
    %v6653 = vpop.f32.mrb[0].mxu0
    %v6654 = vadd.f32 0.0, %v6653
    %v6655 = vpop.f32.mrb[0].mxu0
    %6656 = vmatprep.mubr.f32.mxu0 0.0
    %6657 = vmatmul.mubr.f32.gmra.mrb[0].mxu0 %v6565
    %v6658 = vpop.f32.mrb[0].mxu0
    %v6659 = vadd.f32 0.0, %v6658
    %v6660 = vpop.f32.mrb[0].mxu0
    %6661 = vmatprep.mubr.f32.mxu0 0.0
    %6662 = vmatmul.mubr.f32.gmra.mrb[0].mxu0 %v6568
    %v6663 = vpop.f32.mrb[0].mxu0
    %v6664 = vadd.f32 0.0, %v6663
    %v6665 = vpop.f32.mrb[0].mxu0
    %6666 = vmatprep.mubr.f32.mxu0 0.0
    %6667 = vmatmul.mubr.f32.gmra.mrb[0].mxu0 %v6571
    %v6668 = vpop.f32.mrb[0].mxu0
    %v6669 = vadd.f32 0.0, %v6668
    %v6670 = vpop.f32.mrb[0].mxu0
    %6671 = vmatprep.mubr.f32.mxu0 0.0
    %6672 = vmatmul.mubr.f32.gmra.mrb[0].mxu0 %v6574
    %v6673 = vpop.f32.mrb[0].mxu0
    %v6674 = vadd.f32 0.0, %v6673
    %v6675 = vpop.f32.mrb[0].mxu0
    %6676 = vmatprep.mubr.f32.mxu0 0.0
    %6677 = vmatmul.mubr.f32.gmra.mrb[0].mxu0 %v6577
    %v6678 = vpop.f32.mrb[0].mxu0
    %v6679 = vadd.f32 0.0, %v6678
    %v6680 = vpop.f32.mrb[0].mxu0
    %6681 = vmatprep.mubr.f32.mxu0 0.0
    %6682 = vmatmul.mubr.f32.gmra.mrb[0].mxu0 %v6580
    %v6683 = vpop.f32.mrb[0].mxu0
    %v6684 = vadd.f32 0.0, %v6683
    %v6685 = vpop.f32.mrb[0].mxu0
    %6686 = vdwg.mxu0
    %6687 = vst.msk [vmem:[#allocation3] sm:$0xff] %vm2397, %v6649
    %6688 = vst.msk [vmem:[#allocation3 + $0x8] sm:$0xff] %vm2397, %v6654
    %6689 = vst.msk [vmem:[#allocation3 + $0x10] sm:$0xff] %vm2397, %v6659
    %6690 = vst.msk [vmem:[#allocation3 + $0x18] sm:$0xff] %vm2397, %v6664
    %6691 = vst.msk [vmem:[#allocation3 + $0x20] sm:$0xff] %vm2397, %v6669
    %6692 = vst.msk [vmem:[#allocation3 + $0x28] sm:$0xff] %vm2397, %v6674
    %6693 = vst.msk [vmem:[#allocation3 + $0x30] sm:$0xff] %vm2397, %v6679
    %6694 = vst.msk [vmem:[#allocation3 + $0x38] sm:$0xff] %vm2397, %v6684
    %6695 = vrot.lane.b32.xlu0 %v6255, 112
    %v6696 = vpop.permute.xlu0 %6695
    %6697 = vrot.lane.b32.xlu0 %v6261, 112
    %v6698 = vpop.permute.xlu0 %6697
    %6699 = vrot.lane.b32.xlu0 %v6267, 112
    %v6700 = vpop.permute.xlu0 %6699
    %6701 = vrot.lane.b32.xlu0 %v6273, 112
    %v6702 = vpop.permute.xlu0 %6701
    %6703 = vrot.lane.b32.xlu0 %v6279, 112
    %v6704 = vpop.permute.xlu0 %6703
    %6705 = vrot.lane.b32.xlu0 %v6285, 112
    %v6706 = vpop.permute.xlu0 %6705
    %6707 = vrot.lane.b32.xlu0 %v6291, 112
    %v6708 = vpop.permute.xlu0 %6707
    %6709 = vrot.lane.b32.xlu0 %v6297, 112
    %v6710 = vpop.permute.xlu0 %6709
    %6711 = vrot.lane.b32.xlu0 %v6255, 48
    %v6712 = vpop.permute.xlu0 %6711
    %6713 = vrot.lane.b32.xlu0 %v6261, 48
    %v6714 = vpop.permute.xlu0 %6713
    %6715 = vrot.lane.b32.xlu0 %v6267, 48
    %v6716 = vpop.permute.xlu0 %6715
    %6717 = vrot.lane.b32.xlu0 %v6273, 48
    %v6718 = vpop.permute.xlu0 %6717
    %6719 = vrot.lane.b32.xlu0 %v6279, 48
    %v6720 = vpop.permute.xlu0 %6719
    %6721 = vrot.lane.b32.xlu0 %v6285, 48
    %v6722 = vpop.permute.xlu0 %6721
    %6723 = vrot.lane.b32.xlu0 %v6291, 48
    %v6724 = vpop.permute.xlu0 %6723
    %6725 = vrot.lane.b32.xlu0 %v6297, 48
    %v6726 = vpop.permute.xlu0 %6725
    %v6727 = vsel %vm2397, %v6696, 0
    %v6729 = vsel %vm2397, %v6698, 0
    %v6731 = vsel %vm2397, %v6700, 0
    %v6733 = vsel %vm2397, %v6702, 0
    %v6735 = vsel %vm2397, %v6704, 0
    %v6737 = vsel %vm2397, %v6706, 0
    %v6739 = vsel %vm2397, %v6708, 0
    %v6741 = vsel %vm2397, %v6710, 0
    %v6743 = vsel %vm2397, %v6712, 0
    %v6745 = vsel %vm2397, %v6714, 0
    %v6747 = vsel %vm2397, %v6716, 0
    %v6749 = vsel %vm2397, %v6718, 0
    %v6751 = vsel %vm2397, %v6720, 0
    %v6753 = vsel %vm2397, %v6722, 0
    %v6755 = vsel %vm2397, %v6724, 0
    %v6757 = vsel %vm2397, %v6726, 0
    %6759 = vmatprep.subr.mxu0 0.0
    %6760 = vmatpush1.xpose.msra.mxu0 %v6743
    %6761 = vmatprep.subr.mxu0 0.0
    %6762 = vmatpush1.xpose.msra.mxu0 %v6745
    %6763 = vmatprep.subr.mxu0 0.0
    %6764 = vmatpush1.xpose.msra.mxu0 %v6747
    %6765 = vmatprep.subr.mxu0 0.0
    %6766 = vmatpush1.xpose.msra.mxu0 %v6749
    %6767 = vmatprep.subr.mxu0 0.0
    %6768 = vmatpush1.xpose.msra.mxu0 %v6751
    %6769 = vmatprep.subr.mxu0 0.0
    %6770 = vmatpush1.xpose.msra.mxu0 %v6753
    %6771 = vmatprep.subr.mxu0 0.0
    %6772 = vmatpush1.xpose.msra.mxu0 %v6755
    %6773 = vmatprep.subr.mxu0 0.0
    %6774 = vmatpush1.xpose.msra.mxu0 %v6757
    %6775 = vmatprep.subr.mxu0 0.0
    %6776 = vmatpush1.xpose.msra.mxu0 0.0
    %6777 = vmatprep.subr.mxu0 0.0
    %6778 = vmatpush1.xpose.msra.mxu0 0.0
    %6779 = vmatprep.subr.mxu0 0.0
    %6780 = vmatpush1.xpose.msra.mxu0 0.0
    %6781 = vmatprep.subr.mxu0 0.0
    %6782 = vmatpush1.xpose.msra.mxu0 0.0
    %6783 = vmatprep.subr.mxu0 0.0
    %6784 = vmatpush1.xpose.msra.mxu0 0.0
    %6785 = vmatprep.subr.mxu0 0.0
    %6786 = vmatpush1.xpose.msra.mxu0 0.0
    %6787 = vmatprep.subr.mxu0 0.0
    %6788 = vmatpush1.xpose.msra.mxu0 0.0
    %6789 = vmatprep.subr.mxu0 0.0
    %6790 = vmatpush1.xpose.msra.mxu0 0.0
    %6791 = vmatprep.subr.mxu0 0.0
    %6792 = vmatpush1.xpose.msra.mxu0 0.0
    %6793 = vmatprep.subr.mxu0 0.0
    %6794 = vmatpush1.xpose.msra.mxu0 0.0
    %6795 = vmatprep.subr.mxu0 0.0
    %6796 = vmatpush1.xpose.msra.mxu0 0.0
    %6797 = vmatprep.subr.mxu0 0.0
    %6798 = vmatpush1.xpose.msra.mxu0 0.0
    %6799 = vmatprep.subr.mxu0 0.0
    %6800 = vmatpush1.xpose.msra.mxu0 0.0
    %6801 = vmatprep.subr.mxu0 0.0
    %6802 = vmatpush1.xpose.msra.mxu0 0.0
    %6803 = vmatprep.subr.mxu0 0.0
    %6804 = vmatpush1.xpose.msra.mxu0 0.0
    %6805 = vmatprep.subr.mxu0 0.0
    %6806 = vmatpush1.xpose.msra.mxu0 0.0
    %6807 = vmatprep.subr.mxu0 0.0
    %6808 = vmatpush1.xpose.msra.mxu0 0.0
    %6809 = vmatprep.subr.mxu0 0.0
    %6810 = vmatpush1.xpose.msra.mxu0 0.0
    %6811 = vmatprep.subr.mxu0 0.0
    %6812 = vmatpush1.xpose.msra.mxu0 0.0
    %6813 = vmatprep.subr.mxu0 0.0
    %6814 = vmatpush1.xpose.msra.mxu0 0.0
    %6815 = vmatprep.subr.mxu0 0.0
    %6816 = vmatpush1.xpose.msra.mxu0 0.0
    %6817 = vmatprep.subr.mxu0 0.0
    %6818 = vmatpush1.xpose.msra.mxu0 0.0
    %6819 = vmatprep.subr.mxu0 0.0
    %6820 = vmatpush1.xpose.msra.mxu0 0.0
    %6821 = vmatprep.subr.mxu0 0.0
    %6822 = vmatpush1.xpose.msra.mxu0 0.0
    %6823 = vmatprep.mubr.f32.mxu0 0.0
    %6824 = vmatmul.mubr.f32.gmra.mrb[0].mxu0 %v6727
    %v6825 = vpop.f32.mrb[0].mxu0
    %v6826 = vadd.f32 0.0, %v6825
    %v6827 = vpop.f32.mrb[0].mxu0
    %6828 = vmatprep.mubr.f32.mxu0 0.0
    %6829 = vmatmul.mubr.f32.gmra.mrb[0].mxu0 %v6729
    %v6830 = vpop.f32.mrb[0].mxu0
    %v6831 = vadd.f32 0.0, %v6830
    %v6832 = vpop.f32.mrb[0].mxu0
    %6833 = vmatprep.mubr.f32.mxu0 0.0
    %6834 = vmatmul.mubr.f32.gmra.mrb[0].mxu0 %v6731
    %v6835 = vpop.f32.mrb[0].mxu0
    %v6836 = vadd.f32 0.0, %v6835
    %v6837 = vpop.f32.mrb[0].mxu0
    %6838 = vmatprep.mubr.f32.mxu0 0.0
    %6839 = vmatmul.mubr.f32.gmra.mrb[0].mxu0 %v6733
    %v6840 = vpop.f32.mrb[0].mxu0
    %v6841 = vadd.f32 0.0, %v6840
    %v6842 = vpop.f32.mrb[0].mxu0
    %6843 = vmatprep.mubr.f32.mxu0 0.0
    %6844 = vmatmul.mubr.f32.gmra.mrb[0].mxu0 %v6735
    %v6845 = vpop.f32.mrb[0].mxu0
    %v6846 = vadd.f32 0.0, %v6845
    %v6847 = vpop.f32.mrb[0].mxu0
    %6848 = vmatprep.mubr.f32.mxu0 0.0
    %6849 = vmatmul.mubr.f32.gmra.mrb[0].mxu0 %v6737
    %v6850 = vpop.f32.mrb[0].mxu0
    %v6851 = vadd.f32 0.0, %v6850
    %v6852 = vpop.f32.mrb[0].mxu0
    %6853 = vmatprep.mubr.f32.mxu0 0.0
    %6854 = vmatmul.mubr.f32.gmra.mrb[0].mxu0 %v6739
    %v6855 = vpop.f32.mrb[0].mxu0
    %v6856 = vadd.f32 0.0, %v6855
    %v6857 = vpop.f32.mrb[0].mxu0
    %6858 = vmatprep.mubr.f32.mxu0 0.0
    %6859 = vmatmul.mubr.f32.gmra.mrb[0].mxu0 %v6741
    %v6860 = vpop.f32.mrb[0].mxu0
    %v6861 = vadd.f32 0.0, %v6860
    %v6862 = vpop.f32.mrb[0].mxu0
    %6863 = vdwg.mxu0
    %v6864 = vmul.f32 %v6826, 0.25
    %v6865 = vmul.f32 %v6831, 0.25
    %v6866 = vmul.f32 %v6836, 0.25
    %v6867 = vmul.f32 %v6841, 0.25
    %v6868 = vmul.f32 %v6846, 0.25
    %v6869 = vmul.f32 %v6851, 0.25
    %v6870 = vmul.f32 %v6856, 0.25
    %v6871 = vmul.f32 %v6861, 0.25
    %v6872 = vsel %vm450, %v6864, -inf
    %6873 = vmax.xlane.f32.xlu0 %v6872
    %v6874 = vpop.xlane.xlu0 %6873
    %v6875 = vsel %vm450, %v6865, -inf
    %6876 = vmax.xlane.f32.xlu0 %v6875
    %v6877 = vpop.xlane.xlu0 %6876
    %v6878 = vsel %vm450, %v6866, -inf
    %6879 = vmax.xlane.f32.xlu0 %v6878
    %v6880 = vpop.xlane.xlu0 %6879
    %v6881 = vsel %vm450, %v6867, -inf
    %6882 = vmax.xlane.f32.xlu0 %v6881
    %v6883 = vpop.xlane.xlu0 %6882
    %v6884 = vsel %vm450, %v6868, -inf
    %6885 = vmax.xlane.f32.xlu0 %v6884
    %v6886 = vpop.xlane.xlu0 %6885
    %v6887 = vsel %vm450, %v6869, -inf
    %6888 = vmax.xlane.f32.xlu0 %v6887
    %v6889 = vpop.xlane.xlu0 %6888
    %v6890 = vsel %vm450, %v6870, -inf
    %6891 = vmax.xlane.f32.xlu0 %v6890
    %v6892 = vpop.xlane.xlu0 %6891
    %v6893 = vsel %vm450, %v6871, -inf
    %6894 = vmax.xlane.f32.xlu0 %v6893
    %v6895 = vpop.xlane.xlu0 %6894
    %v6896 = vsub.f32 %v6864, %v6874
    %v6897 = vsub.f32 %v6865, %v6877
    %v6898 = vsub.f32 %v6866, %v6880
    %v6899 = vsub.f32 %v6867, %v6883
    %v6900 = vsub.f32 %v6868, %v6886
    %v6901 = vsub.f32 %v6869, %v6889
    %v6902 = vsub.f32 %v6870, %v6892
    %v6903 = vsub.f32 %v6871, %v6895
    %v6904 = vmul.f32 %v6896, 1.442695
    %v6905 = vpow.pop %v6904
    %v6906 = vmul.f32 %v6897, 1.442695
    %v6907 = vpow.pop %v6906
    %v6908 = vmul.f32 %v6898, 1.442695
    %v6909 = vpow.pop %v6908
    %v6910 = vmul.f32 %v6899, 1.442695
    %v6911 = vpow.pop %v6910
    %v6912 = vmul.f32 %v6900, 1.442695
    %v6913 = vpow.pop %v6912
    %v6914 = vmul.f32 %v6901, 1.442695
    %v6915 = vpow.pop %v6914
    %v6916 = vmul.f32 %v6902, 1.442695
    %v6917 = vpow.pop %v6916
    %v6918 = vmul.f32 %v6903, 1.442695
    %v6919 = vpow.pop %v6918
    %v6920 = vsel %vm450, %v6905, 0.0
    %6921 = vadd.xlane.f32.xlu0 %v6920
    %v6922 = vpop.xlane.xlu0 %6921
    %v6923 = vsel %vm450, %v6907, 0.0
    %6924 = vadd.xlane.f32.xlu0 %v6923
    %v6925 = vpop.xlane.xlu0 %6924
    %v6926 = vsel %vm450, %v6909, 0.0
    %6927 = vadd.xlane.f32.xlu0 %v6926
    %v6928 = vpop.xlane.xlu0 %6927
    %v6929 = vsel %vm450, %v6911, 0.0
    %6930 = vadd.xlane.f32.xlu0 %v6929
    %v6931 = vpop.xlane.xlu0 %6930
    %v6932 = vsel %vm450, %v6913, 0.0
    %6933 = vadd.xlane.f32.xlu0 %v6932
    %v6934 = vpop.xlane.xlu0 %6933
    %v6935 = vsel %vm450, %v6915, 0.0
    %6936 = vadd.xlane.f32.xlu0 %v6935
    %v6937 = vpop.xlane.xlu0 %6936
    %v6938 = vsel %vm450, %v6917, 0.0
    %6939 = vadd.xlane.f32.xlu0 %v6938
    %v6940 = vpop.xlane.xlu0 %6939
    %v6941 = vsel %vm450, %v6919, 0.0
    %6942 = vadd.xlane.f32.xlu0 %v6941
    %v6943 = vpop.xlane.xlu0 %6942
    %v6944 = vrcp.pop %v6922
    %v6945 = vrcp.pop %v6925
    %v6946 = vrcp.pop %v6928
    %v6947 = vrcp.pop %v6931
    %v6948 = vrcp.pop %v6934
    %v6949 = vrcp.pop %v6937
    %v6950 = vrcp.pop %v6940
    %v6951 = vrcp.pop %v6943
    %v6952 = vmul.f32 %v6905, %v6944
    %v6953 = vmul.f32 %v6907, %v6945
    %v6954 = vmul.f32 %v6909, %v6946
    %v6955 = vmul.f32 %v6911, %v6947
    %v6956 = vmul.f32 %v6913, %v6948
    %v6957 = vmul.f32 %v6915, %v6949
    %v6958 = vmul.f32 %v6917, %v6950
    %v6959 = vmul.f32 %v6919, %v6951
    %6968 = vrot.lane.b32.xlu0 %v6257, 112
    %v6969 = vpop.permute.xlu0 %6968
    %6970 = vrot.lane.b32.xlu0 %v6263, 112
    %v6971 = vpop.permute.xlu0 %6970
    %6972 = vrot.lane.b32.xlu0 %v6269, 112
    %v6973 = vpop.permute.xlu0 %6972
    %6974 = vrot.lane.b32.xlu0 %v6275, 112
    %v6975 = vpop.permute.xlu0 %6974
    %6976 = vrot.lane.b32.xlu0 %v6281, 112
    %v6977 = vpop.permute.xlu0 %6976
    %6978 = vrot.lane.b32.xlu0 %v6287, 112
    %v6979 = vpop.permute.xlu0 %6978
    %6980 = vrot.lane.b32.xlu0 %v6293, 112
    %v6981 = vpop.permute.xlu0 %6980
    %6982 = vrot.lane.b32.xlu0 %v6299, 112
    %v6983 = vpop.permute.xlu0 %6982
    %v6993 = vsel %vm450, %v6952, 0
    %v6996 = vsel %vm450, %v6953, 0
    %v6999 = vsel %vm450, %v6954, 0
    %v7002 = vsel %vm450, %v6955, 0
    %v7005 = vsel %vm450, %v6956, 0
    %v7008 = vsel %vm450, %v6957, 0
    %v7011 = vsel %vm450, %v6958, 0
    %v7014 = vsel %vm450, %v6959, 0
    %7016 = vmatprep.subr.mxu0 0.0
    %7017 = vmatpush1.msra.mxu0 %v6969
    %7018 = vmatprep.subr.mxu0 0.0
    %7019 = vmatpush1.msra.mxu0 %v6971
    %7020 = vmatprep.subr.mxu0 0.0
    %7021 = vmatpush1.msra.mxu0 %v6973
    %7022 = vmatprep.subr.mxu0 0.0
    %7023 = vmatpush1.msra.mxu0 %v6975
    %7024 = vmatprep.subr.mxu0 0.0
    %7025 = vmatpush1.msra.mxu0 %v6977
    %7026 = vmatprep.subr.mxu0 0.0
    %7027 = vmatpush1.msra.mxu0 %v6979
    %7028 = vmatprep.subr.mxu0 0.0
    %7029 = vmatpush1.msra.mxu0 %v6981
    %7030 = vmatprep.subr.mxu0 0.0
    %7031 = vmatpush1.msra.mxu0 %v6983
    %7032 = vmatprep.subr.mxu0 0.0
    %7033 = vmatpush1.msra.mxu0 0.0
    %7034 = vmatprep.subr.mxu0 0.0
    %7035 = vmatpush1.msra.mxu0 0.0
    %7036 = vmatprep.subr.mxu0 0.0
    %7037 = vmatpush1.msra.mxu0 0.0
    %7038 = vmatprep.subr.mxu0 0.0
    %7039 = vmatpush1.msra.mxu0 0.0
    %7040 = vmatprep.subr.mxu0 0.0
    %7041 = vmatpush1.msra.mxu0 0.0
    %7042 = vmatprep.subr.mxu0 0.0
    %7043 = vmatpush1.msra.mxu0 0.0
    %7044 = vmatprep.subr.mxu0 0.0
    %7045 = vmatpush1.msra.mxu0 0.0
    %7046 = vmatprep.subr.mxu0 0.0
    %7047 = vmatpush1.msra.mxu0 0.0
    %7048 = vmatprep.subr.mxu0 0.0
    %7049 = vmatpush1.msra.mxu0 0.0
    %7050 = vmatprep.subr.mxu0 0.0
    %7051 = vmatpush1.msra.mxu0 0.0
    %7052 = vmatprep.subr.mxu0 0.0
    %7053 = vmatpush1.msra.mxu0 0.0
    %7054 = vmatprep.subr.mxu0 0.0
    %7055 = vmatpush1.msra.mxu0 0.0
    %7056 = vmatprep.subr.mxu0 0.0
    %7057 = vmatpush1.msra.mxu0 0.0
    %7058 = vmatprep.subr.mxu0 0.0
    %7059 = vmatpush1.msra.mxu0 0.0
    %7060 = vmatprep.subr.mxu0 0.0
    %7061 = vmatpush1.msra.mxu0 0.0
    %7062 = vmatprep.subr.mxu0 0.0
    %7063 = vmatpush1.msra.mxu0 0.0
    %7064 = vmatprep.subr.mxu0 0.0
    %7065 = vmatpush1.msra.mxu0 0.0
    %7066 = vmatprep.subr.mxu0 0.0
    %7067 = vmatpush1.msra.mxu0 0.0
    %7068 = vmatprep.subr.mxu0 0.0
    %7069 = vmatpush1.msra.mxu0 0.0
    %7070 = vmatprep.subr.mxu0 0.0
    %7071 = vmatpush1.msra.mxu0 0.0
    %7072 = vmatprep.subr.mxu0 0.0
    %7073 = vmatpush1.msra.mxu0 0.0
    %7074 = vmatprep.subr.mxu0 0.0
    %7075 = vmatpush1.msra.mxu0 0.0
    %7076 = vmatprep.subr.mxu0 0.0
    %7077 = vmatpush1.msra.mxu0 0.0
    %7078 = vmatprep.subr.mxu0 0.0
    %7079 = vmatpush1.msra.mxu0 0.0
    %7080 = vmatprep.mubr.f32.mxu0 0.0
    %7081 = vmatmul.mubr.f32.gmra.mrb[0].mxu0 %v6993
    %v7082 = vpop.f32.mrb[0].mxu0
    %v7083 = vadd.f32 0.0, %v7082
    %v7084 = vpop.f32.mrb[0].mxu0
    %7085 = vmatprep.mubr.f32.mxu0 0.0
    %7086 = vmatmul.mubr.f32.gmra.mrb[0].mxu0 %v6996
    %v7087 = vpop.f32.mrb[0].mxu0
    %v7088 = vadd.f32 0.0, %v7087
    %v7089 = vpop.f32.mrb[0].mxu0
    %7090 = vmatprep.mubr.f32.mxu0 0.0
    %7091 = vmatmul.mubr.f32.gmra.mrb[0].mxu0 %v6999
    %v7092 = vpop.f32.mrb[0].mxu0
    %v7093 = vadd.f32 0.0, %v7092
    %v7094 = vpop.f32.mrb[0].mxu0
    %7095 = vmatprep.mubr.f32.mxu0 0.0
    %7096 = vmatmul.mubr.f32.gmra.mrb[0].mxu0 %v7002
    %v7097 = vpop.f32.mrb[0].mxu0
    %v7098 = vadd.f32 0.0, %v7097
    %v7099 = vpop.f32.mrb[0].mxu0
    %7100 = vmatprep.mubr.f32.mxu0 0.0
    %7101 = vmatmul.mubr.f32.gmra.mrb[0].mxu0 %v7005
    %v7102 = vpop.f32.mrb[0].mxu0
    %v7103 = vadd.f32 0.0, %v7102
    %v7104 = vpop.f32.mrb[0].mxu0
    %7105 = vmatprep.mubr.f32.mxu0 0.0
    %7106 = vmatmul.mubr.f32.gmra.mrb[0].mxu0 %v7008
    %v7107 = vpop.f32.mrb[0].mxu0
    %v7108 = vadd.f32 0.0, %v7107
    %v7109 = vpop.f32.mrb[0].mxu0
    %7110 = vmatprep.mubr.f32.mxu0 0.0
    %7111 = vmatmul.mubr.f32.gmra.mrb[0].mxu0 %v7011
    %v7112 = vpop.f32.mrb[0].mxu0
    %v7113 = vadd.f32 0.0, %v7112
    %v7114 = vpop.f32.mrb[0].mxu0
    %7115 = vmatprep.mubr.f32.mxu0 0.0
    %7116 = vmatmul.mubr.f32.gmra.mrb[0].mxu0 %v7014
    %v7117 = vpop.f32.mrb[0].mxu0
    %v7118 = vadd.f32 0.0, %v7117
    %v7119 = vpop.f32.mrb[0].mxu0
    %7120 = vdwg.mxu0
    %7129 = vrot.lane.b32.xlu0 %v7083, 16
    %v7130 = vpop.permute.xlu0 %7129
    %7131 = vrot.lane.b32.xlu0 %v7088, 16
    %v7132 = vpop.permute.xlu0 %7131
    %7133 = vrot.lane.b32.xlu0 %v7093, 16
    %v7134 = vpop.permute.xlu0 %7133
    %7135 = vrot.lane.b32.xlu0 %v7098, 16
    %v7136 = vpop.permute.xlu0 %7135
    %7137 = vrot.lane.b32.xlu0 %v7103, 16
    %v7138 = vpop.permute.xlu0 %7137
    %7139 = vrot.lane.b32.xlu0 %v7108, 16
    %v7140 = vpop.permute.xlu0 %7139
    %7141 = vrot.lane.b32.xlu0 %v7113, 16
    %v7142 = vpop.permute.xlu0 %7141
    %7143 = vrot.lane.b32.xlu0 %v7118, 16
    %v7144 = vpop.permute.xlu0 %7143
    %7153 = vst.msk [vmem:[#allocation3] sm:$0xff] %vm2747, %v7130
    %7154 = vst.msk [vmem:[#allocation3 + $0x8] sm:$0xff] %vm2747, %v7132
    %7155 = vst.msk [vmem:[#allocation3 + $0x10] sm:$0xff] %vm2747, %v7134
    %7156 = vst.msk [vmem:[#allocation3 + $0x18] sm:$0xff] %vm2747, %v7136
    %7157 = vst.msk [vmem:[#allocation3 + $0x20] sm:$0xff] %vm2747, %v7138
    %7158 = vst.msk [vmem:[#allocation3 + $0x28] sm:$0xff] %vm2747, %v7140
    %7159 = vst.msk [vmem:[#allocation3 + $0x30] sm:$0xff] %vm2747, %v7142
    %7160 = vst.msk [vmem:[#allocation3 + $0x38] sm:$0xff] %vm2747, %v7144
    %7161 = vrot.lane.b32.xlu0 %v6255, 96
    %v7162 = vpop.permute.xlu0 %7161
    %7163 = vrot.lane.b32.xlu0 %v6261, 96
    %v7164 = vpop.permute.xlu0 %7163
    %7165 = vrot.lane.b32.xlu0 %v6267, 96
    %v7166 = vpop.permute.xlu0 %7165
    %7167 = vrot.lane.b32.xlu0 %v6273, 96
    %v7168 = vpop.permute.xlu0 %7167
    %7169 = vrot.lane.b32.xlu0 %v6279, 96
    %v7170 = vpop.permute.xlu0 %7169
    %7171 = vrot.lane.b32.xlu0 %v6285, 96
    %v7172 = vpop.permute.xlu0 %7171
    %7173 = vrot.lane.b32.xlu0 %v6291, 96
    %v7174 = vpop.permute.xlu0 %7173
    %7175 = vrot.lane.b32.xlu0 %v6297, 96
    %v7176 = vpop.permute.xlu0 %7175
    %7177 = vrot.lane.b32.xlu0 %v6255, 32
    %v7178 = vpop.permute.xlu0 %7177
    %7179 = vrot.lane.b32.xlu0 %v6261, 32
    %v7180 = vpop.permute.xlu0 %7179
    %7181 = vrot.lane.b32.xlu0 %v6267, 32
    %v7182 = vpop.permute.xlu0 %7181
    %7183 = vrot.lane.b32.xlu0 %v6273, 32
    %v7184 = vpop.permute.xlu0 %7183
    %7185 = vrot.lane.b32.xlu0 %v6279, 32
    %v7186 = vpop.permute.xlu0 %7185
    %7187 = vrot.lane.b32.xlu0 %v6285, 32
    %v7188 = vpop.permute.xlu0 %7187
    %7189 = vrot.lane.b32.xlu0 %v6291, 32
    %v7190 = vpop.permute.xlu0 %7189
    %7191 = vrot.lane.b32.xlu0 %v6297, 32
    %v7192 = vpop.permute.xlu0 %7191
    %v7193 = vsel %vm2397, %v7162, 0
    %v7195 = vsel %vm2397, %v7164, 0
    %v7197 = vsel %vm2397, %v7166, 0
    %v7199 = vsel %vm2397, %v7168, 0
    %v7201 = vsel %vm2397, %v7170, 0
    %v7203 = vsel %vm2397, %v7172, 0
    %v7205 = vsel %vm2397, %v7174, 0
    %v7207 = vsel %vm2397, %v7176, 0
    %v7209 = vsel %vm2397, %v7178, 0
    %v7211 = vsel %vm2397, %v7180, 0
    %v7213 = vsel %vm2397, %v7182, 0
    %v7215 = vsel %vm2397, %v7184, 0
    %v7217 = vsel %vm2397, %v7186, 0
    %v7219 = vsel %vm2397, %v7188, 0
    %v7221 = vsel %vm2397, %v7190, 0
    %v7223 = vsel %vm2397, %v7192, 0
    %7225 = vmatprep.subr.mxu0 0.0
    %7226 = vmatpush1.xpose.msra.mxu0 %v7209
    %7227 = vmatprep.subr.mxu0 0.0
    %7228 = vmatpush1.xpose.msra.mxu0 %v7211
    %7229 = vmatprep.subr.mxu0 0.0
    %7230 = vmatpush1.xpose.msra.mxu0 %v7213
    %7231 = vmatprep.subr.mxu0 0.0
    %7232 = vmatpush1.xpose.msra.mxu0 %v7215
    %7233 = vmatprep.subr.mxu0 0.0
    %7234 = vmatpush1.xpose.msra.mxu0 %v7217
    %7235 = vmatprep.subr.mxu0 0.0
    %7236 = vmatpush1.xpose.msra.mxu0 %v7219
    %7237 = vmatprep.subr.mxu0 0.0
    %7238 = vmatpush1.xpose.msra.mxu0 %v7221
    %7239 = vmatprep.subr.mxu0 0.0
    %7240 = vmatpush1.xpose.msra.mxu0 %v7223
    %7241 = vmatprep.subr.mxu0 0.0
    %7242 = vmatpush1.xpose.msra.mxu0 0.0
    %7243 = vmatprep.subr.mxu0 0.0
    %7244 = vmatpush1.xpose.msra.mxu0 0.0
    %7245 = vmatprep.subr.mxu0 0.0
    %7246 = vmatpush1.xpose.msra.mxu0 0.0
    %7247 = vmatprep.subr.mxu0 0.0
    %7248 = vmatpush1.xpose.msra.mxu0 0.0
    %7249 = vmatprep.subr.mxu0 0.0
    %7250 = vmatpush1.xpose.msra.mxu0 0.0
    %7251 = vmatprep.subr.mxu0 0.0
    %7252 = vmatpush1.xpose.msra.mxu0 0.0
    %7253 = vmatprep.subr.mxu0 0.0
    %7254 = vmatpush1.xpose.msra.mxu0 0.0
    %7255 = vmatprep.subr.mxu0 0.0
    %7256 = vmatpush1.xpose.msra.mxu0 0.0
    %7257 = vmatprep.subr.mxu0 0.0
    %7258 = vmatpush1.xpose.msra.mxu0 0.0
    %7259 = vmatprep.subr.mxu0 0.0
    %7260 = vmatpush1.xpose.msra.mxu0 0.0
    %7261 = vmatprep.subr.mxu0 0.0
    %7262 = vmatpush1.xpose.msra.mxu0 0.0
    %7263 = vmatprep.subr.mxu0 0.0
    %7264 = vmatpush1.xpose.msra.mxu0 0.0
    %7265 = vmatprep.subr.mxu0 0.0
    %7266 = vmatpush1.xpose.msra.mxu0 0.0
    %7267 = vmatprep.subr.mxu0 0.0
    %7268 = vmatpush1.xpose.msra.mxu0 0.0
    %7269 = vmatprep.subr.mxu0 0.0
    %7270 = vmatpush1.xpose.msra.mxu0 0.0
    %7271 = vmatprep.subr.mxu0 0.0
    %7272 = vmatpush1.xpose.msra.mxu0 0.0
    %7273 = vmatprep.subr.mxu0 0.0
    %7274 = vmatpush1.xpose.msra.mxu0 0.0
    %7275 = vmatprep.subr.mxu0 0.0
    %7276 = vmatpush1.xpose.msra.mxu0 0.0
    %7277 = vmatprep.subr.mxu0 0.0
    %7278 = vmatpush1.xpose.msra.mxu0 0.0
    %7279 = vmatprep.subr.mxu0 0.0
    %7280 = vmatpush1.xpose.msra.mxu0 0.0
    %7281 = vmatprep.subr.mxu0 0.0
    %7282 = vmatpush1.xpose.msra.mxu0 0.0
    %7283 = vmatprep.subr.mxu0 0.0
    %7284 = vmatpush1.xpose.msra.mxu0 0.0
    %7285 = vmatprep.subr.mxu0 0.0
    %7286 = vmatpush1.xpose.msra.mxu0 0.0
    %7287 = vmatprep.subr.mxu0 0.0
    %7288 = vmatpush1.xpose.msra.mxu0 0.0
    %7289 = vmatprep.mubr.f32.mxu0 0.0
    %7290 = vmatmul.mubr.f32.gmra.mrb[0].mxu0 %v7193
    %v7291 = vpop.f32.mrb[0].mxu0
    %v7292 = vadd.f32 0.0, %v7291
    %v7293 = vpop.f32.mrb[0].mxu0
    %7294 = vmatprep.mubr.f32.mxu0 0.0
    %7295 = vmatmul.mubr.f32.gmra.mrb[0].mxu0 %v7195
    %v7296 = vpop.f32.mrb[0].mxu0
    %v7297 = vadd.f32 0.0, %v7296
    %v7298 = vpop.f32.mrb[0].mxu0
    %7299 = vmatprep.mubr.f32.mxu0 0.0
    %7300 = vmatmul.mubr.f32.gmra.mrb[0].mxu0 %v7197
    %v7301 = vpop.f32.mrb[0].mxu0
    %v7302 = vadd.f32 0.0, %v7301
    %v7303 = vpop.f32.mrb[0].mxu0
    %7304 = vmatprep.mubr.f32.mxu0 0.0
    %7305 = vmatmul.mubr.f32.gmra.mrb[0].mxu0 %v7199
    %v7306 = vpop.f32.mrb[0].mxu0
    %v7307 = vadd.f32 0.0, %v7306
    %v7308 = vpop.f32.mrb[0].mxu0
    %7309 = vmatprep.mubr.f32.mxu0 0.0
    %7310 = vmatmul.mubr.f32.gmra.mrb[0].mxu0 %v7201
    %v7311 = vpop.f32.mrb[0].mxu0
    %v7312 = vadd.f32 0.0, %v7311
    %v7313 = vpop.f32.mrb[0].mxu0
    %7314 = vmatprep.mubr.f32.mxu0 0.0
    %7315 = vmatmul.mubr.f32.gmra.mrb[0].mxu0 %v7203
    %v7316 = vpop.f32.mrb[0].mxu0
    %v7317 = vadd.f32 0.0, %v7316
    %v7318 = vpop.f32.mrb[0].mxu0
    %7319 = vmatprep.mubr.f32.mxu0 0.0
    %7320 = vmatmul.mubr.f32.gmra.mrb[0].mxu0 %v7205
    %v7321 = vpop.f32.mrb[0].mxu0
    %v7322 = vadd.f32 0.0, %v7321
    %v7323 = vpop.f32.mrb[0].mxu0
    %7324 = vmatprep.mubr.f32.mxu0 0.0
    %7325 = vmatmul.mubr.f32.gmra.mrb[0].mxu0 %v7207
    %v7326 = vpop.f32.mrb[0].mxu0
    %v7327 = vadd.f32 0.0, %v7326
    %v7328 = vpop.f32.mrb[0].mxu0
    %7329 = vdwg.mxu0
    %v7330 = vmul.f32 %v7292, 0.25
    %v7331 = vmul.f32 %v7297, 0.25
    %v7332 = vmul.f32 %v7302, 0.25
    %v7333 = vmul.f32 %v7307, 0.25
    %v7334 = vmul.f32 %v7312, 0.25
    %v7335 = vmul.f32 %v7317, 0.25
    %v7336 = vmul.f32 %v7322, 0.25
    %v7337 = vmul.f32 %v7327, 0.25
    %v7338 = vsel %vm450, %v7330, -inf
    %7339 = vmax.xlane.f32.xlu0 %v7338
    %v7340 = vpop.xlane.xlu0 %7339
    %v7341 = vsel %vm450, %v7331, -inf
    %7342 = vmax.xlane.f32.xlu0 %v7341
    %v7343 = vpop.xlane.xlu0 %7342
    %v7344 = vsel %vm450, %v7332, -inf
    %7345 = vmax.xlane.f32.xlu0 %v7344
    %v7346 = vpop.xlane.xlu0 %7345
    %v7347 = vsel %vm450, %v7333, -inf
    %7348 = vmax.xlane.f32.xlu0 %v7347
    %v7349 = vpop.xlane.xlu0 %7348
    %v7350 = vsel %vm450, %v7334, -inf
    %7351 = vmax.xlane.f32.xlu0 %v7350
    %v7352 = vpop.xlane.xlu0 %7351
    %v7353 = vsel %vm450, %v7335, -inf
    %7354 = vmax.xlane.f32.xlu0 %v7353
    %v7355 = vpop.xlane.xlu0 %7354
    %v7356 = vsel %vm450, %v7336, -inf
    %7357 = vmax.xlane.f32.xlu0 %v7356
    %v7358 = vpop.xlane.xlu0 %7357
    %v7359 = vsel %vm450, %v7337, -inf
    %7360 = vmax.xlane.f32.xlu0 %v7359
    %v7361 = vpop.xlane.xlu0 %7360
    %v7362 = vsub.f32 %v7330, %v7340
    %v7363 = vsub.f32 %v7331, %v7343
    %v7364 = vsub.f32 %v7332, %v7346
    %v7365 = vsub.f32 %v7333, %v7349
    %v7366 = vsub.f32 %v7334, %v7352
    %v7367 = vsub.f32 %v7335, %v7355
    %v7368 = vsub.f32 %v7336, %v7358
    %v7369 = vsub.f32 %v7337, %v7361
    %v7370 = vmul.f32 %v7362, 1.442695
    %v7371 = vpow.pop %v7370
    %v7372 = vmul.f32 %v7363, 1.442695
    %v7373 = vpow.pop %v7372
    %v7374 = vmul.f32 %v7364, 1.442695
    %v7375 = vpow.pop %v7374
    %v7376 = vmul.f32 %v7365, 1.442695
    %v7377 = vpow.pop %v7376
    %v7378 = vmul.f32 %v7366, 1.442695
    %v7379 = vpow.pop %v7378
    %v7380 = vmul.f32 %v7367, 1.442695
    %v7381 = vpow.pop %v7380
    %v7382 = vmul.f32 %v7368, 1.442695
    %v7383 = vpow.pop %v7382
    %v7384 = vmul.f32 %v7369, 1.442695
    %v7385 = vpow.pop %v7384
    %v7386 = vsel %vm450, %v7371, 0.0
    %7387 = vadd.xlane.f32.xlu0 %v7386
    %v7388 = vpop.xlane.xlu0 %7387
    %v7389 = vsel %vm450, %v7373, 0.0
    %7390 = vadd.xlane.f32.xlu0 %v7389
    %v7391 = vpop.xlane.xlu0 %7390
    %v7392 = vsel %vm450, %v7375, 0.0
    %7393 = vadd.xlane.f32.xlu0 %v7392
    %v7394 = vpop.xlane.xlu0 %7393
    %v7395 = vsel %vm450, %v7377, 0.0
    %7396 = vadd.xlane.f32.xlu0 %v7395
    %v7397 = vpop.xlane.xlu0 %7396
    %v7398 = vsel %vm450, %v7379, 0.0
    %7399 = vadd.xlane.f32.xlu0 %v7398
    %v7400 = vpop.xlane.xlu0 %7399
    %v7401 = vsel %vm450, %v7381, 0.0
    %7402 = vadd.xlane.f32.xlu0 %v7401
    %v7403 = vpop.xlane.xlu0 %7402
    %v7404 = vsel %vm450, %v7383, 0.0
    %7405 = vadd.xlane.f32.xlu0 %v7404
    %v7406 = vpop.xlane.xlu0 %7405
    %v7407 = vsel %vm450, %v7385, 0.0
    %7408 = vadd.xlane.f32.xlu0 %v7407
    %v7409 = vpop.xlane.xlu0 %7408
    %v7410 = vrcp.pop %v7388
    %v7411 = vrcp.pop %v7391
    %v7412 = vrcp.pop %v7394
    %v7413 = vrcp.pop %v7397
    %v7414 = vrcp.pop %v7400
    %v7415 = vrcp.pop %v7403
    %v7416 = vrcp.pop %v7406
    %v7417 = vrcp.pop %v7409
    %v7418 = vmul.f32 %v7371, %v7410
    %v7419 = vmul.f32 %v7373, %v7411
    %v7420 = vmul.f32 %v7375, %v7412
    %v7421 = vmul.f32 %v7377, %v7413
    %v7422 = vmul.f32 %v7379, %v7414
    %v7423 = vmul.f32 %v7381, %v7415
    %v7424 = vmul.f32 %v7383, %v7416
    %v7425 = vmul.f32 %v7385, %v7417
    %7426 = vrot.lane.b32.xlu0 %v6257, 96
    %v7427 = vpop.permute.xlu0 %7426
    %7428 = vrot.lane.b32.xlu0 %v6263, 96
    %v7429 = vpop.permute.xlu0 %7428
    %7430 = vrot.lane.b32.xlu0 %v6269, 96
    %v7431 = vpop.permute.xlu0 %7430
    %7432 = vrot.lane.b32.xlu0 %v6275, 96
    %v7433 = vpop.permute.xlu0 %7432
    %7434 = vrot.lane.b32.xlu0 %v6281, 96
    %v7435 = vpop.permute.xlu0 %7434
    %7436 = vrot.lane.b32.xlu0 %v6287, 96
    %v7437 = vpop.permute.xlu0 %7436
    %7438 = vrot.lane.b32.xlu0 %v6293, 96
    %v7439 = vpop.permute.xlu0 %7438
    %7440 = vrot.lane.b32.xlu0 %v6299, 96
    %v7441 = vpop.permute.xlu0 %7440
    %v7451 = vsel %vm450, %v7418, 0
    %v7454 = vsel %vm450, %v7419, 0
    %v7457 = vsel %vm450, %v7420, 0
    %v7460 = vsel %vm450, %v7421, 0
    %v7463 = vsel %vm450, %v7422, 0
    %v7466 = vsel %vm450, %v7423, 0
    %v7469 = vsel %vm450, %v7424, 0
    %v7472 = vsel %vm450, %v7425, 0
    %7474 = vmatprep.subr.mxu0 0.0
    %7475 = vmatpush1.msra.mxu0 %v7427
    %7476 = vmatprep.subr.mxu0 0.0
    %7477 = vmatpush1.msra.mxu0 %v7429
    %7478 = vmatprep.subr.mxu0 0.0
    %7479 = vmatpush1.msra.mxu0 %v7431
    %7480 = vmatprep.subr.mxu0 0.0
    %7481 = vmatpush1.msra.mxu0 %v7433
    %7482 = vmatprep.subr.mxu0 0.0
    %7483 = vmatpush1.msra.mxu0 %v7435
    %7484 = vmatprep.subr.mxu0 0.0
    %7485 = vmatpush1.msra.mxu0 %v7437
    %7486 = vmatprep.subr.mxu0 0.0
    %7487 = vmatpush1.msra.mxu0 %v7439
    %7488 = vmatprep.subr.mxu0 0.0
    %7489 = vmatpush1.msra.mxu0 %v7441
    %7490 = vmatprep.subr.mxu0 0.0
    %7491 = vmatpush1.msra.mxu0 0.0
    %7492 = vmatprep.subr.mxu0 0.0
    %7493 = vmatpush1.msra.mxu0 0.0
    %7494 = vmatprep.subr.mxu0 0.0
    %7495 = vmatpush1.msra.mxu0 0.0
    %7496 = vmatprep.subr.mxu0 0.0
    %7497 = vmatpush1.msra.mxu0 0.0
    %7498 = vmatprep.subr.mxu0 0.0
    %7499 = vmatpush1.msra.mxu0 0.0
    %7500 = vmatprep.subr.mxu0 0.0
    %7501 = vmatpush1.msra.mxu0 0.0
    %7502 = vmatprep.subr.mxu0 0.0
    %7503 = vmatpush1.msra.mxu0 0.0
    %7504 = vmatprep.subr.mxu0 0.0
    %7505 = vmatpush1.msra.mxu0 0.0
    %7506 = vmatprep.subr.mxu0 0.0
    %7507 = vmatpush1.msra.mxu0 0.0
    %7508 = vmatprep.subr.mxu0 0.0
    %7509 = vmatpush1.msra.mxu0 0.0
    %7510 = vmatprep.subr.mxu0 0.0
    %7511 = vmatpush1.msra.mxu0 0.0
    %7512 = vmatprep.subr.mxu0 0.0
    %7513 = vmatpush1.msra.mxu0 0.0
    %7514 = vmatprep.subr.mxu0 0.0
    %7515 = vmatpush1.msra.mxu0 0.0
    %7516 = vmatprep.subr.mxu0 0.0
    %7517 = vmatpush1.msra.mxu0 0.0
    %7518 = vmatprep.subr.mxu0 0.0
    %7519 = vmatpush1.msra.mxu0 0.0
    %7520 = vmatprep.subr.mxu0 0.0
    %7521 = vmatpush1.msra.mxu0 0.0
    %7522 = vmatprep.subr.mxu0 0.0
    %7523 = vmatpush1.msra.mxu0 0.0
    %7524 = vmatprep.subr.mxu0 0.0
    %7525 = vmatpush1.msra.mxu0 0.0
    %7526 = vmatprep.subr.mxu0 0.0
    %7527 = vmatpush1.msra.mxu0 0.0
    %7528 = vmatprep.subr.mxu0 0.0
    %7529 = vmatpush1.msra.mxu0 0.0
    %7530 = vmatprep.subr.mxu0 0.0
    %7531 = vmatpush1.msra.mxu0 0.0
    %7532 = vmatprep.subr.mxu0 0.0
    %7533 = vmatpush1.msra.mxu0 0.0
    %7534 = vmatprep.subr.mxu0 0.0
    %7535 = vmatpush1.msra.mxu0 0.0
    %7536 = vmatprep.subr.mxu0 0.0
    %7537 = vmatpush1.msra.mxu0 0.0
    %7538 = vmatprep.mubr.f32.mxu0 0.0
    %7539 = vmatmul.mubr.f32.gmra.mrb[0].mxu0 %v7451
    %v7540 = vpop.f32.mrb[0].mxu0
    %v7541 = vadd.f32 0.0, %v7540
    %v7542 = vpop.f32.mrb[0].mxu0
    %7543 = vmatprep.mubr.f32.mxu0 0.0
    %7544 = vmatmul.mubr.f32.gmra.mrb[0].mxu0 %v7454
    %v7545 = vpop.f32.mrb[0].mxu0
    %v7546 = vadd.f32 0.0, %v7545
    %v7547 = vpop.f32.mrb[0].mxu0
    %7548 = vmatprep.mubr.f32.mxu0 0.0
    %7549 = vmatmul.mubr.f32.gmra.mrb[0].mxu0 %v7457
    %v7550 = vpop.f32.mrb[0].mxu0
    %v7551 = vadd.f32 0.0, %v7550
    %v7552 = vpop.f32.mrb[0].mxu0
    %7553 = vmatprep.mubr.f32.mxu0 0.0
    %7554 = vmatmul.mubr.f32.gmra.mrb[0].mxu0 %v7460
    %v7555 = vpop.f32.mrb[0].mxu0
    %v7556 = vadd.f32 0.0, %v7555
    %v7557 = vpop.f32.mrb[0].mxu0
    %7558 = vmatprep.mubr.f32.mxu0 0.0
    %7559 = vmatmul.mubr.f32.gmra.mrb[0].mxu0 %v7463
    %v7560 = vpop.f32.mrb[0].mxu0
    %v7561 = vadd.f32 0.0, %v7560
    %v7562 = vpop.f32.mrb[0].mxu0
    %7563 = vmatprep.mubr.f32.mxu0 0.0
    %7564 = vmatmul.mubr.f32.gmra.mrb[0].mxu0 %v7466
    %v7565 = vpop.f32.mrb[0].mxu0
    %v7566 = vadd.f32 0.0, %v7565
    %v7567 = vpop.f32.mrb[0].mxu0
    %7568 = vmatprep.mubr.f32.mxu0 0.0
    %7569 = vmatmul.mubr.f32.gmra.mrb[0].mxu0 %v7469
    %v7570 = vpop.f32.mrb[0].mxu0
    %v7571 = vadd.f32 0.0, %v7570
    %v7572 = vpop.f32.mrb[0].mxu0
    %7573 = vmatprep.mubr.f32.mxu0 0.0
    %7574 = vmatmul.mubr.f32.gmra.mrb[0].mxu0 %v7472
    %v7575 = vpop.f32.mrb[0].mxu0
    %v7576 = vadd.f32 0.0, %v7575
    %v7577 = vpop.f32.mrb[0].mxu0
    %7578 = vdwg.mxu0
    %7587 = vrot.lane.b32.xlu0 %v7541, 32
    %v7588 = vpop.permute.xlu0 %7587
    %7589 = vrot.lane.b32.xlu0 %v7546, 32
    %v7590 = vpop.permute.xlu0 %7589
    %7591 = vrot.lane.b32.xlu0 %v7551, 32
    %v7592 = vpop.permute.xlu0 %7591
    %7593 = vrot.lane.b32.xlu0 %v7556, 32
    %v7594 = vpop.permute.xlu0 %7593
    %7595 = vrot.lane.b32.xlu0 %v7561, 32
    %v7596 = vpop.permute.xlu0 %7595
    %7597 = vrot.lane.b32.xlu0 %v7566, 32
    %v7598 = vpop.permute.xlu0 %7597
    %7599 = vrot.lane.b32.xlu0 %v7571, 32
    %v7600 = vpop.permute.xlu0 %7599
    %7601 = vrot.lane.b32.xlu0 %v7576, 32
    %v7602 = vpop.permute.xlu0 %7601
    %7611 = vst.msk [vmem:[#allocation3] sm:$0xff] %vm3097, %v7588
    %7612 = vst.msk [vmem:[#allocation3 + $0x8] sm:$0xff] %vm3097, %v7590
    %7613 = vst.msk [vmem:[#allocation3 + $0x10] sm:$0xff] %vm3097, %v7592
    %7614 = vst.msk [vmem:[#allocation3 + $0x18] sm:$0xff] %vm3097, %v7594
    %7615 = vst.msk [vmem:[#allocation3 + $0x20] sm:$0xff] %vm3097, %v7596
    %7616 = vst.msk [vmem:[#allocation3 + $0x28] sm:$0xff] %vm3097, %v7598
    %7617 = vst.msk [vmem:[#allocation3 + $0x30] sm:$0xff] %vm3097, %v7600
    %7618 = vst.msk [vmem:[#allocation3 + $0x38] sm:$0xff] %vm3097, %v7602
    %7619 = vrot.lane.b32.xlu0 %v6255, 80
    %v7620 = vpop.permute.xlu0 %7619
    %7621 = vrot.lane.b32.xlu0 %v6261, 80
    %v7622 = vpop.permute.xlu0 %7621
    %7623 = vrot.lane.b32.xlu0 %v6267, 80
    %v7624 = vpop.permute.xlu0 %7623
    %7625 = vrot.lane.b32.xlu0 %v6273, 80
    %v7626 = vpop.permute.xlu0 %7625
    %7627 = vrot.lane.b32.xlu0 %v6279, 80
    %v7628 = vpop.permute.xlu0 %7627
    %7629 = vrot.lane.b32.xlu0 %v6285, 80
    %v7630 = vpop.permute.xlu0 %7629
    %7631 = vrot.lane.b32.xlu0 %v6291, 80
    %v7632 = vpop.permute.xlu0 %7631
    %7633 = vrot.lane.b32.xlu0 %v6297, 80
    %v7634 = vpop.permute.xlu0 %7633
    %7635 = vrot.lane.b32.xlu0 %v6255, 16
    %v7636 = vpop.permute.xlu0 %7635
    %7637 = vrot.lane.b32.xlu0 %v6261, 16
    %v7638 = vpop.permute.xlu0 %7637
    %7639 = vrot.lane.b32.xlu0 %v6267, 16
    %v7640 = vpop.permute.xlu0 %7639
    %7641 = vrot.lane.b32.xlu0 %v6273, 16
    %v7642 = vpop.permute.xlu0 %7641
    %7643 = vrot.lane.b32.xlu0 %v6279, 16
    %v7644 = vpop.permute.xlu0 %7643
    %7645 = vrot.lane.b32.xlu0 %v6285, 16
    %v7646 = vpop.permute.xlu0 %7645
    %7647 = vrot.lane.b32.xlu0 %v6291, 16
    %v7648 = vpop.permute.xlu0 %7647
    %7649 = vrot.lane.b32.xlu0 %v6297, 16
    %v7650 = vpop.permute.xlu0 %7649
    %v7651 = vsel %vm2397, %v7620, 0
    %v7653 = vsel %vm2397, %v7622, 0
    %v7655 = vsel %vm2397, %v7624, 0
    %v7657 = vsel %vm2397, %v7626, 0
    %v7659 = vsel %vm2397, %v7628, 0
    %v7661 = vsel %vm2397, %v7630, 0
    %v7663 = vsel %vm2397, %v7632, 0
    %v7665 = vsel %vm2397, %v7634, 0
    %v7667 = vsel %vm2397, %v7636, 0
    %v7669 = vsel %vm2397, %v7638, 0
    %v7671 = vsel %vm2397, %v7640, 0
    %v7673 = vsel %vm2397, %v7642, 0
    %v7675 = vsel %vm2397, %v7644, 0
    %v7677 = vsel %vm2397, %v7646, 0
    %v7679 = vsel %vm2397, %v7648, 0
    %v7681 = vsel %vm2397, %v7650, 0
    %7683 = vmatprep.subr.mxu0 0.0
    %7684 = vmatpush1.xpose.msra.mxu0 %v7667
    %7685 = vmatprep.subr.mxu0 0.0
    %7686 = vmatpush1.xpose.msra.mxu0 %v7669
    %7687 = vmatprep.subr.mxu0 0.0
    %7688 = vmatpush1.xpose.msra.mxu0 %v7671
    %7689 = vmatprep.subr.mxu0 0.0
    %7690 = vmatpush1.xpose.msra.mxu0 %v7673
    %7691 = vmatprep.subr.mxu0 0.0
    %7692 = vmatpush1.xpose.msra.mxu0 %v7675
    %7693 = vmatprep.subr.mxu0 0.0
    %7694 = vmatpush1.xpose.msra.mxu0 %v7677
    %7695 = vmatprep.subr.mxu0 0.0
    %7696 = vmatpush1.xpose.msra.mxu0 %v7679
    %7697 = vmatprep.subr.mxu0 0.0
    %7698 = vmatpush1.xpose.msra.mxu0 %v7681
    %7699 = vmatprep.subr.mxu0 0.0
    %7700 = vmatpush1.xpose.msra.mxu0 0.0
    %7701 = vmatprep.subr.mxu0 0.0
    %7702 = vmatpush1.xpose.msra.mxu0 0.0
    %7703 = vmatprep.subr.mxu0 0.0
    %7704 = vmatpush1.xpose.msra.mxu0 0.0
    %7705 = vmatprep.subr.mxu0 0.0
    %7706 = vmatpush1.xpose.msra.mxu0 0.0
    %7707 = vmatprep.subr.mxu0 0.0
    %7708 = vmatpush1.xpose.msra.mxu0 0.0
    %7709 = vmatprep.subr.mxu0 0.0
    %7710 = vmatpush1.xpose.msra.mxu0 0.0
    %7711 = vmatprep.subr.mxu0 0.0
    %7712 = vmatpush1.xpose.msra.mxu0 0.0
    %7713 = vmatprep.subr.mxu0 0.0
    %7714 = vmatpush1.xpose.msra.mxu0 0.0
    %7715 = vmatprep.subr.mxu0 0.0
    %7716 = vmatpush1.xpose.msra.mxu0 0.0
    %7717 = vmatprep.subr.mxu0 0.0
    %7718 = vmatpush1.xpose.msra.mxu0 0.0
    %7719 = vmatprep.subr.mxu0 0.0
    %7720 = vmatpush1.xpose.msra.mxu0 0.0
    %7721 = vmatprep.subr.mxu0 0.0
    %7722 = vmatpush1.xpose.msra.mxu0 0.0
    %7723 = vmatprep.subr.mxu0 0.0
    %7724 = vmatpush1.xpose.msra.mxu0 0.0
    %7725 = vmatprep.subr.mxu0 0.0
    %7726 = vmatpush1.xpose.msra.mxu0 0.0
    %7727 = vmatprep.subr.mxu0 0.0
    %7728 = vmatpush1.xpose.msra.mxu0 0.0
    %7729 = vmatprep.subr.mxu0 0.0
    %7730 = vmatpush1.xpose.msra.mxu0 0.0
    %7731 = vmatprep.subr.mxu0 0.0
    %7732 = vmatpush1.xpose.msra.mxu0 0.0
    %7733 = vmatprep.subr.mxu0 0.0
    %7734 = vmatpush1.xpose.msra.mxu0 0.0
    %7735 = vmatprep.subr.mxu0 0.0
    %7736 = vmatpush1.xpose.msra.mxu0 0.0
    %7737 = vmatprep.subr.mxu0 0.0
    %7738 = vmatpush1.xpose.msra.mxu0 0.0
    %7739 = vmatprep.subr.mxu0 0.0
    %7740 = vmatpush1.xpose.msra.mxu0 0.0
    %7741 = vmatprep.subr.mxu0 0.0
    %7742 = vmatpush1.xpose.msra.mxu0 0.0
    %7743 = vmatprep.subr.mxu0 0.0
    %7744 = vmatpush1.xpose.msra.mxu0 0.0
    %7745 = vmatprep.subr.mxu0 0.0
    %7746 = vmatpush1.xpose.msra.mxu0 0.0
    %7747 = vmatprep.mubr.f32.mxu0 0.0
    %7748 = vmatmul.mubr.f32.gmra.mrb[0].mxu0 %v7651
    %v7749 = vpop.f32.mrb[0].mxu0
    %v7750 = vadd.f32 0.0, %v7749
    %v7751 = vpop.f32.mrb[0].mxu0
    %7752 = vmatprep.mubr.f32.mxu0 0.0
    %7753 = vmatmul.mubr.f32.gmra.mrb[0].mxu0 %v7653
    %v7754 = vpop.f32.mrb[0].mxu0
    %v7755 = vadd.f32 0.0, %v7754
    %v7756 = vpop.f32.mrb[0].mxu0
    %7757 = vmatprep.mubr.f32.mxu0 0.0
    %7758 = vmatmul.mubr.f32.gmra.mrb[0].mxu0 %v7655
    %v7759 = vpop.f32.mrb[0].mxu0
    %v7760 = vadd.f32 0.0, %v7759
    %v7761 = vpop.f32.mrb[0].mxu0
    %7762 = vmatprep.mubr.f32.mxu0 0.0
    %7763 = vmatmul.mubr.f32.gmra.mrb[0].mxu0 %v7657
    %v7764 = vpop.f32.mrb[0].mxu0
    %v7765 = vadd.f32 0.0, %v7764
    %v7766 = vpop.f32.mrb[0].mxu0
    %7767 = vmatprep.mubr.f32.mxu0 0.0
    %7768 = vmatmul.mubr.f32.gmra.mrb[0].mxu0 %v7659
    %v7769 = vpop.f32.mrb[0].mxu0
    %v7770 = vadd.f32 0.0, %v7769
    %v7771 = vpop.f32.mrb[0].mxu0
    %7772 = vmatprep.mubr.f32.mxu0 0.0
    %7773 = vmatmul.mubr.f32.gmra.mrb[0].mxu0 %v7661
    %v7774 = vpop.f32.mrb[0].mxu0
    %v7775 = vadd.f32 0.0, %v7774
    %v7776 = vpop.f32.mrb[0].mxu0
    %7777 = vmatprep.mubr.f32.mxu0 0.0
    %7778 = vmatmul.mubr.f32.gmra.mrb[0].mxu0 %v7663
    %v7779 = vpop.f32.mrb[0].mxu0
    %v7780 = vadd.f32 0.0, %v7779
    %v7781 = vpop.f32.mrb[0].mxu0
    %7782 = vmatprep.mubr.f32.mxu0 0.0
    %7783 = vmatmul.mubr.f32.gmra.mrb[0].mxu0 %v7665
    %v7784 = vpop.f32.mrb[0].mxu0
    %v7785 = vadd.f32 0.0, %v7784
    %v7786 = vpop.f32.mrb[0].mxu0
    %7787 = vdwg.mxu0
    %v7788 = vmul.f32 %v7750, 0.25
    %v7789 = vmul.f32 %v7755, 0.25
    %v7790 = vmul.f32 %v7760, 0.25
    %v7791 = vmul.f32 %v7765, 0.25
    %v7792 = vmul.f32 %v7770, 0.25
    %v7793 = vmul.f32 %v7775, 0.25
    %v7794 = vmul.f32 %v7780, 0.25
    %v7795 = vmul.f32 %v7785, 0.25
    %v7796 = vsel %vm450, %v7788, -inf
    %7797 = vmax.xlane.f32.xlu0 %v7796
    %v7798 = vpop.xlane.xlu0 %7797
    %v7799 = vsel %vm450, %v7789, -inf
    %7800 = vmax.xlane.f32.xlu0 %v7799
    %v7801 = vpop.xlane.xlu0 %7800
    %v7802 = vsel %vm450, %v7790, -inf
    %7803 = vmax.xlane.f32.xlu0 %v7802
    %v7804 = vpop.xlane.xlu0 %7803
    %v7805 = vsel %vm450, %v7791, -inf
    %7806 = vmax.xlane.f32.xlu0 %v7805
    %v7807 = vpop.xlane.xlu0 %7806
    %v7808 = vsel %vm450, %v7792, -inf
    %7809 = vmax.xlane.f32.xlu0 %v7808
    %v7810 = vpop.xlane.xlu0 %7809
    %v7811 = vsel %vm450, %v7793, -inf
    %7812 = vmax.xlane.f32.xlu0 %v7811
    %v7813 = vpop.xlane.xlu0 %7812
    %v7814 = vsel %vm450, %v7794, -inf
    %7815 = vmax.xlane.f32.xlu0 %v7814
    %v7816 = vpop.xlane.xlu0 %7815
    %v7817 = vsel %vm450, %v7795, -inf
    %7818 = vmax.xlane.f32.xlu0 %v7817
    %v7819 = vpop.xlane.xlu0 %7818
    %v7820 = vsub.f32 %v7788, %v7798
    %v7821 = vsub.f32 %v7789, %v7801
    %v7822 = vsub.f32 %v7790, %v7804
    %v7823 = vsub.f32 %v7791, %v7807
    %v7824 = vsub.f32 %v7792, %v7810
    %v7825 = vsub.f32 %v7793, %v7813
    %v7826 = vsub.f32 %v7794, %v7816
    %v7827 = vsub.f32 %v7795, %v7819
    %v7828 = vmul.f32 %v7820, 1.442695
    %v7829 = vpow.pop %v7828
    %v7830 = vmul.f32 %v7821, 1.442695
    %v7831 = vpow.pop %v7830
    %v7832 = vmul.f32 %v7822, 1.442695
    %v7833 = vpow.pop %v7832
    %v7834 = vmul.f32 %v7823, 1.442695
    %v7835 = vpow.pop %v7834
    %v7836 = vmul.f32 %v7824, 1.442695
    %v7837 = vpow.pop %v7836
    %v7838 = vmul.f32 %v7825, 1.442695
    %v7839 = vpow.pop %v7838
    %v7840 = vmul.f32 %v7826, 1.442695
    %v7841 = vpow.pop %v7840
    %v7842 = vmul.f32 %v7827, 1.442695
    %v7843 = vpow.pop %v7842
    %v7844 = vsel %vm450, %v7829, 0.0
    %7845 = vadd.xlane.f32.xlu0 %v7844
    %v7846 = vpop.xlane.xlu0 %7845
    %v7847 = vsel %vm450, %v7831, 0.0
    %7848 = vadd.xlane.f32.xlu0 %v7847
    %v7849 = vpop.xlane.xlu0 %7848
    %v7850 = vsel %vm450, %v7833, 0.0
    %7851 = vadd.xlane.f32.xlu0 %v7850
    %v7852 = vpop.xlane.xlu0 %7851
    %v7853 = vsel %vm450, %v7835, 0.0
    %7854 = vadd.xlane.f32.xlu0 %v7853
    %v7855 = vpop.xlane.xlu0 %7854
    %v7856 = vsel %vm450, %v7837, 0.0
    %7857 = vadd.xlane.f32.xlu0 %v7856
    %v7858 = vpop.xlane.xlu0 %7857
    %v7859 = vsel %vm450, %v7839, 0.0
    %7860 = vadd.xlane.f32.xlu0 %v7859
    %v7861 = vpop.xlane.xlu0 %7860
    %v7862 = vsel %vm450, %v7841, 0.0
    %7863 = vadd.xlane.f32.xlu0 %v7862
    %v7864 = vpop.xlane.xlu0 %7863
    %v7865 = vsel %vm450, %v7843, 0.0
    %7866 = vadd.xlane.f32.xlu0 %v7865
    %v7867 = vpop.xlane.xlu0 %7866
    %v7868 = vrcp.pop %v7846
    %v7869 = vrcp.pop %v7849
    %v7870 = vrcp.pop %v7852
    %v7871 = vrcp.pop %v7855
    %v7872 = vrcp.pop %v7858
    %v7873 = vrcp.pop %v7861
    %v7874 = vrcp.pop %v7864
    %v7875 = vrcp.pop %v7867
    %v7876 = vmul.f32 %v7829, %v7868
    %v7877 = vmul.f32 %v7831, %v7869
    %v7878 = vmul.f32 %v7833, %v7870
    %v7879 = vmul.f32 %v7835, %v7871
    %v7880 = vmul.f32 %v7837, %v7872
    %v7881 = vmul.f32 %v7839, %v7873
    %v7882 = vmul.f32 %v7841, %v7874
    %v7883 = vmul.f32 %v7843, %v7875
    %7884 = vrot.lane.b32.xlu0 %v6257, 80
    %v7885 = vpop.permute.xlu0 %7884
    %7886 = vrot.lane.b32.xlu0 %v6263, 80
    %v7887 = vpop.permute.xlu0 %7886
    %7888 = vrot.lane.b32.xlu0 %v6269, 80
    %v7889 = vpop.permute.xlu0 %7888
    %7890 = vrot.lane.b32.xlu0 %v6275, 80
    %v7891 = vpop.permute.xlu0 %7890
    %7892 = vrot.lane.b32.xlu0 %v6281, 80
    %v7893 = vpop.permute.xlu0 %7892
    %7894 = vrot.lane.b32.xlu0 %v6287, 80
    %v7895 = vpop.permute.xlu0 %7894
    %7896 = vrot.lane.b32.xlu0 %v6293, 80
    %v7897 = vpop.permute.xlu0 %7896
    %7898 = vrot.lane.b32.xlu0 %v6299, 80
    %v7899 = vpop.permute.xlu0 %7898
    %v7909 = vsel %vm450, %v7876, 0
    %v7912 = vsel %vm450, %v7877, 0
    %v7915 = vsel %vm450, %v7878, 0
    %v7918 = vsel %vm450, %v7879, 0
    %v7921 = vsel %vm450, %v7880, 0
    %v7924 = vsel %vm450, %v7881, 0
    %v7927 = vsel %vm450, %v7882, 0
    %v7930 = vsel %vm450, %v7883, 0
    %7932 = vmatprep.subr.mxu0 0.0
    %7933 = vmatpush1.msra.mxu0 %v7885
    %7934 = vmatprep.subr.mxu0 0.0
    %7935 = vmatpush1.msra.mxu0 %v7887
    %7936 = vmatprep.subr.mxu0 0.0
    %7937 = vmatpush1.msra.mxu0 %v7889
    %7938 = vmatprep.subr.mxu0 0.0
    %7939 = vmatpush1.msra.mxu0 %v7891
    %7940 = vmatprep.subr.mxu0 0.0
    %7941 = vmatpush1.msra.mxu0 %v7893
    %7942 = vmatprep.subr.mxu0 0.0
    %7943 = vmatpush1.msra.mxu0 %v7895
    %7944 = vmatprep.subr.mxu0 0.0
    %7945 = vmatpush1.msra.mxu0 %v7897
    %7946 = vmatprep.subr.mxu0 0.0
    %7947 = vmatpush1.msra.mxu0 %v7899
    %7948 = vmatprep.subr.mxu0 0.0
    %7949 = vmatpush1.msra.mxu0 0.0
    %7950 = vmatprep.subr.mxu0 0.0
    %7951 = vmatpush1.msra.mxu0 0.0
    %7952 = vmatprep.subr.mxu0 0.0
    %7953 = vmatpush1.msra.mxu0 0.0
    %7954 = vmatprep.subr.mxu0 0.0
    %7955 = vmatpush1.msra.mxu0 0.0
    %7956 = vmatprep.subr.mxu0 0.0
    %7957 = vmatpush1.msra.mxu0 0.0
    %7958 = vmatprep.subr.mxu0 0.0
    %7959 = vmatpush1.msra.mxu0 0.0
    %7960 = vmatprep.subr.mxu0 0.0
    %7961 = vmatpush1.msra.mxu0 0.0
    %7962 = vmatprep.subr.mxu0 0.0
    %7963 = vmatpush1.msra.mxu0 0.0
    %7964 = vmatprep.subr.mxu0 0.0
    %7965 = vmatpush1.msra.mxu0 0.0
    %7966 = vmatprep.subr.mxu0 0.0
    %7967 = vmatpush1.msra.mxu0 0.0
    %7968 = vmatprep.subr.mxu0 0.0
    %7969 = vmatpush1.msra.mxu0 0.0
    %7970 = vmatprep.subr.mxu0 0.0
    %7971 = vmatpush1.msra.mxu0 0.0
    %7972 = vmatprep.subr.mxu0 0.0
    %7973 = vmatpush1.msra.mxu0 0.0
    %7974 = vmatprep.subr.mxu0 0.0
    %7975 = vmatpush1.msra.mxu0 0.0
    %7976 = vmatprep.subr.mxu0 0.0
    %7977 = vmatpush1.msra.mxu0 0.0
    %7978 = vmatprep.subr.mxu0 0.0
    %7979 = vmatpush1.msra.mxu0 0.0
    %7980 = vmatprep.subr.mxu0 0.0
    %7981 = vmatpush1.msra.mxu0 0.0
    %7982 = vmatprep.subr.mxu0 0.0
    %7983 = vmatpush1.msra.mxu0 0.0
    %7984 = vmatprep.subr.mxu0 0.0
    %7985 = vmatpush1.msra.mxu0 0.0
    %7986 = vmatprep.subr.mxu0 0.0
    %7987 = vmatpush1.msra.mxu0 0.0
    %7988 = vmatprep.subr.mxu0 0.0
    %7989 = vmatpush1.msra.mxu0 0.0
    %7990 = vmatprep.subr.mxu0 0.0
    %7991 = vmatpush1.msra.mxu0 0.0
    %7992 = vmatprep.subr.mxu0 0.0
    %7993 = vmatpush1.msra.mxu0 0.0
    %7994 = vmatprep.subr.mxu0 0.0
    %7995 = vmatpush1.msra.mxu0 0.0
    %7996 = vmatprep.mubr.f32.mxu0 0.0
    %7997 = vmatmul.mubr.f32.gmra.mrb[0].mxu0 %v7909
    %v7998 = vpop.f32.mrb[0].mxu0
    %v7999 = vadd.f32 0.0, %v7998
    %v8000 = vpop.f32.mrb[0].mxu0
    %8001 = vmatprep.mubr.f32.mxu0 0.0
    %8002 = vmatmul.mubr.f32.gmra.mrb[0].mxu0 %v7912
    %v8003 = vpop.f32.mrb[0].mxu0
    %v8004 = vadd.f32 0.0, %v8003
    %v8005 = vpop.f32.mrb[0].mxu0
    %8006 = vmatprep.mubr.f32.mxu0 0.0
    %8007 = vmatmul.mubr.f32.gmra.mrb[0].mxu0 %v7915
    %v8008 = vpop.f32.mrb[0].mxu0
    %v8009 = vadd.f32 0.0, %v8008
    %v8010 = vpop.f32.mrb[0].mxu0
    %8011 = vmatprep.mubr.f32.mxu0 0.0
    %8012 = vmatmul.mubr.f32.gmra.mrb[0].mxu0 %v7918
    %v8013 = vpop.f32.mrb[0].mxu0
    %v8014 = vadd.f32 0.0, %v8013
    %v8015 = vpop.f32.mrb[0].mxu0
    %8016 = vmatprep.mubr.f32.mxu0 0.0
    %8017 = vmatmul.mubr.f32.gmra.mrb[0].mxu0 %v7921
    %v8018 = vpop.f32.mrb[0].mxu0
    %v8019 = vadd.f32 0.0, %v8018
    %v8020 = vpop.f32.mrb[0].mxu0
    %8021 = vmatprep.mubr.f32.mxu0 0.0
    %8022 = vmatmul.mubr.f32.gmra.mrb[0].mxu0 %v7924
    %v8023 = vpop.f32.mrb[0].mxu0
    %v8024 = vadd.f32 0.0, %v8023
    %v8025 = vpop.f32.mrb[0].mxu0
    %8026 = vmatprep.mubr.f32.mxu0 0.0
    %8027 = vmatmul.mubr.f32.gmra.mrb[0].mxu0 %v7927
    %v8028 = vpop.f32.mrb[0].mxu0
    %v8029 = vadd.f32 0.0, %v8028
    %v8030 = vpop.f32.mrb[0].mxu0
    %8031 = vmatprep.mubr.f32.mxu0 0.0
    %8032 = vmatmul.mubr.f32.gmra.mrb[0].mxu0 %v7930
    %v8033 = vpop.f32.mrb[0].mxu0
    %v8034 = vadd.f32 0.0, %v8033
    %v8035 = vpop.f32.mrb[0].mxu0
    %8036 = vdwg.mxu0
    %8045 = vrot.lane.b32.xlu0 %v7999, 48
    %v8046 = vpop.permute.xlu0 %8045
    %8047 = vrot.lane.b32.xlu0 %v8004, 48
    %v8048 = vpop.permute.xlu0 %8047
    %8049 = vrot.lane.b32.xlu0 %v8009, 48
    %v8050 = vpop.permute.xlu0 %8049
    %8051 = vrot.lane.b32.xlu0 %v8014, 48
    %v8052 = vpop.permute.xlu0 %8051
    %8053 = vrot.lane.b32.xlu0 %v8019, 48
    %v8054 = vpop.permute.xlu0 %8053
    %8055 = vrot.lane.b32.xlu0 %v8024, 48
    %v8056 = vpop.permute.xlu0 %8055
    %8057 = vrot.lane.b32.xlu0 %v8029, 48
    %v8058 = vpop.permute.xlu0 %8057
    %8059 = vrot.lane.b32.xlu0 %v8034, 48
    %v8060 = vpop.permute.xlu0 %8059
    %8069 = vst.msk [vmem:[#allocation3] sm:$0xff] %vm3447, %v8046
    %8070 = vst.msk [vmem:[#allocation3 + $0x8] sm:$0xff] %vm3447, %v8048
    %8071 = vst.msk [vmem:[#allocation3 + $0x10] sm:$0xff] %vm3447, %v8050
    %8072 = vst.msk [vmem:[#allocation3 + $0x18] sm:$0xff] %vm3447, %v8052
    %8073 = vst.msk [vmem:[#allocation3 + $0x20] sm:$0xff] %vm3447, %v8054
    %8074 = vst.msk [vmem:[#allocation3 + $0x28] sm:$0xff] %vm3447, %v8056
    %8075 = vst.msk [vmem:[#allocation3 + $0x30] sm:$0xff] %vm3447, %v8058
    %8076 = vst.msk [vmem:[#allocation3 + $0x38] sm:$0xff] %vm3447, %v8060
    %v8077 = vld [vmem:[#allocation3] sm:$0xff]
    %v8078 = vld [vmem:[#allocation3 + $0x8] sm:$0xff]
    %v8079 = vld [vmem:[#allocation3 + $0x10] sm:$0xff]
    %v8080 = vld [vmem:[#allocation3 + $0x18] sm:$0xff]
    %v8081 = vld [vmem:[#allocation3 + $0x20] sm:$0xff]
    %v8082 = vld [vmem:[#allocation3 + $0x28] sm:$0xff]
    %v8083 = vld [vmem:[#allocation3 + $0x30] sm:$0xff]
    %v8084 = vld [vmem:[#allocation3 + $0x38] sm:$0xff]
    %v8085 = vlaneseq
    %v8086 = vshrl.u32 %v8085, 7
    %v8087 = vsub.s32 0, %v8086
    %v8088 = vrot.slane %v6176, %v8087
    %v8090 = vsel %vm450, %v8077, 0
    %v8093 = vsel %vm450, %v8078, 0
    %v8096 = vsel %vm450, %v8079, 0
    %v8099 = vsel %vm450, %v8080, 0
    %v8102 = vsel %vm450, %v8081, 0
    %v8105 = vsel %vm450, %v8082, 0
    %v8108 = vsel %vm450, %v8083, 0
    %v8111 = vsel %vm450, %v8084, 0
    %8113 = vmatprep.subr.mxu0 0.0
    %8114 = vmatpush1.msra.mxu0 %v6168
    %8115 = vmatprep.subr.mxu0 0.0
    %8116 = vmatpush1.msra.mxu0 %v6169
    %8117 = vmatprep.subr.mxu0 0.0
    %8118 = vmatpush1.msra.mxu0 %v6170
    %8119 = vmatprep.subr.mxu0 0.0
    %8120 = vmatpush1.msra.mxu0 %v6171
    %8121 = vmatprep.subr.mxu0 0.0
    %8122 = vmatpush1.msra.mxu0 %v6172
    %8123 = vmatprep.subr.mxu0 0.0
    %8124 = vmatpush1.msra.mxu0 %v6173
    %8125 = vmatprep.subr.mxu0 0.0
    %8126 = vmatpush1.msra.mxu0 %v6174
    %8127 = vmatprep.subr.mxu0 0.0
    %8128 = vmatpush1.msra.mxu0 %v6175
    %8129 = vmatprep.subr.mxu0 0.0
    %8130 = vmatpush1.msra.mxu0 0.0
    %8131 = vmatprep.subr.mxu0 0.0
    %8132 = vmatpush1.msra.mxu0 0.0
    %8133 = vmatprep.subr.mxu0 0.0
    %8134 = vmatpush1.msra.mxu0 0.0
    %8135 = vmatprep.subr.mxu0 0.0
    %8136 = vmatpush1.msra.mxu0 0.0
    %8137 = vmatprep.subr.mxu0 0.0
    %8138 = vmatpush1.msra.mxu0 0.0
    %8139 = vmatprep.subr.mxu0 0.0
    %8140 = vmatpush1.msra.mxu0 0.0
    %8141 = vmatprep.subr.mxu0 0.0
    %8142 = vmatpush1.msra.mxu0 0.0
    %8143 = vmatprep.subr.mxu0 0.0
    %8144 = vmatpush1.msra.mxu0 0.0
    %8145 = vmatprep.subr.mxu0 0.0
    %8146 = vmatpush1.msra.mxu0 0.0
    %8147 = vmatprep.subr.mxu0 0.0
    %8148 = vmatpush1.msra.mxu0 0.0
    %8149 = vmatprep.subr.mxu0 0.0
    %8150 = vmatpush1.msra.mxu0 0.0
    %8151 = vmatprep.subr.mxu0 0.0
    %8152 = vmatpush1.msra.mxu0 0.0
    %8153 = vmatprep.subr.mxu0 0.0
    %8154 = vmatpush1.msra.mxu0 0.0
    %8155 = vmatprep.subr.mxu0 0.0
    %8156 = vmatpush1.msra.mxu0 0.0
    %8157 = vmatprep.subr.mxu0 0.0
    %8158 = vmatpush1.msra.mxu0 0.0
    %8159 = vmatprep.subr.mxu0 0.0
    %8160 = vmatpush1.msra.mxu0 0.0
    %8161 = vmatprep.subr.mxu0 0.0
    %8162 = vmatpush1.msra.mxu0 0.0
    %8163 = vmatprep.subr.mxu0 0.0
    %8164 = vmatpush1.msra.mxu0 0.0
    %8165 = vmatprep.subr.mxu0 0.0
    %8166 = vmatpush1.msra.mxu0 0.0
    %8167 = vmatprep.subr.mxu0 0.0
    %8168 = vmatpush1.msra.mxu0 0.0
    %8169 = vmatprep.subr.mxu0 0.0
    %8170 = vmatpush1.msra.mxu0 0.0
    %8171 = vmatprep.subr.mxu0 0.0
    %8172 = vmatpush1.msra.mxu0 0.0
    %8173 = vmatprep.subr.mxu0 0.0
    %8174 = vmatpush1.msra.mxu0 0.0
    %8175 = vmatprep.subr.mxu0 0.0
    %8176 = vmatpush1.msra.mxu0 0.0
    %8177 = vmatprep.mubr.f32.mxu0 0.0
    %8178 = vmatmul.mubr.f32.gmra.mrb[0].mxu0 %v8090
    %v8179 = vpop.f32.mrb[0].mxu0
    %v8180 = vadd.f32 %v8088, %v8179
    %v8181 = vpop.f32.mrb[0].mxu0
    %8182 = vmatprep.mubr.f32.mxu0 0.0
    %8183 = vmatmul.mubr.f32.gmra.mrb[0].mxu0 %v8093
    %v8184 = vpop.f32.mrb[0].mxu0
    %v8185 = vadd.f32 %v8088, %v8184
    %v8186 = vpop.f32.mrb[0].mxu0
    %8187 = vmatprep.mubr.f32.mxu0 0.0
    %8188 = vmatmul.mubr.f32.gmra.mrb[0].mxu0 %v8096
    %v8189 = vpop.f32.mrb[0].mxu0
    %v8190 = vadd.f32 %v8088, %v8189
    %v8191 = vpop.f32.mrb[0].mxu0
    %8192 = vmatprep.mubr.f32.mxu0 0.0
    %8193 = vmatmul.mubr.f32.gmra.mrb[0].mxu0 %v8099
    %v8194 = vpop.f32.mrb[0].mxu0
    %v8195 = vadd.f32 %v8088, %v8194
    %v8196 = vpop.f32.mrb[0].mxu0
    %8197 = vmatprep.mubr.f32.mxu0 0.0
    %8198 = vmatmul.mubr.f32.gmra.mrb[0].mxu0 %v8102
    %v8199 = vpop.f32.mrb[0].mxu0
    %v8200 = vadd.f32 %v8088, %v8199
    %v8201 = vpop.f32.mrb[0].mxu0
    %8202 = vmatprep.mubr.f32.mxu0 0.0
    %8203 = vmatmul.mubr.f32.gmra.mrb[0].mxu0 %v8105
    %v8204 = vpop.f32.mrb[0].mxu0
    %v8205 = vadd.f32 %v8088, %v8204
    %v8206 = vpop.f32.mrb[0].mxu0
    %8207 = vmatprep.mubr.f32.mxu0 0.0
    %8208 = vmatmul.mubr.f32.gmra.mrb[0].mxu0 %v8108
    %v8209 = vpop.f32.mrb[0].mxu0
    %v8210 = vadd.f32 %v8088, %v8209
    %v8211 = vpop.f32.mrb[0].mxu0
    %8212 = vmatprep.mubr.f32.mxu0 0.0
    %8213 = vmatmul.mubr.f32.gmra.mrb[0].mxu0 %v8111
    %v8214 = vpop.f32.mrb[0].mxu0
    %v8215 = vadd.f32 %v8088, %v8214
    %v8216 = vpop.f32.mrb[0].mxu0
    %8217 = vdwg.mxu0
    %v8218 = vadd.f32 %v3484, %v8180
    %v8219 = vadd.f32 %v3485, %v8185
    %v8220 = vadd.f32 %v3486, %v8190
    %v8221 = vadd.f32 %v3487, %v8195
    %v8222 = vadd.f32 %v3488, %v8200
    %v8223 = vadd.f32 %v3489, %v8205
    %v8224 = vadd.f32 %v3490, %v8210
    %v8225 = vadd.f32 %v3491, %v8215
    %v8226 = vld [vmem:[%s5 + $0x251] sm:$0x1]
    %v8227 = vld [vmem:[%s5 + $0x252] sm:$0x1]
    %v8228 = vsel %vm450, %v8218, 0.0
    %8229 = vadd.xlane.f32.xlu0 %v8228
    %v8230 = vpop.xlane.xlu0 %8229
    %v8231 = vsel %vm450, %v8219, 0.0
    %8232 = vadd.xlane.f32.xlu0 %v8231
    %v8233 = vpop.xlane.xlu0 %8232
    %v8234 = vsel %vm450, %v8220, 0.0
    %8235 = vadd.xlane.f32.xlu0 %v8234
    %v8236 = vpop.xlane.xlu0 %8235
    %v8237 = vsel %vm450, %v8221, 0.0
    %8238 = vadd.xlane.f32.xlu0 %v8237
    %v8239 = vpop.xlane.xlu0 %8238
    %v8240 = vsel %vm450, %v8222, 0.0
    %8241 = vadd.xlane.f32.xlu0 %v8240
    %v8242 = vpop.xlane.xlu0 %8241
    %v8243 = vsel %vm450, %v8223, 0.0
    %8244 = vadd.xlane.f32.xlu0 %v8243
    %v8245 = vpop.xlane.xlu0 %8244
    %v8246 = vsel %vm450, %v8224, 0.0
    %8247 = vadd.xlane.f32.xlu0 %v8246
    %v8248 = vpop.xlane.xlu0 %8247
    %v8249 = vsel %vm450, %v8225, 0.0
    %8250 = vadd.xlane.f32.xlu0 %v8249
    %v8251 = vpop.xlane.xlu0 %8250
    %v8252 = vmul.f32 %v8230, %v5618
    %v8253 = vmul.f32 %v8233, %v5618
    %v8254 = vmul.f32 %v8236, %v5618
    %v8255 = vmul.f32 %v8239, %v5618
    %v8256 = vmul.f32 %v8242, %v5618
    %v8257 = vmul.f32 %v8245, %v5618
    %v8258 = vmul.f32 %v8248, %v5618
    %v8259 = vmul.f32 %v8251, %v5618
    %v8260 = vsub.f32 %v8218, %v8252
    %v8261 = vsub.f32 %v8219, %v8253
    %v8262 = vsub.f32 %v8220, %v8254
    %v8263 = vsub.f32 %v8221, %v8255
    %v8264 = vsub.f32 %v8222, %v8256
    %v8265 = vsub.f32 %v8223, %v8257
    %v8266 = vsub.f32 %v8224, %v8258
    %v8267 = vsub.f32 %v8225, %v8259
    %v8268 = vmul.f32 %v8260, %v8260
    %v8269 = vmul.f32 %v8261, %v8261
    %v8270 = vmul.f32 %v8262, %v8262
    %v8271 = vmul.f32 %v8263, %v8263
    %v8272 = vmul.f32 %v8264, %v8264
    %v8273 = vmul.f32 %v8265, %v8265
    %v8274 = vmul.f32 %v8266, %v8266
    %v8275 = vmul.f32 %v8267, %v8267
    %v8276 = vsel %vm450, %v8268, 0.0
    %8277 = vadd.xlane.f32.xlu0 %v8276
    %v8278 = vpop.xlane.xlu0 %8277
    %v8279 = vsel %vm450, %v8269, 0.0
    %8280 = vadd.xlane.f32.xlu0 %v8279
    %v8281 = vpop.xlane.xlu0 %8280
    %v8282 = vsel %vm450, %v8270, 0.0
    %8283 = vadd.xlane.f32.xlu0 %v8282
    %v8284 = vpop.xlane.xlu0 %8283
    %v8285 = vsel %vm450, %v8271, 0.0
    %8286 = vadd.xlane.f32.xlu0 %v8285
    %v8287 = vpop.xlane.xlu0 %8286
    %v8288 = vsel %vm450, %v8272, 0.0
    %8289 = vadd.xlane.f32.xlu0 %v8288
    %v8290 = vpop.xlane.xlu0 %8289
    %v8291 = vsel %vm450, %v8273, 0.0
    %8292 = vadd.xlane.f32.xlu0 %v8291
    %v8293 = vpop.xlane.xlu0 %8292
    %v8294 = vsel %vm450, %v8274, 0.0
    %8295 = vadd.xlane.f32.xlu0 %v8294
    %v8296 = vpop.xlane.xlu0 %8295
    %v8297 = vsel %vm450, %v8275, 0.0
    %8298 = vadd.xlane.f32.xlu0 %v8297
    %v8299 = vpop.xlane.xlu0 %8298
    %v8300 = vmul.f32 %v8278, %v5618
    %v8301 = vmul.f32 %v8281, %v5618
    %v8302 = vmul.f32 %v8284, %v5618
    %v8303 = vmul.f32 %v8287, %v5618
    %v8304 = vmul.f32 %v8290, %v5618
    %v8305 = vmul.f32 %v8293, %v5618
    %v8306 = vmul.f32 %v8296, %v5618
    %v8307 = vmul.f32 %v8299, %v5618
    %v8308 = vadd.f32 %v8300, 1e-05
    %v8309 = vadd.f32 %v8301, 1e-05
    %v8310 = vadd.f32 %v8302, 1e-05
    %v8311 = vadd.f32 %v8303, 1e-05
    %v8312 = vadd.f32 %v8304, 1e-05
    %v8313 = vadd.f32 %v8305, 1e-05
    %v8314 = vadd.f32 %v8306, 1e-05
    %v8315 = vadd.f32 %v8307, 1e-05
    %v8316 = vrsqrt.pop %v8308
    %v8317 = vrsqrt.pop %v8309
    %v8318 = vrsqrt.pop %v8310
    %v8319 = vrsqrt.pop %v8311
    %v8320 = vrsqrt.pop %v8312
    %v8321 = vrsqrt.pop %v8313
    %v8322 = vrsqrt.pop %v8314
    %v8323 = vrsqrt.pop %v8315
    %v8324 = vmul.f32 %v8260, %v8316
    %v8325 = vmul.f32 %v8261, %v8317
    %v8326 = vmul.f32 %v8262, %v8318
    %v8327 = vmul.f32 %v8263, %v8319
    %v8328 = vmul.f32 %v8264, %v8320
    %v8329 = vmul.f32 %v8265, %v8321
    %v8330 = vmul.f32 %v8266, %v8322
    %v8331 = vmul.f32 %v8267, %v8323
    %v8332 = vlaneseq
    %v8333 = vshrl.u32 %v8332, 7
    %v8334 = vsub.s32 0, %v8333
    %v8335 = vrot.slane %v8226, %v8334
    %v8336 = vmul.f32 %v8324, %v8335
    %v8337 = vmul.f32 %v8325, %v8335
    %v8338 = vmul.f32 %v8326, %v8335
    %v8339 = vmul.f32 %v8327, %v8335
    %v8340 = vmul.f32 %v8328, %v8335
    %v8341 = vmul.f32 %v8329, %v8335
    %v8342 = vmul.f32 %v8330, %v8335
    %v8343 = vmul.f32 %v8331, %v8335
    %v8344 = vlaneseq
    %v8345 = vshrl.u32 %v8344, 7
    %v8346 = vsub.s32 0, %v8345
    %v8347 = vrot.slane %v8227, %v8346
    %v8348 = vadd.f32 %v8336, %v8347
    %v8349 = vadd.f32 %v8337, %v8347
    %v8350 = vadd.f32 %v8338, %v8347
    %v8351 = vadd.f32 %v8339, %v8347
    %v8352 = vadd.f32 %v8340, %v8347
    %v8353 = vadd.f32 %v8341, %v8347
    %v8354 = vadd.f32 %v8342, %v8347
    %v8355 = vadd.f32 %v8343, %v8347
    %v8356 = vld [vmem:[%s4 + $0x120] sm:$0xff]
    %v8357 = vld [vmem:[%s4 + $0x128] sm:$0xff]
    %v8358 = vld [vmem:[%s4 + $0x130] sm:$0xff]
    %v8359 = vld [vmem:[%s4 + $0x138] sm:$0xff]
    %v8360 = vld [vmem:[%s4 + $0x140] sm:$0xff]
    %v8361 = vld [vmem:[%s4 + $0x148] sm:$0xff]
    %v8362 = vld [vmem:[%s4 + $0x150] sm:$0xff]
    %v8363 = vld [vmem:[%s4 + $0x158] sm:$0xff]
    %v8364 = vld [vmem:[%s4 + $0x160] sm:$0xff]
    %v8365 = vld [vmem:[%s4 + $0x168] sm:$0xff]
    %v8366 = vld [vmem:[%s4 + $0x170] sm:$0xff]
    %v8367 = vld [vmem:[%s4 + $0x178] sm:$0xff]
    %v8368 = vld [vmem:[%s4 + $0x180] sm:$0xff]
    %v8369 = vld [vmem:[%s4 + $0x188] sm:$0xff]
    %v8370 = vld [vmem:[%s4 + $0x190] sm:$0xff]
    %v8371 = vld [vmem:[%s4 + $0x198] sm:$0xff]
    %s8372 = scalar_lea.vmem %s4, 416
    %v8373 = vld [vmem:[%s8372] ss:$8 sm:$0x3]
    %v8374 = vld [vmem:[%s5 + $0x1a0] sm:$0xff]
    %v8375 = vld [vmem:[%s5 + $0x1a8] sm:$0xff]
    %v8376 = vld [vmem:[%s5 + $0x1b0] sm:$0xff]
    %v8377 = vld [vmem:[%s5 + $0x1b8] sm:$0xff]
    %v8378 = vld [vmem:[%s5 + $0x1c0] sm:$0xff]
    %v8379 = vld [vmem:[%s5 + $0x1c8] sm:$0xff]
    %v8380 = vld [vmem:[%s5 + $0x1d0] sm:$0xff]
    %v8381 = vld [vmem:[%s5 + $0x1d8] sm:$0xff]
    %v8382 = vld [vmem:[%s5 + $0x1e0] sm:$0x1]
    %v8384 = vlaneseq
    %v8385 = vshrl.u32 %v8384, 7
    %v8386 = vsub.s32 0, %v8385
    %v8387 = vrot.slane %v8373, %v8386
    %v8390 = vsel %vm450, %v8348, 0
    %v8393 = vsel %vm450, %v8349, 0
    %v8396 = vsel %vm450, %v8350, 0
    %v8399 = vsel %vm450, %v8351, 0
    %v8402 = vsel %vm450, %v8352, 0
    %v8405 = vsel %vm450, %v8353, 0
    %v8408 = vsel %vm450, %v8354, 0
    %v8411 = vsel %vm450, %v8355, 0
    %8413 = vmatprep.subr.mxu0 0.0
    %8414 = vmatpush1.msra.mxu0 %v8356
    %8415 = vmatprep.subr.mxu0 0.0
    %8416 = vmatpush1.msra.mxu0 %v8358
    %8417 = vmatprep.subr.mxu0 0.0
    %8418 = vmatpush1.msra.mxu0 %v8360
    %8419 = vmatprep.subr.mxu0 0.0
    %8420 = vmatpush1.msra.mxu0 %v8362
    %8421 = vmatprep.subr.mxu0 0.0
    %8422 = vmatpush1.msra.mxu0 %v8364
    %8423 = vmatprep.subr.mxu0 0.0
    %8424 = vmatpush1.msra.mxu0 %v8366
    %8425 = vmatprep.subr.mxu0 0.0
    %8426 = vmatpush1.msra.mxu0 %v8368
    %8427 = vmatprep.subr.mxu0 0.0
    %8428 = vmatpush1.msra.mxu0 %v8370
    %8429 = vmatprep.subr.mxu0 0.0
    %8430 = vmatpush1.msra.mxu0 0.0
    %8431 = vmatprep.subr.mxu0 0.0
    %8432 = vmatpush1.msra.mxu0 0.0
    %8433 = vmatprep.subr.mxu0 0.0
    %8434 = vmatpush1.msra.mxu0 0.0
    %8435 = vmatprep.subr.mxu0 0.0
    %8436 = vmatpush1.msra.mxu0 0.0
    %8437 = vmatprep.subr.mxu0 0.0
    %8438 = vmatpush1.msra.mxu0 0.0
    %8439 = vmatprep.subr.mxu0 0.0
    %8440 = vmatpush1.msra.mxu0 0.0
    %8441 = vmatprep.subr.mxu0 0.0
    %8442 = vmatpush1.msra.mxu0 0.0
    %8443 = vmatprep.subr.mxu0 0.0
    %8444 = vmatpush1.msra.mxu0 0.0
    %8445 = vmatprep.subr.mxu0 0.0
    %8446 = vmatpush1.msra.mxu0 0.0
    %8447 = vmatprep.subr.mxu0 0.0
    %8448 = vmatpush1.msra.mxu0 0.0
    %8449 = vmatprep.subr.mxu0 0.0
    %8450 = vmatpush1.msra.mxu0 0.0
    %8451 = vmatprep.subr.mxu0 0.0
    %8452 = vmatpush1.msra.mxu0 0.0
    %8453 = vmatprep.subr.mxu0 0.0
    %8454 = vmatpush1.msra.mxu0 0.0
    %8455 = vmatprep.subr.mxu0 0.0
    %8456 = vmatpush1.msra.mxu0 0.0
    %8457 = vmatprep.subr.mxu0 0.0
    %8458 = vmatpush1.msra.mxu0 0.0
    %8459 = vmatprep.subr.mxu0 0.0
    %8460 = vmatpush1.msra.mxu0 0.0
    %8461 = vmatprep.subr.mxu0 0.0
    %8462 = vmatpush1.msra.mxu0 0.0
    %8463 = vmatprep.subr.mxu0 0.0
    %8464 = vmatpush1.msra.mxu0 0.0
    %8465 = vmatprep.subr.mxu0 0.0
    %8466 = vmatpush1.msra.mxu0 0.0
    %8467 = vmatprep.subr.mxu0 0.0
    %8468 = vmatpush1.msra.mxu0 0.0
    %8469 = vmatprep.subr.mxu0 0.0
    %8470 = vmatpush1.msra.mxu0 0.0
    %8471 = vmatprep.subr.mxu0 0.0
    %8472 = vmatpush1.msra.mxu0 0.0
    %8473 = vmatprep.subr.mxu0 0.0
    %8474 = vmatpush1.msra.mxu0 0.0
    %8475 = vmatprep.subr.mxu0 0.0
    %8476 = vmatpush1.msra.mxu0 0.0
    %8477 = vmatprep.mubr.f32.mxu0 0.0
    %8478 = vmatmul.mubr.f32.gmra.mrb[0].mxu0 %v8390
    %v8479 = vpop.f32.mrb[0].mxu0
    %v8480 = vadd.f32 %v8387, %v8479
    %v8481 = vpop.f32.mrb[0].mxu0
    %8482 = vmatprep.mubr.f32.mxu0 0.0
    %8483 = vmatmul.mubr.f32.gmra.mrb[0].mxu0 %v8393
    %v8484 = vpop.f32.mrb[0].mxu0
    %v8485 = vadd.f32 %v8387, %v8484
    %v8486 = vpop.f32.mrb[0].mxu0
    %8487 = vmatprep.mubr.f32.mxu0 0.0
    %8488 = vmatmul.mubr.f32.gmra.mrb[0].mxu0 %v8396
    %v8489 = vpop.f32.mrb[0].mxu0
    %v8490 = vadd.f32 %v8387, %v8489
    %v8491 = vpop.f32.mrb[0].mxu0
    %8492 = vmatprep.mubr.f32.mxu0 0.0
    %8493 = vmatmul.mubr.f32.gmra.mrb[0].mxu0 %v8399
    %v8494 = vpop.f32.mrb[0].mxu0
    %v8495 = vadd.f32 %v8387, %v8494
    %v8496 = vpop.f32.mrb[0].mxu0
    %8497 = vmatprep.mubr.f32.mxu0 0.0
    %8498 = vmatmul.mubr.f32.gmra.mrb[0].mxu0 %v8402
    %v8499 = vpop.f32.mrb[0].mxu0
    %v8500 = vadd.f32 %v8387, %v8499
    %v8501 = vpop.f32.mrb[0].mxu0
    %8502 = vmatprep.mubr.f32.mxu0 0.0
    %8503 = vmatmul.mubr.f32.gmra.mrb[0].mxu0 %v8405
    %v8504 = vpop.f32.mrb[0].mxu0
    %v8505 = vadd.f32 %v8387, %v8504
    %v8506 = vpop.f32.mrb[0].mxu0
    %8507 = vmatprep.mubr.f32.mxu0 0.0
    %8508 = vmatmul.mubr.f32.gmra.mrb[0].mxu0 %v8408
    %v8509 = vpop.f32.mrb[0].mxu0
    %v8510 = vadd.f32 %v8387, %v8509
    %v8511 = vpop.f32.mrb[0].mxu0
    %8512 = vmatprep.mubr.f32.mxu0 0.0
    %8513 = vmatmul.mubr.f32.gmra.mrb[0].mxu0 %v8411
    %v8514 = vpop.f32.mrb[0].mxu0
    %v8515 = vadd.f32 %v8387, %v8514
    %v8516 = vpop.f32.mrb[0].mxu0
    %8517 = vdwg.mxu0
    %v8518 = vlaneseq
    %v8519 = vshrl.u32 %v8518, 7
    %v8520 = vsub.s32 1, %v8519
    %v8521 = vrot.slane %v8373, %v8520
    %8538 = vrot.lane.b32.xlu0 %v8356, 64
    %v8539 = vpop.permute.xlu0 %8538
    %8540 = vrot.lane.b32.xlu0 %v8357, 64
    %v8541 = vpop.permute.xlu0 %8540
    %8542 = vrot.lane.b32.xlu0 %v8358, 64
    %v8543 = vpop.permute.xlu0 %8542
    %8544 = vrot.lane.b32.xlu0 %v8359, 64
    %v8545 = vpop.permute.xlu0 %8544
    %8546 = vrot.lane.b32.xlu0 %v8360, 64
    %v8547 = vpop.permute.xlu0 %8546
    %8548 = vrot.lane.b32.xlu0 %v8361, 64
    %v8549 = vpop.permute.xlu0 %8548
    %8550 = vrot.lane.b32.xlu0 %v8362, 64
    %v8551 = vpop.permute.xlu0 %8550
    %8552 = vrot.lane.b32.xlu0 %v8363, 64
    %v8553 = vpop.permute.xlu0 %8552
    %8554 = vrot.lane.b32.xlu0 %v8364, 64
    %v8555 = vpop.permute.xlu0 %8554
    %8556 = vrot.lane.b32.xlu0 %v8365, 64
    %v8557 = vpop.permute.xlu0 %8556
    %8558 = vrot.lane.b32.xlu0 %v8366, 64
    %v8559 = vpop.permute.xlu0 %8558
    %8560 = vrot.lane.b32.xlu0 %v8367, 64
    %v8561 = vpop.permute.xlu0 %8560
    %8562 = vrot.lane.b32.xlu0 %v8368, 64
    %v8563 = vpop.permute.xlu0 %8562
    %8564 = vrot.lane.b32.xlu0 %v8369, 64
    %v8565 = vpop.permute.xlu0 %8564
    %8566 = vrot.lane.b32.xlu0 %v8370, 64
    %v8567 = vpop.permute.xlu0 %8566
    %8568 = vrot.lane.b32.xlu0 %v8371, 64
    %v8569 = vpop.permute.xlu0 %8568
    %v8570 = vsel %vm450, %v8539, %v8541
    %v8571 = vsel %vm450, %v8543, %v8545
    %v8572 = vsel %vm450, %v8547, %v8549
    %v8573 = vsel %vm450, %v8551, %v8553
    %v8574 = vsel %vm450, %v8555, %v8557
    %v8575 = vsel %vm450, %v8559, %v8561
    %v8576 = vsel %vm450, %v8563, %v8565
    %v8577 = vsel %vm450, %v8567, %v8569
    %8586 = vrot.lane.b32.xlu0 %v8387, 64
    %v8587 = vpop.permute.xlu0 %8586
    %8588 = vrot.lane.b32.xlu0 %v8521, 64
    %v8589 = vpop.permute.xlu0 %8588
    %v8590 = vsel %vm450, %v8587, %v8589
    %v8593 = vsel %vm450, %v6142, 0
    %v8596 = vsel %vm450, %v6143, 0
    %v8599 = vsel %vm450, %v6144, 0
    %v8602 = vsel %vm450, %v6145, 0
    %v8605 = vsel %vm450, %v6146, 0
    %v8608 = vsel %vm450, %v6147, 0
    %v8611 = vsel %vm450, %v6148, 0
    %v8614 = vsel %vm450, %v6149, 0
    %8616 = vmatprep.subr.mxu0 0.0
    %8617 = vmatpush1.msra.mxu0 %v8570
    %8618 = vmatprep.subr.mxu0 0.0
    %8619 = vmatpush1.msra.mxu0 %v8571
    %8620 = vmatprep.subr.mxu0 0.0
    %8621 = vmatpush1.msra.mxu0 %v8572
    %8622 = vmatprep.subr.mxu0 0.0
    %8623 = vmatpush1.msra.mxu0 %v8573
    %8624 = vmatprep.subr.mxu0 0.0
    %8625 = vmatpush1.msra.mxu0 %v8574
    %8626 = vmatprep.subr.mxu0 0.0
    %8627 = vmatpush1.msra.mxu0 %v8575
    %8628 = vmatprep.subr.mxu0 0.0
    %8629 = vmatpush1.msra.mxu0 %v8576
    %8630 = vmatprep.subr.mxu0 0.0
    %8631 = vmatpush1.msra.mxu0 %v8577
    %8632 = vmatprep.subr.mxu0 0.0
    %8633 = vmatpush1.msra.mxu0 0.0
    %8634 = vmatprep.subr.mxu0 0.0
    %8635 = vmatpush1.msra.mxu0 0.0
    %8636 = vmatprep.subr.mxu0 0.0
    %8637 = vmatpush1.msra.mxu0 0.0
    %8638 = vmatprep.subr.mxu0 0.0
    %8639 = vmatpush1.msra.mxu0 0.0
    %8640 = vmatprep.subr.mxu0 0.0
    %8641 = vmatpush1.msra.mxu0 0.0
    %8642 = vmatprep.subr.mxu0 0.0
    %8643 = vmatpush1.msra.mxu0 0.0
    %8644 = vmatprep.subr.mxu0 0.0
    %8645 = vmatpush1.msra.mxu0 0.0
    %8646 = vmatprep.subr.mxu0 0.0
    %8647 = vmatpush1.msra.mxu0 0.0
    %8648 = vmatprep.subr.mxu0 0.0
    %8649 = vmatpush1.msra.mxu0 0.0
    %8650 = vmatprep.subr.mxu0 0.0
    %8651 = vmatpush1.msra.mxu0 0.0
    %8652 = vmatprep.subr.mxu0 0.0
    %8653 = vmatpush1.msra.mxu0 0.0
    %8654 = vmatprep.subr.mxu0 0.0
    %8655 = vmatpush1.msra.mxu0 0.0
    %8656 = vmatprep.subr.mxu0 0.0
    %8657 = vmatpush1.msra.mxu0 0.0
    %8658 = vmatprep.subr.mxu0 0.0
    %8659 = vmatpush1.msra.mxu0 0.0
    %8660 = vmatprep.subr.mxu0 0.0
    %8661 = vmatpush1.msra.mxu0 0.0
    %8662 = vmatprep.subr.mxu0 0.0
    %8663 = vmatpush1.msra.mxu0 0.0
    %8664 = vmatprep.subr.mxu0 0.0
    %8665 = vmatpush1.msra.mxu0 0.0
    %8666 = vmatprep.subr.mxu0 0.0
    %8667 = vmatpush1.msra.mxu0 0.0
    %8668 = vmatprep.subr.mxu0 0.0
    %8669 = vmatpush1.msra.mxu0 0.0
    %8670 = vmatprep.subr.mxu0 0.0
    %8671 = vmatpush1.msra.mxu0 0.0
    %8672 = vmatprep.subr.mxu0 0.0
    %8673 = vmatpush1.msra.mxu0 0.0
    %8674 = vmatprep.subr.mxu0 0.0
    %8675 = vmatpush1.msra.mxu0 0.0
    %8676 = vmatprep.subr.mxu0 0.0
    %8677 = vmatpush1.msra.mxu0 0.0
    %8678 = vmatprep.subr.mxu0 0.0
    %8679 = vmatpush1.msra.mxu0 0.0
    %8680 = vmatprep.mubr.f32.mxu0 0.0
    %8681 = vmatmul.mubr.f32.gmra.mrb[0].mxu0 %v8593
    %v8682 = vpop.f32.mrb[0].mxu0
    %v8683 = vadd.f32 %v8590, %v8682
    %v8684 = vpop.f32.mrb[0].mxu0
    %8685 = vmatprep.mubr.f32.mxu0 0.0
    %8686 = vmatmul.mubr.f32.gmra.mrb[0].mxu0 %v8596
    %v8687 = vpop.f32.mrb[0].mxu0
    %v8688 = vadd.f32 %v8590, %v8687
    %v8689 = vpop.f32.mrb[0].mxu0
    %8690 = vmatprep.mubr.f32.mxu0 0.0
    %8691 = vmatmul.mubr.f32.gmra.mrb[0].mxu0 %v8599
    %v8692 = vpop.f32.mrb[0].mxu0
    %v8693 = vadd.f32 %v8590, %v8692
    %v8694 = vpop.f32.mrb[0].mxu0
    %8695 = vmatprep.mubr.f32.mxu0 0.0
    %8696 = vmatmul.mubr.f32.gmra.mrb[0].mxu0 %v8602
    %v8697 = vpop.f32.mrb[0].mxu0
    %v8698 = vadd.f32 %v8590, %v8697
    %v8699 = vpop.f32.mrb[0].mxu0
    %8700 = vmatprep.mubr.f32.mxu0 0.0
    %8701 = vmatmul.mubr.f32.gmra.mrb[0].mxu0 %v8605
    %v8702 = vpop.f32.mrb[0].mxu0
    %v8703 = vadd.f32 %v8590, %v8702
    %v8704 = vpop.f32.mrb[0].mxu0
    %8705 = vmatprep.mubr.f32.mxu0 0.0
    %8706 = vmatmul.mubr.f32.gmra.mrb[0].mxu0 %v8608
    %v8707 = vpop.f32.mrb[0].mxu0
    %v8708 = vadd.f32 %v8590, %v8707
    %v8709 = vpop.f32.mrb[0].mxu0
    %8710 = vmatprep.mubr.f32.mxu0 0.0
    %8711 = vmatmul.mubr.f32.gmra.mrb[0].mxu0 %v8611
    %v8712 = vpop.f32.mrb[0].mxu0
    %v8713 = vadd.f32 %v8590, %v8712
    %v8714 = vpop.f32.mrb[0].mxu0
    %8715 = vmatprep.mubr.f32.mxu0 0.0
    %8716 = vmatmul.mubr.f32.gmra.mrb[0].mxu0 %v8614
    %v8717 = vpop.f32.mrb[0].mxu0
    %v8718 = vadd.f32 %v8590, %v8717
    %v8719 = vpop.f32.mrb[0].mxu0
    %8720 = vdwg.mxu0
    %v8722 = vsel %vm2397, %v8480, 0
    %v8725 = vsel %vm2397, %v8485, 0
    %v8728 = vsel %vm2397, %v8490, 0
    %v8731 = vsel %vm2397, %v8495, 0
    %v8734 = vsel %vm2397, %v8500, 0
    %v8737 = vsel %vm2397, %v8505, 0
    %v8740 = vsel %vm2397, %v8510, 0
    %v8743 = vsel %vm2397, %v8515, 0
    %v8746 = vsel %vm2397, %v8683, 0
    %v8749 = vsel %vm2397, %v8688, 0
    %v8752 = vsel %vm2397, %v8693, 0
    %v8755 = vsel %vm2397, %v8698, 0
    %v8758 = vsel %vm2397, %v8703, 0
    %v8761 = vsel %vm2397, %v8708, 0
    %v8764 = vsel %vm2397, %v8713, 0
    %v8767 = vsel %vm2397, %v8718, 0
    %8769 = vmatprep.subr.mxu0 0.0
    %8770 = vmatpush1.xpose.msra.mxu0 %v8746
    %8771 = vmatprep.subr.mxu0 0.0
    %8772 = vmatpush1.xpose.msra.mxu0 %v8749
    %8773 = vmatprep.subr.mxu0 0.0
    %8774 = vmatpush1.xpose.msra.mxu0 %v8752
    %8775 = vmatprep.subr.mxu0 0.0
    %8776 = vmatpush1.xpose.msra.mxu0 %v8755
    %8777 = vmatprep.subr.mxu0 0.0
    %8778 = vmatpush1.xpose.msra.mxu0 %v8758
    %8779 = vmatprep.subr.mxu0 0.0
    %8780 = vmatpush1.xpose.msra.mxu0 %v8761
    %8781 = vmatprep.subr.mxu0 0.0
    %8782 = vmatpush1.xpose.msra.mxu0 %v8764
    %8783 = vmatprep.subr.mxu0 0.0
    %8784 = vmatpush1.xpose.msra.mxu0 %v8767
    %8785 = vmatprep.subr.mxu0 0.0
    %8786 = vmatpush1.xpose.msra.mxu0 0.0
    %8787 = vmatprep.subr.mxu0 0.0
    %8788 = vmatpush1.xpose.msra.mxu0 0.0
    %8789 = vmatprep.subr.mxu0 0.0
    %8790 = vmatpush1.xpose.msra.mxu0 0.0
    %8791 = vmatprep.subr.mxu0 0.0
    %8792 = vmatpush1.xpose.msra.mxu0 0.0
    %8793 = vmatprep.subr.mxu0 0.0
    %8794 = vmatpush1.xpose.msra.mxu0 0.0
    %8795 = vmatprep.subr.mxu0 0.0
    %8796 = vmatpush1.xpose.msra.mxu0 0.0
    %8797 = vmatprep.subr.mxu0 0.0
    %8798 = vmatpush1.xpose.msra.mxu0 0.0
    %8799 = vmatprep.subr.mxu0 0.0
    %8800 = vmatpush1.xpose.msra.mxu0 0.0
    %8801 = vmatprep.subr.mxu0 0.0
    %8802 = vmatpush1.xpose.msra.mxu0 0.0
    %8803 = vmatprep.subr.mxu0 0.0
    %8804 = vmatpush1.xpose.msra.mxu0 0.0
    %8805 = vmatprep.subr.mxu0 0.0
    %8806 = vmatpush1.xpose.msra.mxu0 0.0
    %8807 = vmatprep.subr.mxu0 0.0
    %8808 = vmatpush1.xpose.msra.mxu0 0.0
    %8809 = vmatprep.subr.mxu0 0.0
    %8810 = vmatpush1.xpose.msra.mxu0 0.0
    %8811 = vmatprep.subr.mxu0 0.0
    %8812 = vmatpush1.xpose.msra.mxu0 0.0
    %8813 = vmatprep.subr.mxu0 0.0
    %8814 = vmatpush1.xpose.msra.mxu0 0.0
    %8815 = vmatprep.subr.mxu0 0.0
    %8816 = vmatpush1.xpose.msra.mxu0 0.0
    %8817 = vmatprep.subr.mxu0 0.0
    %8818 = vmatpush1.xpose.msra.mxu0 0.0
    %8819 = vmatprep.subr.mxu0 0.0
    %8820 = vmatpush1.xpose.msra.mxu0 0.0
    %8821 = vmatprep.subr.mxu0 0.0
    %8822 = vmatpush1.xpose.msra.mxu0 0.0
    %8823 = vmatprep.subr.mxu0 0.0
    %8824 = vmatpush1.xpose.msra.mxu0 0.0
    %8825 = vmatprep.subr.mxu0 0.0
    %8826 = vmatpush1.xpose.msra.mxu0 0.0
    %8827 = vmatprep.subr.mxu0 0.0
    %8828 = vmatpush1.xpose.msra.mxu0 0.0
    %8829 = vmatprep.subr.mxu0 0.0
    %8830 = vmatpush1.xpose.msra.mxu0 0.0
    %8831 = vmatprep.subr.mxu0 0.0
    %8832 = vmatpush1.xpose.msra.mxu0 0.0
    %8833 = vmatprep.mubr.f32.mxu0 0.0
    %8834 = vmatmul.mubr.f32.gmra.mrb[0].mxu0 %v8722
    %v8835 = vpop.f32.mrb[0].mxu0
    %v8836 = vadd.f32 0.0, %v8835
    %v8837 = vpop.f32.mrb[0].mxu0
    %8838 = vmatprep.mubr.f32.mxu0 0.0
    %8839 = vmatmul.mubr.f32.gmra.mrb[0].mxu0 %v8725
    %v8840 = vpop.f32.mrb[0].mxu0
    %v8841 = vadd.f32 0.0, %v8840
    %v8842 = vpop.f32.mrb[0].mxu0
    %8843 = vmatprep.mubr.f32.mxu0 0.0
    %8844 = vmatmul.mubr.f32.gmra.mrb[0].mxu0 %v8728
    %v8845 = vpop.f32.mrb[0].mxu0
    %v8846 = vadd.f32 0.0, %v8845
    %v8847 = vpop.f32.mrb[0].mxu0
    %8848 = vmatprep.mubr.f32.mxu0 0.0
    %8849 = vmatmul.mubr.f32.gmra.mrb[0].mxu0 %v8731
    %v8850 = vpop.f32.mrb[0].mxu0
    %v8851 = vadd.f32 0.0, %v8850
    %v8852 = vpop.f32.mrb[0].mxu0
    %8853 = vmatprep.mubr.f32.mxu0 0.0
    %8854 = vmatmul.mubr.f32.gmra.mrb[0].mxu0 %v8734
    %v8855 = vpop.f32.mrb[0].mxu0
    %v8856 = vadd.f32 0.0, %v8855
    %v8857 = vpop.f32.mrb[0].mxu0
    %8858 = vmatprep.mubr.f32.mxu0 0.0
    %8859 = vmatmul.mubr.f32.gmra.mrb[0].mxu0 %v8737
    %v8860 = vpop.f32.mrb[0].mxu0
    %v8861 = vadd.f32 0.0, %v8860
    %v8862 = vpop.f32.mrb[0].mxu0
    %8863 = vmatprep.mubr.f32.mxu0 0.0
    %8864 = vmatmul.mubr.f32.gmra.mrb[0].mxu0 %v8740
    %v8865 = vpop.f32.mrb[0].mxu0
    %v8866 = vadd.f32 0.0, %v8865
    %v8867 = vpop.f32.mrb[0].mxu0
    %8868 = vmatprep.mubr.f32.mxu0 0.0
    %8869 = vmatmul.mubr.f32.gmra.mrb[0].mxu0 %v8743
    %v8870 = vpop.f32.mrb[0].mxu0
    %v8871 = vadd.f32 0.0, %v8870
    %v8872 = vpop.f32.mrb[0].mxu0
    %8873 = vdwg.mxu0
    %v8874 = vmul.f32 %v8836, 0.25
    %v8875 = vmul.f32 %v8841, 0.25
    %v8876 = vmul.f32 %v8846, 0.25
    %v8877 = vmul.f32 %v8851, 0.25
    %v8878 = vmul.f32 %v8856, 0.25
    %v8879 = vmul.f32 %v8861, 0.25
    %v8880 = vmul.f32 %v8866, 0.25
    %v8881 = vmul.f32 %v8871, 0.25
    %v8882 = vsel %vm450, %v8874, -inf
    %8883 = vmax.xlane.f32.xlu0 %v8882
    %v8884 = vpop.xlane.xlu0 %8883
    %v8885 = vsel %vm450, %v8875, -inf
    %8886 = vmax.xlane.f32.xlu0 %v8885
    %v8887 = vpop.xlane.xlu0 %8886
    %v8888 = vsel %vm450, %v8876, -inf
    %8889 = vmax.xlane.f32.xlu0 %v8888
    %v8890 = vpop.xlane.xlu0 %8889
    %v8891 = vsel %vm450, %v8877, -inf
    %8892 = vmax.xlane.f32.xlu0 %v8891
    %v8893 = vpop.xlane.xlu0 %8892
    %v8894 = vsel %vm450, %v8878, -inf
    %8895 = vmax.xlane.f32.xlu0 %v8894
    %v8896 = vpop.xlane.xlu0 %8895
    %v8897 = vsel %vm450, %v8879, -inf
    %8898 = vmax.xlane.f32.xlu0 %v8897
    %v8899 = vpop.xlane.xlu0 %8898
    %v8900 = vsel %vm450, %v8880, -inf
    %8901 = vmax.xlane.f32.xlu0 %v8900
    %v8902 = vpop.xlane.xlu0 %8901
    %v8903 = vsel %vm450, %v8881, -inf
    %8904 = vmax.xlane.f32.xlu0 %v8903
    %v8905 = vpop.xlane.xlu0 %8904
    %v8906 = vsub.f32 %v8874, %v8884
    %v8907 = vsub.f32 %v8875, %v8887
    %v8908 = vsub.f32 %v8876, %v8890
    %v8909 = vsub.f32 %v8877, %v8893
    %v8910 = vsub.f32 %v8878, %v8896
    %v8911 = vsub.f32 %v8879, %v8899
    %v8912 = vsub.f32 %v8880, %v8902
    %v8913 = vsub.f32 %v8881, %v8905
    %v8914 = vmul.f32 %v8906, 1.442695
    %v8915 = vpow.pop %v8914
    %v8916 = vmul.f32 %v8907, 1.442695
    %v8917 = vpow.pop %v8916
    %v8918 = vmul.f32 %v8908, 1.442695
    %v8919 = vpow.pop %v8918
    %v8920 = vmul.f32 %v8909, 1.442695
    %v8921 = vpow.pop %v8920
    %v8922 = vmul.f32 %v8910, 1.442695
    %v8923 = vpow.pop %v8922
    %v8924 = vmul.f32 %v8911, 1.442695
    %v8925 = vpow.pop %v8924
    %v8926 = vmul.f32 %v8912, 1.442695
    %v8927 = vpow.pop %v8926
    %v8928 = vmul.f32 %v8913, 1.442695
    %v8929 = vpow.pop %v8928
    %v8930 = vsel %vm450, %v8915, 0.0
    %8931 = vadd.xlane.f32.xlu0 %v8930
    %v8932 = vpop.xlane.xlu0 %8931
    %v8933 = vsel %vm450, %v8917, 0.0
    %8934 = vadd.xlane.f32.xlu0 %v8933
    %v8935 = vpop.xlane.xlu0 %8934
    %v8936 = vsel %vm450, %v8919, 0.0
    %8937 = vadd.xlane.f32.xlu0 %v8936
    %v8938 = vpop.xlane.xlu0 %8937
    %v8939 = vsel %vm450, %v8921, 0.0
    %8940 = vadd.xlane.f32.xlu0 %v8939
    %v8941 = vpop.xlane.xlu0 %8940
    %v8942 = vsel %vm450, %v8923, 0.0
    %8943 = vadd.xlane.f32.xlu0 %v8942
    %v8944 = vpop.xlane.xlu0 %8943
    %v8945 = vsel %vm450, %v8925, 0.0
    %8946 = vadd.xlane.f32.xlu0 %v8945
    %v8947 = vpop.xlane.xlu0 %8946
    %v8948 = vsel %vm450, %v8927, 0.0
    %8949 = vadd.xlane.f32.xlu0 %v8948
    %v8950 = vpop.xlane.xlu0 %8949
    %v8951 = vsel %vm450, %v8929, 0.0
    %8952 = vadd.xlane.f32.xlu0 %v8951
    %v8953 = vpop.xlane.xlu0 %8952
    %v8954 = vrcp.pop %v8932
    %v8955 = vrcp.pop %v8935
    %v8956 = vrcp.pop %v8938
    %v8957 = vrcp.pop %v8941
    %v8958 = vrcp.pop %v8944
    %v8959 = vrcp.pop %v8947
    %v8960 = vrcp.pop %v8950
    %v8961 = vrcp.pop %v8953
    %v8962 = vmul.f32 %v8915, %v8954
    %v8963 = vmul.f32 %v8917, %v8955
    %v8964 = vmul.f32 %v8919, %v8956
    %v8965 = vmul.f32 %v8921, %v8957
    %v8966 = vmul.f32 %v8923, %v8958
    %v8967 = vmul.f32 %v8925, %v8959
    %v8968 = vmul.f32 %v8927, %v8960
    %v8969 = vmul.f32 %v8929, %v8961
    %8970 = vrot.lane.b32.xlu0 %v8683, 64
    %v8971 = vpop.permute.xlu0 %8970
    %8972 = vrot.lane.b32.xlu0 %v8688, 64
    %v8973 = vpop.permute.xlu0 %8972
    %8974 = vrot.lane.b32.xlu0 %v8693, 64
    %v8975 = vpop.permute.xlu0 %8974
    %8976 = vrot.lane.b32.xlu0 %v8698, 64
    %v8977 = vpop.permute.xlu0 %8976
    %8978 = vrot.lane.b32.xlu0 %v8703, 64
    %v8979 = vpop.permute.xlu0 %8978
    %8980 = vrot.lane.b32.xlu0 %v8708, 64
    %v8981 = vpop.permute.xlu0 %8980
    %8982 = vrot.lane.b32.xlu0 %v8713, 64
    %v8983 = vpop.permute.xlu0 %8982
    %8984 = vrot.lane.b32.xlu0 %v8718, 64
    %v8985 = vpop.permute.xlu0 %8984
    %v8995 = vsel %vm450, %v8962, 0
    %v8998 = vsel %vm450, %v8963, 0
    %v9001 = vsel %vm450, %v8964, 0
    %v9004 = vsel %vm450, %v8965, 0
    %v9007 = vsel %vm450, %v8966, 0
    %v9010 = vsel %vm450, %v8967, 0
    %v9013 = vsel %vm450, %v8968, 0
    %v9016 = vsel %vm450, %v8969, 0
    %9018 = vmatprep.subr.mxu0 0.0
    %9019 = vmatpush1.msra.mxu0 %v8971
    %9020 = vmatprep.subr.mxu0 0.0
    %9021 = vmatpush1.msra.mxu0 %v8973
    %9022 = vmatprep.subr.mxu0 0.0
    %9023 = vmatpush1.msra.mxu0 %v8975
    %9024 = vmatprep.subr.mxu0 0.0
    %9025 = vmatpush1.msra.mxu0 %v8977
    %9026 = vmatprep.subr.mxu0 0.0
    %9027 = vmatpush1.msra.mxu0 %v8979
    %9028 = vmatprep.subr.mxu0 0.0
    %9029 = vmatpush1.msra.mxu0 %v8981
    %9030 = vmatprep.subr.mxu0 0.0
    %9031 = vmatpush1.msra.mxu0 %v8983
    %9032 = vmatprep.subr.mxu0 0.0
    %9033 = vmatpush1.msra.mxu0 %v8985
    %9034 = vmatprep.subr.mxu0 0.0
    %9035 = vmatpush1.msra.mxu0 0.0
    %9036 = vmatprep.subr.mxu0 0.0
    %9037 = vmatpush1.msra.mxu0 0.0
    %9038 = vmatprep.subr.mxu0 0.0
    %9039 = vmatpush1.msra.mxu0 0.0
    %9040 = vmatprep.subr.mxu0 0.0
    %9041 = vmatpush1.msra.mxu0 0.0
    %9042 = vmatprep.subr.mxu0 0.0
    %9043 = vmatpush1.msra.mxu0 0.0
    %9044 = vmatprep.subr.mxu0 0.0
    %9045 = vmatpush1.msra.mxu0 0.0
    %9046 = vmatprep.subr.mxu0 0.0
    %9047 = vmatpush1.msra.mxu0 0.0
    %9048 = vmatprep.subr.mxu0 0.0
    %9049 = vmatpush1.msra.mxu0 0.0
    %9050 = vmatprep.subr.mxu0 0.0
    %9051 = vmatpush1.msra.mxu0 0.0
    %9052 = vmatprep.subr.mxu0 0.0
    %9053 = vmatpush1.msra.mxu0 0.0
    %9054 = vmatprep.subr.mxu0 0.0
    %9055 = vmatpush1.msra.mxu0 0.0
    %9056 = vmatprep.subr.mxu0 0.0
    %9057 = vmatpush1.msra.mxu0 0.0
    %9058 = vmatprep.subr.mxu0 0.0
    %9059 = vmatpush1.msra.mxu0 0.0
    %9060 = vmatprep.subr.mxu0 0.0
    %9061 = vmatpush1.msra.mxu0 0.0
    %9062 = vmatprep.subr.mxu0 0.0
    %9063 = vmatpush1.msra.mxu0 0.0
    %9064 = vmatprep.subr.mxu0 0.0
    %9065 = vmatpush1.msra.mxu0 0.0
    %9066 = vmatprep.subr.mxu0 0.0
    %9067 = vmatpush1.msra.mxu0 0.0
    %9068 = vmatprep.subr.mxu0 0.0
    %9069 = vmatpush1.msra.mxu0 0.0
    %9070 = vmatprep.subr.mxu0 0.0
    %9071 = vmatpush1.msra.mxu0 0.0
    %9072 = vmatprep.subr.mxu0 0.0
    %9073 = vmatpush1.msra.mxu0 0.0
    %9074 = vmatprep.subr.mxu0 0.0
    %9075 = vmatpush1.msra.mxu0 0.0
    %9076 = vmatprep.subr.mxu0 0.0
    %9077 = vmatpush1.msra.mxu0 0.0
    %9078 = vmatprep.subr.mxu0 0.0
    %9079 = vmatpush1.msra.mxu0 0.0
    %9080 = vmatprep.subr.mxu0 0.0
    %9081 = vmatpush1.msra.mxu0 0.0
    %9082 = vmatprep.mubr.f32.mxu0 0.0
    %9083 = vmatmul.mubr.f32.gmra.mrb[0].mxu0 %v8995
    %v9084 = vpop.f32.mrb[0].mxu0
    %v9085 = vadd.f32 0.0, %v9084
    %v9086 = vpop.f32.mrb[0].mxu0
    %9087 = vmatprep.mubr.f32.mxu0 0.0
    %9088 = vmatmul.mubr.f32.gmra.mrb[0].mxu0 %v8998
    %v9089 = vpop.f32.mrb[0].mxu0
    %v9090 = vadd.f32 0.0, %v9089
    %v9091 = vpop.f32.mrb[0].mxu0
    %9092 = vmatprep.mubr.f32.mxu0 0.0
    %9093 = vmatmul.mubr.f32.gmra.mrb[0].mxu0 %v9001
    %v9094 = vpop.f32.mrb[0].mxu0
    %v9095 = vadd.f32 0.0, %v9094
    %v9096 = vpop.f32.mrb[0].mxu0
    %9097 = vmatprep.mubr.f32.mxu0 0.0
    %9098 = vmatmul.mubr.f32.gmra.mrb[0].mxu0 %v9004
    %v9099 = vpop.f32.mrb[0].mxu0
    %v9100 = vadd.f32 0.0, %v9099
    %v9101 = vpop.f32.mrb[0].mxu0
    %9102 = vmatprep.mubr.f32.mxu0 0.0
    %9103 = vmatmul.mubr.f32.gmra.mrb[0].mxu0 %v9007
    %v9104 = vpop.f32.mrb[0].mxu0
    %v9105 = vadd.f32 0.0, %v9104
    %v9106 = vpop.f32.mrb[0].mxu0
    %9107 = vmatprep.mubr.f32.mxu0 0.0
    %9108 = vmatmul.mubr.f32.gmra.mrb[0].mxu0 %v9010
    %v9109 = vpop.f32.mrb[0].mxu0
    %v9110 = vadd.f32 0.0, %v9109
    %v9111 = vpop.f32.mrb[0].mxu0
    %9112 = vmatprep.mubr.f32.mxu0 0.0
    %9113 = vmatmul.mubr.f32.gmra.mrb[0].mxu0 %v9013
    %v9114 = vpop.f32.mrb[0].mxu0
    %v9115 = vadd.f32 0.0, %v9114
    %v9116 = vpop.f32.mrb[0].mxu0
    %9117 = vmatprep.mubr.f32.mxu0 0.0
    %9118 = vmatmul.mubr.f32.gmra.mrb[0].mxu0 %v9016
    %v9119 = vpop.f32.mrb[0].mxu0
    %v9120 = vadd.f32 0.0, %v9119
    %v9121 = vpop.f32.mrb[0].mxu0
    %9122 = vdwg.mxu0
    %9123 = vst.msk [vmem:[#allocation3] sm:$0xff] %vm2397, %v9085
    %9124 = vst.msk [vmem:[#allocation3 + $0x8] sm:$0xff] %vm2397, %v9090
    %9125 = vst.msk [vmem:[#allocation3 + $0x10] sm:$0xff] %vm2397, %v9095
    %9126 = vst.msk [vmem:[#allocation3 + $0x18] sm:$0xff] %vm2397, %v9100
    %9127 = vst.msk [vmem:[#allocation3 + $0x20] sm:$0xff] %vm2397, %v9105
    %9128 = vst.msk [vmem:[#allocation3 + $0x28] sm:$0xff] %vm2397, %v9110
    %9129 = vst.msk [vmem:[#allocation3 + $0x30] sm:$0xff] %vm2397, %v9115
    %9130 = vst.msk [vmem:[#allocation3 + $0x38] sm:$0xff] %vm2397, %v9120
    %9131 = vrot.lane.b32.xlu0 %v8480, 112
    %v9132 = vpop.permute.xlu0 %9131
    %9133 = vrot.lane.b32.xlu0 %v8485, 112
    %v9134 = vpop.permute.xlu0 %9133
    %9135 = vrot.lane.b32.xlu0 %v8490, 112
    %v9136 = vpop.permute.xlu0 %9135
    %9137 = vrot.lane.b32.xlu0 %v8495, 112
    %v9138 = vpop.permute.xlu0 %9137
    %9139 = vrot.lane.b32.xlu0 %v8500, 112
    %v9140 = vpop.permute.xlu0 %9139
    %9141 = vrot.lane.b32.xlu0 %v8505, 112
    %v9142 = vpop.permute.xlu0 %9141
    %9143 = vrot.lane.b32.xlu0 %v8510, 112
    %v9144 = vpop.permute.xlu0 %9143
    %9145 = vrot.lane.b32.xlu0 %v8515, 112
    %v9146 = vpop.permute.xlu0 %9145
    %9147 = vrot.lane.b32.xlu0 %v8683, 112
    %v9148 = vpop.permute.xlu0 %9147
    %9149 = vrot.lane.b32.xlu0 %v8688, 112
    %v9150 = vpop.permute.xlu0 %9149
    %9151 = vrot.lane.b32.xlu0 %v8693, 112
    %v9152 = vpop.permute.xlu0 %9151
    %9153 = vrot.lane.b32.xlu0 %v8698, 112
    %v9154 = vpop.permute.xlu0 %9153
    %9155 = vrot.lane.b32.xlu0 %v8703, 112
    %v9156 = vpop.permute.xlu0 %9155
    %9157 = vrot.lane.b32.xlu0 %v8708, 112
    %v9158 = vpop.permute.xlu0 %9157
    %9159 = vrot.lane.b32.xlu0 %v8713, 112
    %v9160 = vpop.permute.xlu0 %9159
    %9161 = vrot.lane.b32.xlu0 %v8718, 112
    %v9162 = vpop.permute.xlu0 %9161
    %v9163 = vsel %vm2397, %v9132, 0
    %v9165 = vsel %vm2397, %v9134, 0
    %v9167 = vsel %vm2397, %v9136, 0
    %v9169 = vsel %vm2397, %v9138, 0
    %v9171 = vsel %vm2397, %v9140, 0
    %v9173 = vsel %vm2397, %v9142, 0
    %v9175 = vsel %vm2397, %v9144, 0
    %v9177 = vsel %vm2397, %v9146, 0
    %v9179 = vsel %vm2397, %v9148, 0
    %v9181 = vsel %vm2397, %v9150, 0
    %v9183 = vsel %vm2397, %v9152, 0
    %v9185 = vsel %vm2397, %v9154, 0
    %v9187 = vsel %vm2397, %v9156, 0
    %v9189 = vsel %vm2397, %v9158, 0
    %v9191 = vsel %vm2397, %v9160, 0
    %v9193 = vsel %vm2397, %v9162, 0
    %9195 = vmatprep.subr.mxu0 0.0
    %9196 = vmatpush1.xpose.msra.mxu0 %v9179
    %9197 = vmatprep.subr.mxu0 0.0
    %9198 = vmatpush1.xpose.msra.mxu0 %v9181
    %9199 = vmatprep.subr.mxu0 0.0
    %9200 = vmatpush1.xpose.msra.mxu0 %v9183
    %9201 = vmatprep.subr.mxu0 0.0
    %9202 = vmatpush1.xpose.msra.mxu0 %v9185
    %9203 = vmatprep.subr.mxu0 0.0
    %9204 = vmatpush1.xpose.msra.mxu0 %v9187
    %9205 = vmatprep.subr.mxu0 0.0
    %9206 = vmatpush1.xpose.msra.mxu0 %v9189
    %9207 = vmatprep.subr.mxu0 0.0
    %9208 = vmatpush1.xpose.msra.mxu0 %v9191
    %9209 = vmatprep.subr.mxu0 0.0
    %9210 = vmatpush1.xpose.msra.mxu0 %v9193
    %9211 = vmatprep.subr.mxu0 0.0
    %9212 = vmatpush1.xpose.msra.mxu0 0.0
    %9213 = vmatprep.subr.mxu0 0.0
    %9214 = vmatpush1.xpose.msra.mxu0 0.0
    %9215 = vmatprep.subr.mxu0 0.0
    %9216 = vmatpush1.xpose.msra.mxu0 0.0
    %9217 = vmatprep.subr.mxu0 0.0
    %9218 = vmatpush1.xpose.msra.mxu0 0.0
    %9219 = vmatprep.subr.mxu0 0.0
    %9220 = vmatpush1.xpose.msra.mxu0 0.0
    %9221 = vmatprep.subr.mxu0 0.0
    %9222 = vmatpush1.xpose.msra.mxu0 0.0
    %9223 = vmatprep.subr.mxu0 0.0
    %9224 = vmatpush1.xpose.msra.mxu0 0.0
    %9225 = vmatprep.subr.mxu0 0.0
    %9226 = vmatpush1.xpose.msra.mxu0 0.0
    %9227 = vmatprep.subr.mxu0 0.0
    %9228 = vmatpush1.xpose.msra.mxu0 0.0
    %9229 = vmatprep.subr.mxu0 0.0
    %9230 = vmatpush1.xpose.msra.mxu0 0.0
    %9231 = vmatprep.subr.mxu0 0.0
    %9232 = vmatpush1.xpose.msra.mxu0 0.0
    %9233 = vmatprep.subr.mxu0 0.0
    %9234 = vmatpush1.xpose.msra.mxu0 0.0
    %9235 = vmatprep.subr.mxu0 0.0
    %9236 = vmatpush1.xpose.msra.mxu0 0.0
    %9237 = vmatprep.subr.mxu0 0.0
    %9238 = vmatpush1.xpose.msra.mxu0 0.0
    %9239 = vmatprep.subr.mxu0 0.0
    %9240 = vmatpush1.xpose.msra.mxu0 0.0
    %9241 = vmatprep.subr.mxu0 0.0
    %9242 = vmatpush1.xpose.msra.mxu0 0.0
    %9243 = vmatprep.subr.mxu0 0.0
    %9244 = vmatpush1.xpose.msra.mxu0 0.0
    %9245 = vmatprep.subr.mxu0 0.0
    %9246 = vmatpush1.xpose.msra.mxu0 0.0
    %9247 = vmatprep.subr.mxu0 0.0
    %9248 = vmatpush1.xpose.msra.mxu0 0.0
    %9249 = vmatprep.subr.mxu0 0.0
    %9250 = vmatpush1.xpose.msra.mxu0 0.0
    %9251 = vmatprep.subr.mxu0 0.0
    %9252 = vmatpush1.xpose.msra.mxu0 0.0
    %9253 = vmatprep.subr.mxu0 0.0
    %9254 = vmatpush1.xpose.msra.mxu0 0.0
    %9255 = vmatprep.subr.mxu0 0.0
    %9256 = vmatpush1.xpose.msra.mxu0 0.0
    %9257 = vmatprep.subr.mxu0 0.0
    %9258 = vmatpush1.xpose.msra.mxu0 0.0
    %9259 = vmatprep.mubr.f32.mxu0 0.0
    %9260 = vmatmul.mubr.f32.gmra.mrb[0].mxu0 %v9163
    %v9261 = vpop.f32.mrb[0].mxu0
    %v9262 = vadd.f32 0.0, %v9261
    %v9263 = vpop.f32.mrb[0].mxu0
    %9264 = vmatprep.mubr.f32.mxu0 0.0
    %9265 = vmatmul.mubr.f32.gmra.mrb[0].mxu0 %v9165
    %v9266 = vpop.f32.mrb[0].mxu0
    %v9267 = vadd.f32 0.0, %v9266
    %v9268 = vpop.f32.mrb[0].mxu0
    %9269 = vmatprep.mubr.f32.mxu0 0.0
    %9270 = vmatmul.mubr.f32.gmra.mrb[0].mxu0 %v9167
    %v9271 = vpop.f32.mrb[0].mxu0
    %v9272 = vadd.f32 0.0, %v9271
    %v9273 = vpop.f32.mrb[0].mxu0
    %9274 = vmatprep.mubr.f32.mxu0 0.0
    %9275 = vmatmul.mubr.f32.gmra.mrb[0].mxu0 %v9169
    %v9276 = vpop.f32.mrb[0].mxu0
    %v9277 = vadd.f32 0.0, %v9276
    %v9278 = vpop.f32.mrb[0].mxu0
    %9279 = vmatprep.mubr.f32.mxu0 0.0
    %9280 = vmatmul.mubr.f32.gmra.mrb[0].mxu0 %v9171
    %v9281 = vpop.f32.mrb[0].mxu0
    %v9282 = vadd.f32 0.0, %v9281
    %v9283 = vpop.f32.mrb[0].mxu0
    %9284 = vmatprep.mubr.f32.mxu0 0.0
    %9285 = vmatmul.mubr.f32.gmra.mrb[0].mxu0 %v9173
    %v9286 = vpop.f32.mrb[0].mxu0
    %v9287 = vadd.f32 0.0, %v9286
    %v9288 = vpop.f32.mrb[0].mxu0
    %9289 = vmatprep.mubr.f32.mxu0 0.0
    %9290 = vmatmul.mubr.f32.gmra.mrb[0].mxu0 %v9175
    %v9291 = vpop.f32.mrb[0].mxu0
    %v9292 = vadd.f32 0.0, %v9291
    %v9293 = vpop.f32.mrb[0].mxu0
    %9294 = vmatprep.mubr.f32.mxu0 0.0
    %9295 = vmatmul.mubr.f32.gmra.mrb[0].mxu0 %v9177
    %v9296 = vpop.f32.mrb[0].mxu0
    %v9297 = vadd.f32 0.0, %v9296
    %v9298 = vpop.f32.mrb[0].mxu0
    %9299 = vdwg.mxu0
    %v9300 = vmul.f32 %v9262, 0.25
    %v9301 = vmul.f32 %v9267, 0.25
    %v9302 = vmul.f32 %v9272, 0.25
    %v9303 = vmul.f32 %v9277, 0.25
    %v9304 = vmul.f32 %v9282, 0.25
    %v9305 = vmul.f32 %v9287, 0.25
    %v9306 = vmul.f32 %v9292, 0.25
    %v9307 = vmul.f32 %v9297, 0.25
    %v9308 = vsel %vm450, %v9300, -inf
    %9309 = vmax.xlane.f32.xlu0 %v9308
    %v9310 = vpop.xlane.xlu0 %9309
    %v9311 = vsel %vm450, %v9301, -inf
    %9312 = vmax.xlane.f32.xlu0 %v9311
    %v9313 = vpop.xlane.xlu0 %9312
    %v9314 = vsel %vm450, %v9302, -inf
    %9315 = vmax.xlane.f32.xlu0 %v9314
    %v9316 = vpop.xlane.xlu0 %9315
    %v9317 = vsel %vm450, %v9303, -inf
    %9318 = vmax.xlane.f32.xlu0 %v9317
    %v9319 = vpop.xlane.xlu0 %9318
    %v9320 = vsel %vm450, %v9304, -inf
    %9321 = vmax.xlane.f32.xlu0 %v9320
    %v9322 = vpop.xlane.xlu0 %9321
    %v9323 = vsel %vm450, %v9305, -inf
    %9324 = vmax.xlane.f32.xlu0 %v9323
    %v9325 = vpop.xlane.xlu0 %9324
    %v9326 = vsel %vm450, %v9306, -inf
    %9327 = vmax.xlane.f32.xlu0 %v9326
    %v9328 = vpop.xlane.xlu0 %9327
    %v9329 = vsel %vm450, %v9307, -inf
    %9330 = vmax.xlane.f32.xlu0 %v9329
    %v9331 = vpop.xlane.xlu0 %9330
    %v9332 = vsub.f32 %v9300, %v9310
    %v9333 = vsub.f32 %v9301, %v9313
    %v9334 = vsub.f32 %v9302, %v9316
    %v9335 = vsub.f32 %v9303, %v9319
    %v9336 = vsub.f32 %v9304, %v9322
    %v9337 = vsub.f32 %v9305, %v9325
    %v9338 = vsub.f32 %v9306, %v9328
    %v9339 = vsub.f32 %v9307, %v9331
    %v9340 = vmul.f32 %v9332, 1.442695
    %v9341 = vpow.pop %v9340
    %v9342 = vmul.f32 %v9333, 1.442695
    %v9343 = vpow.pop %v9342
    %v9344 = vmul.f32 %v9334, 1.442695
    %v9345 = vpow.pop %v9344
    %v9346 = vmul.f32 %v9335, 1.442695
    %v9347 = vpow.pop %v9346
    %v9348 = vmul.f32 %v9336, 1.442695
    %v9349 = vpow.pop %v9348
    %v9350 = vmul.f32 %v9337, 1.442695
    %v9351 = vpow.pop %v9350
    %v9352 = vmul.f32 %v9338, 1.442695
    %v9353 = vpow.pop %v9352
    %v9354 = vmul.f32 %v9339, 1.442695
    %v9355 = vpow.pop %v9354
    %v9356 = vsel %vm450, %v9341, 0.0
    %9357 = vadd.xlane.f32.xlu0 %v9356
    %v9358 = vpop.xlane.xlu0 %9357
    %v9359 = vsel %vm450, %v9343, 0.0
    %9360 = vadd.xlane.f32.xlu0 %v9359
    %v9361 = vpop.xlane.xlu0 %9360
    %v9362 = vsel %vm450, %v9345, 0.0
    %9363 = vadd.xlane.f32.xlu0 %v9362
    %v9364 = vpop.xlane.xlu0 %9363
    %v9365 = vsel %vm450, %v9347, 0.0
    %9366 = vadd.xlane.f32.xlu0 %v9365
    %v9367 = vpop.xlane.xlu0 %9366
    %v9368 = vsel %vm450, %v9349, 0.0
    %9369 = vadd.xlane.f32.xlu0 %v9368
    %v9370 = vpop.xlane.xlu0 %9369
    %v9371 = vsel %vm450, %v9351, 0.0
    %9372 = vadd.xlane.f32.xlu0 %v9371
    %v9373 = vpop.xlane.xlu0 %9372
    %v9374 = vsel %vm450, %v9353, 0.0
    %9375 = vadd.xlane.f32.xlu0 %v9374
    %v9376 = vpop.xlane.xlu0 %9375
    %v9377 = vsel %vm450, %v9355, 0.0
    %9378 = vadd.xlane.f32.xlu0 %v9377
    %v9379 = vpop.xlane.xlu0 %9378
    %v9380 = vrcp.pop %v9358
    %v9381 = vrcp.pop %v9361
    %v9382 = vrcp.pop %v9364
    %v9383 = vrcp.pop %v9367
    %v9384 = vrcp.pop %v9370
    %v9385 = vrcp.pop %v9373
    %v9386 = vrcp.pop %v9376
    %v9387 = vrcp.pop %v9379
    %v9388 = vmul.f32 %v9341, %v9380
    %v9389 = vmul.f32 %v9343, %v9381
    %v9390 = vmul.f32 %v9345, %v9382
    %v9391 = vmul.f32 %v9347, %v9383
    %v9392 = vmul.f32 %v9349, %v9384
    %v9393 = vmul.f32 %v9351, %v9385
    %v9394 = vmul.f32 %v9353, %v9386
    %v9395 = vmul.f32 %v9355, %v9387
    %9396 = vrot.lane.b32.xlu0 %v8683, 48
    %v9397 = vpop.permute.xlu0 %9396
    %9398 = vrot.lane.b32.xlu0 %v8688, 48
    %v9399 = vpop.permute.xlu0 %9398
    %9400 = vrot.lane.b32.xlu0 %v8693, 48
    %v9401 = vpop.permute.xlu0 %9400
    %9402 = vrot.lane.b32.xlu0 %v8698, 48
    %v9403 = vpop.permute.xlu0 %9402
    %9404 = vrot.lane.b32.xlu0 %v8703, 48
    %v9405 = vpop.permute.xlu0 %9404
    %9406 = vrot.lane.b32.xlu0 %v8708, 48
    %v9407 = vpop.permute.xlu0 %9406
    %9408 = vrot.lane.b32.xlu0 %v8713, 48
    %v9409 = vpop.permute.xlu0 %9408
    %9410 = vrot.lane.b32.xlu0 %v8718, 48
    %v9411 = vpop.permute.xlu0 %9410
    %v9421 = vsel %vm450, %v9388, 0
    %v9424 = vsel %vm450, %v9389, 0
    %v9427 = vsel %vm450, %v9390, 0
    %v9430 = vsel %vm450, %v9391, 0
    %v9433 = vsel %vm450, %v9392, 0
    %v9436 = vsel %vm450, %v9393, 0
    %v9439 = vsel %vm450, %v9394, 0
    %v9442 = vsel %vm450, %v9395, 0
    %9444 = vmatprep.subr.mxu0 0.0
    %9445 = vmatpush1.msra.mxu0 %v9397
    %9446 = vmatprep.subr.mxu0 0.0
    %9447 = vmatpush1.msra.mxu0 %v9399
    %9448 = vmatprep.subr.mxu0 0.0
    %9449 = vmatpush1.msra.mxu0 %v9401
    %9450 = vmatprep.subr.mxu0 0.0
    %9451 = vmatpush1.msra.mxu0 %v9403
    %9452 = vmatprep.subr.mxu0 0.0
    %9453 = vmatpush1.msra.mxu0 %v9405
    %9454 = vmatprep.subr.mxu0 0.0
    %9455 = vmatpush1.msra.mxu0 %v9407
    %9456 = vmatprep.subr.mxu0 0.0
    %9457 = vmatpush1.msra.mxu0 %v9409
    %9458 = vmatprep.subr.mxu0 0.0
    %9459 = vmatpush1.msra.mxu0 %v9411
    %9460 = vmatprep.subr.mxu0 0.0
    %9461 = vmatpush1.msra.mxu0 0.0
    %9462 = vmatprep.subr.mxu0 0.0
    %9463 = vmatpush1.msra.mxu0 0.0
    %9464 = vmatprep.subr.mxu0 0.0
    %9465 = vmatpush1.msra.mxu0 0.0
    %9466 = vmatprep.subr.mxu0 0.0
    %9467 = vmatpush1.msra.mxu0 0.0
    %9468 = vmatprep.subr.mxu0 0.0
    %9469 = vmatpush1.msra.mxu0 0.0
    %9470 = vmatprep.subr.mxu0 0.0
    %9471 = vmatpush1.msra.mxu0 0.0
    %9472 = vmatprep.subr.mxu0 0.0
    %9473 = vmatpush1.msra.mxu0 0.0
    %9474 = vmatprep.subr.mxu0 0.0
    %9475 = vmatpush1.msra.mxu0 0.0
    %9476 = vmatprep.subr.mxu0 0.0
    %9477 = vmatpush1.msra.mxu0 0.0
    %9478 = vmatprep.subr.mxu0 0.0
    %9479 = vmatpush1.msra.mxu0 0.0
    %9480 = vmatprep.subr.mxu0 0.0
    %9481 = vmatpush1.msra.mxu0 0.0
    %9482 = vmatprep.subr.mxu0 0.0
    %9483 = vmatpush1.msra.mxu0 0.0
    %9484 = vmatprep.subr.mxu0 0.0
    %9485 = vmatpush1.msra.mxu0 0.0
    %9486 = vmatprep.subr.mxu0 0.0
    %9487 = vmatpush1.msra.mxu0 0.0
    %9488 = vmatprep.subr.mxu0 0.0
    %9489 = vmatpush1.msra.mxu0 0.0
    %9490 = vmatprep.subr.mxu0 0.0
    %9491 = vmatpush1.msra.mxu0 0.0
    %9492 = vmatprep.subr.mxu0 0.0
    %9493 = vmatpush1.msra.mxu0 0.0
    %9494 = vmatprep.subr.mxu0 0.0
    %9495 = vmatpush1.msra.mxu0 0.0
    %9496 = vmatprep.subr.mxu0 0.0
    %9497 = vmatpush1.msra.mxu0 0.0
    %9498 = vmatprep.subr.mxu0 0.0
    %9499 = vmatpush1.msra.mxu0 0.0
    %9500 = vmatprep.subr.mxu0 0.0
    %9501 = vmatpush1.msra.mxu0 0.0
    %9502 = vmatprep.subr.mxu0 0.0
    %9503 = vmatpush1.msra.mxu0 0.0
    %9504 = vmatprep.subr.mxu0 0.0
    %9505 = vmatpush1.msra.mxu0 0.0
    %9506 = vmatprep.subr.mxu0 0.0
    %9507 = vmatpush1.msra.mxu0 0.0
    %9508 = vmatprep.mubr.f32.mxu0 0.0
    %9509 = vmatmul.mubr.f32.gmra.mrb[0].mxu0 %v9421
    %v9510 = vpop.f32.mrb[0].mxu0
    %v9511 = vadd.f32 0.0, %v9510
    %v9512 = vpop.f32.mrb[0].mxu0
    %9513 = vmatprep.mubr.f32.mxu0 0.0
    %9514 = vmatmul.mubr.f32.gmra.mrb[0].mxu0 %v9424
    %v9515 = vpop.f32.mrb[0].mxu0
    %v9516 = vadd.f32 0.0, %v9515
    %v9517 = vpop.f32.mrb[0].mxu0
    %9518 = vmatprep.mubr.f32.mxu0 0.0
    %9519 = vmatmul.mubr.f32.gmra.mrb[0].mxu0 %v9427
    %v9520 = vpop.f32.mrb[0].mxu0
    %v9521 = vadd.f32 0.0, %v9520
    %v9522 = vpop.f32.mrb[0].mxu0
    %9523 = vmatprep.mubr.f32.mxu0 0.0
    %9524 = vmatmul.mubr.f32.gmra.mrb[0].mxu0 %v9430
    %v9525 = vpop.f32.mrb[0].mxu0
    %v9526 = vadd.f32 0.0, %v9525
    %v9527 = vpop.f32.mrb[0].mxu0
    %9528 = vmatprep.mubr.f32.mxu0 0.0
    %9529 = vmatmul.mubr.f32.gmra.mrb[0].mxu0 %v9433
    %v9530 = vpop.f32.mrb[0].mxu0
    %v9531 = vadd.f32 0.0, %v9530
    %v9532 = vpop.f32.mrb[0].mxu0
    %9533 = vmatprep.mubr.f32.mxu0 0.0
    %9534 = vmatmul.mubr.f32.gmra.mrb[0].mxu0 %v9436
    %v9535 = vpop.f32.mrb[0].mxu0
    %v9536 = vadd.f32 0.0, %v9535
    %v9537 = vpop.f32.mrb[0].mxu0
    %9538 = vmatprep.mubr.f32.mxu0 0.0
    %9539 = vmatmul.mubr.f32.gmra.mrb[0].mxu0 %v9439
    %v9540 = vpop.f32.mrb[0].mxu0
    %v9541 = vadd.f32 0.0, %v9540
    %v9542 = vpop.f32.mrb[0].mxu0
    %9543 = vmatprep.mubr.f32.mxu0 0.0
    %9544 = vmatmul.mubr.f32.gmra.mrb[0].mxu0 %v9442
    %v9545 = vpop.f32.mrb[0].mxu0
    %v9546 = vadd.f32 0.0, %v9545
    %v9547 = vpop.f32.mrb[0].mxu0
    %9548 = vdwg.mxu0
    %9557 = vrot.lane.b32.xlu0 %v9511, 16
    %v9558 = vpop.permute.xlu0 %9557
    %9559 = vrot.lane.b32.xlu0 %v9516, 16
    %v9560 = vpop.permute.xlu0 %9559
    %9561 = vrot.lane.b32.xlu0 %v9521, 16
    %v9562 = vpop.permute.xlu0 %9561
    %9563 = vrot.lane.b32.xlu0 %v9526, 16
    %v9564 = vpop.permute.xlu0 %9563
    %9565 = vrot.lane.b32.xlu0 %v9531, 16
    %v9566 = vpop.permute.xlu0 %9565
    %9567 = vrot.lane.b32.xlu0 %v9536, 16
    %v9568 = vpop.permute.xlu0 %9567
    %9569 = vrot.lane.b32.xlu0 %v9541, 16
    %v9570 = vpop.permute.xlu0 %9569
    %9571 = vrot.lane.b32.xlu0 %v9546, 16
    %v9572 = vpop.permute.xlu0 %9571
    %9581 = vst.msk [vmem:[#allocation3] sm:$0xff] %vm2747, %v9558
    %9582 = vst.msk [vmem:[#allocation3 + $0x8] sm:$0xff] %vm2747, %v9560
    %9583 = vst.msk [vmem:[#allocation3 + $0x10] sm:$0xff] %vm2747, %v9562
    %9584 = vst.msk [vmem:[#allocation3 + $0x18] sm:$0xff] %vm2747, %v9564
    %9585 = vst.msk [vmem:[#allocation3 + $0x20] sm:$0xff] %vm2747, %v9566
    %9586 = vst.msk [vmem:[#allocation3 + $0x28] sm:$0xff] %vm2747, %v9568
    %9587 = vst.msk [vmem:[#allocation3 + $0x30] sm:$0xff] %vm2747, %v9570
    %9588 = vst.msk [vmem:[#allocation3 + $0x38] sm:$0xff] %vm2747, %v9572
    %9589 = vrot.lane.b32.xlu0 %v8480, 96
    %v9590 = vpop.permute.xlu0 %9589
    %9591 = vrot.lane.b32.xlu0 %v8485, 96
    %v9592 = vpop.permute.xlu0 %9591
    %9593 = vrot.lane.b32.xlu0 %v8490, 96
    %v9594 = vpop.permute.xlu0 %9593
    %9595 = vrot.lane.b32.xlu0 %v8495, 96
    %v9596 = vpop.permute.xlu0 %9595
    %9597 = vrot.lane.b32.xlu0 %v8500, 96
    %v9598 = vpop.permute.xlu0 %9597
    %9599 = vrot.lane.b32.xlu0 %v8505, 96
    %v9600 = vpop.permute.xlu0 %9599
    %9601 = vrot.lane.b32.xlu0 %v8510, 96
    %v9602 = vpop.permute.xlu0 %9601
    %9603 = vrot.lane.b32.xlu0 %v8515, 96
    %v9604 = vpop.permute.xlu0 %9603
    %9605 = vrot.lane.b32.xlu0 %v8683, 96
    %v9606 = vpop.permute.xlu0 %9605
    %9607 = vrot.lane.b32.xlu0 %v8688, 96
    %v9608 = vpop.permute.xlu0 %9607
    %9609 = vrot.lane.b32.xlu0 %v8693, 96
    %v9610 = vpop.permute.xlu0 %9609
    %9611 = vrot.lane.b32.xlu0 %v8698, 96
    %v9612 = vpop.permute.xlu0 %9611
    %9613 = vrot.lane.b32.xlu0 %v8703, 96
    %v9614 = vpop.permute.xlu0 %9613
    %9615 = vrot.lane.b32.xlu0 %v8708, 96
    %v9616 = vpop.permute.xlu0 %9615
    %9617 = vrot.lane.b32.xlu0 %v8713, 96
    %v9618 = vpop.permute.xlu0 %9617
    %9619 = vrot.lane.b32.xlu0 %v8718, 96
    %v9620 = vpop.permute.xlu0 %9619
    %v9621 = vsel %vm2397, %v9590, 0
    %v9623 = vsel %vm2397, %v9592, 0
    %v9625 = vsel %vm2397, %v9594, 0
    %v9627 = vsel %vm2397, %v9596, 0
    %v9629 = vsel %vm2397, %v9598, 0
    %v9631 = vsel %vm2397, %v9600, 0
    %v9633 = vsel %vm2397, %v9602, 0
    %v9635 = vsel %vm2397, %v9604, 0
    %v9637 = vsel %vm2397, %v9606, 0
    %v9639 = vsel %vm2397, %v9608, 0
    %v9641 = vsel %vm2397, %v9610, 0
    %v9643 = vsel %vm2397, %v9612, 0
    %v9645 = vsel %vm2397, %v9614, 0
    %v9647 = vsel %vm2397, %v9616, 0
    %v9649 = vsel %vm2397, %v9618, 0
    %v9651 = vsel %vm2397, %v9620, 0
    %9653 = vmatprep.subr.mxu0 0.0
    %9654 = vmatpush1.xpose.msra.mxu0 %v9637
    %9655 = vmatprep.subr.mxu0 0.0
    %9656 = vmatpush1.xpose.msra.mxu0 %v9639
    %9657 = vmatprep.subr.mxu0 0.0
    %9658 = vmatpush1.xpose.msra.mxu0 %v9641
    %9659 = vmatprep.subr.mxu0 0.0
    %9660 = vmatpush1.xpose.msra.mxu0 %v9643
    %9661 = vmatprep.subr.mxu0 0.0
    %9662 = vmatpush1.xpose.msra.mxu0 %v9645
    %9663 = vmatprep.subr.mxu0 0.0
    %9664 = vmatpush1.xpose.msra.mxu0 %v9647
    %9665 = vmatprep.subr.mxu0 0.0
    %9666 = vmatpush1.xpose.msra.mxu0 %v9649
    %9667 = vmatprep.subr.mxu0 0.0
    %9668 = vmatpush1.xpose.msra.mxu0 %v9651
    %9669 = vmatprep.subr.mxu0 0.0
    %9670 = vmatpush1.xpose.msra.mxu0 0.0
    %9671 = vmatprep.subr.mxu0 0.0
    %9672 = vmatpush1.xpose.msra.mxu0 0.0
    %9673 = vmatprep.subr.mxu0 0.0
    %9674 = vmatpush1.xpose.msra.mxu0 0.0
    %9675 = vmatprep.subr.mxu0 0.0
    %9676 = vmatpush1.xpose.msra.mxu0 0.0
    %9677 = vmatprep.subr.mxu0 0.0
    %9678 = vmatpush1.xpose.msra.mxu0 0.0
    %9679 = vmatprep.subr.mxu0 0.0
    %9680 = vmatpush1.xpose.msra.mxu0 0.0
    %9681 = vmatprep.subr.mxu0 0.0
    %9682 = vmatpush1.xpose.msra.mxu0 0.0
    %9683 = vmatprep.subr.mxu0 0.0
    %9684 = vmatpush1.xpose.msra.mxu0 0.0
    %9685 = vmatprep.subr.mxu0 0.0
    %9686 = vmatpush1.xpose.msra.mxu0 0.0
    %9687 = vmatprep.subr.mxu0 0.0
    %9688 = vmatpush1.xpose.msra.mxu0 0.0
    %9689 = vmatprep.subr.mxu0 0.0
    %9690 = vmatpush1.xpose.msra.mxu0 0.0
    %9691 = vmatprep.subr.mxu0 0.0
    %9692 = vmatpush1.xpose.msra.mxu0 0.0
    %9693 = vmatprep.subr.mxu0 0.0
    %9694 = vmatpush1.xpose.msra.mxu0 0.0
    %9695 = vmatprep.subr.mxu0 0.0
    %9696 = vmatpush1.xpose.msra.mxu0 0.0
    %9697 = vmatprep.subr.mxu0 0.0
    %9698 = vmatpush1.xpose.msra.mxu0 0.0
    %9699 = vmatprep.subr.mxu0 0.0
    %9700 = vmatpush1.xpose.msra.mxu0 0.0
    %9701 = vmatprep.subr.mxu0 0.0
    %9702 = vmatpush1.xpose.msra.mxu0 0.0
    %9703 = vmatprep.subr.mxu0 0.0
    %9704 = vmatpush1.xpose.msra.mxu0 0.0
    %9705 = vmatprep.subr.mxu0 0.0
    %9706 = vmatpush1.xpose.msra.mxu0 0.0
    %9707 = vmatprep.subr.mxu0 0.0
    %9708 = vmatpush1.xpose.msra.mxu0 0.0
    %9709 = vmatprep.subr.mxu0 0.0
    %9710 = vmatpush1.xpose.msra.mxu0 0.0
    %9711 = vmatprep.subr.mxu0 0.0
    %9712 = vmatpush1.xpose.msra.mxu0 0.0
    %9713 = vmatprep.subr.mxu0 0.0
    %9714 = vmatpush1.xpose.msra.mxu0 0.0
    %9715 = vmatprep.subr.mxu0 0.0
    %9716 = vmatpush1.xpose.msra.mxu0 0.0
    %9717 = vmatprep.mubr.f32.mxu0 0.0
    %9718 = vmatmul.mubr.f32.gmra.mrb[0].mxu0 %v9621
    %v9719 = vpop.f32.mrb[0].mxu0
    %v9720 = vadd.f32 0.0, %v9719
    %v9721 = vpop.f32.mrb[0].mxu0
    %9722 = vmatprep.mubr.f32.mxu0 0.0
    %9723 = vmatmul.mubr.f32.gmra.mrb[0].mxu0 %v9623
    %v9724 = vpop.f32.mrb[0].mxu0
    %v9725 = vadd.f32 0.0, %v9724
    %v9726 = vpop.f32.mrb[0].mxu0
    %9727 = vmatprep.mubr.f32.mxu0 0.0
    %9728 = vmatmul.mubr.f32.gmra.mrb[0].mxu0 %v9625
    %v9729 = vpop.f32.mrb[0].mxu0
    %v9730 = vadd.f32 0.0, %v9729
    %v9731 = vpop.f32.mrb[0].mxu0
    %9732 = vmatprep.mubr.f32.mxu0 0.0
    %9733 = vmatmul.mubr.f32.gmra.mrb[0].mxu0 %v9627
    %v9734 = vpop.f32.mrb[0].mxu0
    %v9735 = vadd.f32 0.0, %v9734
    %v9736 = vpop.f32.mrb[0].mxu0
    %9737 = vmatprep.mubr.f32.mxu0 0.0
    %9738 = vmatmul.mubr.f32.gmra.mrb[0].mxu0 %v9629
    %v9739 = vpop.f32.mrb[0].mxu0
    %v9740 = vadd.f32 0.0, %v9739
    %v9741 = vpop.f32.mrb[0].mxu0
    %9742 = vmatprep.mubr.f32.mxu0 0.0
    %9743 = vmatmul.mubr.f32.gmra.mrb[0].mxu0 %v9631
    %v9744 = vpop.f32.mrb[0].mxu0
    %v9745 = vadd.f32 0.0, %v9744
    %v9746 = vpop.f32.mrb[0].mxu0
    %9747 = vmatprep.mubr.f32.mxu0 0.0
    %9748 = vmatmul.mubr.f32.gmra.mrb[0].mxu0 %v9633
    %v9749 = vpop.f32.mrb[0].mxu0
    %v9750 = vadd.f32 0.0, %v9749
    %v9751 = vpop.f32.mrb[0].mxu0
    %9752 = vmatprep.mubr.f32.mxu0 0.0
    %9753 = vmatmul.mubr.f32.gmra.mrb[0].mxu0 %v9635
    %v9754 = vpop.f32.mrb[0].mxu0
    %v9755 = vadd.f32 0.0, %v9754
    %v9756 = vpop.f32.mrb[0].mxu0
    %9757 = vdwg.mxu0
    %v9758 = vmul.f32 %v9720, 0.25
    %v9759 = vmul.f32 %v9725, 0.25
    %v9760 = vmul.f32 %v9730, 0.25
    %v9761 = vmul.f32 %v9735, 0.25
    %v9762 = vmul.f32 %v9740, 0.25
    %v9763 = vmul.f32 %v9745, 0.25
    %v9764 = vmul.f32 %v9750, 0.25
    %v9765 = vmul.f32 %v9755, 0.25
    %v9766 = vsel %vm450, %v9758, -inf
    %9767 = vmax.xlane.f32.xlu0 %v9766
    %v9768 = vpop.xlane.xlu0 %9767
    %v9769 = vsel %vm450, %v9759, -inf
    %9770 = vmax.xlane.f32.xlu0 %v9769
    %v9771 = vpop.xlane.xlu0 %9770
    %v9772 = vsel %vm450, %v9760, -inf
    %9773 = vmax.xlane.f32.xlu0 %v9772
    %v9774 = vpop.xlane.xlu0 %9773
    %v9775 = vsel %vm450, %v9761, -inf
    %9776 = vmax.xlane.f32.xlu0 %v9775
    %v9777 = vpop.xlane.xlu0 %9776
    %v9778 = vsel %vm450, %v9762, -inf
    %9779 = vmax.xlane.f32.xlu0 %v9778
    %v9780 = vpop.xlane.xlu0 %9779
    %v9781 = vsel %vm450, %v9763, -inf
    %9782 = vmax.xlane.f32.xlu0 %v9781
    %v9783 = vpop.xlane.xlu0 %9782
    %v9784 = vsel %vm450, %v9764, -inf
    %9785 = vmax.xlane.f32.xlu0 %v9784
    %v9786 = vpop.xlane.xlu0 %9785
    %v9787 = vsel %vm450, %v9765, -inf
    %9788 = vmax.xlane.f32.xlu0 %v9787
    %v9789 = vpop.xlane.xlu0 %9788
    %v9790 = vsub.f32 %v9758, %v9768
    %v9791 = vsub.f32 %v9759, %v9771
    %v9792 = vsub.f32 %v9760, %v9774
    %v9793 = vsub.f32 %v9761, %v9777
    %v9794 = vsub.f32 %v9762, %v9780
    %v9795 = vsub.f32 %v9763, %v9783
    %v9796 = vsub.f32 %v9764, %v9786
    %v9797 = vsub.f32 %v9765, %v9789
    %v9798 = vmul.f32 %v9790, 1.442695
    %v9799 = vpow.pop %v9798
    %v9800 = vmul.f32 %v9791, 1.442695
    %v9801 = vpow.pop %v9800
    %v9802 = vmul.f32 %v9792, 1.442695
    %v9803 = vpow.pop %v9802
    %v9804 = vmul.f32 %v9793, 1.442695
    %v9805 = vpow.pop %v9804
    %v9806 = vmul.f32 %v9794, 1.442695
    %v9807 = vpow.pop %v9806
    %v9808 = vmul.f32 %v9795, 1.442695
    %v9809 = vpow.pop %v9808
    %v9810 = vmul.f32 %v9796, 1.442695
    %v9811 = vpow.pop %v9810
    %v9812 = vmul.f32 %v9797, 1.442695
    %v9813 = vpow.pop %v9812
    %v9814 = vsel %vm450, %v9799, 0.0
    %9815 = vadd.xlane.f32.xlu0 %v9814
    %v9816 = vpop.xlane.xlu0 %9815
    %v9817 = vsel %vm450, %v9801, 0.0
    %9818 = vadd.xlane.f32.xlu0 %v9817
    %v9819 = vpop.xlane.xlu0 %9818
    %v9820 = vsel %vm450, %v9803, 0.0
    %9821 = vadd.xlane.f32.xlu0 %v9820
    %v9822 = vpop.xlane.xlu0 %9821
    %v9823 = vsel %vm450, %v9805, 0.0
    %9824 = vadd.xlane.f32.xlu0 %v9823
    %v9825 = vpop.xlane.xlu0 %9824
    %v9826 = vsel %vm450, %v9807, 0.0
    %9827 = vadd.xlane.f32.xlu0 %v9826
    %v9828 = vpop.xlane.xlu0 %9827
    %v9829 = vsel %vm450, %v9809, 0.0
    %9830 = vadd.xlane.f32.xlu0 %v9829
    %v9831 = vpop.xlane.xlu0 %9830
    %v9832 = vsel %vm450, %v9811, 0.0
    %9833 = vadd.xlane.f32.xlu0 %v9832
    %v9834 = vpop.xlane.xlu0 %9833
    %v9835 = vsel %vm450, %v9813, 0.0
    %9836 = vadd.xlane.f32.xlu0 %v9835
    %v9837 = vpop.xlane.xlu0 %9836
    %v9838 = vrcp.pop %v9816
    %v9839 = vrcp.pop %v9819
    %v9840 = vrcp.pop %v9822
    %v9841 = vrcp.pop %v9825
    %v9842 = vrcp.pop %v9828
    %v9843 = vrcp.pop %v9831
    %v9844 = vrcp.pop %v9834
    %v9845 = vrcp.pop %v9837
    %v9846 = vmul.f32 %v9799, %v9838
    %v9847 = vmul.f32 %v9801, %v9839
    %v9848 = vmul.f32 %v9803, %v9840
    %v9849 = vmul.f32 %v9805, %v9841
    %v9850 = vmul.f32 %v9807, %v9842
    %v9851 = vmul.f32 %v9809, %v9843
    %v9852 = vmul.f32 %v9811, %v9844
    %v9853 = vmul.f32 %v9813, %v9845
    %9854 = vrot.lane.b32.xlu0 %v8683, 32
    %v9855 = vpop.permute.xlu0 %9854
    %9856 = vrot.lane.b32.xlu0 %v8688, 32
    %v9857 = vpop.permute.xlu0 %9856
    %9858 = vrot.lane.b32.xlu0 %v8693, 32
    %v9859 = vpop.permute.xlu0 %9858
    %9860 = vrot.lane.b32.xlu0 %v8698, 32
    %v9861 = vpop.permute.xlu0 %9860
    %9862 = vrot.lane.b32.xlu0 %v8703, 32
    %v9863 = vpop.permute.xlu0 %9862
    %9864 = vrot.lane.b32.xlu0 %v8708, 32
    %v9865 = vpop.permute.xlu0 %9864
    %9866 = vrot.lane.b32.xlu0 %v8713, 32
    %v9867 = vpop.permute.xlu0 %9866
    %9868 = vrot.lane.b32.xlu0 %v8718, 32
    %v9869 = vpop.permute.xlu0 %9868
    %v9879 = vsel %vm450, %v9846, 0
    %v9882 = vsel %vm450, %v9847, 0
    %v9885 = vsel %vm450, %v9848, 0
    %v9888 = vsel %vm450, %v9849, 0
    %v9891 = vsel %vm450, %v9850, 0
    %v9894 = vsel %vm450, %v9851, 0
    %v9897 = vsel %vm450, %v9852, 0
    %v9900 = vsel %vm450, %v9853, 0
    %9902 = vmatprep.subr.mxu0 0.0
    %9903 = vmatpush1.msra.mxu0 %v9855
    %9904 = vmatprep.subr.mxu0 0.0
    %9905 = vmatpush1.msra.mxu0 %v9857
    %9906 = vmatprep.subr.mxu0 0.0
    %9907 = vmatpush1.msra.mxu0 %v9859
    %9908 = vmatprep.subr.mxu0 0.0
    %9909 = vmatpush1.msra.mxu0 %v9861
    %9910 = vmatprep.subr.mxu0 0.0
    %9911 = vmatpush1.msra.mxu0 %v9863
    %9912 = vmatprep.subr.mxu0 0.0
    %9913 = vmatpush1.msra.mxu0 %v9865
    %9914 = vmatprep.subr.mxu0 0.0
    %9915 = vmatpush1.msra.mxu0 %v9867
    %9916 = vmatprep.subr.mxu0 0.0
    %9917 = vmatpush1.msra.mxu0 %v9869
    %9918 = vmatprep.subr.mxu0 0.0
    %9919 = vmatpush1.msra.mxu0 0.0
    %9920 = vmatprep.subr.mxu0 0.0
    %9921 = vmatpush1.msra.mxu0 0.0
    %9922 = vmatprep.subr.mxu0 0.0
    %9923 = vmatpush1.msra.mxu0 0.0
    %9924 = vmatprep.subr.mxu0 0.0
    %9925 = vmatpush1.msra.mxu0 0.0
    %9926 = vmatprep.subr.mxu0 0.0
    %9927 = vmatpush1.msra.mxu0 0.0
    %9928 = vmatprep.subr.mxu0 0.0
    %9929 = vmatpush1.msra.mxu0 0.0
    %9930 = vmatprep.subr.mxu0 0.0
    %9931 = vmatpush1.msra.mxu0 0.0
    %9932 = vmatprep.subr.mxu0 0.0
    %9933 = vmatpush1.msra.mxu0 0.0
    %9934 = vmatprep.subr.mxu0 0.0
    %9935 = vmatpush1.msra.mxu0 0.0
    %9936 = vmatprep.subr.mxu0 0.0
    %9937 = vmatpush1.msra.mxu0 0.0
    %9938 = vmatprep.subr.mxu0 0.0
    %9939 = vmatpush1.msra.mxu0 0.0
    %9940 = vmatprep.subr.mxu0 0.0
    %9941 = vmatpush1.msra.mxu0 0.0
    %9942 = vmatprep.subr.mxu0 0.0
    %9943 = vmatpush1.msra.mxu0 0.0
    %9944 = vmatprep.subr.mxu0 0.0
    %9945 = vmatpush1.msra.mxu0 0.0
    %9946 = vmatprep.subr.mxu0 0.0
    %9947 = vmatpush1.msra.mxu0 0.0
    %9948 = vmatprep.subr.mxu0 0.0
    %9949 = vmatpush1.msra.mxu0 0.0
    %9950 = vmatprep.subr.mxu0 0.0
    %9951 = vmatpush1.msra.mxu0 0.0
    %9952 = vmatprep.subr.mxu0 0.0
    %9953 = vmatpush1.msra.mxu0 0.0
    %9954 = vmatprep.subr.mxu0 0.0
    %9955 = vmatpush1.msra.mxu0 0.0
    %9956 = vmatprep.subr.mxu0 0.0
    %9957 = vmatpush1.msra.mxu0 0.0
    %9958 = vmatprep.subr.mxu0 0.0
    %9959 = vmatpush1.msra.mxu0 0.0
    %9960 = vmatprep.subr.mxu0 0.0
    %9961 = vmatpush1.msra.mxu0 0.0
    %9962 = vmatprep.subr.mxu0 0.0
    %9963 = vmatpush1.msra.mxu0 0.0
    %9964 = vmatprep.subr.mxu0 0.0
    %9965 = vmatpush1.msra.mxu0 0.0
    %9966 = vmatprep.mubr.f32.mxu0 0.0
    %9967 = vmatmul.mubr.f32.gmra.mrb[0].mxu0 %v9879
    %v9968 = vpop.f32.mrb[0].mxu0
    %v9969 = vadd.f32 0.0, %v9968
    %v9970 = vpop.f32.mrb[0].mxu0
    %9971 = vmatprep.mubr.f32.mxu0 0.0
    %9972 = vmatmul.mubr.f32.gmra.mrb[0].mxu0 %v9882
    %v9973 = vpop.f32.mrb[0].mxu0
    %v9974 = vadd.f32 0.0, %v9973
    %v9975 = vpop.f32.mrb[0].mxu0
    %9976 = vmatprep.mubr.f32.mxu0 0.0
    %9977 = vmatmul.mubr.f32.gmra.mrb[0].mxu0 %v9885
    %v9978 = vpop.f32.mrb[0].mxu0
    %v9979 = vadd.f32 0.0, %v9978
    %v9980 = vpop.f32.mrb[0].mxu0
    %9981 = vmatprep.mubr.f32.mxu0 0.0
    %9982 = vmatmul.mubr.f32.gmra.mrb[0].mxu0 %v9888
    %v9983 = vpop.f32.mrb[0].mxu0
    %v9984 = vadd.f32 0.0, %v9983
    %v9985 = vpop.f32.mrb[0].mxu0
    %9986 = vmatprep.mubr.f32.mxu0 0.0
    %9987 = vmatmul.mubr.f32.gmra.mrb[0].mxu0 %v9891
    %v9988 = vpop.f32.mrb[0].mxu0
    %v9989 = vadd.f32 0.0, %v9988
    %v9990 = vpop.f32.mrb[0].mxu0
    %9991 = vmatprep.mubr.f32.mxu0 0.0
    %9992 = vmatmul.mubr.f32.gmra.mrb[0].mxu0 %v9894
    %v9993 = vpop.f32.mrb[0].mxu0
    %v9994 = vadd.f32 0.0, %v9993
    %v9995 = vpop.f32.mrb[0].mxu0
    %9996 = vmatprep.mubr.f32.mxu0 0.0
    %9997 = vmatmul.mubr.f32.gmra.mrb[0].mxu0 %v9897
    %v9998 = vpop.f32.mrb[0].mxu0
    %v9999 = vadd.f32 0.0, %v9998
    %v10000 = vpop.f32.mrb[0].mxu0
    %10001 = vmatprep.mubr.f32.mxu0 0.0
    %10002 = vmatmul.mubr.f32.gmra.mrb[0].mxu0 %v9900
    %v10003 = vpop.f32.mrb[0].mxu0
    %v10004 = vadd.f32 0.0, %v10003
    %v10005 = vpop.f32.mrb[0].mxu0
    %10006 = vdwg.mxu0
    %10015 = vrot.lane.b32.xlu0 %v9969, 32
    %v10016 = vpop.permute.xlu0 %10015
    %10017 = vrot.lane.b32.xlu0 %v9974, 32
    %v10018 = vpop.permute.xlu0 %10017
    %10019 = vrot.lane.b32.xlu0 %v9979, 32
    %v10020 = vpop.permute.xlu0 %10019
    %10021 = vrot.lane.b32.xlu0 %v9984, 32
    %v10022 = vpop.permute.xlu0 %10021
    %10023 = vrot.lane.b32.xlu0 %v9989, 32
    %v10024 = vpop.permute.xlu0 %10023
    %10025 = vrot.lane.b32.xlu0 %v9994, 32
    %v10026 = vpop.permute.xlu0 %10025
    %10027 = vrot.lane.b32.xlu0 %v9999, 32
    %v10028 = vpop.permute.xlu0 %10027
    %10029 = vrot.lane.b32.xlu0 %v10004, 32
    %v10030 = vpop.permute.xlu0 %10029
    %10039 = vst.msk [vmem:[#allocation3] sm:$0xff] %vm3097, %v10016
    %10040 = vst.msk [vmem:[#allocation3 + $0x8] sm:$0xff] %vm3097, %v10018
    %10041 = vst.msk [vmem:[#allocation3 + $0x10] sm:$0xff] %vm3097, %v10020
    %10042 = vst.msk [vmem:[#allocation3 + $0x18] sm:$0xff] %vm3097, %v10022
    %10043 = vst.msk [vmem:[#allocation3 + $0x20] sm:$0xff] %vm3097, %v10024
    %10044 = vst.msk [vmem:[#allocation3 + $0x28] sm:$0xff] %vm3097, %v10026
    %10045 = vst.msk [vmem:[#allocation3 + $0x30] sm:$0xff] %vm3097, %v10028
    %10046 = vst.msk [vmem:[#allocation3 + $0x38] sm:$0xff] %vm3097, %v10030
    %10047 = vrot.lane.b32.xlu0 %v8480, 80
    %v10048 = vpop.permute.xlu0 %10047
    %10049 = vrot.lane.b32.xlu0 %v8485, 80
    %v10050 = vpop.permute.xlu0 %10049
    %10051 = vrot.lane.b32.xlu0 %v8490, 80
    %v10052 = vpop.permute.xlu0 %10051
    %10053 = vrot.lane.b32.xlu0 %v8495, 80
    %v10054 = vpop.permute.xlu0 %10053
    %10055 = vrot.lane.b32.xlu0 %v8500, 80
    %v10056 = vpop.permute.xlu0 %10055
    %10057 = vrot.lane.b32.xlu0 %v8505, 80
    %v10058 = vpop.permute.xlu0 %10057
    %10059 = vrot.lane.b32.xlu0 %v8510, 80
    %v10060 = vpop.permute.xlu0 %10059
    %10061 = vrot.lane.b32.xlu0 %v8515, 80
    %v10062 = vpop.permute.xlu0 %10061
    %10063 = vrot.lane.b32.xlu0 %v8683, 80
    %v10064 = vpop.permute.xlu0 %10063
    %10065 = vrot.lane.b32.xlu0 %v8688, 80
    %v10066 = vpop.permute.xlu0 %10065
    %10067 = vrot.lane.b32.xlu0 %v8693, 80
    %v10068 = vpop.permute.xlu0 %10067
    %10069 = vrot.lane.b32.xlu0 %v8698, 80
    %v10070 = vpop.permute.xlu0 %10069
    %10071 = vrot.lane.b32.xlu0 %v8703, 80
    %v10072 = vpop.permute.xlu0 %10071
    %10073 = vrot.lane.b32.xlu0 %v8708, 80
    %v10074 = vpop.permute.xlu0 %10073
    %10075 = vrot.lane.b32.xlu0 %v8713, 80
    %v10076 = vpop.permute.xlu0 %10075
    %10077 = vrot.lane.b32.xlu0 %v8718, 80
    %v10078 = vpop.permute.xlu0 %10077
    %v10079 = vsel %vm2397, %v10048, 0
    %v10081 = vsel %vm2397, %v10050, 0
    %v10083 = vsel %vm2397, %v10052, 0
    %v10085 = vsel %vm2397, %v10054, 0
    %v10087 = vsel %vm2397, %v10056, 0
    %v10089 = vsel %vm2397, %v10058, 0
    %v10091 = vsel %vm2397, %v10060, 0
    %v10093 = vsel %vm2397, %v10062, 0
    %v10095 = vsel %vm2397, %v10064, 0
    %v10097 = vsel %vm2397, %v10066, 0
    %v10099 = vsel %vm2397, %v10068, 0
    %v10101 = vsel %vm2397, %v10070, 0
    %v10103 = vsel %vm2397, %v10072, 0
    %v10105 = vsel %vm2397, %v10074, 0
    %v10107 = vsel %vm2397, %v10076, 0
    %v10109 = vsel %vm2397, %v10078, 0
    %10111 = vmatprep.subr.mxu0 0.0
    %10112 = vmatpush1.xpose.msra.mxu0 %v10095
    %10113 = vmatprep.subr.mxu0 0.0
    %10114 = vmatpush1.xpose.msra.mxu0 %v10097
    %10115 = vmatprep.subr.mxu0 0.0
    %10116 = vmatpush1.xpose.msra.mxu0 %v10099
    %10117 = vmatprep.subr.mxu0 0.0
    %10118 = vmatpush1.xpose.msra.mxu0 %v10101
    %10119 = vmatprep.subr.mxu0 0.0
    %10120 = vmatpush1.xpose.msra.mxu0 %v10103
    %10121 = vmatprep.subr.mxu0 0.0
    %10122 = vmatpush1.xpose.msra.mxu0 %v10105
    %10123 = vmatprep.subr.mxu0 0.0
    %10124 = vmatpush1.xpose.msra.mxu0 %v10107
    %10125 = vmatprep.subr.mxu0 0.0
    %10126 = vmatpush1.xpose.msra.mxu0 %v10109
    %10127 = vmatprep.subr.mxu0 0.0
    %10128 = vmatpush1.xpose.msra.mxu0 0.0
    %10129 = vmatprep.subr.mxu0 0.0
    %10130 = vmatpush1.xpose.msra.mxu0 0.0
    %10131 = vmatprep.subr.mxu0 0.0
    %10132 = vmatpush1.xpose.msra.mxu0 0.0
    %10133 = vmatprep.subr.mxu0 0.0
    %10134 = vmatpush1.xpose.msra.mxu0 0.0
    %10135 = vmatprep.subr.mxu0 0.0
    %10136 = vmatpush1.xpose.msra.mxu0 0.0
    %10137 = vmatprep.subr.mxu0 0.0
    %10138 = vmatpush1.xpose.msra.mxu0 0.0
    %10139 = vmatprep.subr.mxu0 0.0
    %10140 = vmatpush1.xpose.msra.mxu0 0.0
    %10141 = vmatprep.subr.mxu0 0.0
    %10142 = vmatpush1.xpose.msra.mxu0 0.0
    %10143 = vmatprep.subr.mxu0 0.0
    %10144 = vmatpush1.xpose.msra.mxu0 0.0
    %10145 = vmatprep.subr.mxu0 0.0
    %10146 = vmatpush1.xpose.msra.mxu0 0.0
    %10147 = vmatprep.subr.mxu0 0.0
    %10148 = vmatpush1.xpose.msra.mxu0 0.0
    %10149 = vmatprep.subr.mxu0 0.0
    %10150 = vmatpush1.xpose.msra.mxu0 0.0
    %10151 = vmatprep.subr.mxu0 0.0
    %10152 = vmatpush1.xpose.msra.mxu0 0.0
    %10153 = vmatprep.subr.mxu0 0.0
    %10154 = vmatpush1.xpose.msra.mxu0 0.0
    %10155 = vmatprep.subr.mxu0 0.0
    %10156 = vmatpush1.xpose.msra.mxu0 0.0
    %10157 = vmatprep.subr.mxu0 0.0
    %10158 = vmatpush1.xpose.msra.mxu0 0.0
    %10159 = vmatprep.subr.mxu0 0.0
    %10160 = vmatpush1.xpose.msra.mxu0 0.0
    %10161 = vmatprep.subr.mxu0 0.0
    %10162 = vmatpush1.xpose.msra.mxu0 0.0
    %10163 = vmatprep.subr.mxu0 0.0
    %10164 = vmatpush1.xpose.msra.mxu0 0.0
    %10165 = vmatprep.subr.mxu0 0.0
    %10166 = vmatpush1.xpose.msra.mxu0 0.0
    %10167 = vmatprep.subr.mxu0 0.0
    %10168 = vmatpush1.xpose.msra.mxu0 0.0
    %10169 = vmatprep.subr.mxu0 0.0
    %10170 = vmatpush1.xpose.msra.mxu0 0.0
    %10171 = vmatprep.subr.mxu0 0.0
    %10172 = vmatpush1.xpose.msra.mxu0 0.0
    %10173 = vmatprep.subr.mxu0 0.0
    %10174 = vmatpush1.xpose.msra.mxu0 0.0
    %10175 = vmatprep.mubr.f32.mxu0 0.0
    %10176 = vmatmul.mubr.f32.gmra.mrb[0].mxu0 %v10079
    %v10177 = vpop.f32.mrb[0].mxu0
    %v10178 = vadd.f32 0.0, %v10177
    %v10179 = vpop.f32.mrb[0].mxu0
    %10180 = vmatprep.mubr.f32.mxu0 0.0
    %10181 = vmatmul.mubr.f32.gmra.mrb[0].mxu0 %v10081
    %v10182 = vpop.f32.mrb[0].mxu0
    %v10183 = vadd.f32 0.0, %v10182
    %v10184 = vpop.f32.mrb[0].mxu0
    %10185 = vmatprep.mubr.f32.mxu0 0.0
    %10186 = vmatmul.mubr.f32.gmra.mrb[0].mxu0 %v10083
    %v10187 = vpop.f32.mrb[0].mxu0
    %v10188 = vadd.f32 0.0, %v10187
    %v10189 = vpop.f32.mrb[0].mxu0
    %10190 = vmatprep.mubr.f32.mxu0 0.0
    %10191 = vmatmul.mubr.f32.gmra.mrb[0].mxu0 %v10085
    %v10192 = vpop.f32.mrb[0].mxu0
    %v10193 = vadd.f32 0.0, %v10192
    %v10194 = vpop.f32.mrb[0].mxu0
    %10195 = vmatprep.mubr.f32.mxu0 0.0
    %10196 = vmatmul.mubr.f32.gmra.mrb[0].mxu0 %v10087
    %v10197 = vpop.f32.mrb[0].mxu0
    %v10198 = vadd.f32 0.0, %v10197
    %v10199 = vpop.f32.mrb[0].mxu0
    %10200 = vmatprep.mubr.f32.mxu0 0.0
    %10201 = vmatmul.mubr.f32.gmra.mrb[0].mxu0 %v10089
    %v10202 = vpop.f32.mrb[0].mxu0
    %v10203 = vadd.f32 0.0, %v10202
    %v10204 = vpop.f32.mrb[0].mxu0
    %10205 = vmatprep.mubr.f32.mxu0 0.0
    %10206 = vmatmul.mubr.f32.gmra.mrb[0].mxu0 %v10091
    %v10207 = vpop.f32.mrb[0].mxu0
    %v10208 = vadd.f32 0.0, %v10207
    %v10209 = vpop.f32.mrb[0].mxu0
    %10210 = vmatprep.mubr.f32.mxu0 0.0
    %10211 = vmatmul.mubr.f32.gmra.mrb[0].mxu0 %v10093
    %v10212 = vpop.f32.mrb[0].mxu0
    %v10213 = vadd.f32 0.0, %v10212
    %v10214 = vpop.f32.mrb[0].mxu0
    %10215 = vdwg.mxu0
    %v10216 = vmul.f32 %v10178, 0.25
    %v10217 = vmul.f32 %v10183, 0.25
    %v10218 = vmul.f32 %v10188, 0.25
    %v10219 = vmul.f32 %v10193, 0.25
    %v10220 = vmul.f32 %v10198, 0.25
    %v10221 = vmul.f32 %v10203, 0.25
    %v10222 = vmul.f32 %v10208, 0.25
    %v10223 = vmul.f32 %v10213, 0.25
    %v10224 = vsel %vm450, %v10216, -inf
    %10225 = vmax.xlane.f32.xlu0 %v10224
    %v10226 = vpop.xlane.xlu0 %10225
    %v10227 = vsel %vm450, %v10217, -inf
    %10228 = vmax.xlane.f32.xlu0 %v10227
    %v10229 = vpop.xlane.xlu0 %10228
    %v10230 = vsel %vm450, %v10218, -inf
    %10231 = vmax.xlane.f32.xlu0 %v10230
    %v10232 = vpop.xlane.xlu0 %10231
    %v10233 = vsel %vm450, %v10219, -inf
    %10234 = vmax.xlane.f32.xlu0 %v10233
    %v10235 = vpop.xlane.xlu0 %10234
    %v10236 = vsel %vm450, %v10220, -inf
    %10237 = vmax.xlane.f32.xlu0 %v10236
    %v10238 = vpop.xlane.xlu0 %10237
    %v10239 = vsel %vm450, %v10221, -inf
    %10240 = vmax.xlane.f32.xlu0 %v10239
    %v10241 = vpop.xlane.xlu0 %10240
    %v10242 = vsel %vm450, %v10222, -inf
    %10243 = vmax.xlane.f32.xlu0 %v10242
    %v10244 = vpop.xlane.xlu0 %10243
    %v10245 = vsel %vm450, %v10223, -inf
    %10246 = vmax.xlane.f32.xlu0 %v10245
    %v10247 = vpop.xlane.xlu0 %10246
    %v10248 = vsub.f32 %v10216, %v10226
    %v10249 = vsub.f32 %v10217, %v10229
    %v10250 = vsub.f32 %v10218, %v10232
    %v10251 = vsub.f32 %v10219, %v10235
    %v10252 = vsub.f32 %v10220, %v10238
    %v10253 = vsub.f32 %v10221, %v10241
    %v10254 = vsub.f32 %v10222, %v10244
    %v10255 = vsub.f32 %v10223, %v10247
    %v10256 = vmul.f32 %v10248, 1.442695
    %v10257 = vpow.pop %v10256
    %v10258 = vmul.f32 %v10249, 1.442695
    %v10259 = vpow.pop %v10258
    %v10260 = vmul.f32 %v10250, 1.442695
    %v10261 = vpow.pop %v10260
    %v10262 = vmul.f32 %v10251, 1.442695
    %v10263 = vpow.pop %v10262
    %v10264 = vmul.f32 %v10252, 1.442695
    %v10265 = vpow.pop %v10264
    %v10266 = vmul.f32 %v10253, 1.442695
    %v10267 = vpow.pop %v10266
    %v10268 = vmul.f32 %v10254, 1.442695
    %v10269 = vpow.pop %v10268
    %v10270 = vmul.f32 %v10255, 1.442695
    %v10271 = vpow.pop %v10270
    %v10272 = vsel %vm450, %v10257, 0.0
    %10273 = vadd.xlane.f32.xlu0 %v10272
    %v10274 = vpop.xlane.xlu0 %10273
    %v10275 = vsel %vm450, %v10259, 0.0
    %10276 = vadd.xlane.f32.xlu0 %v10275
    %v10277 = vpop.xlane.xlu0 %10276
    %v10278 = vsel %vm450, %v10261, 0.0
    %10279 = vadd.xlane.f32.xlu0 %v10278
    %v10280 = vpop.xlane.xlu0 %10279
    %v10281 = vsel %vm450, %v10263, 0.0
    %10282 = vadd.xlane.f32.xlu0 %v10281
    %v10283 = vpop.xlane.xlu0 %10282
    %v10284 = vsel %vm450, %v10265, 0.0
    %10285 = vadd.xlane.f32.xlu0 %v10284
    %v10286 = vpop.xlane.xlu0 %10285
    %v10287 = vsel %vm450, %v10267, 0.0
    %10288 = vadd.xlane.f32.xlu0 %v10287
    %v10289 = vpop.xlane.xlu0 %10288
    %v10290 = vsel %vm450, %v10269, 0.0
    %10291 = vadd.xlane.f32.xlu0 %v10290
    %v10292 = vpop.xlane.xlu0 %10291
    %v10293 = vsel %vm450, %v10271, 0.0
    %10294 = vadd.xlane.f32.xlu0 %v10293
    %v10295 = vpop.xlane.xlu0 %10294
    %v10296 = vrcp.pop %v10274
    %v10297 = vrcp.pop %v10277
    %v10298 = vrcp.pop %v10280
    %v10299 = vrcp.pop %v10283
    %v10300 = vrcp.pop %v10286
    %v10301 = vrcp.pop %v10289
    %v10302 = vrcp.pop %v10292
    %v10303 = vrcp.pop %v10295
    %v10304 = vmul.f32 %v10257, %v10296
    %v10305 = vmul.f32 %v10259, %v10297
    %v10306 = vmul.f32 %v10261, %v10298
    %v10307 = vmul.f32 %v10263, %v10299
    %v10308 = vmul.f32 %v10265, %v10300
    %v10309 = vmul.f32 %v10267, %v10301
    %v10310 = vmul.f32 %v10269, %v10302
    %v10311 = vmul.f32 %v10271, %v10303
    %10312 = vrot.lane.b32.xlu0 %v8683, 16
    %v10313 = vpop.permute.xlu0 %10312
    %10314 = vrot.lane.b32.xlu0 %v8688, 16
    %v10315 = vpop.permute.xlu0 %10314
    %10316 = vrot.lane.b32.xlu0 %v8693, 16
    %v10317 = vpop.permute.xlu0 %10316
    %10318 = vrot.lane.b32.xlu0 %v8698, 16
    %v10319 = vpop.permute.xlu0 %10318
    %10320 = vrot.lane.b32.xlu0 %v8703, 16
    %v10321 = vpop.permute.xlu0 %10320
    %10322 = vrot.lane.b32.xlu0 %v8708, 16
    %v10323 = vpop.permute.xlu0 %10322
    %10324 = vrot.lane.b32.xlu0 %v8713, 16
    %v10325 = vpop.permute.xlu0 %10324
    %10326 = vrot.lane.b32.xlu0 %v8718, 16
    %v10327 = vpop.permute.xlu0 %10326
    %v10337 = vsel %vm450, %v10304, 0
    %v10340 = vsel %vm450, %v10305, 0
    %v10343 = vsel %vm450, %v10306, 0
    %v10346 = vsel %vm450, %v10307, 0
    %v10349 = vsel %vm450, %v10308, 0
    %v10352 = vsel %vm450, %v10309, 0
    %v10355 = vsel %vm450, %v10310, 0
    %v10358 = vsel %vm450, %v10311, 0
    %10360 = vmatprep.subr.mxu0 0.0
    %10361 = vmatpush1.msra.mxu0 %v10313
    %10362 = vmatprep.subr.mxu0 0.0
    %10363 = vmatpush1.msra.mxu0 %v10315
    %10364 = vmatprep.subr.mxu0 0.0
    %10365 = vmatpush1.msra.mxu0 %v10317
    %10366 = vmatprep.subr.mxu0 0.0
    %10367 = vmatpush1.msra.mxu0 %v10319
    %10368 = vmatprep.subr.mxu0 0.0
    %10369 = vmatpush1.msra.mxu0 %v10321
    %10370 = vmatprep.subr.mxu0 0.0
    %10371 = vmatpush1.msra.mxu0 %v10323
    %10372 = vmatprep.subr.mxu0 0.0
    %10373 = vmatpush1.msra.mxu0 %v10325
    %10374 = vmatprep.subr.mxu0 0.0
    %10375 = vmatpush1.msra.mxu0 %v10327
    %10376 = vmatprep.subr.mxu0 0.0
    %10377 = vmatpush1.msra.mxu0 0.0
    %10378 = vmatprep.subr.mxu0 0.0
    %10379 = vmatpush1.msra.mxu0 0.0
    %10380 = vmatprep.subr.mxu0 0.0
    %10381 = vmatpush1.msra.mxu0 0.0
    %10382 = vmatprep.subr.mxu0 0.0
    %10383 = vmatpush1.msra.mxu0 0.0
    %10384 = vmatprep.subr.mxu0 0.0
    %10385 = vmatpush1.msra.mxu0 0.0
    %10386 = vmatprep.subr.mxu0 0.0
    %10387 = vmatpush1.msra.mxu0 0.0
    %10388 = vmatprep.subr.mxu0 0.0
    %10389 = vmatpush1.msra.mxu0 0.0
    %10390 = vmatprep.subr.mxu0 0.0
    %10391 = vmatpush1.msra.mxu0 0.0
    %10392 = vmatprep.subr.mxu0 0.0
    %10393 = vmatpush1.msra.mxu0 0.0
    %10394 = vmatprep.subr.mxu0 0.0
    %10395 = vmatpush1.msra.mxu0 0.0
    %10396 = vmatprep.subr.mxu0 0.0
    %10397 = vmatpush1.msra.mxu0 0.0
    %10398 = vmatprep.subr.mxu0 0.0
    %10399 = vmatpush1.msra.mxu0 0.0
    %10400 = vmatprep.subr.mxu0 0.0
    %10401 = vmatpush1.msra.mxu0 0.0
    %10402 = vmatprep.subr.mxu0 0.0
    %10403 = vmatpush1.msra.mxu0 0.0
    %10404 = vmatprep.subr.mxu0 0.0
    %10405 = vmatpush1.msra.mxu0 0.0
    %10406 = vmatprep.subr.mxu0 0.0
    %10407 = vmatpush1.msra.mxu0 0.0
    %10408 = vmatprep.subr.mxu0 0.0
    %10409 = vmatpush1.msra.mxu0 0.0
    %10410 = vmatprep.subr.mxu0 0.0
    %10411 = vmatpush1.msra.mxu0 0.0
    %10412 = vmatprep.subr.mxu0 0.0
    %10413 = vmatpush1.msra.mxu0 0.0
    %10414 = vmatprep.subr.mxu0 0.0
    %10415 = vmatpush1.msra.mxu0 0.0
    %10416 = vmatprep.subr.mxu0 0.0
    %10417 = vmatpush1.msra.mxu0 0.0
    %10418 = vmatprep.subr.mxu0 0.0
    %10419 = vmatpush1.msra.mxu0 0.0
    %10420 = vmatprep.subr.mxu0 0.0
    %10421 = vmatpush1.msra.mxu0 0.0
    %10422 = vmatprep.subr.mxu0 0.0
    %10423 = vmatpush1.msra.mxu0 0.0
    %10424 = vmatprep.mubr.f32.mxu0 0.0
    %10425 = vmatmul.mubr.f32.gmra.mrb[0].mxu0 %v10337
    %v10426 = vpop.f32.mrb[0].mxu0
    %v10427 = vadd.f32 0.0, %v10426
    %v10428 = vpop.f32.mrb[0].mxu0
    %10429 = vmatprep.mubr.f32.mxu0 0.0
    %10430 = vmatmul.mubr.f32.gmra.mrb[0].mxu0 %v10340
    %v10431 = vpop.f32.mrb[0].mxu0
    %v10432 = vadd.f32 0.0, %v10431
    %v10433 = vpop.f32.mrb[0].mxu0
    %10434 = vmatprep.mubr.f32.mxu0 0.0
    %10435 = vmatmul.mubr.f32.gmra.mrb[0].mxu0 %v10343
    %v10436 = vpop.f32.mrb[0].mxu0
    %v10437 = vadd.f32 0.0, %v10436
    %v10438 = vpop.f32.mrb[0].mxu0
    %10439 = vmatprep.mubr.f32.mxu0 0.0
    %10440 = vmatmul.mubr.f32.gmra.mrb[0].mxu0 %v10346
    %v10441 = vpop.f32.mrb[0].mxu0
    %v10442 = vadd.f32 0.0, %v10441
    %v10443 = vpop.f32.mrb[0].mxu0
    %10444 = vmatprep.mubr.f32.mxu0 0.0
    %10445 = vmatmul.mubr.f32.gmra.mrb[0].mxu0 %v10349
    %v10446 = vpop.f32.mrb[0].mxu0
    %v10447 = vadd.f32 0.0, %v10446
    %v10448 = vpop.f32.mrb[0].mxu0
    %10449 = vmatprep.mubr.f32.mxu0 0.0
    %10450 = vmatmul.mubr.f32.gmra.mrb[0].mxu0 %v10352
    %v10451 = vpop.f32.mrb[0].mxu0
    %v10452 = vadd.f32 0.0, %v10451
    %v10453 = vpop.f32.mrb[0].mxu0
    %10454 = vmatprep.mubr.f32.mxu0 0.0
    %10455 = vmatmul.mubr.f32.gmra.mrb[0].mxu0 %v10355
    %v10456 = vpop.f32.mrb[0].mxu0
    %v10457 = vadd.f32 0.0, %v10456
    %v10458 = vpop.f32.mrb[0].mxu0
    %10459 = vmatprep.mubr.f32.mxu0 0.0
    %10460 = vmatmul.mubr.f32.gmra.mrb[0].mxu0 %v10358
    %v10461 = vpop.f32.mrb[0].mxu0
    %v10462 = vadd.f32 0.0, %v10461
    %v10463 = vpop.f32.mrb[0].mxu0
    %10464 = vdwg.mxu0
    %10473 = vrot.lane.b32.xlu0 %v10427, 48
    %v10474 = vpop.permute.xlu0 %10473
    %10475 = vrot.lane.b32.xlu0 %v10432, 48
    %v10476 = vpop.permute.xlu0 %10475
    %10477 = vrot.lane.b32.xlu0 %v10437, 48
    %v10478 = vpop.permute.xlu0 %10477
    %10479 = vrot.lane.b32.xlu0 %v10442, 48
    %v10480 = vpop.permute.xlu0 %10479
    %10481 = vrot.lane.b32.xlu0 %v10447, 48
    %v10482 = vpop.permute.xlu0 %10481
    %10483 = vrot.lane.b32.xlu0 %v10452, 48
    %v10484 = vpop.permute.xlu0 %10483
    %10485 = vrot.lane.b32.xlu0 %v10457, 48
    %v10486 = vpop.permute.xlu0 %10485
    %10487 = vrot.lane.b32.xlu0 %v10462, 48
    %v10488 = vpop.permute.xlu0 %10487
    %10497 = vst.msk [vmem:[#allocation3] sm:$0xff] %vm3447, %v10474
    %10498 = vst.msk [vmem:[#allocation3 + $0x8] sm:$0xff] %vm3447, %v10476
    %10499 = vst.msk [vmem:[#allocation3 + $0x10] sm:$0xff] %vm3447, %v10478
    %10500 = vst.msk [vmem:[#allocation3 + $0x18] sm:$0xff] %vm3447, %v10480
    %10501 = vst.msk [vmem:[#allocation3 + $0x20] sm:$0xff] %vm3447, %v10482
    %10502 = vst.msk [vmem:[#allocation3 + $0x28] sm:$0xff] %vm3447, %v10484
    %10503 = vst.msk [vmem:[#allocation3 + $0x30] sm:$0xff] %vm3447, %v10486
    %10504 = vst.msk [vmem:[#allocation3 + $0x38] sm:$0xff] %vm3447, %v10488
    %v10505 = vld [vmem:[#allocation3] sm:$0xff]
    %v10506 = vld [vmem:[#allocation3 + $0x8] sm:$0xff]
    %v10507 = vld [vmem:[#allocation3 + $0x10] sm:$0xff]
    %v10508 = vld [vmem:[#allocation3 + $0x18] sm:$0xff]
    %v10509 = vld [vmem:[#allocation3 + $0x20] sm:$0xff]
    %v10510 = vld [vmem:[#allocation3 + $0x28] sm:$0xff]
    %v10511 = vld [vmem:[#allocation3 + $0x30] sm:$0xff]
    %v10512 = vld [vmem:[#allocation3 + $0x38] sm:$0xff]
    %v10513 = vlaneseq
    %v10514 = vshrl.u32 %v10513, 7
    %v10515 = vsub.s32 0, %v10514
    %v10516 = vrot.slane %v8382, %v10515
    %v10518 = vsel %vm450, %v10505, 0
    %v10521 = vsel %vm450, %v10506, 0
    %v10524 = vsel %vm450, %v10507, 0
    %v10527 = vsel %vm450, %v10508, 0
    %v10530 = vsel %vm450, %v10509, 0
    %v10533 = vsel %vm450, %v10510, 0
    %v10536 = vsel %vm450, %v10511, 0
    %v10539 = vsel %vm450, %v10512, 0
    %10541 = vmatprep.subr.mxu0 0.0
    %10542 = vmatpush1.msra.mxu0 %v8374
    %10543 = vmatprep.subr.mxu0 0.0
    %10544 = vmatpush1.msra.mxu0 %v8375
    %10545 = vmatprep.subr.mxu0 0.0
    %10546 = vmatpush1.msra.mxu0 %v8376
    %10547 = vmatprep.subr.mxu0 0.0
    %10548 = vmatpush1.msra.mxu0 %v8377
    %10549 = vmatprep.subr.mxu0 0.0
    %10550 = vmatpush1.msra.mxu0 %v8378
    %10551 = vmatprep.subr.mxu0 0.0
    %10552 = vmatpush1.msra.mxu0 %v8379
    %10553 = vmatprep.subr.mxu0 0.0
    %10554 = vmatpush1.msra.mxu0 %v8380
    %10555 = vmatprep.subr.mxu0 0.0
    %10556 = vmatpush1.msra.mxu0 %v8381
    %10557 = vmatprep.subr.mxu0 0.0
    %10558 = vmatpush1.msra.mxu0 0.0
    %10559 = vmatprep.subr.mxu0 0.0
    %10560 = vmatpush1.msra.mxu0 0.0
    %10561 = vmatprep.subr.mxu0 0.0
    %10562 = vmatpush1.msra.mxu0 0.0
    %10563 = vmatprep.subr.mxu0 0.0
    %10564 = vmatpush1.msra.mxu0 0.0
    %10565 = vmatprep.subr.mxu0 0.0
    %10566 = vmatpush1.msra.mxu0 0.0
    %10567 = vmatprep.subr.mxu0 0.0
    %10568 = vmatpush1.msra.mxu0 0.0
    %10569 = vmatprep.subr.mxu0 0.0
    %10570 = vmatpush1.msra.mxu0 0.0
    %10571 = vmatprep.subr.mxu0 0.0
    %10572 = vmatpush1.msra.mxu0 0.0
    %10573 = vmatprep.subr.mxu0 0.0
    %10574 = vmatpush1.msra.mxu0 0.0
    %10575 = vmatprep.subr.mxu0 0.0
    %10576 = vmatpush1.msra.mxu0 0.0
    %10577 = vmatprep.subr.mxu0 0.0
    %10578 = vmatpush1.msra.mxu0 0.0
    %10579 = vmatprep.subr.mxu0 0.0
    %10580 = vmatpush1.msra.mxu0 0.0
    %10581 = vmatprep.subr.mxu0 0.0
    %10582 = vmatpush1.msra.mxu0 0.0
    %10583 = vmatprep.subr.mxu0 0.0
    %10584 = vmatpush1.msra.mxu0 0.0
    %10585 = vmatprep.subr.mxu0 0.0
    %10586 = vmatpush1.msra.mxu0 0.0
    %10587 = vmatprep.subr.mxu0 0.0
    %10588 = vmatpush1.msra.mxu0 0.0
    %10589 = vmatprep.subr.mxu0 0.0
    %10590 = vmatpush1.msra.mxu0 0.0
    %10591 = vmatprep.subr.mxu0 0.0
    %10592 = vmatpush1.msra.mxu0 0.0
    %10593 = vmatprep.subr.mxu0 0.0
    %10594 = vmatpush1.msra.mxu0 0.0
    %10595 = vmatprep.subr.mxu0 0.0
    %10596 = vmatpush1.msra.mxu0 0.0
    %10597 = vmatprep.subr.mxu0 0.0
    %10598 = vmatpush1.msra.mxu0 0.0
    %10599 = vmatprep.subr.mxu0 0.0
    %10600 = vmatpush1.msra.mxu0 0.0
    %10601 = vmatprep.subr.mxu0 0.0
    %10602 = vmatpush1.msra.mxu0 0.0
    %10603 = vmatprep.subr.mxu0 0.0
    %10604 = vmatpush1.msra.mxu0 0.0
    %10605 = vmatprep.mubr.f32.mxu0 0.0
    %10606 = vmatmul.mubr.f32.gmra.mrb[0].mxu0 %v10518
    %v10607 = vpop.f32.mrb[0].mxu0
    %v10608 = vadd.f32 %v10516, %v10607
    %v10609 = vpop.f32.mrb[0].mxu0
    %10610 = vmatprep.mubr.f32.mxu0 0.0
    %10611 = vmatmul.mubr.f32.gmra.mrb[0].mxu0 %v10521
    %v10612 = vpop.f32.mrb[0].mxu0
    %v10613 = vadd.f32 %v10516, %v10612
    %v10614 = vpop.f32.mrb[0].mxu0
    %10615 = vmatprep.mubr.f32.mxu0 0.0
    %10616 = vmatmul.mubr.f32.gmra.mrb[0].mxu0 %v10524
    %v10617 = vpop.f32.mrb[0].mxu0
    %v10618 = vadd.f32 %v10516, %v10617
    %v10619 = vpop.f32.mrb[0].mxu0
    %10620 = vmatprep.mubr.f32.mxu0 0.0
    %10621 = vmatmul.mubr.f32.gmra.mrb[0].mxu0 %v10527
    %v10622 = vpop.f32.mrb[0].mxu0
    %v10623 = vadd.f32 %v10516, %v10622
    %v10624 = vpop.f32.mrb[0].mxu0
    %10625 = vmatprep.mubr.f32.mxu0 0.0
    %10626 = vmatmul.mubr.f32.gmra.mrb[0].mxu0 %v10530
    %v10627 = vpop.f32.mrb[0].mxu0
    %v10628 = vadd.f32 %v10516, %v10627
    %v10629 = vpop.f32.mrb[0].mxu0
    %10630 = vmatprep.mubr.f32.mxu0 0.0
    %10631 = vmatmul.mubr.f32.gmra.mrb[0].mxu0 %v10533
    %v10632 = vpop.f32.mrb[0].mxu0
    %v10633 = vadd.f32 %v10516, %v10632
    %v10634 = vpop.f32.mrb[0].mxu0
    %10635 = vmatprep.mubr.f32.mxu0 0.0
    %10636 = vmatmul.mubr.f32.gmra.mrb[0].mxu0 %v10536
    %v10637 = vpop.f32.mrb[0].mxu0
    %v10638 = vadd.f32 %v10516, %v10637
    %v10639 = vpop.f32.mrb[0].mxu0
    %10640 = vmatprep.mubr.f32.mxu0 0.0
    %10641 = vmatmul.mubr.f32.gmra.mrb[0].mxu0 %v10539
    %v10642 = vpop.f32.mrb[0].mxu0
    %v10643 = vadd.f32 %v10516, %v10642
    %v10644 = vpop.f32.mrb[0].mxu0
    %10645 = vdwg.mxu0
    %v10646 = vadd.f32 %v8348, %v10608
    %v10647 = vadd.f32 %v8349, %v10613
    %v10648 = vadd.f32 %v8350, %v10618
    %v10649 = vadd.f32 %v8351, %v10623
    %v10650 = vadd.f32 %v8352, %v10628
    %v10651 = vadd.f32 %v8353, %v10633
    %v10652 = vadd.f32 %v8354, %v10638
    %v10653 = vadd.f32 %v8355, %v10643
    %v10654 = vld [vmem:[%s5 + $0x253] sm:$0x1]
    %v10655 = vld [vmem:[%s5 + $0x254] sm:$0x1]
    %v10656 = vsel %vm450, %v10646, 0.0
    %10657 = vadd.xlane.f32.xlu0 %v10656
    %v10658 = vpop.xlane.xlu0 %10657
    %v10659 = vsel %vm450, %v10647, 0.0
    %10660 = vadd.xlane.f32.xlu0 %v10659
    %v10661 = vpop.xlane.xlu0 %10660
    %v10662 = vsel %vm450, %v10648, 0.0
    %10663 = vadd.xlane.f32.xlu0 %v10662
    %v10664 = vpop.xlane.xlu0 %10663
    %v10665 = vsel %vm450, %v10649, 0.0
    %10666 = vadd.xlane.f32.xlu0 %v10665
    %v10667 = vpop.xlane.xlu0 %10666
    %v10668 = vsel %vm450, %v10650, 0.0
    %10669 = vadd.xlane.f32.xlu0 %v10668
    %v10670 = vpop.xlane.xlu0 %10669
    %v10671 = vsel %vm450, %v10651, 0.0
    %10672 = vadd.xlane.f32.xlu0 %v10671
    %v10673 = vpop.xlane.xlu0 %10672
    %v10674 = vsel %vm450, %v10652, 0.0
    %10675 = vadd.xlane.f32.xlu0 %v10674
    %v10676 = vpop.xlane.xlu0 %10675
    %v10677 = vsel %vm450, %v10653, 0.0
    %10678 = vadd.xlane.f32.xlu0 %v10677
    %v10679 = vpop.xlane.xlu0 %10678
    %v10680 = vmul.f32 %v10658, %v5618
    %v10681 = vmul.f32 %v10661, %v5618
    %v10682 = vmul.f32 %v10664, %v5618
    %v10683 = vmul.f32 %v10667, %v5618
    %v10684 = vmul.f32 %v10670, %v5618
    %v10685 = vmul.f32 %v10673, %v5618
    %v10686 = vmul.f32 %v10676, %v5618
    %v10687 = vmul.f32 %v10679, %v5618
    %v10688 = vsub.f32 %v10646, %v10680
    %v10689 = vsub.f32 %v10647, %v10681
    %v10690 = vsub.f32 %v10648, %v10682
    %v10691 = vsub.f32 %v10649, %v10683
    %v10692 = vsub.f32 %v10650, %v10684
    %v10693 = vsub.f32 %v10651, %v10685
    %v10694 = vsub.f32 %v10652, %v10686
    %v10695 = vsub.f32 %v10653, %v10687
    %v10696 = vmul.f32 %v10688, %v10688
    %v10697 = vmul.f32 %v10689, %v10689
    %v10698 = vmul.f32 %v10690, %v10690
    %v10699 = vmul.f32 %v10691, %v10691
    %v10700 = vmul.f32 %v10692, %v10692
    %v10701 = vmul.f32 %v10693, %v10693
    %v10702 = vmul.f32 %v10694, %v10694
    %v10703 = vmul.f32 %v10695, %v10695
    %v10704 = vsel %vm450, %v10696, 0.0
    %10705 = vadd.xlane.f32.xlu0 %v10704
    %v10706 = vpop.xlane.xlu0 %10705
    %v10707 = vsel %vm450, %v10697, 0.0
    %10708 = vadd.xlane.f32.xlu0 %v10707
    %v10709 = vpop.xlane.xlu0 %10708
    %v10710 = vsel %vm450, %v10698, 0.0
    %10711 = vadd.xlane.f32.xlu0 %v10710
    %v10712 = vpop.xlane.xlu0 %10711
    %v10713 = vsel %vm450, %v10699, 0.0
    %10714 = vadd.xlane.f32.xlu0 %v10713
    %v10715 = vpop.xlane.xlu0 %10714
    %v10716 = vsel %vm450, %v10700, 0.0
    %10717 = vadd.xlane.f32.xlu0 %v10716
    %v10718 = vpop.xlane.xlu0 %10717
    %v10719 = vsel %vm450, %v10701, 0.0
    %10720 = vadd.xlane.f32.xlu0 %v10719
    %v10721 = vpop.xlane.xlu0 %10720
    %v10722 = vsel %vm450, %v10702, 0.0
    %10723 = vadd.xlane.f32.xlu0 %v10722
    %v10724 = vpop.xlane.xlu0 %10723
    %v10725 = vsel %vm450, %v10703, 0.0
    %10726 = vadd.xlane.f32.xlu0 %v10725
    %v10727 = vpop.xlane.xlu0 %10726
    %v10728 = vmul.f32 %v10706, %v5618
    %v10729 = vmul.f32 %v10709, %v5618
    %v10730 = vmul.f32 %v10712, %v5618
    %v10731 = vmul.f32 %v10715, %v5618
    %v10732 = vmul.f32 %v10718, %v5618
    %v10733 = vmul.f32 %v10721, %v5618
    %v10734 = vmul.f32 %v10724, %v5618
    %v10735 = vmul.f32 %v10727, %v5618
    %v10736 = vadd.f32 %v10728, 1e-05
    %v10737 = vadd.f32 %v10729, 1e-05
    %v10738 = vadd.f32 %v10730, 1e-05
    %v10739 = vadd.f32 %v10731, 1e-05
    %v10740 = vadd.f32 %v10732, 1e-05
    %v10741 = vadd.f32 %v10733, 1e-05
    %v10742 = vadd.f32 %v10734, 1e-05
    %v10743 = vadd.f32 %v10735, 1e-05
    %v10744 = vrsqrt.pop %v10736
    %v10745 = vrsqrt.pop %v10737
    %v10746 = vrsqrt.pop %v10738
    %v10747 = vrsqrt.pop %v10739
    %v10748 = vrsqrt.pop %v10740
    %v10749 = vrsqrt.pop %v10741
    %v10750 = vrsqrt.pop %v10742
    %v10751 = vrsqrt.pop %v10743
    %v10752 = vmul.f32 %v10688, %v10744
    %v10753 = vmul.f32 %v10689, %v10745
    %v10754 = vmul.f32 %v10690, %v10746
    %v10755 = vmul.f32 %v10691, %v10747
    %v10756 = vmul.f32 %v10692, %v10748
    %v10757 = vmul.f32 %v10693, %v10749
    %v10758 = vmul.f32 %v10694, %v10750
    %v10759 = vmul.f32 %v10695, %v10751
    %v10760 = vlaneseq
    %v10761 = vshrl.u32 %v10760, 7
    %v10762 = vsub.s32 0, %v10761
    %v10763 = vrot.slane %v10654, %v10762
    %v10764 = vmul.f32 %v10752, %v10763
    %v10765 = vmul.f32 %v10753, %v10763
    %v10766 = vmul.f32 %v10754, %v10763
    %v10767 = vmul.f32 %v10755, %v10763
    %v10768 = vmul.f32 %v10756, %v10763
    %v10769 = vmul.f32 %v10757, %v10763
    %v10770 = vmul.f32 %v10758, %v10763
    %v10771 = vmul.f32 %v10759, %v10763
    %v10772 = vlaneseq
    %v10773 = vshrl.u32 %v10772, 7
    %v10774 = vsub.s32 0, %v10773
    %v10775 = vrot.slane %v10655, %v10774
    %v10776 = vadd.f32 %v10764, %v10775
    %v10777 = vadd.f32 %v10765, %v10775
    %v10778 = vadd.f32 %v10766, %v10775
    %v10779 = vadd.f32 %v10767, %v10775
    %v10780 = vadd.f32 %v10768, %v10775
    %v10781 = vadd.f32 %v10769, %v10775
    %v10782 = vadd.f32 %v10770, %v10775
    %v10783 = vadd.f32 %v10771, %v10775
    %v10784 = vld [vmem:[%s5 + $0x258] sm:$0xff]
    %v10785 = vld [vmem:[%s5 + $0x260] sm:$0xff]
    %v10786 = vld [vmem:[%s5 + $0x268] sm:$0xff]
    %v10787 = vld [vmem:[%s5 + $0x270] sm:$0xff]
    %v10788 = vld [vmem:[%s5 + $0x278] sm:$0xff]
    %v10789 = vld [vmem:[%s5 + $0x280] sm:$0xff]
    %v10790 = vld [vmem:[%s5 + $0x288] sm:$0xff]
    %v10791 = vld [vmem:[%s5 + $0x290] sm:$0xff]
    %v10792 = vld [vmem:[%s5 + $0x298] sm:$0x1]
    %v10793 = vld [vmem:[%s5 + $0x2a0] sm:$0xff]
    %v10794 = vld [vmem:[%s5 + $0x2a8] sm:$0xff]
    %v10795 = vld [vmem:[%s5 + $0x2b0] sm:$0xff]
    %v10796 = vld [vmem:[%s5 + $0x2b8] sm:$0xff]
    %v10797 = vld [vmem:[%s5 + $0x2c0] sm:$0x1]
    %v10798 = vlaneseq
    %v10799 = vshrl.u32 %v10798, 7
    %v10800 = vsub.s32 0, %v10799
    %v10801 = vrot.slane %v10792, %v10800
    %v10803 = vsel %vm450, %v10776, 0
    %v10806 = vsel %vm450, %v10777, 0
    %v10809 = vsel %vm450, %v10778, 0
    %v10812 = vsel %vm450, %v10779, 0
    %v10815 = vsel %vm450, %v10780, 0
    %v10818 = vsel %vm450, %v10781, 0
    %v10821 = vsel %vm450, %v10782, 0
    %v10824 = vsel %vm450, %v10783, 0
    %10826 = vmatprep.subr.mxu0 0.0
    %10827 = vmatpush1.msra.mxu0 %v10784
    %10828 = vmatprep.subr.mxu0 0.0
    %10829 = vmatpush1.msra.mxu0 %v10785
    %10830 = vmatprep.subr.mxu0 0.0
    %10831 = vmatpush1.msra.mxu0 %v10786
    %10832 = vmatprep.subr.mxu0 0.0
    %10833 = vmatpush1.msra.mxu0 %v10787
    %10834 = vmatprep.subr.mxu0 0.0
    %10835 = vmatpush1.msra.mxu0 %v10788
    %10836 = vmatprep.subr.mxu0 0.0
    %10837 = vmatpush1.msra.mxu0 %v10789
    %10838 = vmatprep.subr.mxu0 0.0
    %10839 = vmatpush1.msra.mxu0 %v10790
    %10840 = vmatprep.subr.mxu0 0.0
    %10841 = vmatpush1.msra.mxu0 %v10791
    %10842 = vmatprep.subr.mxu0 0.0
    %10843 = vmatpush1.msra.mxu0 0.0
    %10844 = vmatprep.subr.mxu0 0.0
    %10845 = vmatpush1.msra.mxu0 0.0
    %10846 = vmatprep.subr.mxu0 0.0
    %10847 = vmatpush1.msra.mxu0 0.0
    %10848 = vmatprep.subr.mxu0 0.0
    %10849 = vmatpush1.msra.mxu0 0.0
    %10850 = vmatprep.subr.mxu0 0.0
    %10851 = vmatpush1.msra.mxu0 0.0
    %10852 = vmatprep.subr.mxu0 0.0
    %10853 = vmatpush1.msra.mxu0 0.0
    %10854 = vmatprep.subr.mxu0 0.0
    %10855 = vmatpush1.msra.mxu0 0.0
    %10856 = vmatprep.subr.mxu0 0.0
    %10857 = vmatpush1.msra.mxu0 0.0
    %10858 = vmatprep.subr.mxu0 0.0
    %10859 = vmatpush1.msra.mxu0 0.0
    %10860 = vmatprep.subr.mxu0 0.0
    %10861 = vmatpush1.msra.mxu0 0.0
    %10862 = vmatprep.subr.mxu0 0.0
    %10863 = vmatpush1.msra.mxu0 0.0
    %10864 = vmatprep.subr.mxu0 0.0
    %10865 = vmatpush1.msra.mxu0 0.0
    %10866 = vmatprep.subr.mxu0 0.0
    %10867 = vmatpush1.msra.mxu0 0.0
    %10868 = vmatprep.subr.mxu0 0.0
    %10869 = vmatpush1.msra.mxu0 0.0
    %10870 = vmatprep.subr.mxu0 0.0
    %10871 = vmatpush1.msra.mxu0 0.0
    %10872 = vmatprep.subr.mxu0 0.0
    %10873 = vmatpush1.msra.mxu0 0.0
    %10874 = vmatprep.subr.mxu0 0.0
    %10875 = vmatpush1.msra.mxu0 0.0
    %10876 = vmatprep.subr.mxu0 0.0
    %10877 = vmatpush1.msra.mxu0 0.0
    %10878 = vmatprep.subr.mxu0 0.0
    %10879 = vmatpush1.msra.mxu0 0.0
    %10880 = vmatprep.subr.mxu0 0.0
    %10881 = vmatpush1.msra.mxu0 0.0
    %10882 = vmatprep.subr.mxu0 0.0
    %10883 = vmatpush1.msra.mxu0 0.0
    %10884 = vmatprep.subr.mxu0 0.0
    %10885 = vmatpush1.msra.mxu0 0.0
    %10886 = vmatprep.subr.mxu0 0.0
    %10887 = vmatpush1.msra.mxu0 0.0
    %10888 = vmatprep.subr.mxu0 0.0
    %10889 = vmatpush1.msra.mxu0 0.0
    %10890 = vmatprep.mubr.f32.mxu0 0.0
    %10891 = vmatmul.mubr.f32.gmra.mrb[0].mxu0 %v10803
    %v10892 = vpop.f32.mrb[0].mxu0
    %v10893 = vadd.f32 %v10801, %v10892
    %v10894 = vpop.f32.mrb[0].mxu0
    %10895 = vmatprep.mubr.f32.mxu0 0.0
    %10896 = vmatmul.mubr.f32.gmra.mrb[0].mxu0 %v10806
    %v10897 = vpop.f32.mrb[0].mxu0
    %v10898 = vadd.f32 %v10801, %v10897
    %v10899 = vpop.f32.mrb[0].mxu0
    %10900 = vmatprep.mubr.f32.mxu0 0.0
    %10901 = vmatmul.mubr.f32.gmra.mrb[0].mxu0 %v10809
    %v10902 = vpop.f32.mrb[0].mxu0
    %v10903 = vadd.f32 %v10801, %v10902
    %v10904 = vpop.f32.mrb[0].mxu0
    %10905 = vmatprep.mubr.f32.mxu0 0.0
    %10906 = vmatmul.mubr.f32.gmra.mrb[0].mxu0 %v10812
    %v10907 = vpop.f32.mrb[0].mxu0
    %v10908 = vadd.f32 %v10801, %v10907
    %v10909 = vpop.f32.mrb[0].mxu0
    %10910 = vmatprep.mubr.f32.mxu0 0.0
    %10911 = vmatmul.mubr.f32.gmra.mrb[0].mxu0 %v10815
    %v10912 = vpop.f32.mrb[0].mxu0
    %v10913 = vadd.f32 %v10801, %v10912
    %v10914 = vpop.f32.mrb[0].mxu0
    %10915 = vmatprep.mubr.f32.mxu0 0.0
    %10916 = vmatmul.mubr.f32.gmra.mrb[0].mxu0 %v10818
    %v10917 = vpop.f32.mrb[0].mxu0
    %v10918 = vadd.f32 %v10801, %v10917
    %v10919 = vpop.f32.mrb[0].mxu0
    %10920 = vmatprep.mubr.f32.mxu0 0.0
    %10921 = vmatmul.mubr.f32.gmra.mrb[0].mxu0 %v10821
    %v10922 = vpop.f32.mrb[0].mxu0
    %v10923 = vadd.f32 %v10801, %v10922
    %v10924 = vpop.f32.mrb[0].mxu0
    %10925 = vmatprep.mubr.f32.mxu0 0.0
    %10926 = vmatmul.mubr.f32.gmra.mrb[0].mxu0 %v10824
    %v10927 = vpop.f32.mrb[0].mxu0
    %v10928 = vadd.f32 %v10801, %v10927
    %v10929 = vpop.f32.mrb[0].mxu0
    %10930 = vdwg.mxu0
    %v10931 = vmax.f32 %v10893, 0.0
    %v10932 = vmax.f32 %v10898, 0.0
    %v10933 = vmax.f32 %v10903, 0.0
    %v10934 = vmax.f32 %v10908, 0.0
    %v10935 = vmax.f32 %v10913, 0.0
    %v10936 = vmax.f32 %v10918, 0.0
    %v10937 = vmax.f32 %v10923, 0.0
    %v10938 = vmax.f32 %v10928, 0.0
    %v10939 = vlaneseq
    %v10940 = vshrl.u32 %v10939, 7
    %v10941 = vsub.s32 0, %v10940
    %v10942 = vrot.slane %v10797, %v10941
    %v10944 = vsel %vm5882, %v10931, 0
    %v10947 = vsel %vm5882, %v10932, 0
    %v10950 = vsel %vm5882, %v10933, 0
    %v10953 = vsel %vm5882, %v10934, 0
    %v10956 = vsel %vm5882, %v10935, 0
    %v10959 = vsel %vm5882, %v10936, 0
    %v10962 = vsel %vm5882, %v10937, 0
    %v10965 = vsel %vm5882, %v10938, 0
    %10967 = vmatprep.subr.mxu0 0.0
    %10968 = vmatpush1.msra.mxu0 %v10793
    %10969 = vmatprep.subr.mxu0 0.0
    %10970 = vmatpush1.msra.mxu0 %v10794
    %10971 = vmatprep.subr.mxu0 0.0
    %10972 = vmatpush1.msra.mxu0 %v10795
    %10973 = vmatprep.subr.mxu0 0.0
    %10974 = vmatpush1.msra.mxu0 %v10796
    %10975 = vmatprep.subr.mxu0 0.0
    %10976 = vmatpush1.msra.mxu0 0.0
    %10977 = vmatprep.subr.mxu0 0.0
    %10978 = vmatpush1.msra.mxu0 0.0
    %10979 = vmatprep.subr.mxu0 0.0
    %10980 = vmatpush1.msra.mxu0 0.0
    %10981 = vmatprep.subr.mxu0 0.0
    %10982 = vmatpush1.msra.mxu0 0.0
    %10983 = vmatprep.subr.mxu0 0.0
    %10984 = vmatpush1.msra.mxu0 0.0
    %10985 = vmatprep.subr.mxu0 0.0
    %10986 = vmatpush1.msra.mxu0 0.0
    %10987 = vmatprep.subr.mxu0 0.0
    %10988 = vmatpush1.msra.mxu0 0.0
    %10989 = vmatprep.subr.mxu0 0.0
    %10990 = vmatpush1.msra.mxu0 0.0
    %10991 = vmatprep.subr.mxu0 0.0
    %10992 = vmatpush1.msra.mxu0 0.0
    %10993 = vmatprep.subr.mxu0 0.0
    %10994 = vmatpush1.msra.mxu0 0.0
    %10995 = vmatprep.subr.mxu0 0.0
    %10996 = vmatpush1.msra.mxu0 0.0
    %10997 = vmatprep.subr.mxu0 0.0
    %10998 = vmatpush1.msra.mxu0 0.0
    %10999 = vmatprep.subr.mxu0 0.0
    %11000 = vmatpush1.msra.mxu0 0.0
    %11001 = vmatprep.subr.mxu0 0.0
    %11002 = vmatpush1.msra.mxu0 0.0
    %11003 = vmatprep.subr.mxu0 0.0
    %11004 = vmatpush1.msra.mxu0 0.0
    %11005 = vmatprep.subr.mxu0 0.0
    %11006 = vmatpush1.msra.mxu0 0.0
    %11007 = vmatprep.subr.mxu0 0.0
    %11008 = vmatpush1.msra.mxu0 0.0
    %11009 = vmatprep.subr.mxu0 0.0
    %11010 = vmatpush1.msra.mxu0 0.0
    %11011 = vmatprep.subr.mxu0 0.0
    %11012 = vmatpush1.msra.mxu0 0.0
    %11013 = vmatprep.subr.mxu0 0.0
    %11014 = vmatpush1.msra.mxu0 0.0
    %11015 = vmatprep.subr.mxu0 0.0
    %11016 = vmatpush1.msra.mxu0 0.0
    %11017 = vmatprep.subr.mxu0 0.0
    %11018 = vmatpush1.msra.mxu0 0.0
    %11019 = vmatprep.subr.mxu0 0.0
    %11020 = vmatpush1.msra.mxu0 0.0
    %11021 = vmatprep.subr.mxu0 0.0
    %11022 = vmatpush1.msra.mxu0 0.0
    %11023 = vmatprep.subr.mxu0 0.0
    %11024 = vmatpush1.msra.mxu0 0.0
    %11025 = vmatprep.subr.mxu0 0.0
    %11026 = vmatpush1.msra.mxu0 0.0
    %11027 = vmatprep.subr.mxu0 0.0
    %11028 = vmatpush1.msra.mxu0 0.0
    %11029 = vmatprep.subr.mxu0 0.0
    %11030 = vmatpush1.msra.mxu0 0.0
    %11031 = vmatprep.mubr.f32.mxu0 0.0
    %11032 = vmatmul.mubr.f32.gmra.mrb[0].mxu0 %v10944
    %v11033 = vpop.f32.mrb[0].mxu0
    %v11034 = vadd.f32 %v10942, %v11033
    %v11035 = vpop.f32.mrb[0].mxu0
    %11036 = vmatprep.mubr.f32.mxu0 0.0
    %11037 = vmatmul.mubr.f32.gmra.mrb[0].mxu0 %v10947
    %v11038 = vpop.f32.mrb[0].mxu0
    %v11039 = vadd.f32 %v10942, %v11038
    %v11040 = vpop.f32.mrb[0].mxu0
    %11041 = vmatprep.mubr.f32.mxu0 0.0
    %11042 = vmatmul.mubr.f32.gmra.mrb[0].mxu0 %v10950
    %v11043 = vpop.f32.mrb[0].mxu0
    %v11044 = vadd.f32 %v10942, %v11043
    %v11045 = vpop.f32.mrb[0].mxu0
    %11046 = vmatprep.mubr.f32.mxu0 0.0
    %11047 = vmatmul.mubr.f32.gmra.mrb[0].mxu0 %v10953
    %v11048 = vpop.f32.mrb[0].mxu0
    %v11049 = vadd.f32 %v10942, %v11048
    %v11050 = vpop.f32.mrb[0].mxu0
    %11051 = vmatprep.mubr.f32.mxu0 0.0
    %11052 = vmatmul.mubr.f32.gmra.mrb[0].mxu0 %v10956
    %v11053 = vpop.f32.mrb[0].mxu0
    %v11054 = vadd.f32 %v10942, %v11053
    %v11055 = vpop.f32.mrb[0].mxu0
    %11056 = vmatprep.mubr.f32.mxu0 0.0
    %11057 = vmatmul.mubr.f32.gmra.mrb[0].mxu0 %v10959
    %v11058 = vpop.f32.mrb[0].mxu0
    %v11059 = vadd.f32 %v10942, %v11058
    %v11060 = vpop.f32.mrb[0].mxu0
    %11061 = vmatprep.mubr.f32.mxu0 0.0
    %11062 = vmatmul.mubr.f32.gmra.mrb[0].mxu0 %v10962
    %v11063 = vpop.f32.mrb[0].mxu0
    %v11064 = vadd.f32 %v10942, %v11063
    %v11065 = vpop.f32.mrb[0].mxu0
    %11066 = vmatprep.mubr.f32.mxu0 0.0
    %11067 = vmatmul.mubr.f32.gmra.mrb[0].mxu0 %v10965
    %v11068 = vpop.f32.mrb[0].mxu0
    %v11069 = vadd.f32 %v10942, %v11068
    %v11070 = vpop.f32.mrb[0].mxu0
    %11071 = vdwg.mxu0
    %v11072 = vadd.f32 %v10776, %v11034
    %v11073 = vadd.f32 %v10777, %v11039
    %v11074 = vadd.f32 %v10778, %v11044
    %v11075 = vadd.f32 %v10779, %v11049
    %v11076 = vadd.f32 %v10780, %v11054
    %v11077 = vadd.f32 %v10781, %v11059
    %v11078 = vadd.f32 %v10782, %v11064
    %v11079 = vadd.f32 %v10783, %v11069
    %v11080 = vld [vmem:[%s5 + $0x255] sm:$0x1]
    %v11081 = vld [vmem:[%s5 + $0x256] sm:$0x1]
    %v11082 = vsel %vm450, %v11072, 0.0
    %11083 = vadd.xlane.f32.xlu0 %v11082
    %v11084 = vpop.xlane.xlu0 %11083
    %v11085 = vsel %vm450, %v11073, 0.0
    %11086 = vadd.xlane.f32.xlu0 %v11085
    %v11087 = vpop.xlane.xlu0 %11086
    %v11088 = vsel %vm450, %v11074, 0.0
    %11089 = vadd.xlane.f32.xlu0 %v11088
    %v11090 = vpop.xlane.xlu0 %11089
    %v11091 = vsel %vm450, %v11075, 0.0
    %11092 = vadd.xlane.f32.xlu0 %v11091
    %v11093 = vpop.xlane.xlu0 %11092
    %v11094 = vsel %vm450, %v11076, 0.0
    %11095 = vadd.xlane.f32.xlu0 %v11094
    %v11096 = vpop.xlane.xlu0 %11095
    %v11097 = vsel %vm450, %v11077, 0.0
    %11098 = vadd.xlane.f32.xlu0 %v11097
    %v11099 = vpop.xlane.xlu0 %11098
    %v11100 = vsel %vm450, %v11078, 0.0
    %11101 = vadd.xlane.f32.xlu0 %v11100
    %v11102 = vpop.xlane.xlu0 %11101
    %v11103 = vsel %vm450, %v11079, 0.0
    %11104 = vadd.xlane.f32.xlu0 %v11103
    %v11105 = vpop.xlane.xlu0 %11104
    %v11106 = vmul.f32 %v11084, %v5618
    %v11107 = vmul.f32 %v11087, %v5618
    %v11108 = vmul.f32 %v11090, %v5618
    %v11109 = vmul.f32 %v11093, %v5618
    %v11110 = vmul.f32 %v11096, %v5618
    %v11111 = vmul.f32 %v11099, %v5618
    %v11112 = vmul.f32 %v11102, %v5618
    %v11113 = vmul.f32 %v11105, %v5618
    %v11114 = vsub.f32 %v11072, %v11106
    %v11115 = vsub.f32 %v11073, %v11107
    %v11116 = vsub.f32 %v11074, %v11108
    %v11117 = vsub.f32 %v11075, %v11109
    %v11118 = vsub.f32 %v11076, %v11110
    %v11119 = vsub.f32 %v11077, %v11111
    %v11120 = vsub.f32 %v11078, %v11112
    %v11121 = vsub.f32 %v11079, %v11113
    %v11122 = vmul.f32 %v11114, %v11114
    %v11123 = vmul.f32 %v11115, %v11115
    %v11124 = vmul.f32 %v11116, %v11116
    %v11125 = vmul.f32 %v11117, %v11117
    %v11126 = vmul.f32 %v11118, %v11118
    %v11127 = vmul.f32 %v11119, %v11119
    %v11128 = vmul.f32 %v11120, %v11120
    %v11129 = vmul.f32 %v11121, %v11121
    %v11130 = vsel %vm450, %v11122, 0.0
    %11131 = vadd.xlane.f32.xlu0 %v11130
    %v11132 = vpop.xlane.xlu0 %11131
    %v11133 = vsel %vm450, %v11123, 0.0
    %11134 = vadd.xlane.f32.xlu0 %v11133
    %v11135 = vpop.xlane.xlu0 %11134
    %v11136 = vsel %vm450, %v11124, 0.0
    %11137 = vadd.xlane.f32.xlu0 %v11136
    %v11138 = vpop.xlane.xlu0 %11137
    %v11139 = vsel %vm450, %v11125, 0.0
    %11140 = vadd.xlane.f32.xlu0 %v11139
    %v11141 = vpop.xlane.xlu0 %11140
    %v11142 = vsel %vm450, %v11126, 0.0
    %11143 = vadd.xlane.f32.xlu0 %v11142
    %v11144 = vpop.xlane.xlu0 %11143
    %v11145 = vsel %vm450, %v11127, 0.0
    %11146 = vadd.xlane.f32.xlu0 %v11145
    %v11147 = vpop.xlane.xlu0 %11146
    %v11148 = vsel %vm450, %v11128, 0.0
    %11149 = vadd.xlane.f32.xlu0 %v11148
    %v11150 = vpop.xlane.xlu0 %11149
    %v11151 = vsel %vm450, %v11129, 0.0
    %11152 = vadd.xlane.f32.xlu0 %v11151
    %v11153 = vpop.xlane.xlu0 %11152
    %v11154 = vmul.f32 %v11132, %v5618
    %v11155 = vmul.f32 %v11135, %v5618
    %v11156 = vmul.f32 %v11138, %v5618
    %v11157 = vmul.f32 %v11141, %v5618
    %v11158 = vmul.f32 %v11144, %v5618
    %v11159 = vmul.f32 %v11147, %v5618
    %v11160 = vmul.f32 %v11150, %v5618
    %v11161 = vmul.f32 %v11153, %v5618
    %v11162 = vadd.f32 %v11154, 1e-05
    %v11163 = vadd.f32 %v11155, 1e-05
    %v11164 = vadd.f32 %v11156, 1e-05
    %v11165 = vadd.f32 %v11157, 1e-05
    %v11166 = vadd.f32 %v11158, 1e-05
    %v11167 = vadd.f32 %v11159, 1e-05
    %v11168 = vadd.f32 %v11160, 1e-05
    %v11169 = vadd.f32 %v11161, 1e-05
    %v11170 = vrsqrt.pop %v11162
    %v11171 = vrsqrt.pop %v11163
    %v11172 = vrsqrt.pop %v11164
    %v11173 = vrsqrt.pop %v11165
    %v11174 = vrsqrt.pop %v11166
    %v11175 = vrsqrt.pop %v11167
    %v11176 = vrsqrt.pop %v11168
    %v11177 = vrsqrt.pop %v11169
    %v11178 = vmul.f32 %v11114, %v11170
    %v11179 = vmul.f32 %v11115, %v11171
    %v11180 = vmul.f32 %v11116, %v11172
    %v11181 = vmul.f32 %v11117, %v11173
    %v11182 = vmul.f32 %v11118, %v11174
    %v11183 = vmul.f32 %v11119, %v11175
    %v11184 = vmul.f32 %v11120, %v11176
    %v11185 = vmul.f32 %v11121, %v11177
    %v11186 = vlaneseq
    %v11187 = vshrl.u32 %v11186, 7
    %v11188 = vsub.s32 0, %v11187
    %v11189 = vrot.slane %v11080, %v11188
    %v11190 = vmul.f32 %v11178, %v11189
    %v11191 = vmul.f32 %v11179, %v11189
    %v11192 = vmul.f32 %v11180, %v11189
    %v11193 = vmul.f32 %v11181, %v11189
    %v11194 = vmul.f32 %v11182, %v11189
    %v11195 = vmul.f32 %v11183, %v11189
    %v11196 = vmul.f32 %v11184, %v11189
    %v11197 = vmul.f32 %v11185, %v11189
    %v11198 = vlaneseq
    %v11199 = vshrl.u32 %v11198, 7
    %v11200 = vsub.s32 0, %v11199
    %v11201 = vrot.slane %v11081, %v11200
    %v11202 = vadd.f32 %v11190, %v11201
    %v11203 = vadd.f32 %v11191, %v11201
    %v11204 = vadd.f32 %v11192, %v11201
    %v11205 = vadd.f32 %v11193, %v11201
    %v11206 = vadd.f32 %v11194, %v11201
    %v11207 = vadd.f32 %v11195, %v11201
    %v11208 = vadd.f32 %v11196, %v11201
    %v11209 = vadd.f32 %v11197, %v11201
    %v11210 = vld [vmem:[%s2] sm:$0x3]
    %v11212 = vsel %vm450, %v11210, 0
    %11214 = vmatprep.subr.mxu0 0.0
    %11215 = vmatpush1.msra.mxu0 %v11202
    %11216 = vmatprep.subr.mxu0 0.0
    %11217 = vmatpush1.msra.mxu0 %v11203
    %11218 = vmatprep.subr.mxu0 0.0
    %11219 = vmatpush1.msra.mxu0 %v11204
    %11220 = vmatprep.subr.mxu0 0.0
    %11221 = vmatpush1.msra.mxu0 %v11205
    %11222 = vmatprep.subr.mxu0 0.0
    %11223 = vmatpush1.msra.mxu0 %v11206
    %11224 = vmatprep.subr.mxu0 0.0
    %11225 = vmatpush1.msra.mxu0 %v11207
    %11226 = vmatprep.subr.mxu0 0.0
    %11227 = vmatpush1.msra.mxu0 %v11208
    %11228 = vmatprep.subr.mxu0 0.0
    %11229 = vmatpush1.msra.mxu0 %v11209
    %11230 = vmatprep.subr.mxu0 0.0
    %11231 = vmatpush1.msra.mxu0 0.0
    %11232 = vmatprep.subr.mxu0 0.0
    %11233 = vmatpush1.msra.mxu0 0.0
    %11234 = vmatprep.subr.mxu0 0.0
    %11235 = vmatpush1.msra.mxu0 0.0
    %11236 = vmatprep.subr.mxu0 0.0
    %11237 = vmatpush1.msra.mxu0 0.0
    %11238 = vmatprep.subr.mxu0 0.0
    %11239 = vmatpush1.msra.mxu0 0.0
    %11240 = vmatprep.subr.mxu0 0.0
    %11241 = vmatpush1.msra.mxu0 0.0
    %11242 = vmatprep.subr.mxu0 0.0
    %11243 = vmatpush1.msra.mxu0 0.0
    %11244 = vmatprep.subr.mxu0 0.0
    %11245 = vmatpush1.msra.mxu0 0.0
    %11246 = vmatprep.subr.mxu0 0.0
    %11247 = vmatpush1.msra.mxu0 0.0
    %11248 = vmatprep.subr.mxu0 0.0
    %11249 = vmatpush1.msra.mxu0 0.0
    %11250 = vmatprep.subr.mxu0 0.0
    %11251 = vmatpush1.msra.mxu0 0.0
    %11252 = vmatprep.subr.mxu0 0.0
    %11253 = vmatpush1.msra.mxu0 0.0
    %11254 = vmatprep.subr.mxu0 0.0
    %11255 = vmatpush1.msra.mxu0 0.0
    %11256 = vmatprep.subr.mxu0 0.0
    %11257 = vmatpush1.msra.mxu0 0.0
    %11258 = vmatprep.subr.mxu0 0.0
    %11259 = vmatpush1.msra.mxu0 0.0
    %11260 = vmatprep.subr.mxu0 0.0
    %11261 = vmatpush1.msra.mxu0 0.0
    %11262 = vmatprep.subr.mxu0 0.0
    %11263 = vmatpush1.msra.mxu0 0.0
    %11264 = vmatprep.subr.mxu0 0.0
    %11265 = vmatpush1.msra.mxu0 0.0
    %11266 = vmatprep.subr.mxu0 0.0
    %11267 = vmatpush1.msra.mxu0 0.0
    %11268 = vmatprep.subr.mxu0 0.0
    %11269 = vmatpush1.msra.mxu0 0.0
    %11270 = vmatprep.subr.mxu0 0.0
    %11271 = vmatpush1.msra.mxu0 0.0
    %11272 = vmatprep.subr.mxu0 0.0
    %11273 = vmatpush1.msra.mxu0 0.0
    %11274 = vmatprep.subr.mxu0 0.0
    %11275 = vmatpush1.msra.mxu0 0.0
    %11276 = vmatprep.subr.mxu0 0.0
    %11277 = vmatpush1.msra.mxu0 0.0
    %11278 = vmatprep.mubr.f32.mxu0 0.0
    %11279 = vmatmul.mubr.f32.gmra.mrb[0].mxu0 %v11212
    %v11280 = vpop.f32.mrb[0].mxu0
    %v11281 = vadd.f32 0.0, %v11280
    %v11282 = vpop.f32.mrb[0].mxu0
    %11283 = vdwg.mxu0
    %v11284 = vld [vmem:[%s5 + $0x2c8] sm:$0xff]
    %v11285 = vld [vmem:[%s5 + $0x2d0] sm:$0xff]
    %v11286 = vld [vmem:[%s5 + $0x2d8] sm:$0xff]
    %v11287 = vld [vmem:[%s5 + $0x2e0] sm:$0xff]
    %v11288 = vld [vmem:[%s5 + $0x2e8] sm:$0xff]
    %v11289 = vld [vmem:[%s5 + $0x2f0] sm:$0xff]
    %v11290 = vld [vmem:[%s5 + $0x2f8] sm:$0xff]
    %v11291 = vld [vmem:[%s5 + $0x300] sm:$0xff]
    %v11292 = vld [vmem:[%s5 + $0x308] sm:$0x1]
    %v11293 = vlaneseq
    %v11294 = vshrl.u32 %v11293, 7
    %v11295 = vsub.s32 0, %v11294
    %v11296 = vrot.slane %v11292, %v11295
    %v11298 = vsel %vm450, %v11281, 0
    %11300 = vmatprep.subr.mxu0 0.0
    %11301 = vmatpush1.msra.mxu0 %v11284
    %11302 = vmatprep.subr.mxu0 0.0
    %11303 = vmatpush1.msra.mxu0 %v11285
    %11304 = vmatprep.subr.mxu0 0.0
    %11305 = vmatpush1.msra.mxu0 %v11286
    %11306 = vmatprep.subr.mxu0 0.0
    %11307 = vmatpush1.msra.mxu0 %v11287
    %11308 = vmatprep.subr.mxu0 0.0
    %11309 = vmatpush1.msra.mxu0 %v11288
    %11310 = vmatprep.subr.mxu0 0.0
    %11311 = vmatpush1.msra.mxu0 %v11289
    %11312 = vmatprep.subr.mxu0 0.0
    %11313 = vmatpush1.msra.mxu0 %v11290
    %11314 = vmatprep.subr.mxu0 0.0
    %11315 = vmatpush1.msra.mxu0 %v11291
    %11316 = vmatprep.subr.mxu0 0.0
    %11317 = vmatpush1.msra.mxu0 0.0
    %11318 = vmatprep.subr.mxu0 0.0
    %11319 = vmatpush1.msra.mxu0 0.0
    %11320 = vmatprep.subr.mxu0 0.0
    %11321 = vmatpush1.msra.mxu0 0.0
    %11322 = vmatprep.subr.mxu0 0.0
    %11323 = vmatpush1.msra.mxu0 0.0
    %11324 = vmatprep.subr.mxu0 0.0
    %11325 = vmatpush1.msra.mxu0 0.0
    %11326 = vmatprep.subr.mxu0 0.0
    %11327 = vmatpush1.msra.mxu0 0.0
    %11328 = vmatprep.subr.mxu0 0.0
    %11329 = vmatpush1.msra.mxu0 0.0
    %11330 = vmatprep.subr.mxu0 0.0
    %11331 = vmatpush1.msra.mxu0 0.0
    %11332 = vmatprep.subr.mxu0 0.0
    %11333 = vmatpush1.msra.mxu0 0.0
    %11334 = vmatprep.subr.mxu0 0.0
    %11335 = vmatpush1.msra.mxu0 0.0
    %11336 = vmatprep.subr.mxu0 0.0
    %11337 = vmatpush1.msra.mxu0 0.0
    %11338 = vmatprep.subr.mxu0 0.0
    %11339 = vmatpush1.msra.mxu0 0.0
    %11340 = vmatprep.subr.mxu0 0.0
    %11341 = vmatpush1.msra.mxu0 0.0
    %11342 = vmatprep.subr.mxu0 0.0
    %11343 = vmatpush1.msra.mxu0 0.0
    %11344 = vmatprep.subr.mxu0 0.0
    %11345 = vmatpush1.msra.mxu0 0.0
    %11346 = vmatprep.subr.mxu0 0.0
    %11347 = vmatpush1.msra.mxu0 0.0
    %11348 = vmatprep.subr.mxu0 0.0
    %11349 = vmatpush1.msra.mxu0 0.0
    %11350 = vmatprep.subr.mxu0 0.0
    %11351 = vmatpush1.msra.mxu0 0.0
    %11352 = vmatprep.subr.mxu0 0.0
    %11353 = vmatpush1.msra.mxu0 0.0
    %11354 = vmatprep.subr.mxu0 0.0
    %11355 = vmatpush1.msra.mxu0 0.0
    %11356 = vmatprep.subr.mxu0 0.0
    %11357 = vmatpush1.msra.mxu0 0.0
    %11358 = vmatprep.subr.mxu0 0.0
    %11359 = vmatpush1.msra.mxu0 0.0
    %11360 = vmatprep.subr.mxu0 0.0
    %11361 = vmatpush1.msra.mxu0 0.0
    %11362 = vmatprep.subr.mxu0 0.0
    %11363 = vmatpush1.msra.mxu0 0.0
    %11364 = vmatprep.mubr.f32.mxu0 0.0
    %11365 = vmatmul.mubr.f32.gmra.mrb[0].mxu0 %v11298
    %v11366 = vpop.f32.mrb[0].mxu0
    %v11367 = vadd.f32 %v11296, %v11366
    %v11368 = vpop.f32.mrb[0].mxu0
    %11369 = vdwg.mxu0
    %vm11370 = vcmask 17408
    %11371 = vst.msk [vmem:[#allocation4] sm:$0x3] %vm11370, %v11367
    // Predicated region
    $region26: #{tpu_custom_call.1} parent=1 // pred_check
      _
    $region27: #{tpu_custom_call.1} parent=1 // pred_check_branch
      %11373 = sbr.rel (0) target = $region29
    $region28: #{tpu_custom_call.1} parent=1 // pred_region
      %s11375 = ssub.s32 32, 32
      %11376 = vsyncadd [#allocation5], %s11375
      %s11378 = sshll.u32 [#allocation4], 4
      %s11379 = int_to_ptr.vmem [resolvable:$true] %s11378
      %11381 = dma.vmem_to_hbm [thread:$0]  %s11379, 32, %s6, [#allocation5]
    $region29: #{tpu_custom_call.1} parent=1 // pred_fallthru
      _
    // Predicated region
    $region30: #{tpu_custom_call.1} parent=1 // pred_check
      _
    $region31: #{tpu_custom_call.1} parent=1 // pred_check_branch
      %11383 = sbr.rel (0) target = $region33
    $region32: #{tpu_custom_call.1} parent=1 // pred_region
      %11384 = dma.done [#allocation5], 32
    $region33: #{tpu_custom_call.1} parent=1 // pred_fallthru
      _
    %11385 = vsyncpa [#allocation5], 1

</llo_original>
